<compile_context>
chip_gen: v7x
topology: tpu7x:2x2x1
jax: 0.10.0
libtpu: 0.0.40
codegen_flags: <defaults>
</compile_context>

<pallas_src>
import jax
import jax.numpy as jnp
from jax import lax
from jax.experimental import pallas as pl
from jax.experimental.pallas import tpu as pltpu


_VMEM_LIMIT = 48 * 1024 * 1024  # fits v5e/v6e (128 MiB) and v7x (64 MiB) with headroom


def _pick_tile(n, candidates):
    for c in candidates:
        if n % c == 0:
            return c
    return n


# ----------------------------------------------------------------------------
# Kernel 1: input projection (pregates), hoisted out of the recurrent loop.
#   pregates = x @ W_ih^T + (b_ih + b_hh)   as one large tiled MXU matmul.
# ----------------------------------------------------------------------------
def _pregates_kernel(x_ref, wih_t_ref, b_ref, out_ref):
    out_ref[...] = (
        jnp.dot(x_ref[...], wih_t_ref[...], preferred_element_type=jnp.float32)
        + b_ref[...]
    ).astype(out_ref.dtype)


def input_projection(x_flat, wih_t, bias):
    """x_flat: (R, In) bf16; wih_t: (In, 4H) bf16; bias: (1, 4H) f32 -> (R, 4H) f32."""
    R, In = x_flat.shape
    G = wih_t.shape[1]
    tr = _pick_tile(R, (512, 256, 128, 64, 32, 16, 8))
    return pl.pallas_call(
        _pregates_kernel,
        out_shape=jax.ShapeDtypeStruct((R, G), jnp.float32),
        grid=(R // tr,),
        in_specs=[
            pl.BlockSpec((tr, In), lambda r: (r, 0)),
            # Grid-invariant operands: whole-array VMEM resident, single-buffered.
            pl.BlockSpec(memory_space=pltpu.MemorySpace.VMEM),   # W_ih^T (bf16)
            pl.BlockSpec(memory_space=pltpu.MemorySpace.VMEM),   # bias (f32)
        ],
        out_specs=pl.BlockSpec((tr, G), lambda r: (r, 0)),
        compiler_params=pltpu.CompilerParams(
            dimension_semantics=("parallel",),
            vmem_limit_bytes=_VMEM_LIMIT),
    )(x_flat, wih_t, bias)


# ----------------------------------------------------------------------------
# Kernel 2: LSTM recurrence over time.  Grid iterates over time CHUNKS of Tc
# steps; h/c persist in VMEM scratch across grid iterations; per step only
# h_prev @ W_hh^T + pregates[t] (input projection already done by kernel 1).
# ----------------------------------------------------------------------------
def _lstm_scan_kernel(pg_ref, h0_ref, c0_ref, whh_t_ref,
                      y_ref, hT_ref, cT_ref, h_sc, c_sc):
    tc = pl.program_id(0)
    H = h_sc.shape[-1]
    Tc = pg_ref.shape[0]

    @pl.when(tc == 0)
    def _():
        h_sc[...] = h0_ref[...]
        c_sc[...] = c0_ref[...]

    whh_t = whh_t_ref[...]                         # (H, 4H) bf16, VMEM-resident

    def step(s, carry):
        h, c = carry                               # f32 (B, H) recurrent state
        gates = pg_ref[s] + jnp.dot(h.astype(whh_t.dtype), whh_t,
                                    preferred_element_type=jnp.float32)
        # PyTorch gate order [i, f, g, o]; slices are 128-aligned for H % 128 == 0.
        i = jax.nn.sigmoid(gates[:, 0 * H:1 * H])
        f = jax.nn.sigmoid(gates[:, 1 * H:2 * H])
        g = jnp.tanh(gates[:, 2 * H:3 * H])
        o = jax.nn.sigmoid(gates[:, 3 * H:4 * H])
        c_new = f * c + i * g
        h_new = o * jnp.tanh(c_new)
        y_ref[s] = h_new.astype(y_ref.dtype)       # bf16 hidden stream
        return h_new, c_new

    h, c = lax.fori_loop(0, Tc, step, (h_sc[...], c_sc[...]), unroll=True)
    h_sc[...] = h
    c_sc[...] = c

    @pl.when(tc == pl.num_programs(0) - 1)
    def _():
        hT_ref[...] = h.astype(hT_ref.dtype)
        cT_ref[...] = c.astype(cT_ref.dtype)


def lstm_layer_scan(pregates, h0, c0, whh_t):
    """pregates: (T, B, 4H) f32; h0/c0: (B, H) f32; whh_t: (H, 4H) bf16."""
    T, B, G = pregates.shape
    H = h0.shape[-1]
    Tc = _pick_tile(T, (16, 8, 4, 2, 1))           # time steps per grid iteration
    out_shapes = (
        jax.ShapeDtypeStruct((T, B, H), jnp.bfloat16),   # per-step hidden stream
        jax.ShapeDtypeStruct((B, H), jnp.float32),       # final h
        jax.ShapeDtypeStruct((B, H), jnp.float32),       # final c
    )
    return pl.pallas_call(
        _lstm_scan_kernel,
        out_shape=out_shapes,
        grid=(T // Tc,),
        in_specs=[
            pl.BlockSpec((Tc, B, G), lambda t: (t, 0, 0)),        # pregates chunk (streamed)
            pl.BlockSpec(memory_space=pltpu.MemorySpace.VMEM),    # h0 (single-buffered)
            pl.BlockSpec(memory_space=pltpu.MemorySpace.VMEM),    # c0 (single-buffered)
            pl.BlockSpec(memory_space=pltpu.MemorySpace.VMEM),    # W_hh^T (single-buffered)
        ],
        out_specs=(
            pl.BlockSpec((Tc, B, H), lambda t: (t, 0, 0)),        # y chunk
            pl.BlockSpec((B, H), lambda t: (0, 0)),               # hT
            pl.BlockSpec((B, H), lambda t: (0, 0)),               # cT
        ),
        scratch_shapes=[
            pltpu.VMEM((B, H), jnp.float32),                      # h state (f32)
            pltpu.VMEM((B, H), jnp.float32),                      # c state (f32)
        ],
        compiler_params=pltpu.CompilerParams(
            dimension_semantics=("arbitrary",),                   # recurrent axis
            vmem_limit_bytes=_VMEM_LIMIT),
    )(pregates, h0, c0, whh_t)


# ----------------------------------------------------------------------------
# Kernels 3+4: decoder Linear + log_softmax, tiled over (rows, vocab).
# Pass 1: online max / sum-exp over the vocab axis -> per-row log-sum-exp.
# Pass 2: recompute the logits tile and write (logits - lse).
# ----------------------------------------------------------------------------
def _dec_lse_kernel(x_ref, wt_ref, b_ref, lse_ref, m_sc, l_sc):
    v = pl.program_id(1)

    @pl.when(v == 0)
    def _():
        m_sc[...] = jnp.full(m_sc.shape, -jnp.inf, m_sc.dtype)
        l_sc[...] = jnp.zeros(l_sc.shape, l_sc.dtype)

    logits = (jnp.dot(x_ref[...], wt_ref[...], preferred_element_type=jnp.float32)
              + b_ref[...])
    m_prev = m_sc[...]
    m_new = jnp.maximum(m_prev, jnp.max(logits, axis=-1, keepdims=True))
    l_sc[...] = (l_sc[...] * jnp.exp(m_prev - m_new)
                 + jnp.sum(jnp.exp(logits - m_new), axis=-1, keepdims=True))
    m_sc[...] = m_new

    @pl.when(v == pl.num_programs(1) - 1)
    def _():
        lse_ref[...] = m_sc[...] + jnp.log(l_sc[...])


def _dec_norm_kernel(x_ref, wt_ref, b_ref, lse_ref, out_ref):
    logits = (jnp.dot(x_ref[...], wt_ref[...], preferred_element_type=jnp.float32)
              + b_ref[...])
    out_ref[...] = (logits - lse_ref[...]).astype(out_ref.dtype)


def decode_log_softmax(x_flat, dec_wt, dec_b):
    """x_flat: (N, H) bf16; dec_wt: (H, V) bf16; dec_b: (1, V) f32 -> (N, V) f32 log-probs."""
    N, H = x_flat.shape
    V = dec_wt.shape[1]
    tn = _pick_tile(N, (256, 128, 64, 32, 16, 8))
    tv = _pick_tile(V, (512, 256, 128))
    grid = (N // tn, V // tv)

    x_spec = pl.BlockSpec((tn, H), lambda n, v: (n, 0))
    w_spec = pl.BlockSpec((H, tv), lambda n, v: (0, v))
    b_spec = pl.BlockSpec((1, tv), lambda n, v: (0, v))
    lse_spec = pl.BlockSpec((tn, 1), lambda n, v: (n, 0))

    # Pass 1: per-row log-sum-exp (online accumulation across vocab tiles).
    lse = pl.pallas_call(
        _dec_lse_kernel,
        out_shape=jax.ShapeDtypeStruct((N, 1), jnp.float32),
        grid=grid,
        in_specs=[x_spec, w_spec, b_spec],
        out_specs=lse_spec,
        scratch_shapes=[pltpu.VMEM((tn, 1), jnp.float32),    # running max
                        pltpu.VMEM((tn, 1), jnp.float32)],   # running sum-exp
        compiler_params=pltpu.CompilerParams(
            dimension_semantics=("parallel", "arbitrary"),
            vmem_limit_bytes=_VMEM_LIMIT),
    )(x_flat, dec_wt, dec_b)

    # Pass 2: recompute logits tile and normalize.
    return pl.pallas_call(
        _dec_norm_kernel,
        out_shape=jax.ShapeDtypeStruct((N, V), jnp.float32),
        grid=grid,
        in_specs=[x_spec, w_spec, b_spec, lse_spec],
        out_specs=pl.BlockSpec((tn, tv), lambda n, v: (n, v)),
        compiler_params=pltpu.CompilerParams(
            dimension_semantics=("parallel", "parallel"),
            vmem_limit_bytes=_VMEM_LIMIT),
    )(x_flat, dec_wt, dec_b, lse)


# ----------------------------------------------------------------------------
# Params + full model forward
# ----------------------------------------------------------------------------
def init_params(key, ntoken, ninp, nhid, nlayers):
    ks = jax.random.split(key, 3 + 4 * nlayers)
    initrange = 0.1
    stdv = 1.0 / float(nhid) ** 0.5
    params = {
        # Embedding table kept f32 for the gather; activations cast to bf16 for the MXU.
        "enc_w": jax.random.uniform(ks[0], (ntoken, ninp), jnp.float32,
                                    -initrange, initrange),
        # Decoder weight stored pre-transposed (H, V) in bf16; bias as an (1, V) row.
        "dec_wt": jax.random.uniform(ks[1], (ntoken, nhid), jnp.float32,
                                     -initrange, initrange).T.astype(jnp.bfloat16),
        "dec_b": jax.random.uniform(ks[2], (1, ntoken), jnp.float32, -stdv, stdv),
        "lstm": [],
    }
    for l in range(nlayers):
        in_sz = ninp if l == 0 else nhid
        k0, k1, k2, k3 = ks[3 + 4 * l: 7 + 4 * l]
        w_ih = jax.random.uniform(k0, (4 * nhid, in_sz), jnp.float32, -stdv, stdv)
        w_hh = jax.random.uniform(k1, (4 * nhid, nhid), jnp.float32, -stdv, stdv)
        b_ih = jax.random.uniform(k2, (4 * nhid,), jnp.float32, -stdv, stdv)
        b_hh = jax.random.uniform(k3, (4 * nhid,), jnp.float32, -stdv, stdv)
        params["lstm"].append({
            # Pre-transposed bf16 weights and pre-summed f32 bias: no per-forward
            # HBM transpose / bias add.
            "wih_t": w_ih.T.astype(jnp.bfloat16),          # (In, 4H)
            "whh_t": w_hh.T.astype(jnp.bfloat16),          # (H, 4H)
            "bias": (b_ih + b_hh).reshape(1, 4 * nhid),    # (1, 4H) f32
        })
    return params


@jax.jit
def rnn_model_forward(params, tokens, h0, c0):
    """tokens: (T, B) int32; h0/c0: (nlayers, B, H).
    Returns (log_probs (T*B, ntoken), (hT, cT)) — matches RNNModel('LSTM') eval forward."""
    T, B = tokens.shape
    # Embedding gather (plain-JAX glue). Dropout = identity in eval mode.
    x = params["enc_w"][tokens].astype(jnp.bfloat16)           # (T, B, ninp) bf16

    hs, cs = [], []
    for l, lw in enumerate(params["lstm"]):
        In = x.shape[-1]
        pre = input_projection(x.reshape(T * B, In), lw["wih_t"], lw["bias"])
        pre = pre.reshape(T, B, -1)                            # (T, B, 4H) f32
        y, h_l, c_l = lstm_layer_scan(pre, h0[l], c0[l], lw["whh_t"])
        x = y                                                  # (T, B, H) bf16
        hs.append(h_l)
        cs.append(c_l)
    hT = jnp.stack(hs, axis=0)
    cT = jnp.stack(cs, axis=0)

    H = x.shape[-1]
    log_probs = decode_log_softmax(x.reshape(T * B, H),
                                   params["dec_wt"], params["dec_b"])
    return log_probs, (hT, cT)


# Pure-JAX reference with identical dtype handling (bf16 matmul inputs, f32 state).
@jax.jit
def _reference_forward(params, tokens, h0, c0):
    T, B = tokens.shape
    x = params["enc_w"][tokens].astype(jnp.bfloat16)
    hs, cs = [], []
    for l, lw in enumerate(params["lstm"]):
        H = lw["whh_t"].shape[0]
        pre = (jnp.einsum("tbi,ig->tbg", x, lw["wih_t"],
                          preferred_element_type=jnp.float32) + lw["bias"])
        h, c = h0[l], c0[l]
        ys = []
        for t in range(T):
            gates = pre[t] + jnp.dot(h.astype(jnp.bfloat16), lw["whh_t"],
                                     preferred_element_type=jnp.float32)
            i = jax.nn.sigmoid(gates[:, 0 * H:1 * H])
            f = jax.nn.sigmoid(gates[:, 1 * H:2 * H])
            g = jnp.tanh(gates[:, 2 * H:3 * H])
            o = jax.nn.sigmoid(gates[:, 3 * H:4 * H])
            c = f * c + i * g
            h = o * jnp.tanh(c)
            ys.append(h.astype(jnp.bfloat16))
        x = jnp.stack(ys, axis=0)
        hs.append(h)
        cs.append(c)
    logits = (jnp.einsum("nh,hv->nv", x.reshape(T * B, -1), params["dec_wt"],
                         preferred_element_type=jnp.float32) + params["dec_b"])
    return jax.nn.log_softmax(logits, axis=-1), (jnp.stack(hs), jnp.stack(cs))


if __name__ == "__main__":
    # Lane-dense small config: nhid/ninp multiples of 128, batch >= 8, vocab a
    # multiple of 128 (3 vocab tiles -> exercises online log-sum-exp accumulation).
    ntoken, ninp, nhid, nlayers = 384, 128, 128, 2
    seq_len, batch = 32, 8

    key = jax.random.PRNGKey(0)
    k_params, k_tok = jax.random.split(key)
    params = init_params(k_params, ntoken, ninp, nhid, nlayers)

    tokens = jax.random.randint(k_tok, (seq_len, batch), 0, ntoken, dtype=jnp.int32)
    h0 = jnp.zeros((nlayers, batch, nhid), jnp.float32)
    c0 = jnp.zeros((nlayers, batch, nhid), jnp.float32)

    log_probs, (hT, cT) = rnn_model_forward(params, tokens, h0, c0)
    jax.block_until_ready((log_probs, hT, cT))

    assert log_probs.shape == (seq_len * batch, ntoken)
    assert hT.shape == (nlayers, batch, nhid) and cT.shape == (nlayers, batch, nhid)
    assert bool(jnp.all(jnp.isfinite(log_probs)))
    # log_softmax rows should sum (in prob space) to ~1
    assert jnp.allclose(jnp.sum(jnp.exp(log_probs), axis=1), 1.0, atol=1e-3)

    # Cross-check against the pure-JAX reference (same bf16/f32 dtype policy).
    ref_lp, (ref_h, ref_c) = _reference_forward(params, tokens, h0, c0)
    assert jnp.allclose(log_probs, ref_lp, atol=5e-3, rtol=5e-3)
    assert jnp.allclose(hT, ref_h, atol=5e-3, rtol=5e-3)
    assert jnp.allclose(cT, ref_c, atol=5e-3, rtol=5e-3)

    print("KERNEL_OK")
</pallas_src>

<mosaic_0001>
module attributes {stable_mosaic.version = 11 : i64} {
  func.func @_dec_lse_kernel(%arg0: i32, %arg1: i32, %arg2: memref<256x128xbf16, #tpu.memory_space<vmem>>, %arg3: memref<128x128xbf16, #tpu.memory_space<vmem>>, %arg4: memref<1x128xf32, #tpu.memory_space<vmem>>, %arg5: memref<256x1xf32, #tpu.memory_space<vmem>>, %arg6: memref<256x1xf32, #tpu.memory_space<vmem>>, %arg7: memref<256x1xf32, #tpu.memory_space<vmem>>) attributes {dimension_semantics = [#tpu.dimension_semantics<parallel>, #tpu.dimension_semantics<arbitrary>], iteration_bounds = array<i64: 1, 3>, scalar_prefetch = 0 : i64, scratch_operands = 2 : i64, tpu.core_type = #tpu.core_type<tc>, window_params = [{transform_indices = @transform_0, window_bounds = array<i64: 256, 128>}, {transform_indices = @transform_1, window_bounds = array<i64: 128, 128>}, {transform_indices = @transform_2, window_bounds = array<i64: 1, 128>}, {transform_indices = @transform_3, window_bounds = array<i64: 256, 1>}]} {
    %c0_i32 = arith.constant 0 : i32
    %0 = arith.cmpi eq, %arg1, %c0_i32 : i32
    %1 = arith.extui %0 : i1 to i32
    %c0_i32_0 = arith.constant 0 : i32
    %2 = arith.cmpi ne, %1, %c0_i32_0 : i32
    scf.if %2 {
      %cst_17 = arith.constant 0xFF800000 : f32
      %28 = vector.broadcast %cst_17 : f32 to vector<256x1xf32>
      %c0_18 = arith.constant 0 : index
      %c0_19 = arith.constant 0 : index
      %29 = vector.load %arg6[%c0_18, %c0_19] : memref<256x1xf32, #tpu.memory_space<vmem>>, vector<256x1xf32>
      tpu.vector_store %arg6[%c0_18, %c0_19], %28 {strides = array<i32>} : memref<256x1xf32, #tpu.memory_space<vmem>>, vector<256x1xf32>,
      %cst_20 = arith.constant 0.000000e+00 : f32
      %30 = vector.broadcast %cst_20 : f32 to vector<256x1xf32>
      %c0_21 = arith.constant 0 : index
      %c0_22 = arith.constant 0 : index
      %31 = vector.load %arg7[%c0_21, %c0_22] : memref<256x1xf32, #tpu.memory_space<vmem>>, vector<256x1xf32>
      tpu.vector_store %arg7[%c0_21, %c0_22], %30 {strides = array<i32>} : memref<256x1xf32, #tpu.memory_space<vmem>>, vector<256x1xf32>,
    } else {
    }
    %c0 = arith.constant 0 : index
    %c0_1 = arith.constant 0 : index
    %3 = vector.load %arg2[%c0, %c0_1] : memref<256x128xbf16, #tpu.memory_space<vmem>>, vector<256x128xbf16>
    %c0_2 = arith.constant 0 : index
    %c0_3 = arith.constant 0 : index
    %4 = vector.load %arg3[%c0_2, %c0_3] : memref<128x128xbf16, #tpu.memory_space<vmem>>, vector<128x128xbf16>
    %cst = arith.constant dense<0.000000e+00> : vector<256x128xf32>
    %5 = tpu.matmul %3, %4, %cst {dimension_numbers = #tpu.dot_dimension_numbers<[1], [0], [0], [1], [0, 0, 1, 1], [], []>} : vector<256x128xbf16>, vector<128x128xbf16>, vector<256x128xf32> -> vector<256x128xf32>
    %c0_4 = arith.constant 0 : index
    %c0_5 = arith.constant 0 : index
    %6 = vector.load %arg4[%c0_4, %c0_5] : memref<1x128xf32, #tpu.memory_space<vmem>>, vector<1x128xf32>
    %7 = vector.broadcast %6 : vector<1x128xf32> to vector<256x128xf32>
    %8 = arith.addf %5, %7 : vector<256x128xf32>
    %c0_6 = arith.constant 0 : index
    %c0_7 = arith.constant 0 : index
    %9 = vector.load %arg6[%c0_6, %c0_7] : memref<256x1xf32, #tpu.memory_space<vmem>>, vector<256x1xf32>
    %cst_8 = arith.constant dense<0xFF800000> : vector<256xf32>
    %10 = vector.multi_reduction <maximumf>, %8, %cst_8 [1] : vector<256x128xf32> to vector<256xf32>
    %11 = vector.shape_cast %10 : vector<256xf32> to vector<256x1xf32>
    %12 = arith.maximumf %9, %11 : vector<256x1xf32>
    %c0_9 = arith.constant 0 : index
    %c0_10 = arith.constant 0 : index
    %13 = vector.load %arg7[%c0_9, %c0_10] : memref<256x1xf32, #tpu.memory_space<vmem>>, vector<256x1xf32>
    %14 = arith.subf %9, %12 : vector<256x1xf32>
    %15 = math.exp %14 : vector<256x1xf32>
    %16 = arith.mulf %13, %15 : vector<256x1xf32>
    %17 = vector.broadcast %12 : vector<256x1xf32> to vector<256x128xf32>
    %18 = arith.subf %8, %17 : vector<256x128xf32>
    %19 = math.exp %18 : vector<256x128xf32>
    %cst_11 = arith.constant dense<0.000000e+00> : vector<256xf32>
    %20 = vector.multi_reduction <add>, %19, %cst_11 [1] : vector<256x128xf32> to vector<256xf32>
    %21 = vector.shape_cast %20 : vector<256xf32> to vector<256x1xf32>
    %22 = arith.addf %16, %21 : vector<256x1xf32>
    %c0_12 = arith.constant 0 : index
    %c0_13 = arith.constant 0 : index
    %23 = vector.load %arg7[%c0_12, %c0_13] : memref<256x1xf32, #tpu.memory_space<vmem>>, vector<256x1xf32>
    tpu.vector_store %arg7[%c0_12, %c0_13], %22 {strides = array<i32>} : memref<256x1xf32, #tpu.memory_space<vmem>>, vector<256x1xf32>,
    %c0_14 = arith.constant 0 : index
    %c0_15 = arith.constant 0 : index
    %24 = vector.load %arg6[%c0_14, %c0_15] : memref<256x1xf32, #tpu.memory_space<vmem>>, vector<256x1xf32>
    tpu.vector_store %arg6[%c0_14, %c0_15], %12 {strides = array<i32>} : memref<256x1xf32, #tpu.memory_space<vmem>>, vector<256x1xf32>,
    %c2_i32 = arith.constant 2 : i32
    %25 = arith.cmpi eq, %arg1, %c2_i32 : i32
    %26 = arith.extui %25 : i1 to i32
    %c0_i32_16 = arith.constant 0 : i32
    %27 = arith.cmpi ne, %26, %c0_i32_16 : i32
    scf.if %27 {
      %c0_17 = arith.constant 0 : index
      %c0_18 = arith.constant 0 : index
      %28 = vector.load %arg6[%c0_17, %c0_18] : memref<256x1xf32, #tpu.memory_space<vmem>>, vector<256x1xf32>
      %c0_19 = arith.constant 0 : index
      %c0_20 = arith.constant 0 : index
      %29 = vector.load %arg7[%c0_19, %c0_20] : memref<256x1xf32, #tpu.memory_space<vmem>>, vector<256x1xf32>
      %30 = math.log %29 : vector<256x1xf32>
      %31 = arith.addf %28, %30 : vector<256x1xf32>
      %c0_21 = arith.constant 0 : index
      %c0_22 = arith.constant 0 : index
      %32 = vector.load %arg5[%c0_21, %c0_22] : memref<256x1xf32, #tpu.memory_space<vmem>>, vector<256x1xf32>
      tpu.vector_store %arg5[%c0_21, %c0_22], %31 {strides = array<i32>} : memref<256x1xf32, #tpu.memory_space<vmem>>, vector<256x1xf32>,
    } else {
    }
    return
  }
  func.func @transform_0(%arg0: i32, %arg1: i32) -> (i32, i32) {
    %c0_i32 = arith.constant 0 : i32
    %c0_i32_0 = arith.constant 0 : i32
    return %arg0, %c0_i32 : i32, i32
  }
  func.func @transform_1(%arg0: i32, %arg1: i32) -> (i32, i32) {
    %c0_i32 = arith.constant 0 : i32
    %c0_i32_0 = arith.constant 0 : i32
    return %c0_i32, %arg1 : i32, i32
  }
  func.func @transform_2(%arg0: i32, %arg1: i32) -> (i32, i32) {
    %c0_i32 = arith.constant 0 : i32
    %c0_i32_0 = arith.constant 0 : i32
    return %c0_i32, %arg1 : i32, i32
  }
  func.func @transform_3(%arg0: i32, %arg1: i32) -> (i32, i32) {
    %c0_i32 = arith.constant 0 : i32
    %c0_i32_0 = arith.constant 0 : i32
    return %arg0, %c0_i32 : i32, i32
  }
}

module attributes {stable_mosaic.version = 11 : i64} {
  func.func @_pregates_kernel(%arg0: i32, %arg1: memref<256x128xbf16, #tpu.memory_space<vmem>>, %arg2: memref<128x512xbf16, #tpu.memory_space<vmem>>, %arg3: memref<1x512xf32, #tpu.memory_space<vmem>>, %arg4: memref<256x512xf32, #tpu.memory_space<vmem>>) attributes {dimension_semantics = [#tpu.dimension_semantics<parallel>], iteration_bounds = array<i64: 1>, scalar_prefetch = 0 : i64, scratch_operands = 0 : i64, tpu.core_type = #tpu.core_type<tc>, window_params = [{transform_indices = @transform_0, window_bounds = array<i64: 256, 128>}, {pipeline_mode = #tpu.pipeline_mode<synchronous>, transform_indices = @transform_1, window_bounds = array<i64: 128, 512>}, {pipeline_mode = #tpu.pipeline_mode<synchronous>, transform_indices = @transform_2, window_bounds = array<i64: 1, 512>}, {transform_indices = @transform_3, window_bounds = array<i64: 256, 512>}]} {
    %c0 = arith.constant 0 : index
    %c0_0 = arith.constant 0 : index
    %0 = vector.load %arg1[%c0, %c0_0] : memref<256x128xbf16, #tpu.memory_space<vmem>>, vector<256x128xbf16>
    %c0_1 = arith.constant 0 : index
    %c0_2 = arith.constant 0 : index
    %1 = vector.load %arg2[%c0_1, %c0_2] : memref<128x512xbf16, #tpu.memory_space<vmem>>, vector<128x512xbf16>
    %cst = arith.constant dense<0.000000e+00> : vector<256x512xf32>
    %2 = tpu.matmul %0, %1, %cst {dimension_numbers = #tpu.dot_dimension_numbers<[1], [0], [0], [1], [0, 0, 1, 1], [], []>} : vector<256x128xbf16>, vector<128x512xbf16>, vector<256x512xf32> -> vector<256x512xf32>
    %c0_3 = arith.constant 0 : index
    %c0_4 = arith.constant 0 : index
    %3 = vector.load %arg3[%c0_3, %c0_4] : memref<1x512xf32, #tpu.memory_space<vmem>>, vector<1x512xf32>
    %4 = vector.broadcast %3 : vector<1x512xf32> to vector<256x512xf32>
    %5 = arith.addf %2, %4 : vector<256x512xf32>
    %c0_5 = arith.constant 0 : index
    %c0_6 = arith.constant 0 : index
    %6 = vector.load %arg4[%c0_5, %c0_6] : memref<256x512xf32, #tpu.memory_space<vmem>>, vector<256x512xf32>
    tpu.vector_store %arg4[%c0_5, %c0_6], %5 {strides = array<i32>} : memref<256x512xf32, #tpu.memory_space<vmem>>, vector<256x512xf32>,
    return
  }
  func.func @transform_0(%arg0: i32) -> (i32, i32) {
    %c0_i32 = arith.constant 0 : i32
    %c0_i32_0 = arith.constant 0 : i32
    return %arg0, %c0_i32 : i32, i32
  }
  func.func @transform_1(%arg0: i32) -> (i32, i32) {
    %c0_i32 = arith.constant 0 : i32
    %c0_i32_0 = arith.constant 0 : i32
    %c0_i32_1 = arith.constant 0 : i32
    return %c0_i32, %c0_i32_0 : i32, i32
  }
  func.func @transform_2(%arg0: i32) -> (i32, i32) {
    %c0_i32 = arith.constant 0 : i32
    %c0_i32_0 = arith.constant 0 : i32
    %c0_i32_1 = arith.constant 0 : i32
    return %c0_i32, %c0_i32_0 : i32, i32
  }
  func.func @transform_3(%arg0: i32) -> (i32, i32) {
    %c0_i32 = arith.constant 0 : i32
    %c0_i32_0 = arith.constant 0 : i32
    return %arg0, %c0_i32 : i32, i32
  }
}

module attributes {stable_mosaic.version = 11 : i64} {
  func.func @_lstm_scan_kernel(%arg0: i32, %arg1: memref<16x8x512xf32, #tpu.memory_space<vmem>>, %arg2: memref<8x128xf32, #tpu.memory_space<vmem>>, %arg3: memref<8x128xf32, #tpu.memory_space<vmem>>, %arg4: memref<128x512xbf16, #tpu.memory_space<vmem>>, %arg5: memref<16x8x128xbf16, #tpu.memory_space<vmem>>, %arg6: memref<8x128xf32, #tpu.memory_space<vmem>>, %arg7: memref<8x128xf32, #tpu.memory_space<vmem>>, %arg8: memref<8x128xf32, #tpu.memory_space<vmem>>, %arg9: memref<8x128xf32, #tpu.memory_space<vmem>>) attributes {dimension_semantics = [#tpu.dimension_semantics<arbitrary>], iteration_bounds = array<i64: 2>, scalar_prefetch = 0 : i64, scratch_operands = 2 : i64, tpu.core_type = #tpu.core_type<tc>, window_params = [{transform_indices = @transform_0, window_bounds = array<i64: 16, 8, 512>}, {pipeline_mode = #tpu.pipeline_mode<synchronous>, transform_indices = @transform_1, window_bounds = array<i64: 8, 128>}, {pipeline_mode = #tpu.pipeline_mode<synchronous>, transform_indices = @transform_2, window_bounds = array<i64: 8, 128>}, {pipeline_mode = #tpu.pipeline_mode<synchronous>, transform_indices = @transform_3, window_bounds = array<i64: 128, 512>}, {transform_indices = @transform_4, window_bounds = array<i64: 16, 8, 128>}, {pipeline_mode = #tpu.pipeline_mode<synchronous>, transform_indices = @transform_5, window_bounds = array<i64: 8, 128>}, {pipeline_mode = #tpu.pipeline_mode<synchronous>, transform_indices = @transform_6, window_bounds = array<i64: 8, 128>}]} {
    %c0_i32 = arith.constant 0 : i32
    %0 = arith.cmpi eq, %arg0, %c0_i32 : i32
    %1 = arith.extui %0 : i1 to i32
    %c0_i32_0 = arith.constant 0 : i32
    %2 = arith.cmpi ne, %1, %c0_i32_0 : i32
    scf.if %2 {
      %c0_140 = arith.constant 0 : index
      %c0_141 = arith.constant 0 : index
      %587 = vector.load %arg2[%c0_140, %c0_141] : memref<8x128xf32, #tpu.memory_space<vmem>>, vector<8x128xf32>
      %c0_142 = arith.constant 0 : index
      %c0_143 = arith.constant 0 : index
      %588 = vector.load %arg8[%c0_142, %c0_143] : memref<8x128xf32, #tpu.memory_space<vmem>>, vector<8x128xf32>
      tpu.vector_store %arg8[%c0_142, %c0_143], %587 {strides = array<i32>} : memref<8x128xf32, #tpu.memory_space<vmem>>, vector<8x128xf32>,
      %c0_144 = arith.constant 0 : index
      %c0_145 = arith.constant 0 : index
      %589 = vector.load %arg3[%c0_144, %c0_145] : memref<8x128xf32, #tpu.memory_space<vmem>>, vector<8x128xf32>
      %c0_146 = arith.constant 0 : index
      %c0_147 = arith.constant 0 : index
      %590 = vector.load %arg9[%c0_146, %c0_147] : memref<8x128xf32, #tpu.memory_space<vmem>>, vector<8x128xf32>
      tpu.vector_store %arg9[%c0_146, %c0_147], %589 {strides = array<i32>} : memref<8x128xf32, #tpu.memory_space<vmem>>, vector<8x128xf32>,
    } else {
    }
    %c0 = arith.constant 0 : index
    %c0_1 = arith.constant 0 : index
    %3 = vector.load %arg4[%c0, %c0_1] : memref<128x512xbf16, #tpu.memory_space<vmem>>, vector<128x512xbf16>
    %c0_2 = arith.constant 0 : index
    %c0_3 = arith.constant 0 : index
    %4 = vector.load %arg8[%c0_2, %c0_3] : memref<8x128xf32, #tpu.memory_space<vmem>>, vector<8x128xf32>
    %c0_4 = arith.constant 0 : index
    %c0_5 = arith.constant 0 : index
    %5 = vector.load %arg9[%c0_4, %c0_5] : memref<8x128xf32, #tpu.memory_space<vmem>>, vector<8x128xf32>
    %c0_i32_6 = arith.constant 0 : i32
    %6 = arith.index_cast %c0_i32_6 : i32 to index
    %c0_7 = arith.constant 0 : index
    %c0_8 = arith.constant 0 : index
    %7 = vector.load %arg1[%6, %c0_7, %c0_8] : memref<16x8x512xf32, #tpu.memory_space<vmem>>, vector<1x8x512xf32>
    %8 = vector.shape_cast %7 : vector<1x8x512xf32> to vector<8x512xf32>
    %9 = arith.truncf %4 : vector<8x128xf32> to vector<8x128xbf16>
    %cst = arith.constant dense<0.000000e+00> : vector<8x512xf32>
    %10 = tpu.matmul %9, %3, %cst {dimension_numbers = #tpu.dot_dimension_numbers<[1], [0], [0], [1], [0, 0, 1, 1], [], []>} : vector<8x128xbf16>, vector<128x512xbf16>, vector<8x512xf32> -> vector<8x512xf32>
    %11 = arith.addf %8, %10 : vector<8x512xf32>
    %12 = vector.extract_strided_slice %11 {offsets = [0, 0], sizes = [8, 128], strides = [1, 1]} : vector<8x512xf32> to vector<8x128xf32>
    %13 = arith.negf %12 : vector<8x128xf32>
    %14 = math.exp %13 : vector<8x128xf32>
    %cst_9 = arith.constant 1.000000e+00 : f32
    %15 = vector.broadcast %cst_9 : f32 to vector<8x128xf32>
    %16 = arith.addf %15, %14 : vector<8x128xf32>
    %17 = arith.divf %15, %16 : vector<8x128xf32>
    %18 = vector.extract_strided_slice %11 {offsets = [0, 128], sizes = [8, 128], strides = [1, 1]} : vector<8x512xf32> to vector<8x128xf32>
    %19 = arith.negf %18 : vector<8x128xf32>
    %20 = math.exp %19 : vector<8x128xf32>
    %cst_10 = arith.constant 1.000000e+00 : f32
    %21 = vector.broadcast %cst_10 : f32 to vector<8x128xf32>
    %22 = arith.addf %21, %20 : vector<8x128xf32>
    %23 = arith.divf %21, %22 : vector<8x128xf32>
    %24 = vector.extract_strided_slice %11 {offsets = [0, 256], sizes = [8, 128], strides = [1, 1]} : vector<8x512xf32> to vector<8x128xf32>
    %25 = math.tanh %24 : vector<8x128xf32>
    %26 = vector.extract_strided_slice %11 {offsets = [0, 384], sizes = [8, 128], strides = [1, 1]} : vector<8x512xf32> to vector<8x128xf32>
    %27 = arith.negf %26 : vector<8x128xf32>
    %28 = math.exp %27 : vector<8x128xf32>
    %cst_11 = arith.constant 1.000000e+00 : f32
    %29 = vector.broadcast %cst_11 : f32 to vector<8x128xf32>
    %30 = arith.addf %29, %28 : vector<8x128xf32>
    %31 = arith.divf %29, %30 : vector<8x128xf32>
    %32 = arith.mulf %23, %5 : vector<8x128xf32>
    %33 = arith.mulf %17, %25 : vector<8x128xf32>
    %34 = arith.addf %32, %33 : vector<8x128xf32>
    %35 = math.tanh %34 : vector<8x128xf32>
    %36 = arith.mulf %31, %35 : vector<8x128xf32>
    %37 = arith.truncf %36 : vector<8x128xf32> to vector<8x128xbf16>
    %38 = arith.index_cast %c0_i32_6 : i32 to index
    %c0_12 = arith.constant 0 : index
    %c0_13 = arith.constant 0 : index
    %39 = vector.load %arg5[%38, %c0_12, %c0_13] : memref<16x8x128xbf16, #tpu.memory_space<vmem>>, vector<1x8x128xbf16>
    %40 = vector.shape_cast %39 : vector<1x8x128xbf16> to vector<8x128xbf16>
    %41 = vector.shape_cast %37 : vector<8x128xbf16> to vector<1x8x128xbf16>
    tpu.vector_store %arg5[%38, %c0_12, %c0_13], %41 {strides = array<i32>} : memref<16x8x128xbf16, #tpu.memory_space<vmem>>, vector<1x8x128xbf16>,
    %c1_i32 = arith.constant 1 : i32
    %42 = arith.index_cast %c1_i32 : i32 to index
    %c0_14 = arith.constant 0 : index
    %c0_15 = arith.constant 0 : index
    %43 = vector.load %arg1[%42, %c0_14, %c0_15] : memref<16x8x512xf32, #tpu.memory_space<vmem>>, vector<1x8x512xf32>
    %44 = vector.shape_cast %43 : vector<1x8x512xf32> to vector<8x512xf32>
    %45 = arith.truncf %36 : vector<8x128xf32> to vector<8x128xbf16>
    %cst_16 = arith.constant dense<0.000000e+00> : vector<8x512xf32>
    %46 = tpu.matmul %45, %3, %cst_16 {dimension_numbers = #tpu.dot_dimension_numbers<[1], [0], [0], [1], [0, 0, 1, 1], [], []>} : vector<8x128xbf16>, vector<128x512xbf16>, vector<8x512xf32> -> vector<8x512xf32>
    %47 = arith.addf %44, %46 : vector<8x512xf32>
    %48 = vector.extract_strided_slice %47 {offsets = [0, 0], sizes = [8, 128], strides = [1, 1]} : vector<8x512xf32> to vector<8x128xf32>
    %49 = arith.negf %48 : vector<8x128xf32>
    %50 = math.exp %49 : vector<8x128xf32>
    %cst_17 = arith.constant 1.000000e+00 : f32
    %51 = vector.broadcast %cst_17 : f32 to vector<8x128xf32>
    %52 = arith.addf %51, %50 : vector<8x128xf32>
    %53 = arith.divf %51, %52 : vector<8x128xf32>
    %54 = vector.extract_strided_slice %47 {offsets = [0, 128], sizes = [8, 128], strides = [1, 1]} : vector<8x512xf32> to vector<8x128xf32>
    %55 = arith.negf %54 : vector<8x128xf32>
    %56 = math.exp %55 : vector<8x128xf32>
    %cst_18 = arith.constant 1.000000e+00 : f32
    %57 = vector.broadcast %cst_18 : f32 to vector<8x128xf32>
    %58 = arith.addf %57, %56 : vector<8x128xf32>
    %59 = arith.divf %57, %58 : vector<8x128xf32>
    %60 = vector.extract_strided_slice %47 {offsets = [0, 256], sizes = [8, 128], strides = [1, 1]} : vector<8x512xf32> to vector<8x128xf32>
    %61 = math.tanh %60 : vector<8x128xf32>
    %62 = vector.extract_strided_slice %47 {offsets = [0, 384], sizes = [8, 128], strides = [1, 1]} : vector<8x512xf32> to vector<8x128xf32>
    %63 = arith.negf %62 : vector<8x128xf32>
    %64 = math.exp %63 : vector<8x128xf32>
    %cst_19 = arith.constant 1.000000e+00 : f32
    %65 = vector.broadcast %cst_19 : f32 to vector<8x128xf32>
    %66 = arith.addf %65, %64 : vector<8x128xf32>
    %67 = arith.divf %65, %66 : vector<8x128xf32>
    %68 = arith.mulf %59, %34 : vector<8x128xf32>
    %69 = arith.mulf %53, %61 : vector<8x128xf32>
    %70 = arith.addf %68, %69 : vector<8x128xf32>
    %71 = math.tanh %70 : vector<8x128xf32>
    %72 = arith.mulf %67, %71 : vector<8x128xf32>
    %73 = arith.truncf %72 : vector<8x128xf32> to vector<8x128xbf16>
    %74 = arith.index_cast %c1_i32 : i32 to index
    %c0_20 = arith.constant 0 : index
    %c0_21 = arith.constant 0 : index
    %75 = vector.load %arg5[%74, %c0_20, %c0_21] : memref<16x8x128xbf16, #tpu.memory_space<vmem>>, vector<1x8x128xbf16>
    %76 = vector.shape_cast %75 : vector<1x8x128xbf16> to vector<8x128xbf16>
    %77 = vector.shape_cast %73 : vector<8x128xbf16> to vector<1x8x128xbf16>
    tpu.vector_store %arg5[%74, %c0_20, %c0_21], %77 {strides = array<i32>} : memref<16x8x128xbf16, #tpu.memory_space<vmem>>, vector<1x8x128xbf16>,
    %c2_i32 = arith.constant 2 : i32
    %78 = arith.index_cast %c2_i32 : i32 to index
    %c0_22 = arith.constant 0 : index
    %c0_23 = arith.constant 0 : index
    %79 = vector.load %arg1[%78, %c0_22, %c0_23] : memref<16x8x512xf32, #tpu.memory_space<vmem>>, vector<1x8x512xf32>
    %80 = vector.shape_cast %79 : vector<1x8x512xf32> to vector<8x512xf32>
    %81 = arith.truncf %72 : vector<8x128xf32> to vector<8x128xbf16>
    %cst_24 = arith.constant dense<0.000000e+00> : vector<8x512xf32>
    %82 = tpu.matmul %81, %3, %cst_24 {dimension_numbers = #tpu.dot_dimension_numbers<[1], [0], [0], [1], [0, 0, 1, 1], [], []>} : vector<8x128xbf16>, vector<128x512xbf16>, vector<8x512xf32> -> vector<8x512xf32>
    %83 = arith.addf %80, %82 : vector<8x512xf32>
    %84 = vector.extract_strided_slice %83 {offsets = [0, 0], sizes = [8, 128], strides = [1, 1]} : vector<8x512xf32> to vector<8x128xf32>
    %85 = arith.negf %84 : vector<8x128xf32>
    %86 = math.exp %85 : vector<8x128xf32>
    %cst_25 = arith.constant 1.000000e+00 : f32
    %87 = vector.broadcast %cst_25 : f32 to vector<8x128xf32>
    %88 = arith.addf %87, %86 : vector<8x128xf32>
    %89 = arith.divf %87, %88 : vector<8x128xf32>
    %90 = vector.extract_strided_slice %83 {offsets = [0, 128], sizes = [8, 128], strides = [1, 1]} : vector<8x512xf32> to vector<8x128xf32>
    %91 = arith.negf %90 : vector<8x128xf32>
    %92 = math.exp %91 : vector<8x128xf32>
    %cst_26 = arith.constant 1.000000e+00 : f32
    %93 = vector.broadcast %cst_26 : f32 to vector<8x128xf32>
    %94 = arith.addf %93, %92 : vector<8x128xf32>
    %95 = arith.divf %93, %94 : vector<8x128xf32>
    %96 = vector.extract_strided_slice %83 {offsets = [0, 256], sizes = [8, 128], strides = [1, 1]} : vector<8x512xf32> to vector<8x128xf32>
    %97 = math.tanh %96 : vector<8x128xf32>
    %98 = vector.extract_strided_slice %83 {offsets = [0, 384], sizes = [8, 128], strides = [1, 1]} : vector<8x512xf32> to vector<8x128xf32>
    %99 = arith.negf %98 : vector<8x128xf32>
    %100 = math.exp %99 : vector<8x128xf32>
    %cst_27 = arith.constant 1.000000e+00 : f32
    %101 = vector.broadcast %cst_27 : f32 to vector<8x128xf32>
    %102 = arith.addf %101, %100 : vector<8x128xf32>
    %103 = arith.divf %101, %102 : vector<8x128xf32>
    %104 = arith.mulf %95, %70 : vector<8x128xf32>
    %105 = arith.mulf %89, %97 : vector<8x128xf32>
    %106 = arith.addf %104, %105 : vector<8x128xf32>
    %107 = math.tanh %106 : vector<8x128xf32>
    %108 = arith.mulf %103, %107 : vector<8x128xf32>
    %109 = arith.truncf %108 : vector<8x128xf32> to vector<8x128xbf16>
    %110 = arith.index_cast %c2_i32 : i32 to index
    %c0_28 = arith.constant 0 : index
    %c0_29 = arith.constant 0 : index
    %111 = vector.load %arg5[%110, %c0_28, %c0_29] : memref<16x8x128xbf16, #tpu.memory_space<vmem>>, vector<1x8x128xbf16>
    %112 = vector.shape_cast %111 : vector<1x8x128xbf16> to vector<8x128xbf16>
    %113 = vector.shape_cast %109 : vector<8x128xbf16> to vector<1x8x128xbf16>
    tpu.vector_store %arg5[%110, %c0_28, %c0_29], %113 {strides = array<i32>} : memref<16x8x128xbf16, #tpu.memory_space<vmem>>, vector<1x8x128xbf16>,
    %c3_i32 = arith.constant 3 : i32
    %114 = arith.index_cast %c3_i32 : i32 to index
    %c0_30 = arith.constant 0 : index
    %c0_31 = arith.constant 0 : index
    %115 = vector.load %arg1[%114, %c0_30, %c0_31] : memref<16x8x512xf32, #tpu.memory_space<vmem>>, vector<1x8x512xf32>
    %116 = vector.shape_cast %115 : vector<1x8x512xf32> to vector<8x512xf32>
    %117 = arith.truncf %108 : vector<8x128xf32> to vector<8x128xbf16>
    %cst_32 = arith.constant dense<0.000000e+00> : vector<8x512xf32>
    %118 = tpu.matmul %117, %3, %cst_32 {dimension_numbers = #tpu.dot_dimension_numbers<[1], [0], [0], [1], [0, 0, 1, 1], [], []>} : vector<8x128xbf16>, vector<128x512xbf16>, vector<8x512xf32> -> vector<8x512xf32>
    %119 = arith.addf %116, %118 : vector<8x512xf32>
    %120 = vector.extract_strided_slice %119 {offsets = [0, 0], sizes = [8, 128], strides = [1, 1]} : vector<8x512xf32> to vector<8x128xf32>
    %121 = arith.negf %120 : vector<8x128xf32>
    %122 = math.exp %121 : vector<8x128xf32>
    %cst_33 = arith.constant 1.000000e+00 : f32
    %123 = vector.broadcast %cst_33 : f32 to vector<8x128xf32>
    %124 = arith.addf %123, %122 : vector<8x128xf32>
    %125 = arith.divf %123, %124 : vector<8x128xf32>
    %126 = vector.extract_strided_slice %119 {offsets = [0, 128], sizes = [8, 128], strides = [1, 1]} : vector<8x512xf32> to vector<8x128xf32>
    %127 = arith.negf %126 : vector<8x128xf32>
    %128 = math.exp %127 : vector<8x128xf32>
    %cst_34 = arith.constant 1.000000e+00 : f32
    %129 = vector.broadcast %cst_34 : f32 to vector<8x128xf32>
    %130 = arith.addf %129, %128 : vector<8x128xf32>
    %131 = arith.divf %129, %130 : vector<8x128xf32>
    %132 = vector.extract_strided_slice %119 {offsets = [0, 256], sizes = [8, 128], strides = [1, 1]} : vector<8x512xf32> to vector<8x128xf32>
    %133 = math.tanh %132 : vector<8x128xf32>
    %134 = vector.extract_strided_slice %119 {offsets = [0, 384], sizes = [8, 128], strides = [1, 1]} : vector<8x512xf32> to vector<8x128xf32>
    %135 = arith.negf %134 : vector<8x128xf32>
    %136 = math.exp %135 : vector<8x128xf32>
    %cst_35 = arith.constant 1.000000e+00 : f32
    %137 = vector.broadcast %cst_35 : f32 to vector<8x128xf32>
    %138 = arith.addf %137, %136 : vector<8x128xf32>
    %139 = arith.divf %137, %138 : vector<8x128xf32>
    %140 = arith.mulf %131, %106 : vector<8x128xf32>
    %141 = arith.mulf %125, %133 : vector<8x128xf32>
    %142 = arith.addf %140, %141 : vector<8x128xf32>
    %143 = math.tanh %142 : vector<8x128xf32>
    %144 = arith.mulf %139, %143 : vector<8x128xf32>
    %145 = arith.truncf %144 : vector<8x128xf32> to vector<8x128xbf16>
    %146 = arith.index_cast %c3_i32 : i32 to index
    %c0_36 = arith.constant 0 : index
    %c0_37 = arith.constant 0 : index
    %147 = vector.load %arg5[%146, %c0_36, %c0_37] : memref<16x8x128xbf16, #tpu.memory_space<vmem>>, vector<1x8x128xbf16>
    %148 = vector.shape_cast %147 : vector<1x8x128xbf16> to vector<8x128xbf16>
    %149 = vector.shape_cast %145 : vector<8x128xbf16> to vector<1x8x128xbf16>
    tpu.vector_store %arg5[%146, %c0_36, %c0_37], %149 {strides = array<i32>} : memref<16x8x128xbf16, #tpu.memory_space<vmem>>, vector<1x8x128xbf16>,
    %c4_i32 = arith.constant 4 : i32
    %150 = arith.index_cast %c4_i32 : i32 to index
    %c0_38 = arith.constant 0 : index
    %c0_39 = arith.constant 0 : index
    %151 = vector.load %arg1[%150, %c0_38, %c0_39] : memref<16x8x512xf32, #tpu.memory_space<vmem>>, vector<1x8x512xf32>
    %152 = vector.shape_cast %151 : vector<1x8x512xf32> to vector<8x512xf32>
    %153 = arith.truncf %144 : vector<8x128xf32> to vector<8x128xbf16>
    %cst_40 = arith.constant dense<0.000000e+00> : vector<8x512xf32>
    %154 = tpu.matmul %153, %3, %cst_40 {dimension_numbers = #tpu.dot_dimension_numbers<[1], [0], [0], [1], [0, 0, 1, 1], [], []>} : vector<8x128xbf16>, vector<128x512xbf16>, vector<8x512xf32> -> vector<8x512xf32>
    %155 = arith.addf %152, %154 : vector<8x512xf32>
    %156 = vector.extract_strided_slice %155 {offsets = [0, 0], sizes = [8, 128], strides = [1, 1]} : vector<8x512xf32> to vector<8x128xf32>
    %157 = arith.negf %156 : vector<8x128xf32>
    %158 = math.exp %157 : vector<8x128xf32>
    %cst_41 = arith.constant 1.000000e+00 : f32
    %159 = vector.broadcast %cst_41 : f32 to vector<8x128xf32>
    %160 = arith.addf %159, %158 : vector<8x128xf32>
    %161 = arith.divf %159, %160 : vector<8x128xf32>
    %162 = vector.extract_strided_slice %155 {offsets = [0, 128], sizes = [8, 128], strides = [1, 1]} : vector<8x512xf32> to vector<8x128xf32>
    %163 = arith.negf %162 : vector<8x128xf32>
    %164 = math.exp %163 : vector<8x128xf32>
    %cst_42 = arith.constant 1.000000e+00 : f32
    %165 = vector.broadcast %cst_42 : f32 to vector<8x128xf32>
    %166 = arith.addf %165, %164 : vector<8x128xf32>
    %167 = arith.divf %165, %166 : vector<8x128xf32>
    %168 = vector.extract_strided_slice %155 {offsets = [0, 256], sizes = [8, 128], strides = [1, 1]} : vector<8x512xf32> to vector<8x128xf32>
    %169 = math.tanh %168 : vector<8x128xf32>
    %170 = vector.extract_strided_slice %155 {offsets = [0, 384], sizes = [8, 128], strides = [1, 1]} : vector<8x512xf32> to vector<8x128xf32>
    %171 = arith.negf %170 : vector<8x128xf32>
    %172 = math.exp %171 : vector<8x128xf32>
    %cst_43 = arith.constant 1.000000e+00 : f32
    %173 = vector.broadcast %cst_43 : f32 to vector<8x128xf32>
    %174 = arith.addf %173, %172 : vector<8x128xf32>
    %175 = arith.divf %173, %174 : vector<8x128xf32>
    %176 = arith.mulf %167, %142 : vector<8x128xf32>
    %177 = arith.mulf %161, %169 : vector<8x128xf32>
    %178 = arith.addf %176, %177 : vector<8x128xf32>
    %179 = math.tanh %178 : vector<8x128xf32>
    %180 = arith.mulf %175, %179 : vector<8x128xf32>
    %181 = arith.truncf %180 : vector<8x128xf32> to vector<8x128xbf16>
    %182 = arith.index_cast %c4_i32 : i32 to index
    %c0_44 = arith.constant 0 : index
    %c0_45 = arith.constant 0 : index
    %183 = vector.load %arg5[%182, %c0_44, %c0_45] : memref<16x8x128xbf16, #tpu.memory_space<vmem>>, vector<1x8x128xbf16>
    %184 = vector.shape_cast %183 : vector<1x8x128xbf16> to vector<8x128xbf16>
    %185 = vector.shape_cast %181 : vector<8x128xbf16> to vector<1x8x128xbf16>
    tpu.vector_store %arg5[%182, %c0_44, %c0_45], %185 {strides = array<i32>} : memref<16x8x128xbf16, #tpu.memory_space<vmem>>, vector<1x8x128xbf16>,
    %c5_i32 = arith.constant 5 : i32
    %186 = arith.index_cast %c5_i32 : i32 to index
    %c0_46 = arith.constant 0 : index
    %c0_47 = arith.constant 0 : index
    %187 = vector.load %arg1[%186, %c0_46, %c0_47] : memref<16x8x512xf32, #tpu.memory_space<vmem>>, vector<1x8x512xf32>
    %188 = vector.shape_cast %187 : vector<1x8x512xf32> to vector<8x512xf32>
    %189 = arith.truncf %180 : vector<8x128xf32> to vector<8x128xbf16>
    %cst_48 = arith.constant dense<0.000000e+00> : vector<8x512xf32>
    %190 = tpu.matmul %189, %3, %cst_48 {dimension_numbers = #tpu.dot_dimension_numbers<[1], [0], [0], [1], [0, 0, 1, 1], [], []>} : vector<8x128xbf16>, vector<128x512xbf16>, vector<8x512xf32> -> vector<8x512xf32>
    %191 = arith.addf %188, %190 : vector<8x512xf32>
    %192 = vector.extract_strided_slice %191 {offsets = [0, 0], sizes = [8, 128], strides = [1, 1]} : vector<8x512xf32> to vector<8x128xf32>
    %193 = arith.negf %192 : vector<8x128xf32>
    %194 = math.exp %193 : vector<8x128xf32>
    %cst_49 = arith.constant 1.000000e+00 : f32
    %195 = vector.broadcast %cst_49 : f32 to vector<8x128xf32>
    %196 = arith.addf %195, %194 : vector<8x128xf32>
    %197 = arith.divf %195, %196 : vector<8x128xf32>
    %198 = vector.extract_strided_slice %191 {offsets = [0, 128], sizes = [8, 128], strides = [1, 1]} : vector<8x512xf32> to vector<8x128xf32>
    %199 = arith.negf %198 : vector<8x128xf32>
    %200 = math.exp %199 : vector<8x128xf32>
    %cst_50 = arith.constant 1.000000e+00 : f32
    %201 = vector.broadcast %cst_50 : f32 to vector<8x128xf32>
    %202 = arith.addf %201, %200 : vector<8x128xf32>
    %203 = arith.divf %201, %202 : vector<8x128xf32>
    %204 = vector.extract_strided_slice %191 {offsets = [0, 256], sizes = [8, 128], strides = [1, 1]} : vector<8x512xf32> to vector<8x128xf32>
    %205 = math.tanh %204 : vector<8x128xf32>
    %206 = vector.extract_strided_slice %191 {offsets = [0, 384], sizes = [8, 128], strides = [1, 1]} : vector<8x512xf32> to vector<8x128xf32>
    %207 = arith.negf %206 : vector<8x128xf32>
    %208 = math.exp %207 : vector<8x128xf32>
    %cst_51 = arith.constant 1.000000e+00 : f32
    %209 = vector.broadcast %cst_51 : f32 to vector<8x128xf32>
    %210 = arith.addf %209, %208 : vector<8x128xf32>
    %211 = arith.divf %209, %210 : vector<8x128xf32>
    %212 = arith.mulf %203, %178 : vector<8x128xf32>
    %213 = arith.mulf %197, %205 : vector<8x128xf32>
    %214 = arith.addf %212, %213 : vector<8x128xf32>
    %215 = math.tanh %214 : vector<8x128xf32>
    %216 = arith.mulf %211, %215 : vector<8x128xf32>
    %217 = arith.truncf %216 : vector<8x128xf32> to vector<8x128xbf16>
    %218 = arith.index_cast %c5_i32 : i32 to index
    %c0_52 = arith.constant 0 : index
    %c0_53 = arith.constant 0 : index
    %219 = vector.load %arg5[%218, %c0_52, %c0_53] : memref<16x8x128xbf16, #tpu.memory_space<vmem>>, vector<1x8x128xbf16>
    %220 = vector.shape_cast %219 : vector<1x8x128xbf16> to vector<8x128xbf16>
    %221 = vector.shape_cast %217 : vector<8x128xbf16> to vector<1x8x128xbf16>
    tpu.vector_store %arg5[%218, %c0_52, %c0_53], %221 {strides = array<i32>} : memref<16x8x128xbf16, #tpu.memory_space<vmem>>, vector<1x8x128xbf16>,
    %c6_i32 = arith.constant 6 : i32
    %222 = arith.index_cast %c6_i32 : i32 to index
    %c0_54 = arith.constant 0 : index
    %c0_55 = arith.constant 0 : index
    %223 = vector.load %arg1[%222, %c0_54, %c0_55] : memref<16x8x512xf32, #tpu.memory_space<vmem>>, vector<1x8x512xf32>
    %224 = vector.shape_cast %223 : vector<1x8x512xf32> to vector<8x512xf32>
    %225 = arith.truncf %216 : vector<8x128xf32> to vector<8x128xbf16>
    %cst_56 = arith.constant dense<0.000000e+00> : vector<8x512xf32>
    %226 = tpu.matmul %225, %3, %cst_56 {dimension_numbers = #tpu.dot_dimension_numbers<[1], [0], [0], [1], [0, 0, 1, 1], [], []>} : vector<8x128xbf16>, vector<128x512xbf16>, vector<8x512xf32> -> vector<8x512xf32>
    %227 = arith.addf %224, %226 : vector<8x512xf32>
    %228 = vector.extract_strided_slice %227 {offsets = [0, 0], sizes = [8, 128], strides = [1, 1]} : vector<8x512xf32> to vector<8x128xf32>
    %229 = arith.negf %228 : vector<8x128xf32>
    %230 = math.exp %229 : vector<8x128xf32>
    %cst_57 = arith.constant 1.000000e+00 : f32
    %231 = vector.broadcast %cst_57 : f32 to vector<8x128xf32>
    %232 = arith.addf %231, %230 : vector<8x128xf32>
    %233 = arith.divf %231, %232 : vector<8x128xf32>
    %234 = vector.extract_strided_slice %227 {offsets = [0, 128], sizes = [8, 128], strides = [1, 1]} : vector<8x512xf32> to vector<8x128xf32>
    %235 = arith.negf %234 : vector<8x128xf32>
    %236 = math.exp %235 : vector<8x128xf32>
    %cst_58 = arith.constant 1.000000e+00 : f32
    %237 = vector.broadcast %cst_58 : f32 to vector<8x128xf32>
    %238 = arith.addf %237, %236 : vector<8x128xf32>
    %239 = arith.divf %237, %238 : vector<8x128xf32>
    %240 = vector.extract_strided_slice %227 {offsets = [0, 256], sizes = [8, 128], strides = [1, 1]} : vector<8x512xf32> to vector<8x128xf32>
    %241 = math.tanh %240 : vector<8x128xf32>
    %242 = vector.extract_strided_slice %227 {offsets = [0, 384], sizes = [8, 128], strides = [1, 1]} : vector<8x512xf32> to vector<8x128xf32>
    %243 = arith.negf %242 : vector<8x128xf32>
    %244 = math.exp %243 : vector<8x128xf32>
    %cst_59 = arith.constant 1.000000e+00 : f32
    %245 = vector.broadcast %cst_59 : f32 to vector<8x128xf32>
    %246 = arith.addf %245, %244 : vector<8x128xf32>
    %247 = arith.divf %245, %246 : vector<8x128xf32>
    %248 = arith.mulf %239, %214 : vector<8x128xf32>
    %249 = arith.mulf %233, %241 : vector<8x128xf32>
    %250 = arith.addf %248, %249 : vector<8x128xf32>
    %251 = math.tanh %250 : vector<8x128xf32>
    %252 = arith.mulf %247, %251 : vector<8x128xf32>
    %253 = arith.truncf %252 : vector<8x128xf32> to vector<8x128xbf16>
    %254 = arith.index_cast %c6_i32 : i32 to index
    %c0_60 = arith.constant 0 : index
    %c0_61 = arith.constant 0 : index
    %255 = vector.load %arg5[%254, %c0_60, %c0_61] : memref<16x8x128xbf16, #tpu.memory_space<vmem>>, vector<1x8x128xbf16>
    %256 = vector.shape_cast %255 : vector<1x8x128xbf16> to vector<8x128xbf16>
    %257 = vector.shape_cast %253 : vector<8x128xbf16> to vector<1x8x128xbf16>
    tpu.vector_store %arg5[%254, %c0_60, %c0_61], %257 {strides = array<i32>} : memref<16x8x128xbf16, #tpu.memory_space<vmem>>, vector<1x8x128xbf16>,
    %c7_i32 = arith.constant 7 : i32
    %258 = arith.index_cast %c7_i32 : i32 to index
    %c0_62 = arith.constant 0 : index
    %c0_63 = arith.constant 0 : index
    %259 = vector.load %arg1[%258, %c0_62, %c0_63] : memref<16x8x512xf32, #tpu.memory_space<vmem>>, vector<1x8x512xf32>
    %260 = vector.shape_cast %259 : vector<1x8x512xf32> to vector<8x512xf32>
    %261 = arith.truncf %252 : vector<8x128xf32> to vector<8x128xbf16>
    %cst_64 = arith.constant dense<0.000000e+00> : vector<8x512xf32>
    %262 = tpu.matmul %261, %3, %cst_64 {dimension_numbers = #tpu.dot_dimension_numbers<[1], [0], [0], [1], [0, 0, 1, 1], [], []>} : vector<8x128xbf16>, vector<128x512xbf16>, vector<8x512xf32> -> vector<8x512xf32>
    %263 = arith.addf %260, %262 : vector<8x512xf32>
    %264 = vector.extract_strided_slice %263 {offsets = [0, 0], sizes = [8, 128], strides = [1, 1]} : vector<8x512xf32> to vector<8x128xf32>
    %265 = arith.negf %264 : vector<8x128xf32>
    %266 = math.exp %265 : vector<8x128xf32>
    %cst_65 = arith.constant 1.000000e+00 : f32
    %267 = vector.broadcast %cst_65 : f32 to vector<8x128xf32>
    %268 = arith.addf %267, %266 : vector<8x128xf32>
    %269 = arith.divf %267, %268 : vector<8x128xf32>
    %270 = vector.extract_strided_slice %263 {offsets = [0, 128], sizes = [8, 128], strides = [1, 1]} : vector<8x512xf32> to vector<8x128xf32>
    %271 = arith.negf %270 : vector<8x128xf32>
    %272 = math.exp %271 : vector<8x128xf32>
    %cst_66 = arith.constant 1.000000e+00 : f32
    %273 = vector.broadcast %cst_66 : f32 to vector<8x128xf32>
    %274 = arith.addf %273, %272 : vector<8x128xf32>
    %275 = arith.divf %273, %274 : vector<8x128xf32>
    %276 = vector.extract_strided_slice %263 {offsets = [0, 256], sizes = [8, 128], strides = [1, 1]} : vector<8x512xf32> to vector<8x128xf32>
    %277 = math.tanh %276 : vector<8x128xf32>
    %278 = vector.extract_strided_slice %263 {offsets = [0, 384], sizes = [8, 128], strides = [1, 1]} : vector<8x512xf32> to vector<8x128xf32>
    %279 = arith.negf %278 : vector<8x128xf32>
    %280 = math.exp %279 : vector<8x128xf32>
    %cst_67 = arith.constant 1.000000e+00 : f32
    %281 = vector.broadcast %cst_67 : f32 to vector<8x128xf32>
    %282 = arith.addf %281, %280 : vector<8x128xf32>
    %283 = arith.divf %281, %282 : vector<8x128xf32>
    %284 = arith.mulf %275, %250 : vector<8x128xf32>
    %285 = arith.mulf %269, %277 : vector<8x128xf32>
    %286 = arith.addf %284, %285 : vector<8x128xf32>
    %287 = math.tanh %286 : vector<8x128xf32>
    %288 = arith.mulf %283, %287 : vector<8x128xf32>
    %289 = arith.truncf %288 : vector<8x128xf32> to vector<8x128xbf16>
    %290 = arith.index_cast %c7_i32 : i32 to index
    %c0_68 = arith.constant 0 : index
    %c0_69 = arith.constant 0 : index
    %291 = vector.load %arg5[%290, %c0_68, %c0_69] : memref<16x8x128xbf16, #tpu.memory_space<vmem>>, vector<1x8x128xbf16>
    %292 = vector.shape_cast %291 : vector<1x8x128xbf16> to vector<8x128xbf16>
    %293 = vector.shape_cast %289 : vector<8x128xbf16> to vector<1x8x128xbf16>
    tpu.vector_store %arg5[%290, %c0_68, %c0_69], %293 {strides = array<i32>} : memref<16x8x128xbf16, #tpu.memory_space<vmem>>, vector<1x8x128xbf16>,
    %c8_i32 = arith.constant 8 : i32
    %294 = arith.index_cast %c8_i32 : i32 to index
    %c0_70 = arith.constant 0 : index
    %c0_71 = arith.constant 0 : index
    %295 = vector.load %arg1[%294, %c0_70, %c0_71] : memref<16x8x512xf32, #tpu.memory_space<vmem>>, vector<1x8x512xf32>
    %296 = vector.shape_cast %295 : vector<1x8x512xf32> to vector<8x512xf32>
    %297 = arith.truncf %288 : vector<8x128xf32> to vector<8x128xbf16>
    %cst_72 = arith.constant dense<0.000000e+00> : vector<8x512xf32>
    %298 = tpu.matmul %297, %3, %cst_72 {dimension_numbers = #tpu.dot_dimension_numbers<[1], [0], [0], [1], [0, 0, 1, 1], [], []>} : vector<8x128xbf16>, vector<128x512xbf16>, vector<8x512xf32> -> vector<8x512xf32>
    %299 = arith.addf %296, %298 : vector<8x512xf32>
    %300 = vector.extract_strided_slice %299 {offsets = [0, 0], sizes = [8, 128], strides = [1, 1]} : vector<8x512xf32> to vector<8x128xf32>
    %301 = arith.negf %300 : vector<8x128xf32>
    %302 = math.exp %301 : vector<8x128xf32>
    %cst_73 = arith.constant 1.000000e+00 : f32
    %303 = vector.broadcast %cst_73 : f32 to vector<8x128xf32>
    %304 = arith.addf %303, %302 : vector<8x128xf32>
    %305 = arith.divf %303, %304 : vector<8x128xf32>
    %306 = vector.extract_strided_slice %299 {offsets = [0, 128], sizes = [8, 128], strides = [1, 1]} : vector<8x512xf32> to vector<8x128xf32>
    %307 = arith.negf %306 : vector<8x128xf32>
    %308 = math.exp %307 : vector<8x128xf32>
    %cst_74 = arith.constant 1.000000e+00 : f32
    %309 = vector.broadcast %cst_74 : f32 to vector<8x128xf32>
    %310 = arith.addf %309, %308 : vector<8x128xf32>
    %311 = arith.divf %309, %310 : vector<8x128xf32>
    %312 = vector.extract_strided_slice %299 {offsets = [0, 256], sizes = [8, 128], strides = [1, 1]} : vector<8x512xf32> to vector<8x128xf32>
    %313 = math.tanh %312 : vector<8x128xf32>
    %314 = vector.extract_strided_slice %299 {offsets = [0, 384], sizes = [8, 128], strides = [1, 1]} : vector<8x512xf32> to vector<8x128xf32>
    %315 = arith.negf %314 : vector<8x128xf32>
    %316 = math.exp %315 : vector<8x128xf32>
    %cst_75 = arith.constant 1.000000e+00 : f32
    %317 = vector.broadcast %cst_75 : f32 to vector<8x128xf32>
    %318 = arith.addf %317, %316 : vector<8x128xf32>
    %319 = arith.divf %317, %318 : vector<8x128xf32>
    %320 = arith.mulf %311, %286 : vector<8x128xf32>
    %321 = arith.mulf %305, %313 : vector<8x128xf32>
    %322 = arith.addf %320, %321 : vector<8x128xf32>
    %323 = math.tanh %322 : vector<8x128xf32>
    %324 = arith.mulf %319, %323 : vector<8x128xf32>
    %325 = arith.truncf %324 : vector<8x128xf32> to vector<8x128xbf16>
    %326 = arith.index_cast %c8_i32 : i32 to index
    %c0_76 = arith.constant 0 : index
    %c0_77 = arith.constant 0 : index
    %327 = vector.load %arg5[%326, %c0_76, %c0_77] : memref<16x8x128xbf16, #tpu.memory_space<vmem>>, vector<1x8x128xbf16>
    %328 = vector.shape_cast %327 : vector<1x8x128xbf16> to vector<8x128xbf16>
    %329 = vector.shape_cast %325 : vector<8x128xbf16> to vector<1x8x128xbf16>
    tpu.vector_store %arg5[%326, %c0_76, %c0_77], %329 {strides = array<i32>} : memref<16x8x128xbf16, #tpu.memory_space<vmem>>, vector<1x8x128xbf16>,
    %c9_i32 = arith.constant 9 : i32
    %330 = arith.index_cast %c9_i32 : i32 to index
    %c0_78 = arith.constant 0 : index
    %c0_79 = arith.constant 0 : index
    %331 = vector.load %arg1[%330, %c0_78, %c0_79] : memref<16x8x512xf32, #tpu.memory_space<vmem>>, vector<1x8x512xf32>
    %332 = vector.shape_cast %331 : vector<1x8x512xf32> to vector<8x512xf32>
    %333 = arith.truncf %324 : vector<8x128xf32> to vector<8x128xbf16>
    %cst_80 = arith.constant dense<0.000000e+00> : vector<8x512xf32>
    %334 = tpu.matmul %333, %3, %cst_80 {dimension_numbers = #tpu.dot_dimension_numbers<[1], [0], [0], [1], [0, 0, 1, 1], [], []>} : vector<8x128xbf16>, vector<128x512xbf16>, vector<8x512xf32> -> vector<8x512xf32>
    %335 = arith.addf %332, %334 : vector<8x512xf32>
    %336 = vector.extract_strided_slice %335 {offsets = [0, 0], sizes = [8, 128], strides = [1, 1]} : vector<8x512xf32> to vector<8x128xf32>
    %337 = arith.negf %336 : vector<8x128xf32>
    %338 = math.exp %337 : vector<8x128xf32>
    %cst_81 = arith.constant 1.000000e+00 : f32
    %339 = vector.broadcast %cst_81 : f32 to vector<8x128xf32>
    %340 = arith.addf %339, %338 : vector<8x128xf32>
    %341 = arith.divf %339, %340 : vector<8x128xf32>
    %342 = vector.extract_strided_slice %335 {offsets = [0, 128], sizes = [8, 128], strides = [1, 1]} : vector<8x512xf32> to vector<8x128xf32>
    %343 = arith.negf %342 : vector<8x128xf32>
    %344 = math.exp %343 : vector<8x128xf32>
    %cst_82 = arith.constant 1.000000e+00 : f32
    %345 = vector.broadcast %cst_82 : f32 to vector<8x128xf32>
    %346 = arith.addf %345, %344 : vector<8x128xf32>
    %347 = arith.divf %345, %346 : vector<8x128xf32>
    %348 = vector.extract_strided_slice %335 {offsets = [0, 256], sizes = [8, 128], strides = [1, 1]} : vector<8x512xf32> to vector<8x128xf32>
    %349 = math.tanh %348 : vector<8x128xf32>
    %350 = vector.extract_strided_slice %335 {offsets = [0, 384], sizes = [8, 128], strides = [1, 1]} : vector<8x512xf32> to vector<8x128xf32>
    %351 = arith.negf %350 : vector<8x128xf32>
    %352 = math.exp %351 : vector<8x128xf32>
    %cst_83 = arith.constant 1.000000e+00 : f32
    %353 = vector.broadcast %cst_83 : f32 to vector<8x128xf32>
    %354 = arith.addf %353, %352 : vector<8x128xf32>
    %355 = arith.divf %353, %354 : vector<8x128xf32>
    %356 = arith.mulf %347, %322 : vector<8x128xf32>
    %357 = arith.mulf %341, %349 : vector<8x128xf32>
    %358 = arith.addf %356, %357 : vector<8x128xf32>
    %359 = math.tanh %358 : vector<8x128xf32>
    %360 = arith.mulf %355, %359 : vector<8x128xf32>
    %361 = arith.truncf %360 : vector<8x128xf32> to vector<8x128xbf16>
    %362 = arith.index_cast %c9_i32 : i32 to index
    %c0_84 = arith.constant 0 : index
    %c0_85 = arith.constant 0 : index
    %363 = vector.load %arg5[%362, %c0_84, %c0_85] : memref<16x8x128xbf16, #tpu.memory_space<vmem>>, vector<1x8x128xbf16>
    %364 = vector.shape_cast %363 : vector<1x8x128xbf16> to vector<8x128xbf16>
    %365 = vector.shape_cast %361 : vector<8x128xbf16> to vector<1x8x128xbf16>
    tpu.vector_store %arg5[%362, %c0_84, %c0_85], %365 {strides = array<i32>} : memref<16x8x128xbf16, #tpu.memory_space<vmem>>, vector<1x8x128xbf16>,
    %c10_i32 = arith.constant 10 : i32
    %366 = arith.index_cast %c10_i32 : i32 to index
    %c0_86 = arith.constant 0 : index
    %c0_87 = arith.constant 0 : index
    %367 = vector.load %arg1[%366, %c0_86, %c0_87] : memref<16x8x512xf32, #tpu.memory_space<vmem>>, vector<1x8x512xf32>
    %368 = vector.shape_cast %367 : vector<1x8x512xf32> to vector<8x512xf32>
    %369 = arith.truncf %360 : vector<8x128xf32> to vector<8x128xbf16>
    %cst_88 = arith.constant dense<0.000000e+00> : vector<8x512xf32>
    %370 = tpu.matmul %369, %3, %cst_88 {dimension_numbers = #tpu.dot_dimension_numbers<[1], [0], [0], [1], [0, 0, 1, 1], [], []>} : vector<8x128xbf16>, vector<128x512xbf16>, vector<8x512xf32> -> vector<8x512xf32>
    %371 = arith.addf %368, %370 : vector<8x512xf32>
    %372 = vector.extract_strided_slice %371 {offsets = [0, 0], sizes = [8, 128], strides = [1, 1]} : vector<8x512xf32> to vector<8x128xf32>
    %373 = arith.negf %372 : vector<8x128xf32>
    %374 = math.exp %373 : vector<8x128xf32>
    %cst_89 = arith.constant 1.000000e+00 : f32
    %375 = vector.broadcast %cst_89 : f32 to vector<8x128xf32>
    %376 = arith.addf %375, %374 : vector<8x128xf32>
    %377 = arith.divf %375, %376 : vector<8x128xf32>
    %378 = vector.extract_strided_slice %371 {offsets = [0, 128], sizes = [8, 128], strides = [1, 1]} : vector<8x512xf32> to vector<8x128xf32>
    %379 = arith.negf %378 : vector<8x128xf32>
    %380 = math.exp %379 : vector<8x128xf32>
    %cst_90 = arith.constant 1.000000e+00 : f32
    %381 = vector.broadcast %cst_90 : f32 to vector<8x128xf32>
    %382 = arith.addf %381, %380 : vector<8x128xf32>
    %383 = arith.divf %381, %382 : vector<8x128xf32>
    %384 = vector.extract_strided_slice %371 {offsets = [0, 256], sizes = [8, 128], strides = [1, 1]} : vector<8x512xf32> to vector<8x128xf32>
    %385 = math.tanh %384 : vector<8x128xf32>
    %386 = vector.extract_strided_slice %371 {offsets = [0, 384], sizes = [8, 128], strides = [1, 1]} : vector<8x512xf32> to vector<8x128xf32>
    %387 = arith.negf %386 : vector<8x128xf32>
    %388 = math.exp %387 : vector<8x128xf32>
    %cst_91 = arith.constant 1.000000e+00 : f32
    %389 = vector.broadcast %cst_91 : f32 to vector<8x128xf32>
    %390 = arith.addf %389, %388 : vector<8x128xf32>
    %391 = arith.divf %389, %390 : vector<8x128xf32>
    %392 = arith.mulf %383, %358 : vector<8x128xf32>
    %393 = arith.mulf %377, %385 : vector<8x128xf32>
    %394 = arith.addf %392, %393 : vector<8x128xf32>
    %395 = math.tanh %394 : vector<8x128xf32>
    %396 = arith.mulf %391, %395 : vector<8x128xf32>
    %397 = arith.truncf %396 : vector<8x128xf32> to vector<8x128xbf16>
    %398 = arith.index_cast %c10_i32 : i32 to index
    %c0_92 = arith.constant 0 : index
    %c0_93 = arith.constant 0 : index
    %399 = vector.load %arg5[%398, %c0_92, %c0_93] : memref<16x8x128xbf16, #tpu.memory_space<vmem>>, vector<1x8x128xbf16>
    %400 = vector.shape_cast %399 : vector<1x8x128xbf16> to vector<8x128xbf16>
    %401 = vector.shape_cast %397 : vector<8x128xbf16> to vector<1x8x128xbf16>
    tpu.vector_store %arg5[%398, %c0_92, %c0_93], %401 {strides = array<i32>} : memref<16x8x128xbf16, #tpu.memory_space<vmem>>, vector<1x8x128xbf16>,
    %c11_i32 = arith.constant 11 : i32
    %402 = arith.index_cast %c11_i32 : i32 to index
    %c0_94 = arith.constant 0 : index
    %c0_95 = arith.constant 0 : index
    %403 = vector.load %arg1[%402, %c0_94, %c0_95] : memref<16x8x512xf32, #tpu.memory_space<vmem>>, vector<1x8x512xf32>
    %404 = vector.shape_cast %403 : vector<1x8x512xf32> to vector<8x512xf32>
    %405 = arith.truncf %396 : vector<8x128xf32> to vector<8x128xbf16>
    %cst_96 = arith.constant dense<0.000000e+00> : vector<8x512xf32>
    %406 = tpu.matmul %405, %3, %cst_96 {dimension_numbers = #tpu.dot_dimension_numbers<[1], [0], [0], [1], [0, 0, 1, 1], [], []>} : vector<8x128xbf16>, vector<128x512xbf16>, vector<8x512xf32> -> vector<8x512xf32>
    %407 = arith.addf %404, %406 : vector<8x512xf32>
    %408 = vector.extract_strided_slice %407 {offsets = [0, 0], sizes = [8, 128], strides = [1, 1]} : vector<8x512xf32> to vector<8x128xf32>
    %409 = arith.negf %408 : vector<8x128xf32>
    %410 = math.exp %409 : vector<8x128xf32>
    %cst_97 = arith.constant 1.000000e+00 : f32
    %411 = vector.broadcast %cst_97 : f32 to vector<8x128xf32>
    %412 = arith.addf %411, %410 : vector<8x128xf32>
    %413 = arith.divf %411, %412 : vector<8x128xf32>
    %414 = vector.extract_strided_slice %407 {offsets = [0, 128], sizes = [8, 128], strides = [1, 1]} : vector<8x512xf32> to vector<8x128xf32>
    %415 = arith.negf %414 : vector<8x128xf32>
    %416 = math.exp %415 : vector<8x128xf32>
    %cst_98 = arith.constant 1.000000e+00 : f32
    %417 = vector.broadcast %cst_98 : f32 to vector<8x128xf32>
    %418 = arith.addf %417, %416 : vector<8x128xf32>
    %419 = arith.divf %417, %418 : vector<8x128xf32>
    %420 = vector.extract_strided_slice %407 {offsets = [0, 256], sizes = [8, 128], strides = [1, 1]} : vector<8x512xf32> to vector<8x128xf32>
    %421 = math.tanh %420 : vector<8x128xf32>
    %422 = vector.extract_strided_slice %407 {offsets = [0, 384], sizes = [8, 128], strides = [1, 1]} : vector<8x512xf32> to vector<8x128xf32>
    %423 = arith.negf %422 : vector<8x128xf32>
    %424 = math.exp %423 : vector<8x128xf32>
    %cst_99 = arith.constant 1.000000e+00 : f32
    %425 = vector.broadcast %cst_99 : f32 to vector<8x128xf32>
    %426 = arith.addf %425, %424 : vector<8x128xf32>
    %427 = arith.divf %425, %426 : vector<8x128xf32>
    %428 = arith.mulf %419, %394 : vector<8x128xf32>
    %429 = arith.mulf %413, %421 : vector<8x128xf32>
    %430 = arith.addf %428, %429 : vector<8x128xf32>
    %431 = math.tanh %430 : vector<8x128xf32>
    %432 = arith.mulf %427, %431 : vector<8x128xf32>
    %433 = arith.truncf %432 : vector<8x128xf32> to vector<8x128xbf16>
    %434 = arith.index_cast %c11_i32 : i32 to index
    %c0_100 = arith.constant 0 : index
    %c0_101 = arith.constant 0 : index
    %435 = vector.load %arg5[%434, %c0_100, %c0_101] : memref<16x8x128xbf16, #tpu.memory_space<vmem>>, vector<1x8x128xbf16>
    %436 = vector.shape_cast %435 : vector<1x8x128xbf16> to vector<8x128xbf16>
    %437 = vector.shape_cast %433 : vector<8x128xbf16> to vector<1x8x128xbf16>
    tpu.vector_store %arg5[%434, %c0_100, %c0_101], %437 {strides = array<i32>} : memref<16x8x128xbf16, #tpu.memory_space<vmem>>, vector<1x8x128xbf16>,
    %c12_i32 = arith.constant 12 : i32
    %438 = arith.index_cast %c12_i32 : i32 to index
    %c0_102 = arith.constant 0 : index
    %c0_103 = arith.constant 0 : index
    %439 = vector.load %arg1[%438, %c0_102, %c0_103] : memref<16x8x512xf32, #tpu.memory_space<vmem>>, vector<1x8x512xf32>
    %440 = vector.shape_cast %439 : vector<1x8x512xf32> to vector<8x512xf32>
    %441 = arith.truncf %432 : vector<8x128xf32> to vector<8x128xbf16>
    %cst_104 = arith.constant dense<0.000000e+00> : vector<8x512xf32>
    %442 = tpu.matmul %441, %3, %cst_104 {dimension_numbers = #tpu.dot_dimension_numbers<[1], [0], [0], [1], [0, 0, 1, 1], [], []>} : vector<8x128xbf16>, vector<128x512xbf16>, vector<8x512xf32> -> vector<8x512xf32>
    %443 = arith.addf %440, %442 : vector<8x512xf32>
    %444 = vector.extract_strided_slice %443 {offsets = [0, 0], sizes = [8, 128], strides = [1, 1]} : vector<8x512xf32> to vector<8x128xf32>
    %445 = arith.negf %444 : vector<8x128xf32>
    %446 = math.exp %445 : vector<8x128xf32>
    %cst_105 = arith.constant 1.000000e+00 : f32
    %447 = vector.broadcast %cst_105 : f32 to vector<8x128xf32>
    %448 = arith.addf %447, %446 : vector<8x128xf32>
    %449 = arith.divf %447, %448 : vector<8x128xf32>
    %450 = vector.extract_strided_slice %443 {offsets = [0, 128], sizes = [8, 128], strides = [1, 1]} : vector<8x512xf32> to vector<8x128xf32>
    %451 = arith.negf %450 : vector<8x128xf32>
    %452 = math.exp %451 : vector<8x128xf32>
    %cst_106 = arith.constant 1.000000e+00 : f32
    %453 = vector.broadcast %cst_106 : f32 to vector<8x128xf32>
    %454 = arith.addf %453, %452 : vector<8x128xf32>
    %455 = arith.divf %453, %454 : vector<8x128xf32>
    %456 = vector.extract_strided_slice %443 {offsets = [0, 256], sizes = [8, 128], strides = [1, 1]} : vector<8x512xf32> to vector<8x128xf32>
    %457 = math.tanh %456 : vector<8x128xf32>
    %458 = vector.extract_strided_slice %443 {offsets = [0, 384], sizes = [8, 128], strides = [1, 1]} : vector<8x512xf32> to vector<8x128xf32>
    %459 = arith.negf %458 : vector<8x128xf32>
    %460 = math.exp %459 : vector<8x128xf32>
    %cst_107 = arith.constant 1.000000e+00 : f32
    %461 = vector.broadcast %cst_107 : f32 to vector<8x128xf32>
    %462 = arith.addf %461, %460 : vector<8x128xf32>
    %463 = arith.divf %461, %462 : vector<8x128xf32>
    %464 = arith.mulf %455, %430 : vector<8x128xf32>
    %465 = arith.mulf %449, %457 : vector<8x128xf32>
    %466 = arith.addf %464, %465 : vector<8x128xf32>
    %467 = math.tanh %466 : vector<8x128xf32>
    %468 = arith.mulf %463, %467 : vector<8x128xf32>
    %469 = arith.truncf %468 : vector<8x128xf32> to vector<8x128xbf16>
    %470 = arith.index_cast %c12_i32 : i32 to index
    %c0_108 = arith.constant 0 : index
    %c0_109 = arith.constant 0 : index
    %471 = vector.load %arg5[%470, %c0_108, %c0_109] : memref<16x8x128xbf16, #tpu.memory_space<vmem>>, vector<1x8x128xbf16>
    %472 = vector.shape_cast %471 : vector<1x8x128xbf16> to vector<8x128xbf16>
    %473 = vector.shape_cast %469 : vector<8x128xbf16> to vector<1x8x128xbf16>
    tpu.vector_store %arg5[%470, %c0_108, %c0_109], %473 {strides = array<i32>} : memref<16x8x128xbf16, #tpu.memory_space<vmem>>, vector<1x8x128xbf16>,
    %c13_i32 = arith.constant 13 : i32
    %474 = arith.index_cast %c13_i32 : i32 to index
    %c0_110 = arith.constant 0 : index
    %c0_111 = arith.constant 0 : index
    %475 = vector.load %arg1[%474, %c0_110, %c0_111] : memref<16x8x512xf32, #tpu.memory_space<vmem>>, vector<1x8x512xf32>
    %476 = vector.shape_cast %475 : vector<1x8x512xf32> to vector<8x512xf32>
    %477 = arith.truncf %468 : vector<8x128xf32> to vector<8x128xbf16>
    %cst_112 = arith.constant dense<0.000000e+00> : vector<8x512xf32>
    %478 = tpu.matmul %477, %3, %cst_112 {dimension_numbers = #tpu.dot_dimension_numbers<[1], [0], [0], [1], [0, 0, 1, 1], [], []>} : vector<8x128xbf16>, vector<128x512xbf16>, vector<8x512xf32> -> vector<8x512xf32>
    %479 = arith.addf %476, %478 : vector<8x512xf32>
    %480 = vector.extract_strided_slice %479 {offsets = [0, 0], sizes = [8, 128], strides = [1, 1]} : vector<8x512xf32> to vector<8x128xf32>
    %481 = arith.negf %480 : vector<8x128xf32>
    %482 = math.exp %481 : vector<8x128xf32>
    %cst_113 = arith.constant 1.000000e+00 : f32
    %483 = vector.broadcast %cst_113 : f32 to vector<8x128xf32>
    %484 = arith.addf %483, %482 : vector<8x128xf32>
    %485 = arith.divf %483, %484 : vector<8x128xf32>
    %486 = vector.extract_strided_slice %479 {offsets = [0, 128], sizes = [8, 128], strides = [1, 1]} : vector<8x512xf32> to vector<8x128xf32>
    %487 = arith.negf %486 : vector<8x128xf32>
    %488 = math.exp %487 : vector<8x128xf32>
    %cst_114 = arith.constant 1.000000e+00 : f32
    %489 = vector.broadcast %cst_114 : f32 to vector<8x128xf32>
    %490 = arith.addf %489, %488 : vector<8x128xf32>
    %491 = arith.divf %489, %490 : vector<8x128xf32>
    %492 = vector.extract_strided_slice %479 {offsets = [0, 256], sizes = [8, 128], strides = [1, 1]} : vector<8x512xf32> to vector<8x128xf32>
    %493 = math.tanh %492 : vector<8x128xf32>
    %494 = vector.extract_strided_slice %479 {offsets = [0, 384], sizes = [8, 128], strides = [1, 1]} : vector<8x512xf32> to vector<8x128xf32>
    %495 = arith.negf %494 : vector<8x128xf32>
    %496 = math.exp %495 : vector<8x128xf32>
    %cst_115 = arith.constant 1.000000e+00 : f32
    %497 = vector.broadcast %cst_115 : f32 to vector<8x128xf32>
    %498 = arith.addf %497, %496 : vector<8x128xf32>
    %499 = arith.divf %497, %498 : vector<8x128xf32>
    %500 = arith.mulf %491, %466 : vector<8x128xf32>
    %501 = arith.mulf %485, %493 : vector<8x128xf32>
    %502 = arith.addf %500, %501 : vector<8x128xf32>
    %503 = math.tanh %502 : vector<8x128xf32>
    %504 = arith.mulf %499, %503 : vector<8x128xf32>
    %505 = arith.truncf %504 : vector<8x128xf32> to vector<8x128xbf16>
    %506 = arith.index_cast %c13_i32 : i32 to index
    %c0_116 = arith.constant 0 : index
    %c0_117 = arith.constant 0 : index
    %507 = vector.load %arg5[%506, %c0_116, %c0_117] : memref<16x8x128xbf16, #tpu.memory_space<vmem>>, vector<1x8x128xbf16>
    %508 = vector.shape_cast %507 : vector<1x8x128xbf16> to vector<8x128xbf16>
    %509 = vector.shape_cast %505 : vector<8x128xbf16> to vector<1x8x128xbf16>
    tpu.vector_store %arg5[%506, %c0_116, %c0_117], %509 {strides = array<i32>} : memref<16x8x128xbf16, #tpu.memory_space<vmem>>, vector<1x8x128xbf16>,
    %c14_i32 = arith.constant 14 : i32
    %510 = arith.index_cast %c14_i32 : i32 to index
    %c0_118 = arith.constant 0 : index
    %c0_119 = arith.constant 0 : index
    %511 = vector.load %arg1[%510, %c0_118, %c0_119] : memref<16x8x512xf32, #tpu.memory_space<vmem>>, vector<1x8x512xf32>
    %512 = vector.shape_cast %511 : vector<1x8x512xf32> to vector<8x512xf32>
    %513 = arith.truncf %504 : vector<8x128xf32> to vector<8x128xbf16>
    %cst_120 = arith.constant dense<0.000000e+00> : vector<8x512xf32>
    %514 = tpu.matmul %513, %3, %cst_120 {dimension_numbers = #tpu.dot_dimension_numbers<[1], [0], [0], [1], [0, 0, 1, 1], [], []>} : vector<8x128xbf16>, vector<128x512xbf16>, vector<8x512xf32> -> vector<8x512xf32>
    %515 = arith.addf %512, %514 : vector<8x512xf32>
    %516 = vector.extract_strided_slice %515 {offsets = [0, 0], sizes = [8, 128], strides = [1, 1]} : vector<8x512xf32> to vector<8x128xf32>
    %517 = arith.negf %516 : vector<8x128xf32>
    %518 = math.exp %517 : vector<8x128xf32>
    %cst_121 = arith.constant 1.000000e+00 : f32
    %519 = vector.broadcast %cst_121 : f32 to vector<8x128xf32>
    %520 = arith.addf %519, %518 : vector<8x128xf32>
    %521 = arith.divf %519, %520 : vector<8x128xf32>
    %522 = vector.extract_strided_slice %515 {offsets = [0, 128], sizes = [8, 128], strides = [1, 1]} : vector<8x512xf32> to vector<8x128xf32>
    %523 = arith.negf %522 : vector<8x128xf32>
    %524 = math.exp %523 : vector<8x128xf32>
    %cst_122 = arith.constant 1.000000e+00 : f32
    %525 = vector.broadcast %cst_122 : f32 to vector<8x128xf32>
    %526 = arith.addf %525, %524 : vector<8x128xf32>
    %527 = arith.divf %525, %526 : vector<8x128xf32>
    %528 = vector.extract_strided_slice %515 {offsets = [0, 256], sizes = [8, 128], strides = [1, 1]} : vector<8x512xf32> to vector<8x128xf32>
    %529 = math.tanh %528 : vector<8x128xf32>
    %530 = vector.extract_strided_slice %515 {offsets = [0, 384], sizes = [8, 128], strides = [1, 1]} : vector<8x512xf32> to vector<8x128xf32>
    %531 = arith.negf %530 : vector<8x128xf32>
    %532 = math.exp %531 : vector<8x128xf32>
    %cst_123 = arith.constant 1.000000e+00 : f32
    %533 = vector.broadcast %cst_123 : f32 to vector<8x128xf32>
    %534 = arith.addf %533, %532 : vector<8x128xf32>
    %535 = arith.divf %533, %534 : vector<8x128xf32>
    %536 = arith.mulf %527, %502 : vector<8x128xf32>
    %537 = arith.mulf %521, %529 : vector<8x128xf32>
    %538 = arith.addf %536, %537 : vector<8x128xf32>
    %539 = math.tanh %538 : vector<8x128xf32>
    %540 = arith.mulf %535, %539 : vector<8x128xf32>
    %541 = arith.truncf %540 : vector<8x128xf32> to vector<8x128xbf16>
    %542 = arith.index_cast %c14_i32 : i32 to index
    %c0_124 = arith.constant 0 : index
    %c0_125 = arith.constant 0 : index
    %543 = vector.load %arg5[%542, %c0_124, %c0_125] : memref<16x8x128xbf16, #tpu.memory_space<vmem>>, vector<1x8x128xbf16>
    %544 = vector.shape_cast %543 : vector<1x8x128xbf16> to vector<8x128xbf16>
    %545 = vector.shape_cast %541 : vector<8x128xbf16> to vector<1x8x128xbf16>
    tpu.vector_store %arg5[%542, %c0_124, %c0_125], %545 {strides = array<i32>} : memref<16x8x128xbf16, #tpu.memory_space<vmem>>, vector<1x8x128xbf16>,
    %c15_i32 = arith.constant 15 : i32
    %546 = arith.index_cast %c15_i32 : i32 to index
    %c0_126 = arith.constant 0 : index
    %c0_127 = arith.constant 0 : index
    %547 = vector.load %arg1[%546, %c0_126, %c0_127] : memref<16x8x512xf32, #tpu.memory_space<vmem>>, vector<1x8x512xf32>
    %548 = vector.shape_cast %547 : vector<1x8x512xf32> to vector<8x512xf32>
    %549 = arith.truncf %540 : vector<8x128xf32> to vector<8x128xbf16>
    %cst_128 = arith.constant dense<0.000000e+00> : vector<8x512xf32>
    %550 = tpu.matmul %549, %3, %cst_128 {dimension_numbers = #tpu.dot_dimension_numbers<[1], [0], [0], [1], [0, 0, 1, 1], [], []>} : vector<8x128xbf16>, vector<128x512xbf16>, vector<8x512xf32> -> vector<8x512xf32>
    %551 = arith.addf %548, %550 : vector<8x512xf32>
    %552 = vector.extract_strided_slice %551 {offsets = [0, 0], sizes = [8, 128], strides = [1, 1]} : vector<8x512xf32> to vector<8x128xf32>
    %553 = arith.negf %552 : vector<8x128xf32>
    %554 = math.exp %553 : vector<8x128xf32>
    %cst_129 = arith.constant 1.000000e+00 : f32
    %555 = vector.broadcast %cst_129 : f32 to vector<8x128xf32>
    %556 = arith.addf %555, %554 : vector<8x128xf32>
    %557 = arith.divf %555, %556 : vector<8x128xf32>
    %558 = vector.extract_strided_slice %551 {offsets = [0, 128], sizes = [8, 128], strides = [1, 1]} : vector<8x512xf32> to vector<8x128xf32>
    %559 = arith.negf %558 : vector<8x128xf32>
    %560 = math.exp %559 : vector<8x128xf32>
    %cst_130 = arith.constant 1.000000e+00 : f32
    %561 = vector.broadcast %cst_130 : f32 to vector<8x128xf32>
    %562 = arith.addf %561, %560 : vector<8x128xf32>
    %563 = arith.divf %561, %562 : vector<8x128xf32>
    %564 = vector.extract_strided_slice %551 {offsets = [0, 256], sizes = [8, 128], strides = [1, 1]} : vector<8x512xf32> to vector<8x128xf32>
    %565 = math.tanh %564 : vector<8x128xf32>
    %566 = vector.extract_strided_slice %551 {offsets = [0, 384], sizes = [8, 128], strides = [1, 1]} : vector<8x512xf32> to vector<8x128xf32>
    %567 = arith.negf %566 : vector<8x128xf32>
    %568 = math.exp %567 : vector<8x128xf32>
    %cst_131 = arith.constant 1.000000e+00 : f32
    %569 = vector.broadcast %cst_131 : f32 to vector<8x128xf32>
    %570 = arith.addf %569, %568 : vector<8x128xf32>
    %571 = arith.divf %569, %570 : vector<8x128xf32>
    %572 = arith.mulf %563, %538 : vector<8x128xf32>
    %573 = arith.mulf %557, %565 : vector<8x128xf32>
    %574 = arith.addf %572, %573 : vector<8x128xf32>
    %575 = math.tanh %574 : vector<8x128xf32>
    %576 = arith.mulf %571, %575 : vector<8x128xf32>
    %577 = arith.truncf %576 : vector<8x128xf32> to vector<8x128xbf16>
    %578 = arith.index_cast %c15_i32 : i32 to index
    %c0_132 = arith.constant 0 : index
    %c0_133 = arith.constant 0 : index
    %579 = vector.load %arg5[%578, %c0_132, %c0_133] : memref<16x8x128xbf16, #tpu.memory_space<vmem>>, vector<1x8x128xbf16>
    %580 = vector.shape_cast %579 : vector<1x8x128xbf16> to vector<8x128xbf16>
    %581 = vector.shape_cast %577 : vector<8x128xbf16> to vector<1x8x128xbf16>
    tpu.vector_store %arg5[%578, %c0_132, %c0_133], %581 {strides = array<i32>} : memref<16x8x128xbf16, #tpu.memory_space<vmem>>, vector<1x8x128xbf16>,
    %c16_i32 = arith.constant 16 : i32
    %c0_134 = arith.constant 0 : index
    %c0_135 = arith.constant 0 : index
    %582 = vector.load %arg8[%c0_134, %c0_135] : memref<8x128xf32, #tpu.memory_space<vmem>>, vector<8x128xf32>
    tpu.vector_store %arg8[%c0_134, %c0_135], %576 {strides = array<i32>} : memref<8x128xf32, #tpu.memory_space<vmem>>, vector<8x128xf32>,
    %c0_136 = arith.constant 0 : index
    %c0_137 = arith.constant 0 : index
    %583 = vector.load %arg9[%c0_136, %c0_137] : memref<8x128xf32, #tpu.memory_space<vmem>>, vector<8x128xf32>
    tpu.vector_store %arg9[%c0_136, %c0_137], %574 {strides = array<i32>} : memref<8x128xf32, #tpu.memory_space<vmem>>, vector<8x128xf32>,
    %c1_i32_138 = arith.constant 1 : i32
    %584 = arith.cmpi eq, %arg0, %c1_i32_138 : i32
    %585 = arith.extui %584 : i1 to i32
    %c0_i32_139 = arith.constant 0 : i32
    %586 = arith.cmpi ne, %585, %c0_i32_139 : i32
    scf.if %586 {
      %c0_140 = arith.constant 0 : index
      %c0_141 = arith.constant 0 : index
      %587 = vector.load %arg6[%c0_140, %c0_141] : memref<8x128xf32, #tpu.memory_space<vmem>>, vector<8x128xf32>
      tpu.vector_store %arg6[%c0_140, %c0_141], %576 {strides = array<i32>} : memref<8x128xf32, #tpu.memory_space<vmem>>, vector<8x128xf32>,
      %c0_142 = arith.constant 0 : index
      %c0_143 = arith.constant 0 : index
      %588 = vector.load %arg7[%c0_142, %c0_143] : memref<8x128xf32, #tpu.memory_space<vmem>>, vector<8x128xf32>
      tpu.vector_store %arg7[%c0_142, %c0_143], %574 {strides = array<i32>} : memref<8x128xf32, #tpu.memory_space<vmem>>, vector<8x128xf32>,
    } else {
    }
    return
  }
  func.func @transform_0(%arg0: i32) -> (i32, i32, i32) {
    %c0_i32 = arith.constant 0 : i32
    %c0_i32_0 = arith.constant 0 : i32
    %c0_i32_1 = arith.constant 0 : i32
    return %arg0, %c0_i32, %c0_i32_0 : i32, i32, i32
  }
  func.func @transform_1(%arg0: i32) -> (i32, i32) {
    %c0_i32 = arith.constant 0 : i32
    %c0_i32_0 = arith.constant 0 : i32
    %c0_i32_1 = arith.constant 0 : i32
    return %c0_i32, %c0_i32_0 : i32, i32
  }
  func.func @transform_2(%arg0: i32) -> (i32, i32) {
    %c0_i32 = arith.constant 0 : i32
    %c0_i32_0 = arith.constant 0 : i32
    %c0_i32_1 = arith.constant 0 : i32
    return %c0_i32, %c0_i32_0 : i32, i32
  }
  func.func @transform_3(%arg0: i32) -> (i32, i32) {
    %c0_i32 = arith.constant 0 : i32
    %c0_i32_0 = arith.constant 0 : i32
    %c0_i32_1 = arith.constant 0 : i32
    return %c0_i32, %c0_i32_0 : i32, i32
  }
  func.func @transform_4(%arg0: i32) -> (i32, i32, i32) {
    %c0_i32 = arith.constant 0 : i32
    %c0_i32_0 = arith.constant 0 : i32
    %c0_i32_1 = arith.constant 0 : i32
    return %arg0, %c0_i32, %c0_i32_0 : i32, i32, i32
  }
  func.func @transform_5(%arg0: i32) -> (i32, i32) {
    %c0_i32 = arith.constant 0 : i32
    %c0_i32_0 = arith.constant 0 : i32
    %c0_i32_1 = arith.constant 0 : i32
    return %c0_i32, %c0_i32_0 : i32, i32
  }
  func.func @transform_6(%arg0: i32) -> (i32, i32) {
    %c0_i32 = arith.constant 0 : i32
    %c0_i32_0 = arith.constant 0 : i32
    %c0_i32_1 = arith.constant 0 : i32
    return %c0_i32, %c0_i32_0 : i32, i32
  }
}

module attributes {stable_mosaic.version = 11 : i64} {
  func.func @_dec_norm_kernel(%arg0: i32, %arg1: i32, %arg2: memref<256x128xbf16, #tpu.memory_space<vmem>>, %arg3: memref<128x128xbf16, #tpu.memory_space<vmem>>, %arg4: memref<1x128xf32, #tpu.memory_space<vmem>>, %arg5: memref<256x1xf32, #tpu.memory_space<vmem>>, %arg6: memref<256x128xf32, #tpu.memory_space<vmem>>) attributes {dimension_semantics = [#tpu.dimension_semantics<parallel>, #tpu.dimension_semantics<parallel>], iteration_bounds = array<i64: 1, 3>, scalar_prefetch = 0 : i64, scratch_operands = 0 : i64, tpu.core_type = #tpu.core_type<tc>, window_params = [{transform_indices = @transform_0, window_bounds = array<i64: 256, 128>}, {transform_indices = @transform_1, window_bounds = array<i64: 128, 128>}, {transform_indices = @transform_2, window_bounds = array<i64: 1, 128>}, {transform_indices = @transform_3, window_bounds = array<i64: 256, 1>}, {transform_indices = @transform_4, window_bounds = array<i64: 256, 128>}]} {
    %c0 = arith.constant 0 : index
    %c0_0 = arith.constant 0 : index
    %0 = vector.load %arg2[%c0, %c0_0] : memref<256x128xbf16, #tpu.memory_space<vmem>>, vector<256x128xbf16>
    %c0_1 = arith.constant 0 : index
    %c0_2 = arith.constant 0 : index
    %1 = vector.load %arg3[%c0_1, %c0_2] : memref<128x128xbf16, #tpu.memory_space<vmem>>, vector<128x128xbf16>
    %cst = arith.constant dense<0.000000e+00> : vector<256x128xf32>
    %2 = tpu.matmul %0, %1, %cst {dimension_numbers = #tpu.dot_dimension_numbers<[1], [0], [0], [1], [0, 0, 1, 1], [], []>} : vector<256x128xbf16>, vector<128x128xbf16>, vector<256x128xf32> -> vector<256x128xf32>
    %c0_3 = arith.constant 0 : index
    %c0_4 = arith.constant 0 : index
    %3 = vector.load %arg4[%c0_3, %c0_4] : memref<1x128xf32, #tpu.memory_space<vmem>>, vector<1x128xf32>
    %4 = vector.broadcast %3 : vector<1x128xf32> to vector<256x128xf32>
    %5 = arith.addf %2, %4 : vector<256x128xf32>
    %c0_5 = arith.constant 0 : index
    %c0_6 = arith.constant 0 : index
    %6 = vector.load %arg5[%c0_5, %c0_6] : memref<256x1xf32, #tpu.memory_space<vmem>>, vector<256x1xf32>
    %7 = vector.broadcast %6 : vector<256x1xf32> to vector<256x128xf32>
    %8 = arith.subf %5, %7 : vector<256x128xf32>
    %c0_7 = arith.constant 0 : index
    %c0_8 = arith.constant 0 : index
    %9 = vector.load %arg6[%c0_7, %c0_8] : memref<256x128xf32, #tpu.memory_space<vmem>>, vector<256x128xf32>
    tpu.vector_store %arg6[%c0_7, %c0_8], %8 {strides = array<i32>} : memref<256x128xf32, #tpu.memory_space<vmem>>, vector<256x128xf32>,
    return
  }
  func.func @transform_0(%arg0: i32, %arg1: i32) -> (i32, i32) {
    %c0_i32 = arith.constant 0 : i32
    %c0_i32_0 = arith.constant 0 : i32
    return %arg0, %c0_i32 : i32, i32
  }
  func.func @transform_1(%arg0: i32, %arg1: i32) -> (i32, i32) {
    %c0_i32 = arith.constant 0 : i32
    %c0_i32_0 = arith.constant 0 : i32
    return %c0_i32, %arg1 : i32, i32
  }
  func.func @transform_2(%arg0: i32, %arg1: i32) -> (i32, i32) {
    %c0_i32 = arith.constant 0 : i32
    %c0_i32_0 = arith.constant 0 : i32
    return %c0_i32, %arg1 : i32, i32
  }
  func.func @transform_3(%arg0: i32, %arg1: i32) -> (i32, i32) {
    %c0_i32 = arith.constant 0 : i32
    %c0_i32_0 = arith.constant 0 : i32
    return %arg0, %c0_i32 : i32, i32
  }
  func.func @transform_4(%arg0: i32, %arg1: i32) -> (i32, i32) {
    %c0_i32 = arith.constant 0 : i32
    return %arg0, %arg1 : i32, i32
  }
}

</mosaic_0001>

<llo_original>
// kernel: rnn_model_forward.6
$region0: #{rnn_model_forward.6}
  #allocation0 [shape = 'u32[]', space=smem, size = 0x4, offset = 0x4, fixed_abs, tag = 'smem constant byte address 0x4 - core index']
  #allocation1 [shape = 'u32[144,128]{1,0:T(1,128)}', space=vmem, size = 0x12000, scoped, tag = 'internal scratch']
  %s0 = inlined_call_operand.vmem [shape: bf16[256,128], index: 0, kind: input, shape index: {}]
  %s1 = inlined_call_operand.vmem [shape: bf16[128,512], index: 1, kind: input, shape index: {}]
  %s2 = inlined_call_operand.vmem [shape: f32[1,512], index: 2, kind: input, shape index: {}]
  %s3 = inlined_call_operand.vmem [shape: f32[256,512], index: 3, kind: output, shape index: {}]
  %s4 = sld [smem:[#allocation0]]
  $region22: #{rnn_model_forward.6} parent=0
    _
  %s6 = ssub.s32 1, %s4
  %s7 = scalar_select 0, %s6, %s4
  // Predicated region
  $region2: #{rnn_model_forward.6} parent=0 // pred_check
    _
  $region3: #{rnn_model_forward.6} parent=0 // pred_check_branch
    %9 = sbr.rel (0) target = $region5
  $region4: #{rnn_model_forward.6} parent=0 // pred_region
    _
  $region5: #{rnn_model_forward.6} parent=0 // pred_fallthru
    _
  // Predicated region
  $region6: #{rnn_model_forward.6} parent=0 // pred_check
    _
  $region7: #{rnn_model_forward.6} parent=0 // pred_check_branch
    %11 = sbr.rel (0) target = $region9
  $region8: #{rnn_model_forward.6} parent=0 // pred_region
    _
  $region9: #{rnn_model_forward.6} parent=0 // pred_fallthru
    _
  // Predicated region
  $region10: #{rnn_model_forward.6} parent=0 // pred_check
    _
  $region11: #{rnn_model_forward.6} parent=0 // pred_check_branch
    %13 = sbr.rel (0) target = $region13
  $region12: #{rnn_model_forward.6} parent=0 // pred_region
    _
  $region13: #{rnn_model_forward.6} parent=0 // pred_fallthru
    _
  %v15 = vld [vmem:[%s0] sm:$0xf]
  %v16 = vld [vmem:[%s0 + $0x4] sm:$0xf]
  %v17 = vld [vmem:[%s0 + $0x8] sm:$0xf]
  %v18 = vld [vmem:[%s0 + $0xc] sm:$0xf]
  %v19 = vld [vmem:[%s0 + $0x10] sm:$0xf]
  %v20 = vld [vmem:[%s0 + $0x14] sm:$0xf]
  %v21 = vld [vmem:[%s0 + $0x18] sm:$0xf]
  %v22 = vld [vmem:[%s0 + $0x1c] sm:$0xf]
  %v23 = vld [vmem:[%s0 + $0x20] sm:$0xf]
  %v24 = vld [vmem:[%s0 + $0x24] sm:$0xf]
  %v25 = vld [vmem:[%s0 + $0x28] sm:$0xf]
  %v26 = vld [vmem:[%s0 + $0x2c] sm:$0xf]
  %v27 = vld [vmem:[%s0 + $0x30] sm:$0xf]
  %v28 = vld [vmem:[%s0 + $0x34] sm:$0xf]
  %v29 = vld [vmem:[%s0 + $0x38] sm:$0xf]
  %v30 = vld [vmem:[%s0 + $0x3c] sm:$0xf]
  %v31 = vld [vmem:[%s0 + $0x40] sm:$0xf]
  %v32 = vld [vmem:[%s0 + $0x44] sm:$0xf]
  %v33 = vld [vmem:[%s0 + $0x48] sm:$0xf]
  %v34 = vld [vmem:[%s0 + $0x4c] sm:$0xf]
  %v35 = vld [vmem:[%s0 + $0x50] sm:$0xf]
  %v36 = vld [vmem:[%s0 + $0x54] sm:$0xf]
  %v37 = vld [vmem:[%s0 + $0x58] sm:$0xf]
  %v38 = vld [vmem:[%s0 + $0x5c] sm:$0xf]
  %v39 = vld [vmem:[%s0 + $0x60] sm:$0xf]
  %v40 = vld [vmem:[%s0 + $0x64] sm:$0xf]
  %v41 = vld [vmem:[%s0 + $0x68] sm:$0xf]
  %v42 = vld [vmem:[%s0 + $0x6c] sm:$0xf]
  %v43 = vld [vmem:[%s0 + $0x70] sm:$0xf]
  %v44 = vld [vmem:[%s0 + $0x74] sm:$0xf]
  %v45 = vld [vmem:[%s0 + $0x78] sm:$0xf]
  %v46 = vld [vmem:[%s0 + $0x7c] sm:$0xf]
  %v47 = vld [vmem:[%s1] sm:$0xff]
  %v48 = vld [vmem:[%s1 + $0x8] sm:$0xff]
  %v49 = vld [vmem:[%s1 + $0x10] sm:$0xff]
  %v50 = vld [vmem:[%s1 + $0x18] sm:$0xff]
  %v51 = vld [vmem:[%s1 + $0x20] sm:$0xff]
  %v52 = vld [vmem:[%s1 + $0x28] sm:$0xff]
  %v53 = vld [vmem:[%s1 + $0x30] sm:$0xff]
  %v54 = vld [vmem:[%s1 + $0x38] sm:$0xff]
  %v55 = vld [vmem:[%s1 + $0x40] sm:$0xff]
  %v56 = vld [vmem:[%s1 + $0x48] sm:$0xff]
  %v57 = vld [vmem:[%s1 + $0x50] sm:$0xff]
  %v58 = vld [vmem:[%s1 + $0x58] sm:$0xff]
  %v59 = vld [vmem:[%s1 + $0x60] sm:$0xff]
  %v60 = vld [vmem:[%s1 + $0x68] sm:$0xff]
  %v61 = vld [vmem:[%s1 + $0x70] sm:$0xff]
  %v62 = vld [vmem:[%s1 + $0x78] sm:$0xff]
  %v63 = vld [vmem:[%s1 + $0x80] sm:$0xff]
  %v64 = vld [vmem:[%s1 + $0x88] sm:$0xff]
  %v65 = vld [vmem:[%s1 + $0x90] sm:$0xff]
  %v66 = vld [vmem:[%s1 + $0x98] sm:$0xff]
  %v67 = vld [vmem:[%s1 + $0xa0] sm:$0xff]
  %v68 = vld [vmem:[%s1 + $0xa8] sm:$0xff]
  %v69 = vld [vmem:[%s1 + $0xb0] sm:$0xff]
  %v70 = vld [vmem:[%s1 + $0xb8] sm:$0xff]
  %v71 = vld [vmem:[%s1 + $0xc0] sm:$0xff]
  %v72 = vld [vmem:[%s1 + $0xc8] sm:$0xff]
  %v73 = vld [vmem:[%s1 + $0xd0] sm:$0xff]
  %v74 = vld [vmem:[%s1 + $0xd8] sm:$0xff]
  %v75 = vld [vmem:[%s1 + $0xe0] sm:$0xff]
  %v76 = vld [vmem:[%s1 + $0xe8] sm:$0xff]
  %v77 = vld [vmem:[%s1 + $0xf0] sm:$0xff]
  %v78 = vld [vmem:[%s1 + $0xf8] sm:$0xff]
  %v79 = vld [vmem:[%s2] sm:$0xf]
  %v81 = vlaneseq
  %v82 = vshrl.u32 %v81, 7
  %v83 = vsub.s32 0, %v82
  %v84 = vrot.slane %v79, %v83
  %v85 = vlaneseq
  %v86 = vshrl.u32 %v85, 7
  %v87 = vsub.s32 1, %v86
  %v88 = vrot.slane %v79, %v87
  %v89 = vlaneseq
  %v90 = vshrl.u32 %v89, 7
  %v91 = vsub.s32 2, %v90
  %v92 = vrot.slane %v79, %v91
  %v93 = vlaneseq
  %v94 = vshrl.u32 %v93, 7
  %v95 = vsub.s32 3, %v94
  %v96 = vrot.slane %v79, %v95
  %v133 = vunpack.c.l.b16 %v15
  %v134 = vunpack.c.l.b16 %v16
  %v135 = vunpack.c.l.b16 %v17
  %v136 = vunpack.c.l.b16 %v18
  %v137 = vunpack.c.l.b16 %v19
  %v138 = vunpack.c.l.b16 %v20
  %v139 = vunpack.c.l.b16 %v21
  %v140 = vunpack.c.l.b16 %v22
  %v141 = vunpack.c.l.b16 %v23
  %v142 = vunpack.c.l.b16 %v24
  %v143 = vunpack.c.l.b16 %v25
  %v144 = vunpack.c.l.b16 %v26
  %v145 = vunpack.c.l.b16 %v27
  %v146 = vunpack.c.l.b16 %v28
  %v147 = vunpack.c.l.b16 %v29
  %v148 = vunpack.c.l.b16 %v30
  %v149 = vunpack.c.l.b16 %v31
  %v150 = vunpack.c.l.b16 %v32
  %v151 = vunpack.c.l.b16 %v33
  %v152 = vunpack.c.l.b16 %v34
  %v153 = vunpack.c.l.b16 %v35
  %v154 = vunpack.c.l.b16 %v36
  %v155 = vunpack.c.l.b16 %v37
  %v156 = vunpack.c.l.b16 %v38
  %v157 = vunpack.c.l.b16 %v39
  %v158 = vunpack.c.l.b16 %v40
  %v159 = vunpack.c.l.b16 %v41
  %v160 = vunpack.c.l.b16 %v42
  %v161 = vunpack.c.l.b16 %v43
  %v162 = vunpack.c.l.b16 %v44
  %v163 = vunpack.c.l.b16 %v45
  %v164 = vunpack.c.l.b16 %v46
  %v165 = vpack.c.b16 %v134, %v133
  %v166 = vpack.c.b16 %v136, %v135
  %v167 = vpack.c.b16 %v138, %v137
  %v168 = vpack.c.b16 %v140, %v139
  %v169 = vpack.c.b16 %v142, %v141
  %v170 = vpack.c.b16 %v144, %v143
  %v171 = vpack.c.b16 %v146, %v145
  %v172 = vpack.c.b16 %v148, %v147
  %v173 = vpack.c.b16 %v150, %v149
  %v174 = vpack.c.b16 %v152, %v151
  %v175 = vpack.c.b16 %v154, %v153
  %v176 = vpack.c.b16 %v156, %v155
  %v177 = vpack.c.b16 %v158, %v157
  %v178 = vpack.c.b16 %v160, %v159
  %v179 = vpack.c.b16 %v162, %v161
  %v180 = vpack.c.b16 %v164, %v163
  %v229 = vunpack.c.l.b16 %v47
  %v230 = vunpack.c.h.b16 %v47
  %v231 = vunpack.c.l.b16 %v48
  %v232 = vunpack.c.h.b16 %v48
  %v233 = vunpack.c.l.b16 %v49
  %v234 = vunpack.c.h.b16 %v49
  %v235 = vunpack.c.l.b16 %v50
  %v236 = vunpack.c.h.b16 %v50
  %v237 = vunpack.c.l.b16 %v51
  %v238 = vunpack.c.h.b16 %v51
  %v239 = vunpack.c.l.b16 %v52
  %v240 = vunpack.c.h.b16 %v52
  %v241 = vunpack.c.l.b16 %v53
  %v242 = vunpack.c.h.b16 %v53
  %v243 = vunpack.c.l.b16 %v54
  %v244 = vunpack.c.h.b16 %v54
  %v245 = vunpack.c.l.b16 %v55
  %v246 = vunpack.c.h.b16 %v55
  %v247 = vunpack.c.l.b16 %v56
  %v248 = vunpack.c.h.b16 %v56
  %v249 = vunpack.c.l.b16 %v57
  %v250 = vunpack.c.h.b16 %v57
  %v251 = vunpack.c.l.b16 %v58
  %v252 = vunpack.c.h.b16 %v58
  %v253 = vunpack.c.l.b16 %v59
  %v254 = vunpack.c.h.b16 %v59
  %v255 = vunpack.c.l.b16 %v60
  %v256 = vunpack.c.h.b16 %v60
  %v257 = vunpack.c.l.b16 %v61
  %v258 = vunpack.c.h.b16 %v61
  %v259 = vunpack.c.l.b16 %v62
  %v260 = vunpack.c.h.b16 %v62
  %v261 = vunpack.c.l.b16 %v63
  %v262 = vunpack.c.h.b16 %v63
  %v263 = vunpack.c.l.b16 %v64
  %v264 = vunpack.c.h.b16 %v64
  %v265 = vunpack.c.l.b16 %v65
  %v266 = vunpack.c.h.b16 %v65
  %v267 = vunpack.c.l.b16 %v66
  %v268 = vunpack.c.h.b16 %v66
  %v269 = vunpack.c.l.b16 %v67
  %v270 = vunpack.c.h.b16 %v67
  %v271 = vunpack.c.l.b16 %v68
  %v272 = vunpack.c.h.b16 %v68
  %v273 = vunpack.c.l.b16 %v69
  %v274 = vunpack.c.h.b16 %v69
  %v275 = vunpack.c.l.b16 %v70
  %v276 = vunpack.c.h.b16 %v70
  %v277 = vunpack.c.l.b16 %v71
  %v278 = vunpack.c.h.b16 %v71
  %v279 = vunpack.c.l.b16 %v72
  %v280 = vunpack.c.h.b16 %v72
  %v281 = vunpack.c.l.b16 %v73
  %v282 = vunpack.c.h.b16 %v73
  %v283 = vunpack.c.l.b16 %v74
  %v284 = vunpack.c.h.b16 %v74
  %v285 = vunpack.c.l.b16 %v75
  %v286 = vunpack.c.h.b16 %v75
  %v287 = vunpack.c.l.b16 %v76
  %v288 = vunpack.c.h.b16 %v76
  %v289 = vunpack.c.l.b16 %v77
  %v290 = vunpack.c.h.b16 %v77
  %v291 = vunpack.c.l.b16 %v78
  %v292 = vunpack.c.h.b16 %v78
  %v293 = vpack.c.b16 %v233, %v229
  %v294 = vpack.c.b16 %v234, %v230
  %v295 = vpack.c.b16 %v235, %v231
  %v296 = vpack.c.b16 %v236, %v232
  %v297 = vpack.c.b16 %v241, %v237
  %v298 = vpack.c.b16 %v242, %v238
  %v299 = vpack.c.b16 %v243, %v239
  %v300 = vpack.c.b16 %v244, %v240
  %v301 = vpack.c.b16 %v249, %v245
  %v302 = vpack.c.b16 %v250, %v246
  %v303 = vpack.c.b16 %v251, %v247
  %v304 = vpack.c.b16 %v252, %v248
  %v305 = vpack.c.b16 %v257, %v253
  %v306 = vpack.c.b16 %v258, %v254
  %v307 = vpack.c.b16 %v259, %v255
  %v308 = vpack.c.b16 %v260, %v256
  %v309 = vpack.c.b16 %v265, %v261
  %v310 = vpack.c.b16 %v266, %v262
  %v311 = vpack.c.b16 %v267, %v263
  %v312 = vpack.c.b16 %v268, %v264
  %v313 = vpack.c.b16 %v273, %v269
  %v314 = vpack.c.b16 %v274, %v270
  %v315 = vpack.c.b16 %v275, %v271
  %v316 = vpack.c.b16 %v276, %v272
  %v317 = vpack.c.b16 %v281, %v277
  %v318 = vpack.c.b16 %v282, %v278
  %v319 = vpack.c.b16 %v283, %v279
  %v320 = vpack.c.b16 %v284, %v280
  %v321 = vpack.c.b16 %v289, %v285
  %v322 = vpack.c.b16 %v290, %v286
  %v323 = vpack.c.b16 %v291, %v287
  %v324 = vpack.c.b16 %v292, %v288
  %357 = vmatprep.subr.bf16.mxu0 %v294
  %358 = vmatpush1.bf16.msra.mxu0 %v293
  %359 = vmatprep.subr.bf16.mxu0 %v298
  %360 = vmatpush1.bf16.msra.mxu0 %v297
  %361 = vmatprep.subr.bf16.mxu0 %v302
  %362 = vmatpush1.bf16.msra.mxu0 %v301
  %363 = vmatprep.subr.bf16.mxu0 %v306
  %364 = vmatpush1.bf16.msra.mxu0 %v305
  %365 = vmatprep.subr.bf16.mxu0 %v310
  %366 = vmatpush1.bf16.msra.mxu0 %v309
  %367 = vmatprep.subr.bf16.mxu0 %v314
  %368 = vmatpush1.bf16.msra.mxu0 %v313
  %369 = vmatprep.subr.bf16.mxu0 %v318
  %370 = vmatpush1.bf16.msra.mxu0 %v317
  %371 = vmatprep.subr.bf16.mxu0 %v322
  %372 = vmatpush1.bf16.msra.mxu0 %v321
  %373 = vmatprep.subr.bf16.mxu0 0
  %374 = vmatpush1.bf16.msra.mxu0 0
  %375 = vmatprep.subr.bf16.mxu0 0
  %376 = vmatpush1.bf16.msra.mxu0 0
  %377 = vmatprep.subr.bf16.mxu0 0
  %378 = vmatpush1.bf16.msra.mxu0 0
  %379 = vmatprep.subr.bf16.mxu0 0
  %380 = vmatpush1.bf16.msra.mxu0 0
  %381 = vmatprep.subr.bf16.mxu0 0
  %382 = vmatpush1.bf16.msra.mxu0 0
  %383 = vmatprep.subr.bf16.mxu0 0
  %384 = vmatpush1.bf16.msra.mxu0 0
  %385 = vmatprep.subr.bf16.mxu0 0
  %386 = vmatpush1.bf16.msra.mxu0 0
  %387 = vmatprep.subr.bf16.mxu0 0
  %388 = vmatpush1.bf16.msra.mxu0 0
  %389 = vmatprep.mubr.bf16.mxu0 0
  %390 = vmatmul.mubr.bf16.gmra.mrb[0].mxu0 %v165
  %v391 = vpop.f32.mrb[0].mxu0
  %v392 = vadd.f32 %v84, %v391
  %v393 = vpop.f32.mrb[0].mxu0
  %v394 = vadd.f32 %v88, %v393
  %v395 = vpop.f32.mrb[0].mxu0
  %v396 = vadd.f32 %v84, %v395
  %v397 = vpop.f32.mrb[0].mxu0
  %v398 = vadd.f32 %v88, %v397
  %399 = vmatprep.mubr.bf16.mxu0 0
  %400 = vmatmul.mubr.bf16.gmra.mrb[0].mxu0 %v166
  %v401 = vpop.f32.mrb[0].mxu0
  %v402 = vadd.f32 %v84, %v401
  %v403 = vpop.f32.mrb[0].mxu0
  %v404 = vadd.f32 %v88, %v403
  %v405 = vpop.f32.mrb[0].mxu0
  %v406 = vadd.f32 %v84, %v405
  %v407 = vpop.f32.mrb[0].mxu0
  %v408 = vadd.f32 %v88, %v407
  %409 = vmatprep.mubr.bf16.mxu0 0
  %410 = vmatmul.mubr.bf16.gmra.mrb[0].mxu0 %v167
  %v411 = vpop.f32.mrb[0].mxu0
  %v412 = vadd.f32 %v84, %v411
  %v413 = vpop.f32.mrb[0].mxu0
  %v414 = vadd.f32 %v88, %v413
  %v415 = vpop.f32.mrb[0].mxu0
  %v416 = vadd.f32 %v84, %v415
  %v417 = vpop.f32.mrb[0].mxu0
  %v418 = vadd.f32 %v88, %v417
  %419 = vmatprep.mubr.bf16.mxu0 0
  %420 = vmatmul.mubr.bf16.gmra.mrb[0].mxu0 %v168
  %v421 = vpop.f32.mrb[0].mxu0
  %v422 = vadd.f32 %v84, %v421
  %v423 = vpop.f32.mrb[0].mxu0
  %v424 = vadd.f32 %v88, %v423
  %v425 = vpop.f32.mrb[0].mxu0
  %v426 = vadd.f32 %v84, %v425
  %v427 = vpop.f32.mrb[0].mxu0
  %v428 = vadd.f32 %v88, %v427
  %429 = vmatprep.mubr.bf16.mxu0 0
  %430 = vmatmul.mubr.bf16.gmra.mrb[0].mxu0 %v169
  %v431 = vpop.f32.mrb[0].mxu0
  %v432 = vadd.f32 %v84, %v431
  %v433 = vpop.f32.mrb[0].mxu0
  %v434 = vadd.f32 %v88, %v433
  %v435 = vpop.f32.mrb[0].mxu0
  %v436 = vadd.f32 %v84, %v435
  %v437 = vpop.f32.mrb[0].mxu0
  %v438 = vadd.f32 %v88, %v437
  %439 = vmatprep.mubr.bf16.mxu0 0
  %440 = vmatmul.mubr.bf16.gmra.mrb[0].mxu0 %v170
  %v441 = vpop.f32.mrb[0].mxu0
  %v442 = vadd.f32 %v84, %v441
  %v443 = vpop.f32.mrb[0].mxu0
  %v444 = vadd.f32 %v88, %v443
  %v445 = vpop.f32.mrb[0].mxu0
  %v446 = vadd.f32 %v84, %v445
  %v447 = vpop.f32.mrb[0].mxu0
  %v448 = vadd.f32 %v88, %v447
  %449 = vmatprep.mubr.bf16.mxu0 0
  %450 = vmatmul.mubr.bf16.gmra.mrb[0].mxu0 %v171
  %v451 = vpop.f32.mrb[0].mxu0
  %v452 = vadd.f32 %v84, %v451
  %v453 = vpop.f32.mrb[0].mxu0
  %v454 = vadd.f32 %v88, %v453
  %v455 = vpop.f32.mrb[0].mxu0
  %v456 = vadd.f32 %v84, %v455
  %v457 = vpop.f32.mrb[0].mxu0
  %v458 = vadd.f32 %v88, %v457
  %459 = vmatprep.mubr.bf16.mxu0 0
  %460 = vmatmul.mubr.bf16.gmra.mrb[0].mxu0 %v172
  %v461 = vpop.f32.mrb[0].mxu0
  %v462 = vadd.f32 %v84, %v461
  %v463 = vpop.f32.mrb[0].mxu0
  %v464 = vadd.f32 %v88, %v463
  %v465 = vpop.f32.mrb[0].mxu0
  %v466 = vadd.f32 %v84, %v465
  %v467 = vpop.f32.mrb[0].mxu0
  %v468 = vadd.f32 %v88, %v467
  %469 = vmatprep.mubr.bf16.mxu0 0
  %470 = vmatmul.mubr.bf16.gmra.mrb[0].mxu0 %v173
  %v471 = vpop.f32.mrb[0].mxu0
  %v472 = vadd.f32 %v84, %v471
  %v473 = vpop.f32.mrb[0].mxu0
  %v474 = vadd.f32 %v88, %v473
  %v475 = vpop.f32.mrb[0].mxu0
  %v476 = vadd.f32 %v84, %v475
  %v477 = vpop.f32.mrb[0].mxu0
  %v478 = vadd.f32 %v88, %v477
  %479 = vmatprep.mubr.bf16.mxu0 0
  %480 = vmatmul.mubr.bf16.gmra.mrb[0].mxu0 %v174
  %v481 = vpop.f32.mrb[0].mxu0
  %v482 = vadd.f32 %v84, %v481
  %v483 = vpop.f32.mrb[0].mxu0
  %v484 = vadd.f32 %v88, %v483
  %v485 = vpop.f32.mrb[0].mxu0
  %v486 = vadd.f32 %v84, %v485
  %v487 = vpop.f32.mrb[0].mxu0
  %v488 = vadd.f32 %v88, %v487
  %489 = vmatprep.mubr.bf16.mxu0 0
  %490 = vmatmul.mubr.bf16.gmra.mrb[0].mxu0 %v175
  %v491 = vpop.f32.mrb[0].mxu0
  %v492 = vadd.f32 %v84, %v491
  %v493 = vpop.f32.mrb[0].mxu0
  %v494 = vadd.f32 %v88, %v493
  %v495 = vpop.f32.mrb[0].mxu0
  %v496 = vadd.f32 %v84, %v495
  %v497 = vpop.f32.mrb[0].mxu0
  %v498 = vadd.f32 %v88, %v497
  %499 = vmatprep.mubr.bf16.mxu0 0
  %500 = vmatmul.mubr.bf16.gmra.mrb[0].mxu0 %v176
  %v501 = vpop.f32.mrb[0].mxu0
  %v502 = vadd.f32 %v84, %v501
  %v503 = vpop.f32.mrb[0].mxu0
  %v504 = vadd.f32 %v88, %v503
  %v505 = vpop.f32.mrb[0].mxu0
  %v506 = vadd.f32 %v84, %v505
  %v507 = vpop.f32.mrb[0].mxu0
  %v508 = vadd.f32 %v88, %v507
  %509 = vmatprep.mubr.bf16.mxu0 0
  %510 = vmatmul.mubr.bf16.gmra.mrb[0].mxu0 %v177
  %v511 = vpop.f32.mrb[0].mxu0
  %v512 = vadd.f32 %v84, %v511
  %v513 = vpop.f32.mrb[0].mxu0
  %v514 = vadd.f32 %v88, %v513
  %v515 = vpop.f32.mrb[0].mxu0
  %v516 = vadd.f32 %v84, %v515
  %v517 = vpop.f32.mrb[0].mxu0
  %v518 = vadd.f32 %v88, %v517
  %519 = vmatprep.mubr.bf16.mxu0 0
  %520 = vmatmul.mubr.bf16.gmra.mrb[0].mxu0 %v178
  %v521 = vpop.f32.mrb[0].mxu0
  %v522 = vadd.f32 %v84, %v521
  %v523 = vpop.f32.mrb[0].mxu0
  %v524 = vadd.f32 %v88, %v523
  %v525 = vpop.f32.mrb[0].mxu0
  %v526 = vadd.f32 %v84, %v525
  %v527 = vpop.f32.mrb[0].mxu0
  %v528 = vadd.f32 %v88, %v527
  %529 = vmatprep.mubr.bf16.mxu0 0
  %530 = vmatmul.mubr.bf16.gmra.mrb[0].mxu0 %v179
  %v531 = vpop.f32.mrb[0].mxu0
  %v532 = vadd.f32 %v84, %v531
  %v533 = vpop.f32.mrb[0].mxu0
  %v534 = vadd.f32 %v88, %v533
  %v535 = vpop.f32.mrb[0].mxu0
  %v536 = vadd.f32 %v84, %v535
  %v537 = vpop.f32.mrb[0].mxu0
  %v538 = vadd.f32 %v88, %v537
  %539 = vmatprep.mubr.bf16.mxu0 0
  %540 = vmatmul.mubr.bf16.gmra.mrb[0].mxu0 %v180
  %v541 = vpop.f32.mrb[0].mxu0
  %v542 = vadd.f32 %v84, %v541
  %v543 = vpop.f32.mrb[0].mxu0
  %v544 = vadd.f32 %v88, %v543
  %v545 = vpop.f32.mrb[0].mxu0
  %v546 = vadd.f32 %v84, %v545
  %v547 = vpop.f32.mrb[0].mxu0
  %v548 = vadd.f32 %v88, %v547
  %549 = vdwg.mxu0
  %550 = vmatprep.subr.bf16.mxu0 %v296
  %551 = vmatpush1.bf16.msra.mxu0 %v295
  %552 = vmatprep.subr.bf16.mxu0 %v300
  %553 = vmatpush1.bf16.msra.mxu0 %v299
  %554 = vmatprep.subr.bf16.mxu0 %v304
  %555 = vmatpush1.bf16.msra.mxu0 %v303
  %556 = vmatprep.subr.bf16.mxu0 %v308
  %557 = vmatpush1.bf16.msra.mxu0 %v307
  %558 = vmatprep.subr.bf16.mxu0 %v312
  %559 = vmatpush1.bf16.msra.mxu0 %v311
  %560 = vmatprep.subr.bf16.mxu0 %v316
  %561 = vmatpush1.bf16.msra.mxu0 %v315
  %562 = vmatprep.subr.bf16.mxu0 %v320
  %563 = vmatpush1.bf16.msra.mxu0 %v319
  %564 = vmatprep.subr.bf16.mxu0 %v324
  %565 = vmatpush1.bf16.msra.mxu0 %v323
  %566 = vmatprep.subr.bf16.mxu0 0
  %567 = vmatpush1.bf16.msra.mxu0 0
  %568 = vmatprep.subr.bf16.mxu0 0
  %569 = vmatpush1.bf16.msra.mxu0 0
  %570 = vmatprep.subr.bf16.mxu0 0
  %571 = vmatpush1.bf16.msra.mxu0 0
  %572 = vmatprep.subr.bf16.mxu0 0
  %573 = vmatpush1.bf16.msra.mxu0 0
  %574 = vmatprep.subr.bf16.mxu0 0
  %575 = vmatpush1.bf16.msra.mxu0 0
  %576 = vmatprep.subr.bf16.mxu0 0
  %577 = vmatpush1.bf16.msra.mxu0 0
  %578 = vmatprep.subr.bf16.mxu0 0
  %579 = vmatpush1.bf16.msra.mxu0 0
  %580 = vmatprep.subr.bf16.mxu0 0
  %581 = vmatpush1.bf16.msra.mxu0 0
  %582 = vmatprep.mubr.bf16.mxu0 0
  %583 = vmatmul.mubr.bf16.gmra.mrb[0].mxu0 %v165
  %v584 = vpop.f32.mrb[0].mxu0
  %v585 = vadd.f32 %v92, %v584
  %v586 = vpop.f32.mrb[0].mxu0
  %v587 = vadd.f32 %v96, %v586
  %v588 = vpop.f32.mrb[0].mxu0
  %v589 = vadd.f32 %v92, %v588
  %v590 = vpop.f32.mrb[0].mxu0
  %v591 = vadd.f32 %v96, %v590
  %592 = vmatprep.mubr.bf16.mxu0 0
  %593 = vmatmul.mubr.bf16.gmra.mrb[0].mxu0 %v166
  %v594 = vpop.f32.mrb[0].mxu0
  %v595 = vadd.f32 %v92, %v594
  %v596 = vpop.f32.mrb[0].mxu0
  %v597 = vadd.f32 %v96, %v596
  %v598 = vpop.f32.mrb[0].mxu0
  %v599 = vadd.f32 %v92, %v598
  %v600 = vpop.f32.mrb[0].mxu0
  %v601 = vadd.f32 %v96, %v600
  %602 = vmatprep.mubr.bf16.mxu0 0
  %603 = vmatmul.mubr.bf16.gmra.mrb[0].mxu0 %v167
  %v604 = vpop.f32.mrb[0].mxu0
  %v605 = vadd.f32 %v92, %v604
  %v606 = vpop.f32.mrb[0].mxu0
  %v607 = vadd.f32 %v96, %v606
  %v608 = vpop.f32.mrb[0].mxu0
  %v609 = vadd.f32 %v92, %v608
  %v610 = vpop.f32.mrb[0].mxu0
  %v611 = vadd.f32 %v96, %v610
  %612 = vmatprep.mubr.bf16.mxu0 0
  %613 = vmatmul.mubr.bf16.gmra.mrb[0].mxu0 %v168
  %v614 = vpop.f32.mrb[0].mxu0
  %v615 = vadd.f32 %v92, %v614
  %v616 = vpop.f32.mrb[0].mxu0
  %v617 = vadd.f32 %v96, %v616
  %v618 = vpop.f32.mrb[0].mxu0
  %v619 = vadd.f32 %v92, %v618
  %v620 = vpop.f32.mrb[0].mxu0
  %v621 = vadd.f32 %v96, %v620
  %622 = vmatprep.mubr.bf16.mxu0 0
  %623 = vmatmul.mubr.bf16.gmra.mrb[0].mxu0 %v169
  %v624 = vpop.f32.mrb[0].mxu0
  %v625 = vadd.f32 %v92, %v624
  %v626 = vpop.f32.mrb[0].mxu0
  %v627 = vadd.f32 %v96, %v626
  %v628 = vpop.f32.mrb[0].mxu0
  %v629 = vadd.f32 %v92, %v628
  %v630 = vpop.f32.mrb[0].mxu0
  %v631 = vadd.f32 %v96, %v630
  %632 = vmatprep.mubr.bf16.mxu0 0
  %633 = vmatmul.mubr.bf16.gmra.mrb[0].mxu0 %v170
  %v634 = vpop.f32.mrb[0].mxu0
  %v635 = vadd.f32 %v92, %v634
  %v636 = vpop.f32.mrb[0].mxu0
  %v637 = vadd.f32 %v96, %v636
  %v638 = vpop.f32.mrb[0].mxu0
  %v639 = vadd.f32 %v92, %v638
  %v640 = vpop.f32.mrb[0].mxu0
  %v641 = vadd.f32 %v96, %v640
  %642 = vmatprep.mubr.bf16.mxu0 0
  %643 = vmatmul.mubr.bf16.gmra.mrb[0].mxu0 %v171
  %v644 = vpop.f32.mrb[0].mxu0
  %v645 = vadd.f32 %v92, %v644
  %v646 = vpop.f32.mrb[0].mxu0
  %v647 = vadd.f32 %v96, %v646
  %v648 = vpop.f32.mrb[0].mxu0
  %v649 = vadd.f32 %v92, %v648
  %v650 = vpop.f32.mrb[0].mxu0
  %v651 = vadd.f32 %v96, %v650
  %652 = vmatprep.mubr.bf16.mxu0 0
  %653 = vmatmul.mubr.bf16.gmra.mrb[0].mxu0 %v172
  %v654 = vpop.f32.mrb[0].mxu0
  %v655 = vadd.f32 %v92, %v654
  %v656 = vpop.f32.mrb[0].mxu0
  %v657 = vadd.f32 %v96, %v656
  %v658 = vpop.f32.mrb[0].mxu0
  %v659 = vadd.f32 %v92, %v658
  %v660 = vpop.f32.mrb[0].mxu0
  %v661 = vadd.f32 %v96, %v660
  %662 = vmatprep.mubr.bf16.mxu0 0
  %663 = vmatmul.mubr.bf16.gmra.mrb[0].mxu0 %v173
  %v664 = vpop.f32.mrb[0].mxu0
  %v665 = vadd.f32 %v92, %v664
  %v666 = vpop.f32.mrb[0].mxu0
  %v667 = vadd.f32 %v96, %v666
  %v668 = vpop.f32.mrb[0].mxu0
  %v669 = vadd.f32 %v92, %v668
  %v670 = vpop.f32.mrb[0].mxu0
  %v671 = vadd.f32 %v96, %v670
  %672 = vmatprep.mubr.bf16.mxu0 0
  %673 = vmatmul.mubr.bf16.gmra.mrb[0].mxu0 %v174
  %v674 = vpop.f32.mrb[0].mxu0
  %v675 = vadd.f32 %v92, %v674
  %v676 = vpop.f32.mrb[0].mxu0
  %v677 = vadd.f32 %v96, %v676
  %v678 = vpop.f32.mrb[0].mxu0
  %v679 = vadd.f32 %v92, %v678
  %v680 = vpop.f32.mrb[0].mxu0
  %v681 = vadd.f32 %v96, %v680
  %682 = vmatprep.mubr.bf16.mxu0 0
  %683 = vmatmul.mubr.bf16.gmra.mrb[0].mxu0 %v175
  %v684 = vpop.f32.mrb[0].mxu0
  %v685 = vadd.f32 %v92, %v684
  %v686 = vpop.f32.mrb[0].mxu0
  %v687 = vadd.f32 %v96, %v686
  %v688 = vpop.f32.mrb[0].mxu0
  %v689 = vadd.f32 %v92, %v688
  %v690 = vpop.f32.mrb[0].mxu0
  %v691 = vadd.f32 %v96, %v690
  %692 = vmatprep.mubr.bf16.mxu0 0
  %693 = vmatmul.mubr.bf16.gmra.mrb[0].mxu0 %v176
  %v694 = vpop.f32.mrb[0].mxu0
  %v695 = vadd.f32 %v92, %v694
  %v696 = vpop.f32.mrb[0].mxu0
  %v697 = vadd.f32 %v96, %v696
  %v698 = vpop.f32.mrb[0].mxu0
  %v699 = vadd.f32 %v92, %v698
  %v700 = vpop.f32.mrb[0].mxu0
  %v701 = vadd.f32 %v96, %v700
  %702 = vmatprep.mubr.bf16.mxu0 0
  %703 = vmatmul.mubr.bf16.gmra.mrb[0].mxu0 %v177
  %v704 = vpop.f32.mrb[0].mxu0
  %v705 = vadd.f32 %v92, %v704
  %v706 = vpop.f32.mrb[0].mxu0
  %v707 = vadd.f32 %v96, %v706
  %v708 = vpop.f32.mrb[0].mxu0
  %v709 = vadd.f32 %v92, %v708
  %v710 = vpop.f32.mrb[0].mxu0
  %v711 = vadd.f32 %v96, %v710
  %712 = vmatprep.mubr.bf16.mxu0 0
  %713 = vmatmul.mubr.bf16.gmra.mrb[0].mxu0 %v178
  %v714 = vpop.f32.mrb[0].mxu0
  %v715 = vadd.f32 %v92, %v714
  %v716 = vpop.f32.mrb[0].mxu0
  %v717 = vadd.f32 %v96, %v716
  %v718 = vpop.f32.mrb[0].mxu0
  %v719 = vadd.f32 %v92, %v718
  %v720 = vpop.f32.mrb[0].mxu0
  %v721 = vadd.f32 %v96, %v720
  %722 = vmatprep.mubr.bf16.mxu0 0
  %723 = vmatmul.mubr.bf16.gmra.mrb[0].mxu0 %v179
  %v724 = vpop.f32.mrb[0].mxu0
  %v725 = vadd.f32 %v92, %v724
  %v726 = vpop.f32.mrb[0].mxu0
  %v727 = vadd.f32 %v96, %v726
  %v728 = vpop.f32.mrb[0].mxu0
  %v729 = vadd.f32 %v92, %v728
  %v730 = vpop.f32.mrb[0].mxu0
  %v731 = vadd.f32 %v96, %v730
  %732 = vmatprep.mubr.bf16.mxu0 0
  %733 = vmatmul.mubr.bf16.gmra.mrb[0].mxu0 %v180
  %v734 = vpop.f32.mrb[0].mxu0
  %v735 = vadd.f32 %v92, %v734
  %v736 = vpop.f32.mrb[0].mxu0
  %v737 = vadd.f32 %v96, %v736
  %v738 = vpop.f32.mrb[0].mxu0
  %v739 = vadd.f32 %v92, %v738
  %v740 = vpop.f32.mrb[0].mxu0
  %v741 = vadd.f32 %v96, %v740
  %742 = vdwg.mxu0
  %743 = vst [vmem:[%s3] sm:$0xff] %v392
  %744 = vst [vmem:[%s3 + $0x8] sm:$0xff] %v394
  %745 = vst [vmem:[%s3 + $0x10] sm:$0xff] %v585
  %746 = vst [vmem:[%s3 + $0x18] sm:$0xff] %v587
  %747 = vst [vmem:[%s3 + $0x20] sm:$0xff] %v396
  %748 = vst [vmem:[%s3 + $0x28] sm:$0xff] %v398
  %749 = vst [vmem:[%s3 + $0x30] sm:$0xff] %v589
  %750 = vst [vmem:[%s3 + $0x38] sm:$0xff] %v591
  %751 = vst [vmem:[%s3 + $0x40] sm:$0xff] %v402
  %752 = vst [vmem:[%s3 + $0x48] sm:$0xff] %v404
  %753 = vst [vmem:[%s3 + $0x50] sm:$0xff] %v595
  %754 = vst [vmem:[%s3 + $0x58] sm:$0xff] %v597
  %755 = vst [vmem:[%s3 + $0x60] sm:$0xff] %v406
  %756 = vst [vmem:[%s3 + $0x68] sm:$0xff] %v408
  %757 = vst [vmem:[%s3 + $0x70] sm:$0xff] %v599
  %758 = vst [vmem:[%s3 + $0x78] sm:$0xff] %v601
  %759 = vst [vmem:[%s3 + $0x80] sm:$0xff] %v412
  %760 = vst [vmem:[%s3 + $0x88] sm:$0xff] %v414
  %761 = vst [vmem:[%s3 + $0x90] sm:$0xff] %v605
  %762 = vst [vmem:[%s3 + $0x98] sm:$0xff] %v607
  %763 = vst [vmem:[%s3 + $0xa0] sm:$0xff] %v416
  %764 = vst [vmem:[%s3 + $0xa8] sm:$0xff] %v418
  %765 = vst [vmem:[%s3 + $0xb0] sm:$0xff] %v609
  %766 = vst [vmem:[%s3 + $0xb8] sm:$0xff] %v611
  %767 = vst [vmem:[%s3 + $0xc0] sm:$0xff] %v422
  %768 = vst [vmem:[%s3 + $0xc8] sm:$0xff] %v424
  %769 = vst [vmem:[%s3 + $0xd0] sm:$0xff] %v615
  %770 = vst [vmem:[%s3 + $0xd8] sm:$0xff] %v617
  %771 = vst [vmem:[%s3 + $0xe0] sm:$0xff] %v426
  %772 = vst [vmem:[%s3 + $0xe8] sm:$0xff] %v428
  %773 = vst [vmem:[%s3 + $0xf0] sm:$0xff] %v619
  %774 = vst [vmem:[%s3 + $0xf8] sm:$0xff] %v621
  %775 = vst [vmem:[%s3 + $0x100] sm:$0xff] %v432
  %776 = vst [vmem:[%s3 + $0x108] sm:$0xff] %v434
  %777 = vst [vmem:[%s3 + $0x110] sm:$0xff] %v625
  %778 = vst [vmem:[%s3 + $0x118] sm:$0xff] %v627
  %779 = vst [vmem:[%s3 + $0x120] sm:$0xff] %v436
  %780 = vst [vmem:[%s3 + $0x128] sm:$0xff] %v438
  %781 = vst [vmem:[%s3 + $0x130] sm:$0xff] %v629
  %782 = vst [vmem:[%s3 + $0x138] sm:$0xff] %v631
  %783 = vst [vmem:[%s3 + $0x140] sm:$0xff] %v442
  %784 = vst [vmem:[%s3 + $0x148] sm:$0xff] %v444
  %785 = vst [vmem:[%s3 + $0x150] sm:$0xff] %v635
  %786 = vst [vmem:[%s3 + $0x158] sm:$0xff] %v637
  %787 = vst [vmem:[%s3 + $0x160] sm:$0xff] %v446
  %788 = vst [vmem:[%s3 + $0x168] sm:$0xff] %v448
  %789 = vst [vmem:[%s3 + $0x170] sm:$0xff] %v639
  %790 = vst [vmem:[%s3 + $0x178] sm:$0xff] %v641
  %791 = vst [vmem:[%s3 + $0x180] sm:$0xff] %v452
  %792 = vst [vmem:[%s3 + $0x188] sm:$0xff] %v454
  %793 = vst [vmem:[%s3 + $0x190] sm:$0xff] %v645
  %794 = vst [vmem:[%s3 + $0x198] sm:$0xff] %v647
  %795 = vst [vmem:[%s3 + $0x1a0] sm:$0xff] %v456
  %796 = vst [vmem:[%s3 + $0x1a8] sm:$0xff] %v458
  %797 = vst [vmem:[%s3 + $0x1b0] sm:$0xff] %v649
  %798 = vst [vmem:[%s3 + $0x1b8] sm:$0xff] %v651
  %799 = vst [vmem:[%s3 + $0x1c0] sm:$0xff] %v462
  %800 = vst [vmem:[%s3 + $0x1c8] sm:$0xff] %v464
  %801 = vst [vmem:[%s3 + $0x1d0] sm:$0xff] %v655
  %802 = vst [vmem:[%s3 + $0x1d8] sm:$0xff] %v657
  %803 = vst [vmem:[%s3 + $0x1e0] sm:$0xff] %v466
  %804 = vst [vmem:[%s3 + $0x1e8] sm:$0xff] %v468
  %805 = vst [vmem:[%s3 + $0x1f0] sm:$0xff] %v659
  %806 = vst [vmem:[%s3 + $0x1f8] sm:$0xff] %v661
  %807 = vst [vmem:[%s3 + $0x200] sm:$0xff] %v472
  %808 = vst [vmem:[%s3 + $0x208] sm:$0xff] %v474
  %809 = vst [vmem:[%s3 + $0x210] sm:$0xff] %v665
  %810 = vst [vmem:[%s3 + $0x218] sm:$0xff] %v667
  %811 = vst [vmem:[%s3 + $0x220] sm:$0xff] %v476
  %812 = vst [vmem:[%s3 + $0x228] sm:$0xff] %v478
  %813 = vst [vmem:[%s3 + $0x230] sm:$0xff] %v669
  %814 = vst [vmem:[%s3 + $0x238] sm:$0xff] %v671
  %815 = vst [vmem:[%s3 + $0x240] sm:$0xff] %v482
  %816 = vst [vmem:[%s3 + $0x248] sm:$0xff] %v484
  %817 = vst [vmem:[%s3 + $0x250] sm:$0xff] %v675
  %818 = vst [vmem:[%s3 + $0x258] sm:$0xff] %v677
  %819 = vst [vmem:[%s3 + $0x260] sm:$0xff] %v486
  %820 = vst [vmem:[%s3 + $0x268] sm:$0xff] %v488
  %821 = vst [vmem:[%s3 + $0x270] sm:$0xff] %v679
  %822 = vst [vmem:[%s3 + $0x278] sm:$0xff] %v681
  %823 = vst [vmem:[%s3 + $0x280] sm:$0xff] %v492
  %824 = vst [vmem:[%s3 + $0x288] sm:$0xff] %v494
  %825 = vst [vmem:[%s3 + $0x290] sm:$0xff] %v685
  %826 = vst [vmem:[%s3 + $0x298] sm:$0xff] %v687
  %827 = vst [vmem:[%s3 + $0x2a0] sm:$0xff] %v496
  %828 = vst [vmem:[%s3 + $0x2a8] sm:$0xff] %v498
  %829 = vst [vmem:[%s3 + $0x2b0] sm:$0xff] %v689
  %830 = vst [vmem:[%s3 + $0x2b8] sm:$0xff] %v691
  %831 = vst [vmem:[%s3 + $0x2c0] sm:$0xff] %v502
  %832 = vst [vmem:[%s3 + $0x2c8] sm:$0xff] %v504
  %833 = vst [vmem:[%s3 + $0x2d0] sm:$0xff] %v695
  %834 = vst [vmem:[%s3 + $0x2d8] sm:$0xff] %v697
  %835 = vst [vmem:[%s3 + $0x2e0] sm:$0xff] %v506
  %836 = vst [vmem:[%s3 + $0x2e8] sm:$0xff] %v508
  %837 = vst [vmem:[%s3 + $0x2f0] sm:$0xff] %v699
  %838 = vst [vmem:[%s3 + $0x2f8] sm:$0xff] %v701
  %839 = vst [vmem:[%s3 + $0x300] sm:$0xff] %v512
  %840 = vst [vmem:[%s3 + $0x308] sm:$0xff] %v514
  %841 = vst [vmem:[%s3 + $0x310] sm:$0xff] %v705
  %842 = vst [vmem:[%s3 + $0x318] sm:$0xff] %v707
  %843 = vst [vmem:[%s3 + $0x320] sm:$0xff] %v516
  %844 = vst [vmem:[%s3 + $0x328] sm:$0xff] %v518
  %845 = vst [vmem:[%s3 + $0x330] sm:$0xff] %v709
  %846 = vst [vmem:[%s3 + $0x338] sm:$0xff] %v711
  %847 = vst [vmem:[%s3 + $0x340] sm:$0xff] %v522
  %848 = vst [vmem:[%s3 + $0x348] sm:$0xff] %v524
  %849 = vst [vmem:[%s3 + $0x350] sm:$0xff] %v715
  %850 = vst [vmem:[%s3 + $0x358] sm:$0xff] %v717
  %851 = vst [vmem:[%s3 + $0x360] sm:$0xff] %v526
  %852 = vst [vmem:[%s3 + $0x368] sm:$0xff] %v528
  %853 = vst [vmem:[%s3 + $0x370] sm:$0xff] %v719
  %854 = vst [vmem:[%s3 + $0x378] sm:$0xff] %v721
  %855 = vst [vmem:[%s3 + $0x380] sm:$0xff] %v532
  %856 = vst [vmem:[%s3 + $0x388] sm:$0xff] %v534
  %857 = vst [vmem:[%s3 + $0x390] sm:$0xff] %v725
  %858 = vst [vmem:[%s3 + $0x398] sm:$0xff] %v727
  %859 = vst [vmem:[%s3 + $0x3a0] sm:$0xff] %v536
  %860 = vst [vmem:[%s3 + $0x3a8] sm:$0xff] %v538
  %861 = vst [vmem:[%s3 + $0x3b0] sm:$0xff] %v729
  %862 = vst [vmem:[%s3 + $0x3b8] sm:$0xff] %v731
  %863 = vst [vmem:[%s3 + $0x3c0] sm:$0xff] %v542
  %864 = vst [vmem:[%s3 + $0x3c8] sm:$0xff] %v544
  %865 = vst [vmem:[%s3 + $0x3d0] sm:$0xff] %v735
  %866 = vst [vmem:[%s3 + $0x3d8] sm:$0xff] %v737
  %867 = vst [vmem:[%s3 + $0x3e0] sm:$0xff] %v546
  %868 = vst [vmem:[%s3 + $0x3e8] sm:$0xff] %v548
  %869 = vst [vmem:[%s3 + $0x3f0] sm:$0xff] %v739
  %870 = vst [vmem:[%s3 + $0x3f8] sm:$0xff] %v741
  // Predicated region
  $region14: #{rnn_model_forward.6} parent=0 // pred_check
    _
  $region15: #{rnn_model_forward.6} parent=0 // pred_check_branch
    %872 = sbr.rel (0) target = $region17
  $region16: #{rnn_model_forward.6} parent=0 // pred_region
    _
  $region17: #{rnn_model_forward.6} parent=0 // pred_fallthru
    _
  // Predicated region
  $region18: #{rnn_model_forward.6} parent=0 // pred_check
    _
  $region19: #{rnn_model_forward.6} parent=0 // pred_check_branch
    %874 = sbr.rel (0) target = $region21
  $region20: #{rnn_model_forward.6} parent=0 // pred_region
    _
  $region21: #{rnn_model_forward.6} parent=0 // pred_fallthru
    _

// kernel: rnn_model_forward.10
$region0: #{rnn_model_forward.10}
  #allocation0 [shape = 'u32[]', space=smem, size = 0x4, offset = 0x4, fixed_abs, tag = 'smem constant byte address 0x4 - core index']
  #allocation1 [shape = 'u32[144,128]{1,0:T(1,128)}', space=vmem, size = 0x12000, scoped, tag = 'internal scratch']
  #allocation2 [shape = 'f32[256,1]{1,0:T(8,128)}', space=vmem, size = 0x20000, scoped, tag = 'scratch operand']
  #allocation3 [shape = 'f32[256,1]{1,0:T(8,128)}', space=vmem, size = 0x20000, scoped, tag = 'scratch operand']
  %s0 = inlined_call_operand.vmem [shape: bf16[256,128], index: 0, kind: input, shape index: {}]
  %s1 = inlined_call_operand.vmem [shape: bf16[128,384], index: 1, kind: input, shape index: {}]
  %s2 = inlined_call_operand.vmem [shape: f32[1,384], index: 2, kind: input, shape index: {}]
  %s3 = inlined_call_operand.vmem [shape: f32[256,1], index: 3, kind: output, shape index: {}]
  %s4 = sld [smem:[#allocation0]]
  $region94: #{rnn_model_forward.10} parent=0
    _
  %s6 = ssub.s32 1, %s4
  %s7 = scalar_select 0, %s6, %s4
  $region1: #{rnn_model_forward.10} parent=0
    #allocation4 [shape = 'u8[65536]{0}', space=vmem, size = 0x10000, scoped, tag = 'input window, operand 1']
    loop: start=0, step=1, limit=5
    $region2: #{rnn_model_forward.10} parent=1 // loop_pre_header
      _
    $region3: #{rnn_model_forward.10} parent=1 // loop_header
      %s9 = sphi 0, %s13
      %p10 = scmp.ge.s32.totalorder %s9, 5
      %s16 = sphi 0, %s28
      %s17 = sphi 0, %s24
      %s18 = sphi 0, %s16
      %s19 = sphi 0, %s17
      %s20 = sphi 0, %s18
      %s21 = sphi 0, %s19
      %s31 = sphi 0, %s33
      %s34 = sphi 0, %s31
      %s35 = sphi 0, %s34
      %s51 = sphi 0, %s35
      %s57 = sphi 0, %s59
      %s60 = sphi 0, %s57
      %s61 = sphi 0, %s60
      %s77 = sphi 0, %s61
      %s83 = sphi 0, %s85
      %s86 = sphi 0, %s83
      %s87 = sphi 0, %s86
      %s103 = sphi 0, %s87
      %s109 = sphi 0, %s111
      %s112 = sphi 0, %s109
      %s113 = sphi 0, %s112
      %s129 = sphi 0, %s113
    $region4: #{rnn_model_forward.10} parent=1 // loop_header_branch
      %12 = sbr.rel (%p10) target = $region8
    $region5: #{rnn_model_forward.10} parent=1 // loop_body
      %s14 = ssub.s32 %s9, 1
      %s15 = ssub.s32 %s9, 2
      %s22 = sadd.s32 1, %s17
      %p23 = scmp.ge.s32.totalorder %s22, 3
      %s24 = scalar_select %p23, 0, %s22
      %s25 = sadd.s32 1, %s16
      %s26 = scalar_select %p23, %s25, %s16
      %p27 = scmp.ge.s32.totalorder %s26, 1
      %s28 = scalar_select %p27, 0, %s26
      %s29 = ssub.s32 %s16, %s28
      %p30 = scmp.eq.s32.totalorder %s29, 0
      %s32 = sadd.s32 %s31, 1
      %s33 = scalar_select %p30, %s31, %s32
      %p36 = pneg %p30
      %p37 = scmp.eq.s32.totalorder %s9, 2
      %p38 = por %p36, %p37
      %p39 = scmp.ne.s32.totalorder %s31, %s34
      %p40 = scmp.eq.s32.totalorder %s9, 0
      %p41 = por %p39, %p40
      %p42 = scmp.ne.s32.totalorder %s31, %s34
      %p43 = scmp.eq.s32.totalorder %s14, 2
      %p44 = por %p42, %p43
      %p45 = scmp.ne.s32.totalorder %s34, %s35
      %p46 = scmp.eq.s32.totalorder %s14, 0
      %p47 = por %p45, %p46
      %p48 = scmp.ne.s32.totalorder %s34, %s35
      %p49 = scmp.eq.s32.totalorder %s15, 2
      %p50 = por %p48, %p49
      %p52 = scmp.ne.s32.totalorder %s35, %s51
      %p53 = scmp.eq.s32.totalorder %s15, 0
      %p54 = por %p52, %p53
      %s55 = ssub.s32 %s17, %s24
      %p56 = scmp.eq.s32.totalorder %s55, 0
      %s58 = sadd.s32 %s57, 1
      %s59 = scalar_select %p56, %s57, %s58
      %p62 = pneg %p56
      %p63 = scmp.eq.s32.totalorder %s9, 2
      %p64 = por %p62, %p63
      %p65 = scmp.ne.s32.totalorder %s57, %s60
      %p66 = scmp.eq.s32.totalorder %s9, 0
      %p67 = por %p65, %p66
      %p68 = scmp.ne.s32.totalorder %s57, %s60
      %p69 = scmp.eq.s32.totalorder %s14, 2
      %p70 = por %p68, %p69
      %p71 = scmp.ne.s32.totalorder %s60, %s61
      %p72 = scmp.eq.s32.totalorder %s14, 0
      %p73 = por %p71, %p72
      %p74 = scmp.ne.s32.totalorder %s60, %s61
      %p75 = scmp.eq.s32.totalorder %s15, 2
      %p76 = por %p74, %p75
      %p78 = scmp.ne.s32.totalorder %s61, %s77
      %p79 = scmp.eq.s32.totalorder %s15, 0
      %p80 = por %p78, %p79
      %s81 = ssub.s32 %s17, %s24
      %p82 = scmp.eq.s32.totalorder %s81, 0
      %s84 = sadd.s32 %s83, 1
      %s85 = scalar_select %p82, %s83, %s84
      %p88 = pneg %p82
      %p89 = scmp.eq.s32.totalorder %s9, 2
      %p90 = por %p88, %p89
      %p91 = scmp.ne.s32.totalorder %s83, %s86
      %p92 = scmp.eq.s32.totalorder %s9, 0
      %p93 = por %p91, %p92
      %p94 = scmp.ne.s32.totalorder %s83, %s86
      %p95 = scmp.eq.s32.totalorder %s14, 2
      %p96 = por %p94, %p95
      %p97 = scmp.ne.s32.totalorder %s86, %s87
      %p98 = scmp.eq.s32.totalorder %s14, 0
      %p99 = por %p97, %p98
      %p100 = scmp.ne.s32.totalorder %s86, %s87
      %p101 = scmp.eq.s32.totalorder %s15, 2
      %p102 = por %p100, %p101
      %p104 = scmp.ne.s32.totalorder %s87, %s103
      %p105 = scmp.eq.s32.totalorder %s15, 0
      %p106 = por %p104, %p105
      %s107 = ssub.s32 %s16, %s28
      %p108 = scmp.eq.s32.totalorder %s107, 0
      %s110 = sadd.s32 %s109, 1
      %s111 = scalar_select %p108, %s109, %s110
      %p114 = pneg %p108
      %p115 = scmp.eq.s32.totalorder %s9, 2
      %p116 = por %p114, %p115
      %p117 = scmp.ne.s32.totalorder %s109, %s112
      %p118 = scmp.eq.s32.totalorder %s9, 0
      %p119 = por %p117, %p118
      %p120 = scmp.ne.s32.totalorder %s109, %s112
      %p121 = scmp.eq.s32.totalorder %s14, 2
      %p122 = por %p120, %p121
      %p123 = scmp.ne.s32.totalorder %s112, %s113
      %p124 = scmp.eq.s32.totalorder %s14, 0
      %p125 = por %p123, %p124
      %p126 = scmp.ne.s32.totalorder %s112, %s113
      %p127 = scmp.eq.s32.totalorder %s15, 2
      %p128 = por %p126, %p127
      %p130 = scmp.ne.s32.totalorder %s113, %s129
      %p131 = scmp.eq.s32.totalorder %s15, 0
      %p132 = por %p130, %p131
      %p133 = scmp.le.s32.totalorder 1, %s9
      %p134 = scmp.lt.s32.totalorder %s9, 4
      %p135 = pnand %p133, %p134
      %p136 = pneg %p135
      // Predicated region
      $region9: #{rnn_model_forward.10} parent=5 // pred_check
        _
      $region10: #{rnn_model_forward.10} parent=5 // pred_check_branch
        %138 = sbr.rel (%p135) target = $region12
      $region11: #{rnn_model_forward.10} parent=5 // pred_region
        %s139 = ssub.s32 %s9, 1
        // Predicated region
        $region13: #{rnn_model_forward.10} parent=11 // pred_check
          %p140 = pneg %p47
        $region14: #{rnn_model_forward.10} parent=11 // pred_check_branch
          %142 = sbr.rel (%p140) target = $region16
        $region15: #{rnn_model_forward.10} parent=11 // pred_region
          %s143 = smul.u32 32, %s18
          %p144 = scmp.lt.s32.totalorder %s143, 31
          %s145 = scalar_select %p144, %s143, 31
          %s146 = smul.addr %s145, 4
          %s147 = scalar_lea.vmem %s0, %s146
          %s148 = smul.u32 32, %s18
        $region16: #{rnn_model_forward.10} parent=11 // pred_fallthru
          _
      $region12: #{rnn_model_forward.10} parent=5 // pred_fallthru
        _
      %p149 = scmp.lt.s32.totalorder %s9, 3
      // Predicated region
      $region17: #{rnn_model_forward.10} parent=5 // pred_check
        %p150 = pneg %p149
      $region18: #{rnn_model_forward.10} parent=5 // pred_check_branch
        %152 = sbr.rel (%p150) target = $region20
      $region19: #{rnn_model_forward.10} parent=5 // pred_region
        // Predicated region
        $region21: #{rnn_model_forward.10} parent=19 // pred_check
          %p153 = pneg %p67
        $region22: #{rnn_model_forward.10} parent=19 // pred_check_branch
          %155 = sbr.rel (%p153) target = $region24
        $region23: #{rnn_model_forward.10} parent=19 // pred_region
          %s156 = sand.u32 %s57, 1
          %s157 = sand.u32 %s57, 1
          %s158 = smul.addr %s157, 64
          %s159 = scalar_lea.vmem [#allocation4], %s158
          %s160 = smul.addr %s17, 4
          %s161 = scalar_lea.vmem %s1, %s160
          // Predicated region
          $region25: #{rnn_model_forward.10} parent=23 // pred_check
            _
          $region26: #{rnn_model_forward.10} parent=23 // pred_check_branch
            %163 = sbr.rel (0) target = $region28
          $region27: #{rnn_model_forward.10} parent=23 // pred_region
            // Predicated region
            $region29: #{rnn_model_forward.10} parent=27 // pred_check
              _
            $region30: #{rnn_model_forward.10} parent=27 // pred_check_branch
              %165 = sbr.rel target = $region32
            $region31: #{rnn_model_forward.10} parent=27 // pred_region
              // Predicated region
              $region44: #{rnn_model_forward.10} parent=31 // pred_check
                _
              $region45: #{rnn_model_forward.10} parent=31 // pred_check_branch
                %210 = sbr.rel (0) target = $region47
              $region46: #{rnn_model_forward.10} parent=31 // pred_region
                loop: start=0, step=1, limit=1
                $region48: #{rnn_model_forward.10} parent=46 // loop_pre_header
                  _
                $region49: #{rnn_model_forward.10} parent=46 // loop_header
                  %s212 = sphi 0, %s216
                  %p213 = scmp.ge.s32.totalorder %s212, 1
                  %s217 = sphi %s161, %s161
                  %s218 = sphi %s159, %s159
                $region50: #{rnn_model_forward.10} parent=46 // loop_header_branch
                  %215 = sbr.rel (%p213) target = $region54
                $region51: #{rnn_model_forward.10} parent=46 // loop_body
                  _
                $region52: #{rnn_model_forward.10} parent=46 // loop_footer
                  %s216 = sadd.s32 1, %s212
                $region53: #{rnn_model_forward.10} parent=46 // loop_footer_branch
                  %211 = sbr.rel target = $region49
                $region54: #{rnn_model_forward.10} parent=46 // loop_exit
                  _
                loop: start=0, step=1, limit=1
                $region55: #{rnn_model_forward.10} parent=46 // loop_pre_header
                  _
                $region56: #{rnn_model_forward.10} parent=46 // loop_header
                  %s221 = sphi 0, %s225
                  %p222 = scmp.ge.s32.totalorder %s221, 1
                  %s226 = sphi %s161, %s161
                  %s227 = sphi %s159, %s159
                $region57: #{rnn_model_forward.10} parent=46 // loop_header_branch
                  %224 = sbr.rel (%p222) target = $region61
                $region58: #{rnn_model_forward.10} parent=46 // loop_body
                  %v228 = vld [vmem:[%s226] sm:$0xf]
                  %229 = vst [vmem:[%s227] sm:$0xf] %v228
                  %v230 = vld [vmem:[%s226 + $0xc] sm:$0xf]
                  %231 = vst [vmem:[%s227 + $0x4] sm:$0xf] %v230
                  %v232 = vld [vmem:[%s226 + $0x18] sm:$0xf]
                  %233 = vst [vmem:[%s227 + $0x8] sm:$0xf] %v232
                  %v234 = vld [vmem:[%s226 + $0x24] sm:$0xf]
                  %235 = vst [vmem:[%s227 + $0xc] sm:$0xf] %v234
                  %v236 = vld [vmem:[%s226 + $0x30] sm:$0xf]
                  %237 = vst [vmem:[%s227 + $0x10] sm:$0xf] %v236
                  %v238 = vld [vmem:[%s226 + $0x3c] sm:$0xf]
                  %239 = vst [vmem:[%s227 + $0x14] sm:$0xf] %v238
                  %v240 = vld [vmem:[%s226 + $0x48] sm:$0xf]
                  %241 = vst [vmem:[%s227 + $0x18] sm:$0xf] %v240
                  %v242 = vld [vmem:[%s226 + $0x54] sm:$0xf]
                  %243 = vst [vmem:[%s227 + $0x1c] sm:$0xf] %v242
                  %v244 = vld [vmem:[%s226 + $0x60] sm:$0xf]
                  %245 = vst [vmem:[%s227 + $0x20] sm:$0xf] %v244
                  %v246 = vld [vmem:[%s226 + $0x6c] sm:$0xf]
                  %247 = vst [vmem:[%s227 + $0x24] sm:$0xf] %v246
                  %v248 = vld [vmem:[%s226 + $0x78] sm:$0xf]
                  %249 = vst [vmem:[%s227 + $0x28] sm:$0xf] %v248
                  %v250 = vld [vmem:[%s226 + $0x84] sm:$0xf]
                  %251 = vst [vmem:[%s227 + $0x2c] sm:$0xf] %v250
                  %v252 = vld [vmem:[%s226 + $0x90] sm:$0xf]
                  %253 = vst [vmem:[%s227 + $0x30] sm:$0xf] %v252
                  %v254 = vld [vmem:[%s226 + $0x9c] sm:$0xf]
                  %255 = vst [vmem:[%s227 + $0x34] sm:$0xf] %v254
                  %v256 = vld [vmem:[%s226 + $0xa8] sm:$0xf]
                  %257 = vst [vmem:[%s227 + $0x38] sm:$0xf] %v256
                  %v258 = vld [vmem:[%s226 + $0xb4] sm:$0xf]
                  %259 = vst [vmem:[%s227 + $0x3c] sm:$0xf] %v258
                $region59: #{rnn_model_forward.10} parent=46 // loop_footer
                  %s225 = sadd.s32 1, %s221
                $region60: #{rnn_model_forward.10} parent=46 // loop_footer_branch
                  %220 = sbr.rel target = $region56
                $region61: #{rnn_model_forward.10} parent=46 // loop_exit
                  _
              $region47: #{rnn_model_forward.10} parent=31 // pred_fallthru
                _
            $region32: #{rnn_model_forward.10} parent=27 // pred_fallthru
              _
            // Predicated region
            $region33: #{rnn_model_forward.10} parent=27 // pred_check
              _
            $region34: #{rnn_model_forward.10} parent=27 // pred_check_branch
              %167 = sbr.rel (0) target = $region36
            $region35: #{rnn_model_forward.10} parent=27 // pred_region
              loop: start=0, step=1, limit=1
              $region37: #{rnn_model_forward.10} parent=35 // loop_pre_header
                _
              $region38: #{rnn_model_forward.10} parent=35 // loop_header
                %s170 = sphi 0, %s174
                %p171 = scmp.ge.s32.totalorder %s170, 1
                %s175 = sphi %s161, %s161
                %s176 = sphi %s159, %s159
              $region39: #{rnn_model_forward.10} parent=35 // loop_header_branch
                %173 = sbr.rel (%p171) target = $region43
              $region40: #{rnn_model_forward.10} parent=35 // loop_body
                %v177 = vld [vmem:[%s175] sm:$0xf]
                %178 = vst [vmem:[%s176] sm:$0xf] %v177
                %v179 = vld [vmem:[%s175 + $0xc] sm:$0xf]
                %180 = vst [vmem:[%s176 + $0x4] sm:$0xf] %v179
                %v181 = vld [vmem:[%s175 + $0x18] sm:$0xf]
                %182 = vst [vmem:[%s176 + $0x8] sm:$0xf] %v181
                %v183 = vld [vmem:[%s175 + $0x24] sm:$0xf]
                %184 = vst [vmem:[%s176 + $0xc] sm:$0xf] %v183
                %v185 = vld [vmem:[%s175 + $0x30] sm:$0xf]
                %186 = vst [vmem:[%s176 + $0x10] sm:$0xf] %v185
                %v187 = vld [vmem:[%s175 + $0x3c] sm:$0xf]
                %188 = vst [vmem:[%s176 + $0x14] sm:$0xf] %v187
                %v189 = vld [vmem:[%s175 + $0x48] sm:$0xf]
                %190 = vst [vmem:[%s176 + $0x18] sm:$0xf] %v189
                %v191 = vld [vmem:[%s175 + $0x54] sm:$0xf]
                %192 = vst [vmem:[%s176 + $0x1c] sm:$0xf] %v191
                %v193 = vld [vmem:[%s175 + $0x60] sm:$0xf]
                %194 = vst [vmem:[%s176 + $0x20] sm:$0xf] %v193
                %v195 = vld [vmem:[%s175 + $0x6c] sm:$0xf]
                %196 = vst [vmem:[%s176 + $0x24] sm:$0xf] %v195
                %v197 = vld [vmem:[%s175 + $0x78] sm:$0xf]
                %198 = vst [vmem:[%s176 + $0x28] sm:$0xf] %v197
                %v199 = vld [vmem:[%s175 + $0x84] sm:$0xf]
                %200 = vst [vmem:[%s176 + $0x2c] sm:$0xf] %v199
                %v201 = vld [vmem:[%s175 + $0x90] sm:$0xf]
                %202 = vst [vmem:[%s176 + $0x30] sm:$0xf] %v201
                %v203 = vld [vmem:[%s175 + $0x9c] sm:$0xf]
                %204 = vst [vmem:[%s176 + $0x34] sm:$0xf] %v203
                %v205 = vld [vmem:[%s175 + $0xa8] sm:$0xf]
                %206 = vst [vmem:[%s176 + $0x38] sm:$0xf] %v205
                %v207 = vld [vmem:[%s175 + $0xb4] sm:$0xf]
                %208 = vst [vmem:[%s176 + $0x3c] sm:$0xf] %v207
              $region41: #{rnn_model_forward.10} parent=35 // loop_footer
                %s174 = sadd.s32 1, %s170
              $region42: #{rnn_model_forward.10} parent=35 // loop_footer_branch
                %169 = sbr.rel target = $region38
              $region43: #{rnn_model_forward.10} parent=35 // loop_exit
                _
            $region36: #{rnn_model_forward.10} parent=27 // pred_fallthru
              _
          $region28: #{rnn_model_forward.10} parent=23 // pred_fallthru
            _
          %260 = vnop
        $region24: #{rnn_model_forward.10} parent=19 // pred_fallthru
          _
        // Predicated region
        $region62: #{rnn_model_forward.10} parent=19 // pred_check
          %p261 = pneg %p93
        $region63: #{rnn_model_forward.10} parent=19 // pred_check_branch
          %263 = sbr.rel (%p261) target = $region65
        $region64: #{rnn_model_forward.10} parent=19 // pred_region
          %p264 = scmp.lt.s32.totalorder %s17, 2
          %s265 = scalar_select %p264, %s17, 2
          %s266 = scalar_lea.vmem %s2, %s265
        $region65: #{rnn_model_forward.10} parent=19 // pred_fallthru
          _
      $region20: #{rnn_model_forward.10} parent=5 // pred_fallthru
        _
      %p267 = scmp.le.s32.totalorder 1, %s9
      %p268 = scmp.lt.s32.totalorder %s9, 4
      %p269 = pnand %p267, %p268
      %p270 = pneg %p269
      // Predicated region
      $region66: #{rnn_model_forward.10} parent=5 // pred_check
        _
      $region67: #{rnn_model_forward.10} parent=5 // pred_check_branch
        %272 = sbr.rel (%p269) target = $region69
      $region68: #{rnn_model_forward.10} parent=5 // pred_region
        %s273 = ssub.s32 %s9, 1
        %s274 = sand.u32 %s60, 1
        %s275 = sand.u32 %s60, 1
        %s276 = smul.addr %s275, 64
        %s277 = scalar_lea.vmem [#allocation4], %s276
        // Predicated region
        $region70: #{rnn_model_forward.10} parent=68 // pred_check
          %p278 = pneg %p73
        $region71: #{rnn_model_forward.10} parent=68 // pred_check_branch
          %280 = sbr.rel (%p278) target = $region73
        $region72: #{rnn_model_forward.10} parent=68 // pred_region
          _
        $region73: #{rnn_model_forward.10} parent=68 // pred_fallthru
          _
        %s281 = smul.u32 32, %s18
        %p282 = scmp.lt.s32.totalorder %s281, 31
        %s283 = scalar_select %p282, %s281, 31
        %s284 = smul.addr %s283, 4
        %s285 = scalar_lea.vmem %s0, %s284
        %p286 = pneg %p47
        %p287 = pneg %p44
        %s288 = sand.u32 %s60, 1
        %s289 = sand.u32 %s60, 1
        %s290 = smul.addr %s289, 64
        %s291 = scalar_lea.vmem [#allocation4], %s290
        %p292 = pneg %p73
        %p293 = pneg %p70
        %p294 = scmp.lt.s32.totalorder %s19, 2
        %s295 = scalar_select %p294, %s19, 2
        %s296 = scalar_lea.vmem %s2, %s295
        %p297 = pneg %p99
        %p298 = pneg %p96
        %p299 = pneg %p125
        %p300 = pneg %p122
        %s301 = smul.u32 32, %s18
        %p302 = scmp.lt.s32.totalorder %s301, 31
        %s303 = scalar_select %p302, %s301, 31
        %s304 = smul.addr %s303, 8
        %s305 = scalar_lea.vmem %s3, %s304
        %s306 = smul.u32 32, %s18
        %p307 = scmp.lt.s32.totalorder %s306, 31
        %s308 = scalar_select %p307, %s306, 31
        %s309 = smul.addr %s308, 4
        %s310 = scalar_lea.vmem %s0, %s309
        %s311 = smul.u32 32, %s18
        %p312 = scmp.lt.s32.totalorder %s19, 2
        %s313 = scalar_select %p312, %s19, 2
        %s314 = scalar_lea.vmem %s2, %s313
        %s315 = smul.u32 32, %s18
        %p316 = scmp.lt.s32.totalorder %s315, 31
        %s317 = scalar_select %p316, %s315, 31
        %s318 = smul.addr %s317, 8
        %s319 = scalar_lea.vmem %s3, %s318
        %s320 = smul.u32 32, %s18
        %p322 = scmp.eq.s32.totalorder %s19, 0
        // Predicated region
        $region74: #{rnn_model_forward.10} parent=68 // pred_check
          %p323 = pneg %p322
        $region75: #{rnn_model_forward.10} parent=68 // pred_check_branch
          %325 = sbr.rel (%p323) target = $region77
        $region76: #{rnn_model_forward.10} parent=68 // pred_region
          %vm326 = vcmask 7168
          %327 = vst.msk [vmem:[#allocation2] sm:$0xff] %vm326, -inf
          %328 = vst.msk [vmem:[#allocation2 + $0x8] sm:$0xff] %vm326, -inf
          %329 = vst.msk [vmem:[#allocation2 + $0x10] sm:$0xff] %vm326, -inf
          %330 = vst.msk [vmem:[#allocation2 + $0x18] sm:$0xff] %vm326, -inf
          %331 = vst.msk [vmem:[#allocation2 + $0x20] sm:$0xff] %vm326, -inf
          %332 = vst.msk [vmem:[#allocation2 + $0x28] sm:$0xff] %vm326, -inf
          %333 = vst.msk [vmem:[#allocation2 + $0x30] sm:$0xff] %vm326, -inf
          %334 = vst.msk [vmem:[#allocation2 + $0x38] sm:$0xff] %vm326, -inf
          %335 = vst.msk [vmem:[#allocation2 + $0x40] sm:$0xff] %vm326, -inf
          %336 = vst.msk [vmem:[#allocation2 + $0x48] sm:$0xff] %vm326, -inf
          %337 = vst.msk [vmem:[#allocation2 + $0x50] sm:$0xff] %vm326, -inf
          %338 = vst.msk [vmem:[#allocation2 + $0x58] sm:$0xff] %vm326, -inf
          %339 = vst.msk [vmem:[#allocation2 + $0x60] sm:$0xff] %vm326, -inf
          %340 = vst.msk [vmem:[#allocation2 + $0x68] sm:$0xff] %vm326, -inf
          %341 = vst.msk [vmem:[#allocation2 + $0x70] sm:$0xff] %vm326, -inf
          %342 = vst.msk [vmem:[#allocation2 + $0x78] sm:$0xff] %vm326, -inf
          %343 = vst.msk [vmem:[#allocation2 + $0x80] sm:$0xff] %vm326, -inf
          %344 = vst.msk [vmem:[#allocation2 + $0x88] sm:$0xff] %vm326, -inf
          %345 = vst.msk [vmem:[#allocation2 + $0x90] sm:$0xff] %vm326, -inf
          %346 = vst.msk [vmem:[#allocation2 + $0x98] sm:$0xff] %vm326, -inf
          %347 = vst.msk [vmem:[#allocation2 + $0xa0] sm:$0xff] %vm326, -inf
          %348 = vst.msk [vmem:[#allocation2 + $0xa8] sm:$0xff] %vm326, -inf
          %349 = vst.msk [vmem:[#allocation2 + $0xb0] sm:$0xff] %vm326, -inf
          %350 = vst.msk [vmem:[#allocation2 + $0xb8] sm:$0xff] %vm326, -inf
          %351 = vst.msk [vmem:[#allocation2 + $0xc0] sm:$0xff] %vm326, -inf
          %352 = vst.msk [vmem:[#allocation2 + $0xc8] sm:$0xff] %vm326, -inf
          %353 = vst.msk [vmem:[#allocation2 + $0xd0] sm:$0xff] %vm326, -inf
          %354 = vst.msk [vmem:[#allocation2 + $0xd8] sm:$0xff] %vm326, -inf
          %355 = vst.msk [vmem:[#allocation2 + $0xe0] sm:$0xff] %vm326, -inf
          %356 = vst.msk [vmem:[#allocation2 + $0xe8] sm:$0xff] %vm326, -inf
          %357 = vst.msk [vmem:[#allocation2 + $0xf0] sm:$0xff] %vm326, -inf
          %358 = vst.msk [vmem:[#allocation2 + $0xf8] sm:$0xff] %vm326, -inf
          %359 = vst.msk [vmem:[#allocation3] sm:$0xff] %vm326, 0.0
          %360 = vst.msk [vmem:[#allocation3 + $0x8] sm:$0xff] %vm326, 0.0
          %361 = vst.msk [vmem:[#allocation3 + $0x10] sm:$0xff] %vm326, 0.0
          %362 = vst.msk [vmem:[#allocation3 + $0x18] sm:$0xff] %vm326, 0.0
          %363 = vst.msk [vmem:[#allocation3 + $0x20] sm:$0xff] %vm326, 0.0
          %364 = vst.msk [vmem:[#allocation3 + $0x28] sm:$0xff] %vm326, 0.0
          %365 = vst.msk [vmem:[#allocation3 + $0x30] sm:$0xff] %vm326, 0.0
          %366 = vst.msk [vmem:[#allocation3 + $0x38] sm:$0xff] %vm326, 0.0
          %367 = vst.msk [vmem:[#allocation3 + $0x40] sm:$0xff] %vm326, 0.0
          %368 = vst.msk [vmem:[#allocation3 + $0x48] sm:$0xff] %vm326, 0.0
          %369 = vst.msk [vmem:[#allocation3 + $0x50] sm:$0xff] %vm326, 0.0
          %370 = vst.msk [vmem:[#allocation3 + $0x58] sm:$0xff] %vm326, 0.0
          %371 = vst.msk [vmem:[#allocation3 + $0x60] sm:$0xff] %vm326, 0.0
          %372 = vst.msk [vmem:[#allocation3 + $0x68] sm:$0xff] %vm326, 0.0
          %373 = vst.msk [vmem:[#allocation3 + $0x70] sm:$0xff] %vm326, 0.0
          %374 = vst.msk [vmem:[#allocation3 + $0x78] sm:$0xff] %vm326, 0.0
          %375 = vst.msk [vmem:[#allocation3 + $0x80] sm:$0xff] %vm326, 0.0
          %376 = vst.msk [vmem:[#allocation3 + $0x88] sm:$0xff] %vm326, 0.0
          %377 = vst.msk [vmem:[#allocation3 + $0x90] sm:$0xff] %vm326, 0.0
          %378 = vst.msk [vmem:[#allocation3 + $0x98] sm:$0xff] %vm326, 0.0
          %379 = vst.msk [vmem:[#allocation3 + $0xa0] sm:$0xff] %vm326, 0.0
          %380 = vst.msk [vmem:[#allocation3 + $0xa8] sm:$0xff] %vm326, 0.0
          %381 = vst.msk [vmem:[#allocation3 + $0xb0] sm:$0xff] %vm326, 0.0
          %382 = vst.msk [vmem:[#allocation3 + $0xb8] sm:$0xff] %vm326, 0.0
          %383 = vst.msk [vmem:[#allocation3 + $0xc0] sm:$0xff] %vm326, 0.0
          %384 = vst.msk [vmem:[#allocation3 + $0xc8] sm:$0xff] %vm326, 0.0
          %385 = vst.msk [vmem:[#allocation3 + $0xd0] sm:$0xff] %vm326, 0.0
          %386 = vst.msk [vmem:[#allocation3 + $0xd8] sm:$0xff] %vm326, 0.0
          %387 = vst.msk [vmem:[#allocation3 + $0xe0] sm:$0xff] %vm326, 0.0
          %388 = vst.msk [vmem:[#allocation3 + $0xe8] sm:$0xff] %vm326, 0.0
          %389 = vst.msk [vmem:[#allocation3 + $0xf0] sm:$0xff] %vm326, 0.0
          %390 = vst.msk [vmem:[#allocation3 + $0xf8] sm:$0xff] %vm326, 0.0
        $region77: #{rnn_model_forward.10} parent=68 // pred_fallthru
          _
        %v391 = vld [vmem:[%s310] sm:$0xf]
        %v392 = vld [vmem:[%s310 + $0x4] sm:$0xf]
        %v393 = vld [vmem:[%s310 + $0x8] sm:$0xf]
        %v394 = vld [vmem:[%s310 + $0xc] sm:$0xf]
        %v395 = vld [vmem:[%s310 + $0x10] sm:$0xf]
        %v396 = vld [vmem:[%s310 + $0x14] sm:$0xf]
        %v397 = vld [vmem:[%s310 + $0x18] sm:$0xf]
        %v398 = vld [vmem:[%s310 + $0x1c] sm:$0xf]
        %v399 = vld [vmem:[%s310 + $0x20] sm:$0xf]
        %v400 = vld [vmem:[%s310 + $0x24] sm:$0xf]
        %v401 = vld [vmem:[%s310 + $0x28] sm:$0xf]
        %v402 = vld [vmem:[%s310 + $0x2c] sm:$0xf]
        %v403 = vld [vmem:[%s310 + $0x30] sm:$0xf]
        %v404 = vld [vmem:[%s310 + $0x34] sm:$0xf]
        %v405 = vld [vmem:[%s310 + $0x38] sm:$0xf]
        %v406 = vld [vmem:[%s310 + $0x3c] sm:$0xf]
        %v407 = vld [vmem:[%s310 + $0x40] sm:$0xf]
        %v408 = vld [vmem:[%s310 + $0x44] sm:$0xf]
        %v409 = vld [vmem:[%s310 + $0x48] sm:$0xf]
        %v410 = vld [vmem:[%s310 + $0x4c] sm:$0xf]
        %v411 = vld [vmem:[%s310 + $0x50] sm:$0xf]
        %v412 = vld [vmem:[%s310 + $0x54] sm:$0xf]
        %v413 = vld [vmem:[%s310 + $0x58] sm:$0xf]
        %v414 = vld [vmem:[%s310 + $0x5c] sm:$0xf]
        %v415 = vld [vmem:[%s310 + $0x60] sm:$0xf]
        %v416 = vld [vmem:[%s310 + $0x64] sm:$0xf]
        %v417 = vld [vmem:[%s310 + $0x68] sm:$0xf]
        %v418 = vld [vmem:[%s310 + $0x6c] sm:$0xf]
        %v419 = vld [vmem:[%s310 + $0x70] sm:$0xf]
        %v420 = vld [vmem:[%s310 + $0x74] sm:$0xf]
        %v421 = vld [vmem:[%s310 + $0x78] sm:$0xf]
        %v422 = vld [vmem:[%s310 + $0x7c] sm:$0xf]
        %v423 = vld [vmem:[%s277] sm:$0xf]
        %v424 = vld [vmem:[%s277 + $0x4] sm:$0xf]
        %v425 = vld [vmem:[%s277 + $0x8] sm:$0xf]
        %v426 = vld [vmem:[%s277 + $0xc] sm:$0xf]
        %v427 = vld [vmem:[%s277 + $0x10] sm:$0xf]
        %v428 = vld [vmem:[%s277 + $0x14] sm:$0xf]
        %v429 = vld [vmem:[%s277 + $0x18] sm:$0xf]
        %v430 = vld [vmem:[%s277 + $0x1c] sm:$0xf]
        %v431 = vld [vmem:[%s277 + $0x20] sm:$0xf]
        %v432 = vld [vmem:[%s277 + $0x24] sm:$0xf]
        %v433 = vld [vmem:[%s277 + $0x28] sm:$0xf]
        %v434 = vld [vmem:[%s277 + $0x2c] sm:$0xf]
        %v435 = vld [vmem:[%s277 + $0x30] sm:$0xf]
        %v436 = vld [vmem:[%s277 + $0x34] sm:$0xf]
        %v437 = vld [vmem:[%s277 + $0x38] sm:$0xf]
        %v438 = vld [vmem:[%s277 + $0x3c] sm:$0xf]
        %v439 = vld [vmem:[%s314] sm:$0x1]
        %v441 = vlaneseq
        %v442 = vshrl.u32 %v441, 7
        %v443 = vsub.s32 0, %v442
        %v444 = vrot.slane %v439, %v443
        %v478 = vunpack.c.l.b16 %v391
        %v479 = vunpack.c.l.b16 %v392
        %v480 = vunpack.c.l.b16 %v393
        %v481 = vunpack.c.l.b16 %v394
        %v482 = vunpack.c.l.b16 %v395
        %v483 = vunpack.c.l.b16 %v396
        %v484 = vunpack.c.l.b16 %v397
        %v485 = vunpack.c.l.b16 %v398
        %v486 = vunpack.c.l.b16 %v399
        %v487 = vunpack.c.l.b16 %v400
        %v488 = vunpack.c.l.b16 %v401
        %v489 = vunpack.c.l.b16 %v402
        %v490 = vunpack.c.l.b16 %v403
        %v491 = vunpack.c.l.b16 %v404
        %v492 = vunpack.c.l.b16 %v405
        %v493 = vunpack.c.l.b16 %v406
        %v494 = vunpack.c.l.b16 %v407
        %v495 = vunpack.c.l.b16 %v408
        %v496 = vunpack.c.l.b16 %v409
        %v497 = vunpack.c.l.b16 %v410
        %v498 = vunpack.c.l.b16 %v411
        %v499 = vunpack.c.l.b16 %v412
        %v500 = vunpack.c.l.b16 %v413
        %v501 = vunpack.c.l.b16 %v414
        %v502 = vunpack.c.l.b16 %v415
        %v503 = vunpack.c.l.b16 %v416
        %v504 = vunpack.c.l.b16 %v417
        %v505 = vunpack.c.l.b16 %v418
        %v506 = vunpack.c.l.b16 %v419
        %v507 = vunpack.c.l.b16 %v420
        %v508 = vunpack.c.l.b16 %v421
        %v509 = vunpack.c.l.b16 %v422
        %v510 = vpack.c.b16 %v479, %v478
        %v511 = vpack.c.b16 %v481, %v480
        %v512 = vpack.c.b16 %v483, %v482
        %v513 = vpack.c.b16 %v485, %v484
        %v514 = vpack.c.b16 %v487, %v486
        %v515 = vpack.c.b16 %v489, %v488
        %v516 = vpack.c.b16 %v491, %v490
        %v517 = vpack.c.b16 %v493, %v492
        %v518 = vpack.c.b16 %v495, %v494
        %v519 = vpack.c.b16 %v497, %v496
        %v520 = vpack.c.b16 %v499, %v498
        %v521 = vpack.c.b16 %v501, %v500
        %v522 = vpack.c.b16 %v503, %v502
        %v523 = vpack.c.b16 %v505, %v504
        %v524 = vpack.c.b16 %v507, %v506
        %v525 = vpack.c.b16 %v509, %v508
        %v558 = vunpack.c.l.b16 %v423
        %v559 = vunpack.c.l.b16 %v424
        %v560 = vunpack.c.l.b16 %v425
        %v561 = vunpack.c.l.b16 %v426
        %v562 = vunpack.c.l.b16 %v427
        %v563 = vunpack.c.l.b16 %v428
        %v564 = vunpack.c.l.b16 %v429
        %v565 = vunpack.c.l.b16 %v430
        %v566 = vunpack.c.l.b16 %v431
        %v567 = vunpack.c.l.b16 %v432
        %v568 = vunpack.c.l.b16 %v433
        %v569 = vunpack.c.l.b16 %v434
        %v570 = vunpack.c.l.b16 %v435
        %v571 = vunpack.c.l.b16 %v436
        %v572 = vunpack.c.l.b16 %v437
        %v573 = vunpack.c.l.b16 %v438
        %v574 = vpack.c.b16 %v559, %v558
        %v575 = vpack.c.b16 %v561, %v560
        %v576 = vpack.c.b16 %v563, %v562
        %v577 = vpack.c.b16 %v565, %v564
        %v578 = vpack.c.b16 %v567, %v566
        %v579 = vpack.c.b16 %v569, %v568
        %v580 = vpack.c.b16 %v571, %v570
        %v581 = vpack.c.b16 %v573, %v572
        %590 = vmatprep.subr.bf16.mxu0 0
        %591 = vmatpush1.bf16.msra.mxu0 %v574
        %592 = vmatprep.subr.bf16.mxu0 0
        %593 = vmatpush1.bf16.msra.mxu0 %v575
        %594 = vmatprep.subr.bf16.mxu0 0
        %595 = vmatpush1.bf16.msra.mxu0 %v576
        %596 = vmatprep.subr.bf16.mxu0 0
        %597 = vmatpush1.bf16.msra.mxu0 %v577
        %598 = vmatprep.subr.bf16.mxu0 0
        %599 = vmatpush1.bf16.msra.mxu0 %v578
        %600 = vmatprep.subr.bf16.mxu0 0
        %601 = vmatpush1.bf16.msra.mxu0 %v579
        %602 = vmatprep.subr.bf16.mxu0 0
        %603 = vmatpush1.bf16.msra.mxu0 %v580
        %604 = vmatprep.subr.bf16.mxu0 0
        %605 = vmatpush1.bf16.msra.mxu0 %v581
        %606 = vmatprep.subr.bf16.mxu0 0
        %607 = vmatpush1.bf16.msra.mxu0 0
        %608 = vmatprep.subr.bf16.mxu0 0
        %609 = vmatpush1.bf16.msra.mxu0 0
        %610 = vmatprep.subr.bf16.mxu0 0
        %611 = vmatpush1.bf16.msra.mxu0 0
        %612 = vmatprep.subr.bf16.mxu0 0
        %613 = vmatpush1.bf16.msra.mxu0 0
        %614 = vmatprep.subr.bf16.mxu0 0
        %615 = vmatpush1.bf16.msra.mxu0 0
        %616 = vmatprep.subr.bf16.mxu0 0
        %617 = vmatpush1.bf16.msra.mxu0 0
        %618 = vmatprep.subr.bf16.mxu0 0
        %619 = vmatpush1.bf16.msra.mxu0 0
        %620 = vmatprep.subr.bf16.mxu0 0
        %621 = vmatpush1.bf16.msra.mxu0 0
        %622 = vmatprep.mubr.bf16.mxu0 0
        %623 = vmatmul.mubr.bf16.gmra.mrb[0].mxu0 %v510
        %v624 = vpop.f32.mrb[0].mxu0
        %v625 = vadd.f32 %v444, %v624
        %v626 = vpop.f32.mrb[0].mxu0
        %v627 = vpop.f32.mrb[0].mxu0
        %v628 = vadd.f32 %v444, %v627
        %v629 = vpop.f32.mrb[0].mxu0
        %630 = vmatprep.mubr.bf16.mxu0 0
        %631 = vmatmul.mubr.bf16.gmra.mrb[0].mxu0 %v511
        %v632 = vpop.f32.mrb[0].mxu0
        %v633 = vadd.f32 %v444, %v632
        %v634 = vpop.f32.mrb[0].mxu0
        %v635 = vpop.f32.mrb[0].mxu0
        %v636 = vadd.f32 %v444, %v635
        %v637 = vpop.f32.mrb[0].mxu0
        %638 = vmatprep.mubr.bf16.mxu0 0
        %639 = vmatmul.mubr.bf16.gmra.mrb[0].mxu0 %v512
        %v640 = vpop.f32.mrb[0].mxu0
        %v641 = vadd.f32 %v444, %v640
        %v642 = vpop.f32.mrb[0].mxu0
        %v643 = vpop.f32.mrb[0].mxu0
        %v644 = vadd.f32 %v444, %v643
        %v645 = vpop.f32.mrb[0].mxu0
        %646 = vmatprep.mubr.bf16.mxu0 0
        %647 = vmatmul.mubr.bf16.gmra.mrb[0].mxu0 %v513
        %v648 = vpop.f32.mrb[0].mxu0
        %v649 = vadd.f32 %v444, %v648
        %v650 = vpop.f32.mrb[0].mxu0
        %v651 = vpop.f32.mrb[0].mxu0
        %v652 = vadd.f32 %v444, %v651
        %v653 = vpop.f32.mrb[0].mxu0
        %654 = vmatprep.mubr.bf16.mxu0 0
        %655 = vmatmul.mubr.bf16.gmra.mrb[0].mxu0 %v514
        %v656 = vpop.f32.mrb[0].mxu0
        %v657 = vadd.f32 %v444, %v656
        %v658 = vpop.f32.mrb[0].mxu0
        %v659 = vpop.f32.mrb[0].mxu0
        %v660 = vadd.f32 %v444, %v659
        %v661 = vpop.f32.mrb[0].mxu0
        %662 = vmatprep.mubr.bf16.mxu0 0
        %663 = vmatmul.mubr.bf16.gmra.mrb[0].mxu0 %v515
        %v664 = vpop.f32.mrb[0].mxu0
        %v665 = vadd.f32 %v444, %v664
        %v666 = vpop.f32.mrb[0].mxu0
        %v667 = vpop.f32.mrb[0].mxu0
        %v668 = vadd.f32 %v444, %v667
        %v669 = vpop.f32.mrb[0].mxu0
        %670 = vmatprep.mubr.bf16.mxu0 0
        %671 = vmatmul.mubr.bf16.gmra.mrb[0].mxu0 %v516
        %v672 = vpop.f32.mrb[0].mxu0
        %v673 = vadd.f32 %v444, %v672
        %v674 = vpop.f32.mrb[0].mxu0
        %v675 = vpop.f32.mrb[0].mxu0
        %v676 = vadd.f32 %v444, %v675
        %v677 = vpop.f32.mrb[0].mxu0
        %678 = vmatprep.mubr.bf16.mxu0 0
        %679 = vmatmul.mubr.bf16.gmra.mrb[0].mxu0 %v517
        %v680 = vpop.f32.mrb[0].mxu0
        %v681 = vadd.f32 %v444, %v680
        %v682 = vpop.f32.mrb[0].mxu0
        %v683 = vpop.f32.mrb[0].mxu0
        %v684 = vadd.f32 %v444, %v683
        %v685 = vpop.f32.mrb[0].mxu0
        %686 = vmatprep.mubr.bf16.mxu0 0
        %687 = vmatmul.mubr.bf16.gmra.mrb[0].mxu0 %v518
        %v688 = vpop.f32.mrb[0].mxu0
        %v689 = vadd.f32 %v444, %v688
        %v690 = vpop.f32.mrb[0].mxu0
        %v691 = vpop.f32.mrb[0].mxu0
        %v692 = vadd.f32 %v444, %v691
        %v693 = vpop.f32.mrb[0].mxu0
        %694 = vmatprep.mubr.bf16.mxu0 0
        %695 = vmatmul.mubr.bf16.gmra.mrb[0].mxu0 %v519
        %v696 = vpop.f32.mrb[0].mxu0
        %v697 = vadd.f32 %v444, %v696
        %v698 = vpop.f32.mrb[0].mxu0
        %v699 = vpop.f32.mrb[0].mxu0
        %v700 = vadd.f32 %v444, %v699
        %v701 = vpop.f32.mrb[0].mxu0
        %702 = vmatprep.mubr.bf16.mxu0 0
        %703 = vmatmul.mubr.bf16.gmra.mrb[0].mxu0 %v520
        %v704 = vpop.f32.mrb[0].mxu0
        %v705 = vadd.f32 %v444, %v704
        %v706 = vpop.f32.mrb[0].mxu0
        %v707 = vpop.f32.mrb[0].mxu0
        %v708 = vadd.f32 %v444, %v707
        %v709 = vpop.f32.mrb[0].mxu0
        %710 = vmatprep.mubr.bf16.mxu0 0
        %711 = vmatmul.mubr.bf16.gmra.mrb[0].mxu0 %v521
        %v712 = vpop.f32.mrb[0].mxu0
        %v713 = vadd.f32 %v444, %v712
        %v714 = vpop.f32.mrb[0].mxu0
        %v715 = vpop.f32.mrb[0].mxu0
        %v716 = vadd.f32 %v444, %v715
        %v717 = vpop.f32.mrb[0].mxu0
        %718 = vmatprep.mubr.bf16.mxu0 0
        %719 = vmatmul.mubr.bf16.gmra.mrb[0].mxu0 %v522
        %v720 = vpop.f32.mrb[0].mxu0
        %v721 = vadd.f32 %v444, %v720
        %v722 = vpop.f32.mrb[0].mxu0
        %v723 = vpop.f32.mrb[0].mxu0
        %v724 = vadd.f32 %v444, %v723
        %v725 = vpop.f32.mrb[0].mxu0
        %726 = vmatprep.mubr.bf16.mxu0 0
        %727 = vmatmul.mubr.bf16.gmra.mrb[0].mxu0 %v523
        %v728 = vpop.f32.mrb[0].mxu0
        %v729 = vadd.f32 %v444, %v728
        %v730 = vpop.f32.mrb[0].mxu0
        %v731 = vpop.f32.mrb[0].mxu0
        %v732 = vadd.f32 %v444, %v731
        %v733 = vpop.f32.mrb[0].mxu0
        %734 = vmatprep.mubr.bf16.mxu0 0
        %735 = vmatmul.mubr.bf16.gmra.mrb[0].mxu0 %v524
        %v736 = vpop.f32.mrb[0].mxu0
        %v737 = vadd.f32 %v444, %v736
        %v738 = vpop.f32.mrb[0].mxu0
        %v739 = vpop.f32.mrb[0].mxu0
        %v740 = vadd.f32 %v444, %v739
        %v741 = vpop.f32.mrb[0].mxu0
        %742 = vmatprep.mubr.bf16.mxu0 0
        %743 = vmatmul.mubr.bf16.gmra.mrb[0].mxu0 %v525
        %v744 = vpop.f32.mrb[0].mxu0
        %v745 = vadd.f32 %v444, %v744
        %v746 = vpop.f32.mrb[0].mxu0
        %v747 = vpop.f32.mrb[0].mxu0
        %v748 = vadd.f32 %v444, %v747
        %v749 = vpop.f32.mrb[0].mxu0
        %750 = vdwg.mxu0
        %v751 = vld [vmem:[#allocation2] sm:$0xff]
        %v752 = vld [vmem:[#allocation2 + $0x8] sm:$0xff]
        %v753 = vld [vmem:[#allocation2 + $0x10] sm:$0xff]
        %v754 = vld [vmem:[#allocation2 + $0x18] sm:$0xff]
        %v755 = vld [vmem:[#allocation2 + $0x20] sm:$0xff]
        %v756 = vld [vmem:[#allocation2 + $0x28] sm:$0xff]
        %v757 = vld [vmem:[#allocation2 + $0x30] sm:$0xff]
        %v758 = vld [vmem:[#allocation2 + $0x38] sm:$0xff]
        %v759 = vld [vmem:[#allocation2 + $0x40] sm:$0xff]
        %v760 = vld [vmem:[#allocation2 + $0x48] sm:$0xff]
        %v761 = vld [vmem:[#allocation2 + $0x50] sm:$0xff]
        %v762 = vld [vmem:[#allocation2 + $0x58] sm:$0xff]
        %v763 = vld [vmem:[#allocation2 + $0x60] sm:$0xff]
        %v764 = vld [vmem:[#allocation2 + $0x68] sm:$0xff]
        %v765 = vld [vmem:[#allocation2 + $0x70] sm:$0xff]
        %v766 = vld [vmem:[#allocation2 + $0x78] sm:$0xff]
        %v767 = vld [vmem:[#allocation2 + $0x80] sm:$0xff]
        %v768 = vld [vmem:[#allocation2 + $0x88] sm:$0xff]
        %v769 = vld [vmem:[#allocation2 + $0x90] sm:$0xff]
        %v770 = vld [vmem:[#allocation2 + $0x98] sm:$0xff]
        %v771 = vld [vmem:[#allocation2 + $0xa0] sm:$0xff]
        %v772 = vld [vmem:[#allocation2 + $0xa8] sm:$0xff]
        %v773 = vld [vmem:[#allocation2 + $0xb0] sm:$0xff]
        %v774 = vld [vmem:[#allocation2 + $0xb8] sm:$0xff]
        %v775 = vld [vmem:[#allocation2 + $0xc0] sm:$0xff]
        %v776 = vld [vmem:[#allocation2 + $0xc8] sm:$0xff]
        %v777 = vld [vmem:[#allocation2 + $0xd0] sm:$0xff]
        %v778 = vld [vmem:[#allocation2 + $0xd8] sm:$0xff]
        %v779 = vld [vmem:[#allocation2 + $0xe0] sm:$0xff]
        %v780 = vld [vmem:[#allocation2 + $0xe8] sm:$0xff]
        %v781 = vld [vmem:[#allocation2 + $0xf0] sm:$0xff]
        %v782 = vld [vmem:[#allocation2 + $0xf8] sm:$0xff]
        %783 = vmax.xlane.f32.xlu0 %v625
        %v784 = vpop.xlane.xlu0 %783
        %785 = vmax.xlane.f32.xlu0 %v628
        %v786 = vpop.xlane.xlu0 %785
        %787 = vmax.xlane.f32.xlu0 %v633
        %v788 = vpop.xlane.xlu0 %787
        %789 = vmax.xlane.f32.xlu0 %v636
        %v790 = vpop.xlane.xlu0 %789
        %791 = vmax.xlane.f32.xlu0 %v641
        %v792 = vpop.xlane.xlu0 %791
        %793 = vmax.xlane.f32.xlu0 %v644
        %v794 = vpop.xlane.xlu0 %793
        %795 = vmax.xlane.f32.xlu0 %v649
        %v796 = vpop.xlane.xlu0 %795
        %797 = vmax.xlane.f32.xlu0 %v652
        %v798 = vpop.xlane.xlu0 %797
        %799 = vmax.xlane.f32.xlu0 %v657
        %v800 = vpop.xlane.xlu0 %799
        %801 = vmax.xlane.f32.xlu0 %v660
        %v802 = vpop.xlane.xlu0 %801
        %803 = vmax.xlane.f32.xlu0 %v665
        %v804 = vpop.xlane.xlu0 %803
        %805 = vmax.xlane.f32.xlu0 %v668
        %v806 = vpop.xlane.xlu0 %805
        %807 = vmax.xlane.f32.xlu0 %v673
        %v808 = vpop.xlane.xlu0 %807
        %809 = vmax.xlane.f32.xlu0 %v676
        %v810 = vpop.xlane.xlu0 %809
        %811 = vmax.xlane.f32.xlu0 %v681
        %v812 = vpop.xlane.xlu0 %811
        %813 = vmax.xlane.f32.xlu0 %v684
        %v814 = vpop.xlane.xlu0 %813
        %815 = vmax.xlane.f32.xlu0 %v689
        %v816 = vpop.xlane.xlu0 %815
        %817 = vmax.xlane.f32.xlu0 %v692
        %v818 = vpop.xlane.xlu0 %817
        %819 = vmax.xlane.f32.xlu0 %v697
        %v820 = vpop.xlane.xlu0 %819
        %821 = vmax.xlane.f32.xlu0 %v700
        %v822 = vpop.xlane.xlu0 %821
        %823 = vmax.xlane.f32.xlu0 %v705
        %v824 = vpop.xlane.xlu0 %823
        %825 = vmax.xlane.f32.xlu0 %v708
        %v826 = vpop.xlane.xlu0 %825
        %827 = vmax.xlane.f32.xlu0 %v713
        %v828 = vpop.xlane.xlu0 %827
        %829 = vmax.xlane.f32.xlu0 %v716
        %v830 = vpop.xlane.xlu0 %829
        %831 = vmax.xlane.f32.xlu0 %v721
        %v832 = vpop.xlane.xlu0 %831
        %833 = vmax.xlane.f32.xlu0 %v724
        %v834 = vpop.xlane.xlu0 %833
        %835 = vmax.xlane.f32.xlu0 %v729
        %v836 = vpop.xlane.xlu0 %835
        %837 = vmax.xlane.f32.xlu0 %v732
        %v838 = vpop.xlane.xlu0 %837
        %839 = vmax.xlane.f32.xlu0 %v737
        %v840 = vpop.xlane.xlu0 %839
        %841 = vmax.xlane.f32.xlu0 %v740
        %v842 = vpop.xlane.xlu0 %841
        %843 = vmax.xlane.f32.xlu0 %v745
        %v844 = vpop.xlane.xlu0 %843
        %845 = vmax.xlane.f32.xlu0 %v748
        %v846 = vpop.xlane.xlu0 %845
        %v847 = vmax.f32 %v751, %v784
        %v848 = vmax.f32 %v752, %v786
        %v849 = vmax.f32 %v753, %v788
        %v850 = vmax.f32 %v754, %v790
        %v851 = vmax.f32 %v755, %v792
        %v852 = vmax.f32 %v756, %v794
        %v853 = vmax.f32 %v757, %v796
        %v854 = vmax.f32 %v758, %v798
        %v855 = vmax.f32 %v759, %v800
        %v856 = vmax.f32 %v760, %v802
        %v857 = vmax.f32 %v761, %v804
        %v858 = vmax.f32 %v762, %v806
        %v859 = vmax.f32 %v763, %v808
        %v860 = vmax.f32 %v764, %v810
        %v861 = vmax.f32 %v765, %v812
        %v862 = vmax.f32 %v766, %v814
        %v863 = vmax.f32 %v767, %v816
        %v864 = vmax.f32 %v768, %v818
        %v865 = vmax.f32 %v769, %v820
        %v866 = vmax.f32 %v770, %v822
        %v867 = vmax.f32 %v771, %v824
        %v868 = vmax.f32 %v772, %v826
        %v869 = vmax.f32 %v773, %v828
        %v870 = vmax.f32 %v774, %v830
        %v871 = vmax.f32 %v775, %v832
        %v872 = vmax.f32 %v776, %v834
        %v873 = vmax.f32 %v777, %v836
        %v874 = vmax.f32 %v778, %v838
        %v875 = vmax.f32 %v779, %v840
        %v876 = vmax.f32 %v780, %v842
        %v877 = vmax.f32 %v781, %v844
        %v878 = vmax.f32 %v782, %v846
        %v879 = vld [vmem:[#allocation3] sm:$0xff]
        %v880 = vld [vmem:[#allocation3 + $0x8] sm:$0xff]
        %v881 = vld [vmem:[#allocation3 + $0x10] sm:$0xff]
        %v882 = vld [vmem:[#allocation3 + $0x18] sm:$0xff]
        %v883 = vld [vmem:[#allocation3 + $0x20] sm:$0xff]
        %v884 = vld [vmem:[#allocation3 + $0x28] sm:$0xff]
        %v885 = vld [vmem:[#allocation3 + $0x30] sm:$0xff]
        %v886 = vld [vmem:[#allocation3 + $0x38] sm:$0xff]
        %v887 = vld [vmem:[#allocation3 + $0x40] sm:$0xff]
        %v888 = vld [vmem:[#allocation3 + $0x48] sm:$0xff]
        %v889 = vld [vmem:[#allocation3 + $0x50] sm:$0xff]
        %v890 = vld [vmem:[#allocation3 + $0x58] sm:$0xff]
        %v891 = vld [vmem:[#allocation3 + $0x60] sm:$0xff]
        %v892 = vld [vmem:[#allocation3 + $0x68] sm:$0xff]
        %v893 = vld [vmem:[#allocation3 + $0x70] sm:$0xff]
        %v894 = vld [vmem:[#allocation3 + $0x78] sm:$0xff]
        %v895 = vld [vmem:[#allocation3 + $0x80] sm:$0xff]
        %v896 = vld [vmem:[#allocation3 + $0x88] sm:$0xff]
        %v897 = vld [vmem:[#allocation3 + $0x90] sm:$0xff]
        %v898 = vld [vmem:[#allocation3 + $0x98] sm:$0xff]
        %v899 = vld [vmem:[#allocation3 + $0xa0] sm:$0xff]
        %v900 = vld [vmem:[#allocation3 + $0xa8] sm:$0xff]
        %v901 = vld [vmem:[#allocation3 + $0xb0] sm:$0xff]
        %v902 = vld [vmem:[#allocation3 + $0xb8] sm:$0xff]
        %v903 = vld [vmem:[#allocation3 + $0xc0] sm:$0xff]
        %v904 = vld [vmem:[#allocation3 + $0xc8] sm:$0xff]
        %v905 = vld [vmem:[#allocation3 + $0xd0] sm:$0xff]
        %v906 = vld [vmem:[#allocation3 + $0xd8] sm:$0xff]
        %v907 = vld [vmem:[#allocation3 + $0xe0] sm:$0xff]
        %v908 = vld [vmem:[#allocation3 + $0xe8] sm:$0xff]
        %v909 = vld [vmem:[#allocation3 + $0xf0] sm:$0xff]
        %v910 = vld [vmem:[#allocation3 + $0xf8] sm:$0xff]
        %v911 = vsub.f32 %v751, %v847
        %v912 = vsub.f32 %v752, %v848
        %v913 = vsub.f32 %v753, %v849
        %v914 = vsub.f32 %v754, %v850
        %v915 = vsub.f32 %v755, %v851
        %v916 = vsub.f32 %v756, %v852
        %v917 = vsub.f32 %v757, %v853
        %v918 = vsub.f32 %v758, %v854
        %v919 = vsub.f32 %v759, %v855
        %v920 = vsub.f32 %v760, %v856
        %v921 = vsub.f32 %v761, %v857
        %v922 = vsub.f32 %v762, %v858
        %v923 = vsub.f32 %v763, %v859
        %v924 = vsub.f32 %v764, %v860
        %v925 = vsub.f32 %v765, %v861
        %v926 = vsub.f32 %v766, %v862
        %v927 = vsub.f32 %v767, %v863
        %v928 = vsub.f32 %v768, %v864
        %v929 = vsub.f32 %v769, %v865
        %v930 = vsub.f32 %v770, %v866
        %v931 = vsub.f32 %v771, %v867
        %v932 = vsub.f32 %v772, %v868
        %v933 = vsub.f32 %v773, %v869
        %v934 = vsub.f32 %v774, %v870
        %v935 = vsub.f32 %v775, %v871
        %v936 = vsub.f32 %v776, %v872
        %v937 = vsub.f32 %v777, %v873
        %v938 = vsub.f32 %v778, %v874
        %v939 = vsub.f32 %v779, %v875
        %v940 = vsub.f32 %v780, %v876
        %v941 = vsub.f32 %v781, %v877
        %v942 = vsub.f32 %v782, %v878
        %v943 = vmul.f32 %v911, 1.442695
        %v944 = vpow.pop %v943
        %v945 = vmul.f32 %v912, 1.442695
        %v946 = vpow.pop %v945
        %v947 = vmul.f32 %v913, 1.442695
        %v948 = vpow.pop %v947
        %v949 = vmul.f32 %v914, 1.442695
        %v950 = vpow.pop %v949
        %v951 = vmul.f32 %v915, 1.442695
        %v952 = vpow.pop %v951
        %v953 = vmul.f32 %v916, 1.442695
        %v954 = vpow.pop %v953
        %v955 = vmul.f32 %v917, 1.442695
        %v956 = vpow.pop %v955
        %v957 = vmul.f32 %v918, 1.442695
        %v958 = vpow.pop %v957
        %v959 = vmul.f32 %v919, 1.442695
        %v960 = vpow.pop %v959
        %v961 = vmul.f32 %v920, 1.442695
        %v962 = vpow.pop %v961
        %v963 = vmul.f32 %v921, 1.442695
        %v964 = vpow.pop %v963
        %v965 = vmul.f32 %v922, 1.442695
        %v966 = vpow.pop %v965
        %v967 = vmul.f32 %v923, 1.442695
        %v968 = vpow.pop %v967
        %v969 = vmul.f32 %v924, 1.442695
        %v970 = vpow.pop %v969
        %v971 = vmul.f32 %v925, 1.442695
        %v972 = vpow.pop %v971
        %v973 = vmul.f32 %v926, 1.442695
        %v974 = vpow.pop %v973
        %v975 = vmul.f32 %v927, 1.442695
        %v976 = vpow.pop %v975
        %v977 = vmul.f32 %v928, 1.442695
        %v978 = vpow.pop %v977
        %v979 = vmul.f32 %v929, 1.442695
        %v980 = vpow.pop %v979
        %v981 = vmul.f32 %v930, 1.442695
        %v982 = vpow.pop %v981
        %v983 = vmul.f32 %v931, 1.442695
        %v984 = vpow.pop %v983
        %v985 = vmul.f32 %v932, 1.442695
        %v986 = vpow.pop %v985
        %v987 = vmul.f32 %v933, 1.442695
        %v988 = vpow.pop %v987
        %v989 = vmul.f32 %v934, 1.442695
        %v990 = vpow.pop %v989
        %v991 = vmul.f32 %v935, 1.442695
        %v992 = vpow.pop %v991
        %v993 = vmul.f32 %v936, 1.442695
        %v994 = vpow.pop %v993
        %v995 = vmul.f32 %v937, 1.442695
        %v996 = vpow.pop %v995
        %v997 = vmul.f32 %v938, 1.442695
        %v998 = vpow.pop %v997
        %v999 = vmul.f32 %v939, 1.442695
        %v1000 = vpow.pop %v999
        %v1001 = vmul.f32 %v940, 1.442695
        %v1002 = vpow.pop %v1001
        %v1003 = vmul.f32 %v941, 1.442695
        %v1004 = vpow.pop %v1003
        %v1005 = vmul.f32 %v942, 1.442695
        %v1006 = vpow.pop %v1005
        %v1007 = vmul.f32 %v879, %v944
        %v1008 = vmul.f32 %v880, %v946
        %v1009 = vmul.f32 %v881, %v948
        %v1010 = vmul.f32 %v882, %v950
        %v1011 = vmul.f32 %v883, %v952
        %v1012 = vmul.f32 %v884, %v954
        %v1013 = vmul.f32 %v885, %v956
        %v1014 = vmul.f32 %v886, %v958
        %v1015 = vmul.f32 %v887, %v960
        %v1016 = vmul.f32 %v888, %v962
        %v1017 = vmul.f32 %v889, %v964
        %v1018 = vmul.f32 %v890, %v966
        %v1019 = vmul.f32 %v891, %v968
        %v1020 = vmul.f32 %v892, %v970
        %v1021 = vmul.f32 %v893, %v972
        %v1022 = vmul.f32 %v894, %v974
        %v1023 = vmul.f32 %v895, %v976
        %v1024 = vmul.f32 %v896, %v978
        %v1025 = vmul.f32 %v897, %v980
        %v1026 = vmul.f32 %v898, %v982
        %v1027 = vmul.f32 %v899, %v984
        %v1028 = vmul.f32 %v900, %v986
        %v1029 = vmul.f32 %v901, %v988
        %v1030 = vmul.f32 %v902, %v990
        %v1031 = vmul.f32 %v903, %v992
        %v1032 = vmul.f32 %v904, %v994
        %v1033 = vmul.f32 %v905, %v996
        %v1034 = vmul.f32 %v906, %v998
        %v1035 = vmul.f32 %v907, %v1000
        %v1036 = vmul.f32 %v908, %v1002
        %v1037 = vmul.f32 %v909, %v1004
        %v1038 = vmul.f32 %v910, %v1006
        %1040 = vset.pattern.permute.xlu0 0
        %1041 = vperm.xlu0 %1040, %v847
        %v1042 = vpop.permute.xlu0 %1041
        %1045 = vset.pattern.permute.xlu0 0
        %1046 = vperm.xlu0 %1045, %v848
        %v1047 = vpop.permute.xlu0 %1046
        %1050 = vset.pattern.permute.xlu0 0
        %1051 = vperm.xlu0 %1050, %v849
        %v1052 = vpop.permute.xlu0 %1051
        %1055 = vset.pattern.permute.xlu0 0
        %1056 = vperm.xlu0 %1055, %v850
        %v1057 = vpop.permute.xlu0 %1056
        %1060 = vset.pattern.permute.xlu0 0
        %1061 = vperm.xlu0 %1060, %v851
        %v1062 = vpop.permute.xlu0 %1061
        %1065 = vset.pattern.permute.xlu0 0
        %1066 = vperm.xlu0 %1065, %v852
        %v1067 = vpop.permute.xlu0 %1066
        %1070 = vset.pattern.permute.xlu0 0
        %1071 = vperm.xlu0 %1070, %v853
        %v1072 = vpop.permute.xlu0 %1071
        %1075 = vset.pattern.permute.xlu0 0
        %1076 = vperm.xlu0 %1075, %v854
        %v1077 = vpop.permute.xlu0 %1076
        %1080 = vset.pattern.permute.xlu0 0
        %1081 = vperm.xlu0 %1080, %v855
        %v1082 = vpop.permute.xlu0 %1081
        %1085 = vset.pattern.permute.xlu0 0
        %1086 = vperm.xlu0 %1085, %v856
        %v1087 = vpop.permute.xlu0 %1086
        %1090 = vset.pattern.permute.xlu0 0
        %1091 = vperm.xlu0 %1090, %v857
        %v1092 = vpop.permute.xlu0 %1091
        %1095 = vset.pattern.permute.xlu0 0
        %1096 = vperm.xlu0 %1095, %v858
        %v1097 = vpop.permute.xlu0 %1096
        %1100 = vset.pattern.permute.xlu0 0
        %1101 = vperm.xlu0 %1100, %v859
        %v1102 = vpop.permute.xlu0 %1101
        %1105 = vset.pattern.permute.xlu0 0
        %1106 = vperm.xlu0 %1105, %v860
        %v1107 = vpop.permute.xlu0 %1106
        %1110 = vset.pattern.permute.xlu0 0
        %1111 = vperm.xlu0 %1110, %v861
        %v1112 = vpop.permute.xlu0 %1111
        %1115 = vset.pattern.permute.xlu0 0
        %1116 = vperm.xlu0 %1115, %v862
        %v1117 = vpop.permute.xlu0 %1116
        %1120 = vset.pattern.permute.xlu0 0
        %1121 = vperm.xlu0 %1120, %v863
        %v1122 = vpop.permute.xlu0 %1121
        %1125 = vset.pattern.permute.xlu0 0
        %1126 = vperm.xlu0 %1125, %v864
        %v1127 = vpop.permute.xlu0 %1126
        %1130 = vset.pattern.permute.xlu0 0
        %1131 = vperm.xlu0 %1130, %v865
        %v1132 = vpop.permute.xlu0 %1131
        %1135 = vset.pattern.permute.xlu0 0
        %1136 = vperm.xlu0 %1135, %v866
        %v1137 = vpop.permute.xlu0 %1136
        %1140 = vset.pattern.permute.xlu0 0
        %1141 = vperm.xlu0 %1140, %v867
        %v1142 = vpop.permute.xlu0 %1141
        %1145 = vset.pattern.permute.xlu0 0
        %1146 = vperm.xlu0 %1145, %v868
        %v1147 = vpop.permute.xlu0 %1146
        %1150 = vset.pattern.permute.xlu0 0
        %1151 = vperm.xlu0 %1150, %v869
        %v1152 = vpop.permute.xlu0 %1151
        %1155 = vset.pattern.permute.xlu0 0
        %1156 = vperm.xlu0 %1155, %v870
        %v1157 = vpop.permute.xlu0 %1156
        %1160 = vset.pattern.permute.xlu0 0
        %1161 = vperm.xlu0 %1160, %v871
        %v1162 = vpop.permute.xlu0 %1161
        %1165 = vset.pattern.permute.xlu0 0
        %1166 = vperm.xlu0 %1165, %v872
        %v1167 = vpop.permute.xlu0 %1166
        %1170 = vset.pattern.permute.xlu0 0
        %1171 = vperm.xlu0 %1170, %v873
        %v1172 = vpop.permute.xlu0 %1171
        %1175 = vset.pattern.permute.xlu0 0
        %1176 = vperm.xlu0 %1175, %v874
        %v1177 = vpop.permute.xlu0 %1176
        %1180 = vset.pattern.permute.xlu0 0
        %1181 = vperm.xlu0 %1180, %v875
        %v1182 = vpop.permute.xlu0 %1181
        %1185 = vset.pattern.permute.xlu0 0
        %1186 = vperm.xlu0 %1185, %v876
        %v1187 = vpop.permute.xlu0 %1186
        %1190 = vset.pattern.permute.xlu0 0
        %1191 = vperm.xlu0 %1190, %v877
        %v1192 = vpop.permute.xlu0 %1191
        %1195 = vset.pattern.permute.xlu0 0
        %1196 = vperm.xlu0 %1195, %v878
        %v1197 = vpop.permute.xlu0 %1196
        %v1199 = vsub.f32 %v625, %v1042
        %v1200 = vsub.f32 %v628, %v1047
        %v1201 = vsub.f32 %v633, %v1052
        %v1202 = vsub.f32 %v636, %v1057
        %v1203 = vsub.f32 %v641, %v1062
        %v1204 = vsub.f32 %v644, %v1067
        %v1205 = vsub.f32 %v649, %v1072
        %v1206 = vsub.f32 %v652, %v1077
        %v1207 = vsub.f32 %v657, %v1082
        %v1208 = vsub.f32 %v660, %v1087
        %v1209 = vsub.f32 %v665, %v1092
        %v1210 = vsub.f32 %v668, %v1097
        %v1211 = vsub.f32 %v673, %v1102
        %v1212 = vsub.f32 %v676, %v1107
        %v1213 = vsub.f32 %v681, %v1112
        %v1214 = vsub.f32 %v684, %v1117
        %v1215 = vsub.f32 %v689, %v1122
        %v1216 = vsub.f32 %v692, %v1127
        %v1217 = vsub.f32 %v697, %v1132
        %v1218 = vsub.f32 %v700, %v1137
        %v1219 = vsub.f32 %v705, %v1142
        %v1220 = vsub.f32 %v708, %v1147
        %v1221 = vsub.f32 %v713, %v1152
        %v1222 = vsub.f32 %v716, %v1157
        %v1223 = vsub.f32 %v721, %v1162
        %v1224 = vsub.f32 %v724, %v1167
        %v1225 = vsub.f32 %v729, %v1172
        %v1226 = vsub.f32 %v732, %v1177
        %v1227 = vsub.f32 %v737, %v1182
        %v1228 = vsub.f32 %v740, %v1187
        %v1229 = vsub.f32 %v745, %v1192
        %v1230 = vsub.f32 %v748, %v1197
        %v1231 = vmul.f32 %v1199, 1.442695
        %v1232 = vpow.pop %v1231
        %v1233 = vmul.f32 %v1200, 1.442695
        %v1234 = vpow.pop %v1233
        %v1235 = vmul.f32 %v1201, 1.442695
        %v1236 = vpow.pop %v1235
        %v1237 = vmul.f32 %v1202, 1.442695
        %v1238 = vpow.pop %v1237
        %v1239 = vmul.f32 %v1203, 1.442695
        %v1240 = vpow.pop %v1239
        %v1241 = vmul.f32 %v1204, 1.442695
        %v1242 = vpow.pop %v1241
        %v1243 = vmul.f32 %v1205, 1.442695
        %v1244 = vpow.pop %v1243
        %v1245 = vmul.f32 %v1206, 1.442695
        %v1246 = vpow.pop %v1245
        %v1247 = vmul.f32 %v1207, 1.442695
        %v1248 = vpow.pop %v1247
        %v1249 = vmul.f32 %v1208, 1.442695
        %v1250 = vpow.pop %v1249
        %v1251 = vmul.f32 %v1209, 1.442695
        %v1252 = vpow.pop %v1251
        %v1253 = vmul.f32 %v1210, 1.442695
        %v1254 = vpow.pop %v1253
        %v1255 = vmul.f32 %v1211, 1.442695
        %v1256 = vpow.pop %v1255
        %v1257 = vmul.f32 %v1212, 1.442695
        %v1258 = vpow.pop %v1257
        %v1259 = vmul.f32 %v1213, 1.442695
        %v1260 = vpow.pop %v1259
        %v1261 = vmul.f32 %v1214, 1.442695
        %v1262 = vpow.pop %v1261
        %v1263 = vmul.f32 %v1215, 1.442695
        %v1264 = vpow.pop %v1263
        %v1265 = vmul.f32 %v1216, 1.442695
        %v1266 = vpow.pop %v1265
        %v1267 = vmul.f32 %v1217, 1.442695
        %v1268 = vpow.pop %v1267
        %v1269 = vmul.f32 %v1218, 1.442695
        %v1270 = vpow.pop %v1269
        %v1271 = vmul.f32 %v1219, 1.442695
        %v1272 = vpow.pop %v1271
        %v1273 = vmul.f32 %v1220, 1.442695
        %v1274 = vpow.pop %v1273
        %v1275 = vmul.f32 %v1221, 1.442695
        %v1276 = vpow.pop %v1275
        %v1277 = vmul.f32 %v1222, 1.442695
        %v1278 = vpow.pop %v1277
        %v1279 = vmul.f32 %v1223, 1.442695
        %v1280 = vpow.pop %v1279
        %v1281 = vmul.f32 %v1224, 1.442695
        %v1282 = vpow.pop %v1281
        %v1283 = vmul.f32 %v1225, 1.442695
        %v1284 = vpow.pop %v1283
        %v1285 = vmul.f32 %v1226, 1.442695
        %v1286 = vpow.pop %v1285
        %v1287 = vmul.f32 %v1227, 1.442695
        %v1288 = vpow.pop %v1287
        %v1289 = vmul.f32 %v1228, 1.442695
        %v1290 = vpow.pop %v1289
        %v1291 = vmul.f32 %v1229, 1.442695
        %v1292 = vpow.pop %v1291
        %v1293 = vmul.f32 %v1230, 1.442695
        %v1294 = vpow.pop %v1293
        %1295 = vadd.xlane.f32.xlu0 %v1232
        %v1296 = vpop.xlane.xlu0 %1295
        %1297 = vadd.xlane.f32.xlu0 %v1234
        %v1298 = vpop.xlane.xlu0 %1297
        %1299 = vadd.xlane.f32.xlu0 %v1236
        %v1300 = vpop.xlane.xlu0 %1299
        %1301 = vadd.xlane.f32.xlu0 %v1238
        %v1302 = vpop.xlane.xlu0 %1301
        %1303 = vadd.xlane.f32.xlu0 %v1240
        %v1304 = vpop.xlane.xlu0 %1303
        %1305 = vadd.xlane.f32.xlu0 %v1242
        %v1306 = vpop.xlane.xlu0 %1305
        %1307 = vadd.xlane.f32.xlu0 %v1244
        %v1308 = vpop.xlane.xlu0 %1307
        %1309 = vadd.xlane.f32.xlu0 %v1246
        %v1310 = vpop.xlane.xlu0 %1309
        %1311 = vadd.xlane.f32.xlu0 %v1248
        %v1312 = vpop.xlane.xlu0 %1311
        %1313 = vadd.xlane.f32.xlu0 %v1250
        %v1314 = vpop.xlane.xlu0 %1313
        %1315 = vadd.xlane.f32.xlu0 %v1252
        %v1316 = vpop.xlane.xlu0 %1315
        %1317 = vadd.xlane.f32.xlu0 %v1254
        %v1318 = vpop.xlane.xlu0 %1317
        %1319 = vadd.xlane.f32.xlu0 %v1256
        %v1320 = vpop.xlane.xlu0 %1319
        %1321 = vadd.xlane.f32.xlu0 %v1258
        %v1322 = vpop.xlane.xlu0 %1321
        %1323 = vadd.xlane.f32.xlu0 %v1260
        %v1324 = vpop.xlane.xlu0 %1323
        %1325 = vadd.xlane.f32.xlu0 %v1262
        %v1326 = vpop.xlane.xlu0 %1325
        %1327 = vadd.xlane.f32.xlu0 %v1264
        %v1328 = vpop.xlane.xlu0 %1327
        %1329 = vadd.xlane.f32.xlu0 %v1266
        %v1330 = vpop.xlane.xlu0 %1329
        %1331 = vadd.xlane.f32.xlu0 %v1268
        %v1332 = vpop.xlane.xlu0 %1331
        %1333 = vadd.xlane.f32.xlu0 %v1270
        %v1334 = vpop.xlane.xlu0 %1333
        %1335 = vadd.xlane.f32.xlu0 %v1272
        %v1336 = vpop.xlane.xlu0 %1335
        %1337 = vadd.xlane.f32.xlu0 %v1274
        %v1338 = vpop.xlane.xlu0 %1337
        %1339 = vadd.xlane.f32.xlu0 %v1276
        %v1340 = vpop.xlane.xlu0 %1339
        %1341 = vadd.xlane.f32.xlu0 %v1278
        %v1342 = vpop.xlane.xlu0 %1341
        %1343 = vadd.xlane.f32.xlu0 %v1280
        %v1344 = vpop.xlane.xlu0 %1343
        %1345 = vadd.xlane.f32.xlu0 %v1282
        %v1346 = vpop.xlane.xlu0 %1345
        %1347 = vadd.xlane.f32.xlu0 %v1284
        %v1348 = vpop.xlane.xlu0 %1347
        %1349 = vadd.xlane.f32.xlu0 %v1286
        %v1350 = vpop.xlane.xlu0 %1349
        %1351 = vadd.xlane.f32.xlu0 %v1288
        %v1352 = vpop.xlane.xlu0 %1351
        %1353 = vadd.xlane.f32.xlu0 %v1290
        %v1354 = vpop.xlane.xlu0 %1353
        %1355 = vadd.xlane.f32.xlu0 %v1292
        %v1356 = vpop.xlane.xlu0 %1355
        %1357 = vadd.xlane.f32.xlu0 %v1294
        %v1358 = vpop.xlane.xlu0 %1357
        %v1359 = vadd.f32 %v1007, %v1296
        %v1360 = vadd.f32 %v1008, %v1298
        %v1361 = vadd.f32 %v1009, %v1300
        %v1362 = vadd.f32 %v1010, %v1302
        %v1363 = vadd.f32 %v1011, %v1304
        %v1364 = vadd.f32 %v1012, %v1306
        %v1365 = vadd.f32 %v1013, %v1308
        %v1366 = vadd.f32 %v1014, %v1310
        %v1367 = vadd.f32 %v1015, %v1312
        %v1368 = vadd.f32 %v1016, %v1314
        %v1369 = vadd.f32 %v1017, %v1316
        %v1370 = vadd.f32 %v1018, %v1318
        %v1371 = vadd.f32 %v1019, %v1320
        %v1372 = vadd.f32 %v1020, %v1322
        %v1373 = vadd.f32 %v1021, %v1324
        %v1374 = vadd.f32 %v1022, %v1326
        %v1375 = vadd.f32 %v1023, %v1328
        %v1376 = vadd.f32 %v1024, %v1330
        %v1377 = vadd.f32 %v1025, %v1332
        %v1378 = vadd.f32 %v1026, %v1334
        %v1379 = vadd.f32 %v1027, %v1336
        %v1380 = vadd.f32 %v1028, %v1338
        %v1381 = vadd.f32 %v1029, %v1340
        %v1382 = vadd.f32 %v1030, %v1342
        %v1383 = vadd.f32 %v1031, %v1344
        %v1384 = vadd.f32 %v1032, %v1346
        %v1385 = vadd.f32 %v1033, %v1348
        %v1386 = vadd.f32 %v1034, %v1350
        %v1387 = vadd.f32 %v1035, %v1352
        %v1388 = vadd.f32 %v1036, %v1354
        %v1389 = vadd.f32 %v1037, %v1356
        %v1390 = vadd.f32 %v1038, %v1358
        %vm1391 = vcmask 7168
        %1392 = vst.msk [vmem:[#allocation3] sm:$0xff] %vm1391, %v1359
        %1393 = vst.msk [vmem:[#allocation3 + $0x8] sm:$0xff] %vm1391, %v1360
        %1394 = vst.msk [vmem:[#allocation3 + $0x10] sm:$0xff] %vm1391, %v1361
        %1395 = vst.msk [vmem:[#allocation3 + $0x18] sm:$0xff] %vm1391, %v1362
        %1396 = vst.msk [vmem:[#allocation3 + $0x20] sm:$0xff] %vm1391, %v1363
        %1397 = vst.msk [vmem:[#allocation3 + $0x28] sm:$0xff] %vm1391, %v1364
        %1398 = vst.msk [vmem:[#allocation3 + $0x30] sm:$0xff] %vm1391, %v1365
        %1399 = vst.msk [vmem:[#allocation3 + $0x38] sm:$0xff] %vm1391, %v1366
        %1400 = vst.msk [vmem:[#allocation3 + $0x40] sm:$0xff] %vm1391, %v1367
        %1401 = vst.msk [vmem:[#allocation3 + $0x48] sm:$0xff] %vm1391, %v1368
        %1402 = vst.msk [vmem:[#allocation3 + $0x50] sm:$0xff] %vm1391, %v1369
        %1403 = vst.msk [vmem:[#allocation3 + $0x58] sm:$0xff] %vm1391, %v1370
        %1404 = vst.msk [vmem:[#allocation3 + $0x60] sm:$0xff] %vm1391, %v1371
        %1405 = vst.msk [vmem:[#allocation3 + $0x68] sm:$0xff] %vm1391, %v1372
        %1406 = vst.msk [vmem:[#allocation3 + $0x70] sm:$0xff] %vm1391, %v1373
        %1407 = vst.msk [vmem:[#allocation3 + $0x78] sm:$0xff] %vm1391, %v1374
        %1408 = vst.msk [vmem:[#allocation3 + $0x80] sm:$0xff] %vm1391, %v1375
        %1409 = vst.msk [vmem:[#allocation3 + $0x88] sm:$0xff] %vm1391, %v1376
        %1410 = vst.msk [vmem:[#allocation3 + $0x90] sm:$0xff] %vm1391, %v1377
        %1411 = vst.msk [vmem:[#allocation3 + $0x98] sm:$0xff] %vm1391, %v1378
        %1412 = vst.msk [vmem:[#allocation3 + $0xa0] sm:$0xff] %vm1391, %v1379
        %1413 = vst.msk [vmem:[#allocation3 + $0xa8] sm:$0xff] %vm1391, %v1380
        %1414 = vst.msk [vmem:[#allocation3 + $0xb0] sm:$0xff] %vm1391, %v1381
        %1415 = vst.msk [vmem:[#allocation3 + $0xb8] sm:$0xff] %vm1391, %v1382
        %1416 = vst.msk [vmem:[#allocation3 + $0xc0] sm:$0xff] %vm1391, %v1383
        %1417 = vst.msk [vmem:[#allocation3 + $0xc8] sm:$0xff] %vm1391, %v1384
        %1418 = vst.msk [vmem:[#allocation3 + $0xd0] sm:$0xff] %vm1391, %v1385
        %1419 = vst.msk [vmem:[#allocation3 + $0xd8] sm:$0xff] %vm1391, %v1386
        %1420 = vst.msk [vmem:[#allocation3 + $0xe0] sm:$0xff] %vm1391, %v1387
        %1421 = vst.msk [vmem:[#allocation3 + $0xe8] sm:$0xff] %vm1391, %v1388
        %1422 = vst.msk [vmem:[#allocation3 + $0xf0] sm:$0xff] %vm1391, %v1389
        %1423 = vst.msk [vmem:[#allocation3 + $0xf8] sm:$0xff] %vm1391, %v1390
        %1424 = vst.msk [vmem:[#allocation2] sm:$0xff] %vm1391, %v847
        %1425 = vst.msk [vmem:[#allocation2 + $0x8] sm:$0xff] %vm1391, %v848
        %1426 = vst.msk [vmem:[#allocation2 + $0x10] sm:$0xff] %vm1391, %v849
        %1427 = vst.msk [vmem:[#allocation2 + $0x18] sm:$0xff] %vm1391, %v850
        %1428 = vst.msk [vmem:[#allocation2 + $0x20] sm:$0xff] %vm1391, %v851
        %1429 = vst.msk [vmem:[#allocation2 + $0x28] sm:$0xff] %vm1391, %v852
        %1430 = vst.msk [vmem:[#allocation2 + $0x30] sm:$0xff] %vm1391, %v853
        %1431 = vst.msk [vmem:[#allocation2 + $0x38] sm:$0xff] %vm1391, %v854
        %1432 = vst.msk [vmem:[#allocation2 + $0x40] sm:$0xff] %vm1391, %v855
        %1433 = vst.msk [vmem:[#allocation2 + $0x48] sm:$0xff] %vm1391, %v856
        %1434 = vst.msk [vmem:[#allocation2 + $0x50] sm:$0xff] %vm1391, %v857
        %1435 = vst.msk [vmem:[#allocation2 + $0x58] sm:$0xff] %vm1391, %v858
        %1436 = vst.msk [vmem:[#allocation2 + $0x60] sm:$0xff] %vm1391, %v859
        %1437 = vst.msk [vmem:[#allocation2 + $0x68] sm:$0xff] %vm1391, %v860
        %1438 = vst.msk [vmem:[#allocation2 + $0x70] sm:$0xff] %vm1391, %v861
        %1439 = vst.msk [vmem:[#allocation2 + $0x78] sm:$0xff] %vm1391, %v862
        %1440 = vst.msk [vmem:[#allocation2 + $0x80] sm:$0xff] %vm1391, %v863
        %1441 = vst.msk [vmem:[#allocation2 + $0x88] sm:$0xff] %vm1391, %v864
        %1442 = vst.msk [vmem:[#allocation2 + $0x90] sm:$0xff] %vm1391, %v865
        %1443 = vst.msk [vmem:[#allocation2 + $0x98] sm:$0xff] %vm1391, %v866
        %1444 = vst.msk [vmem:[#allocation2 + $0xa0] sm:$0xff] %vm1391, %v867
        %1445 = vst.msk [vmem:[#allocation2 + $0xa8] sm:$0xff] %vm1391, %v868
        %1446 = vst.msk [vmem:[#allocation2 + $0xb0] sm:$0xff] %vm1391, %v869
        %1447 = vst.msk [vmem:[#allocation2 + $0xb8] sm:$0xff] %vm1391, %v870
        %1448 = vst.msk [vmem:[#allocation2 + $0xc0] sm:$0xff] %vm1391, %v871
        %1449 = vst.msk [vmem:[#allocation2 + $0xc8] sm:$0xff] %vm1391, %v872
        %1450 = vst.msk [vmem:[#allocation2 + $0xd0] sm:$0xff] %vm1391, %v873
        %1451 = vst.msk [vmem:[#allocation2 + $0xd8] sm:$0xff] %vm1391, %v874
        %1452 = vst.msk [vmem:[#allocation2 + $0xe0] sm:$0xff] %vm1391, %v875
        %1453 = vst.msk [vmem:[#allocation2 + $0xe8] sm:$0xff] %vm1391, %v876
        %1454 = vst.msk [vmem:[#allocation2 + $0xf0] sm:$0xff] %vm1391, %v877
        %1455 = vst.msk [vmem:[#allocation2 + $0xf8] sm:$0xff] %vm1391, %v878
        %p1456 = scmp.eq.s32.totalorder %s19, 2
        // Predicated region
        $region78: #{rnn_model_forward.10} parent=68 // pred_check
          %p1457 = pneg %p1456
        $region79: #{rnn_model_forward.10} parent=68 // pred_check_branch
          %1459 = sbr.rel (%p1457) target = $region81
        $region80: #{rnn_model_forward.10} parent=68 // pred_region
          %v1460 = vld [vmem:[#allocation2] sm:$0xff]
          %v1461 = vld [vmem:[#allocation2 + $0x8] sm:$0xff]
          %v1462 = vld [vmem:[#allocation2 + $0x10] sm:$0xff]
          %v1463 = vld [vmem:[#allocation2 + $0x18] sm:$0xff]
          %v1464 = vld [vmem:[#allocation2 + $0x20] sm:$0xff]
          %v1465 = vld [vmem:[#allocation2 + $0x28] sm:$0xff]
          %v1466 = vld [vmem:[#allocation2 + $0x30] sm:$0xff]
          %v1467 = vld [vmem:[#allocation2 + $0x38] sm:$0xff]
          %v1468 = vld [vmem:[#allocation2 + $0x40] sm:$0xff]
          %v1469 = vld [vmem:[#allocation2 + $0x48] sm:$0xff]
          %v1470 = vld [vmem:[#allocation2 + $0x50] sm:$0xff]
          %v1471 = vld [vmem:[#allocation2 + $0x58] sm:$0xff]
          %v1472 = vld [vmem:[#allocation2 + $0x60] sm:$0xff]
          %v1473 = vld [vmem:[#allocation2 + $0x68] sm:$0xff]
          %v1474 = vld [vmem:[#allocation2 + $0x70] sm:$0xff]
          %v1475 = vld [vmem:[#allocation2 + $0x78] sm:$0xff]
          %v1476 = vld [vmem:[#allocation2 + $0x80] sm:$0xff]
          %v1477 = vld [vmem:[#allocation2 + $0x88] sm:$0xff]
          %v1478 = vld [vmem:[#allocation2 + $0x90] sm:$0xff]
          %v1479 = vld [vmem:[#allocation2 + $0x98] sm:$0xff]
          %v1480 = vld [vmem:[#allocation2 + $0xa0] sm:$0xff]
          %v1481 = vld [vmem:[#allocation2 + $0xa8] sm:$0xff]
          %v1482 = vld [vmem:[#allocation2 + $0xb0] sm:$0xff]
          %v1483 = vld [vmem:[#allocation2 + $0xb8] sm:$0xff]
          %v1484 = vld [vmem:[#allocation2 + $0xc0] sm:$0xff]
          %v1485 = vld [vmem:[#allocation2 + $0xc8] sm:$0xff]
          %v1486 = vld [vmem:[#allocation2 + $0xd0] sm:$0xff]
          %v1487 = vld [vmem:[#allocation2 + $0xd8] sm:$0xff]
          %v1488 = vld [vmem:[#allocation2 + $0xe0] sm:$0xff]
          %v1489 = vld [vmem:[#allocation2 + $0xe8] sm:$0xff]
          %v1490 = vld [vmem:[#allocation2 + $0xf0] sm:$0xff]
          %v1491 = vld [vmem:[#allocation2 + $0xf8] sm:$0xff]
          %v1492 = vld [vmem:[#allocation3] sm:$0xff]
          %v1493 = vld [vmem:[#allocation3 + $0x8] sm:$0xff]
          %v1494 = vld [vmem:[#allocation3 + $0x10] sm:$0xff]
          %v1495 = vld [vmem:[#allocation3 + $0x18] sm:$0xff]
          %v1496 = vld [vmem:[#allocation3 + $0x20] sm:$0xff]
          %v1497 = vld [vmem:[#allocation3 + $0x28] sm:$0xff]
          %v1498 = vld [vmem:[#allocation3 + $0x30] sm:$0xff]
          %v1499 = vld [vmem:[#allocation3 + $0x38] sm:$0xff]
          %v1500 = vld [vmem:[#allocation3 + $0x40] sm:$0xff]
          %v1501 = vld [vmem:[#allocation3 + $0x48] sm:$0xff]
          %v1502 = vld [vmem:[#allocation3 + $0x50] sm:$0xff]
          %v1503 = vld [vmem:[#allocation3 + $0x58] sm:$0xff]
          %v1504 = vld [vmem:[#allocation3 + $0x60] sm:$0xff]
          %v1505 = vld [vmem:[#allocation3 + $0x68] sm:$0xff]
          %v1506 = vld [vmem:[#allocation3 + $0x70] sm:$0xff]
          %v1507 = vld [vmem:[#allocation3 + $0x78] sm:$0xff]
          %v1508 = vld [vmem:[#allocation3 + $0x80] sm:$0xff]
          %v1509 = vld [vmem:[#allocation3 + $0x88] sm:$0xff]
          %v1510 = vld [vmem:[#allocation3 + $0x90] sm:$0xff]
          %v1511 = vld [vmem:[#allocation3 + $0x98] sm:$0xff]
          %v1512 = vld [vmem:[#allocation3 + $0xa0] sm:$0xff]
          %v1513 = vld [vmem:[#allocation3 + $0xa8] sm:$0xff]
          %v1514 = vld [vmem:[#allocation3 + $0xb0] sm:$0xff]
          %v1515 = vld [vmem:[#allocation3 + $0xb8] sm:$0xff]
          %v1516 = vld [vmem:[#allocation3 + $0xc0] sm:$0xff]
          %v1517 = vld [vmem:[#allocation3 + $0xc8] sm:$0xff]
          %v1518 = vld [vmem:[#allocation3 + $0xd0] sm:$0xff]
          %v1519 = vld [vmem:[#allocation3 + $0xd8] sm:$0xff]
          %v1520 = vld [vmem:[#allocation3 + $0xe0] sm:$0xff]
          %v1521 = vld [vmem:[#allocation3 + $0xe8] sm:$0xff]
          %v1522 = vld [vmem:[#allocation3 + $0xf0] sm:$0xff]
          %v1523 = vld [vmem:[#allocation3 + $0xf8] sm:$0xff]
          %v1524 = vlog2.pop %v1492
          %v1525 = vmul.f32 %v1524, 0.6931472
          %v1526 = vlog2.pop %v1493
          %v1527 = vmul.f32 %v1526, 0.6931472
          %v1528 = vlog2.pop %v1494
          %v1529 = vmul.f32 %v1528, 0.6931472
          %v1530 = vlog2.pop %v1495
          %v1531 = vmul.f32 %v1530, 0.6931472
          %v1532 = vlog2.pop %v1496
          %v1533 = vmul.f32 %v1532, 0.6931472
          %v1534 = vlog2.pop %v1497
          %v1535 = vmul.f32 %v1534, 0.6931472
          %v1536 = vlog2.pop %v1498
          %v1537 = vmul.f32 %v1536, 0.6931472
          %v1538 = vlog2.pop %v1499
          %v1539 = vmul.f32 %v1538, 0.6931472
          %v1540 = vlog2.pop %v1500
          %v1541 = vmul.f32 %v1540, 0.6931472
          %v1542 = vlog2.pop %v1501
          %v1543 = vmul.f32 %v1542, 0.6931472
          %v1544 = vlog2.pop %v1502
          %v1545 = vmul.f32 %v1544, 0.6931472
          %v1546 = vlog2.pop %v1503
          %v1547 = vmul.f32 %v1546, 0.6931472
          %v1548 = vlog2.pop %v1504
          %v1549 = vmul.f32 %v1548, 0.6931472
          %v1550 = vlog2.pop %v1505
          %v1551 = vmul.f32 %v1550, 0.6931472
          %v1552 = vlog2.pop %v1506
          %v1553 = vmul.f32 %v1552, 0.6931472
          %v1554 = vlog2.pop %v1507
          %v1555 = vmul.f32 %v1554, 0.6931472
          %v1556 = vlog2.pop %v1508
          %v1557 = vmul.f32 %v1556, 0.6931472
          %v1558 = vlog2.pop %v1509
          %v1559 = vmul.f32 %v1558, 0.6931472
          %v1560 = vlog2.pop %v1510
          %v1561 = vmul.f32 %v1560, 0.6931472
          %v1562 = vlog2.pop %v1511
          %v1563 = vmul.f32 %v1562, 0.6931472
          %v1564 = vlog2.pop %v1512
          %v1565 = vmul.f32 %v1564, 0.6931472
          %v1566 = vlog2.pop %v1513
          %v1567 = vmul.f32 %v1566, 0.6931472
          %v1568 = vlog2.pop %v1514
          %v1569 = vmul.f32 %v1568, 0.6931472
          %v1570 = vlog2.pop %v1515
          %v1571 = vmul.f32 %v1570, 0.6931472
          %v1572 = vlog2.pop %v1516
          %v1573 = vmul.f32 %v1572, 0.6931472
          %v1574 = vlog2.pop %v1517
          %v1575 = vmul.f32 %v1574, 0.6931472
          %v1576 = vlog2.pop %v1518
          %v1577 = vmul.f32 %v1576, 0.6931472
          %v1578 = vlog2.pop %v1519
          %v1579 = vmul.f32 %v1578, 0.6931472
          %v1580 = vlog2.pop %v1520
          %v1581 = vmul.f32 %v1580, 0.6931472
          %v1582 = vlog2.pop %v1521
          %v1583 = vmul.f32 %v1582, 0.6931472
          %v1584 = vlog2.pop %v1522
          %v1585 = vmul.f32 %v1584, 0.6931472
          %v1586 = vlog2.pop %v1523
          %v1587 = vmul.f32 %v1586, 0.6931472
          %v1588 = vadd.f32 %v1460, %v1525
          %v1589 = vadd.f32 %v1461, %v1527
          %v1590 = vadd.f32 %v1462, %v1529
          %v1591 = vadd.f32 %v1463, %v1531
          %v1592 = vadd.f32 %v1464, %v1533
          %v1593 = vadd.f32 %v1465, %v1535
          %v1594 = vadd.f32 %v1466, %v1537
          %v1595 = vadd.f32 %v1467, %v1539
          %v1596 = vadd.f32 %v1468, %v1541
          %v1597 = vadd.f32 %v1469, %v1543
          %v1598 = vadd.f32 %v1470, %v1545
          %v1599 = vadd.f32 %v1471, %v1547
          %v1600 = vadd.f32 %v1472, %v1549
          %v1601 = vadd.f32 %v1473, %v1551
          %v1602 = vadd.f32 %v1474, %v1553
          %v1603 = vadd.f32 %v1475, %v1555
          %v1604 = vadd.f32 %v1476, %v1557
          %v1605 = vadd.f32 %v1477, %v1559
          %v1606 = vadd.f32 %v1478, %v1561
          %v1607 = vadd.f32 %v1479, %v1563
          %v1608 = vadd.f32 %v1480, %v1565
          %v1609 = vadd.f32 %v1481, %v1567
          %v1610 = vadd.f32 %v1482, %v1569
          %v1611 = vadd.f32 %v1483, %v1571
          %v1612 = vadd.f32 %v1484, %v1573
          %v1613 = vadd.f32 %v1485, %v1575
          %v1614 = vadd.f32 %v1486, %v1577
          %v1615 = vadd.f32 %v1487, %v1579
          %v1616 = vadd.f32 %v1488, %v1581
          %v1617 = vadd.f32 %v1489, %v1583
          %v1618 = vadd.f32 %v1490, %v1585
          %v1619 = vadd.f32 %v1491, %v1587
          %1620 = vst.msk [vmem:[%s319] sm:$0xff] %vm1391, %v1588
          %1621 = vst.msk [vmem:[%s319 + $0x8] sm:$0xff] %vm1391, %v1589
          %1622 = vst.msk [vmem:[%s319 + $0x10] sm:$0xff] %vm1391, %v1590
          %1623 = vst.msk [vmem:[%s319 + $0x18] sm:$0xff] %vm1391, %v1591
          %1624 = vst.msk [vmem:[%s319 + $0x20] sm:$0xff] %vm1391, %v1592
          %1625 = vst.msk [vmem:[%s319 + $0x28] sm:$0xff] %vm1391, %v1593
          %1626 = vst.msk [vmem:[%s319 + $0x30] sm:$0xff] %vm1391, %v1594
          %1627 = vst.msk [vmem:[%s319 + $0x38] sm:$0xff] %vm1391, %v1595
          %1628 = vst.msk [vmem:[%s319 + $0x40] sm:$0xff] %vm1391, %v1596
          %1629 = vst.msk [vmem:[%s319 + $0x48] sm:$0xff] %vm1391, %v1597
          %1630 = vst.msk [vmem:[%s319 + $0x50] sm:$0xff] %vm1391, %v1598
          %1631 = vst.msk [vmem:[%s319 + $0x58] sm:$0xff] %vm1391, %v1599
          %1632 = vst.msk [vmem:[%s319 + $0x60] sm:$0xff] %vm1391, %v1600
          %1633 = vst.msk [vmem:[%s319 + $0x68] sm:$0xff] %vm1391, %v1601
          %1634 = vst.msk [vmem:[%s319 + $0x70] sm:$0xff] %vm1391, %v1602
          %1635 = vst.msk [vmem:[%s319 + $0x78] sm:$0xff] %vm1391, %v1603
          %1636 = vst.msk [vmem:[%s319 + $0x80] sm:$0xff] %vm1391, %v1604
          %1637 = vst.msk [vmem:[%s319 + $0x88] sm:$0xff] %vm1391, %v1605
          %1638 = vst.msk [vmem:[%s319 + $0x90] sm:$0xff] %vm1391, %v1606
          %1639 = vst.msk [vmem:[%s319 + $0x98] sm:$0xff] %vm1391, %v1607
          %1640 = vst.msk [vmem:[%s319 + $0xa0] sm:$0xff] %vm1391, %v1608
          %1641 = vst.msk [vmem:[%s319 + $0xa8] sm:$0xff] %vm1391, %v1609
          %1642 = vst.msk [vmem:[%s319 + $0xb0] sm:$0xff] %vm1391, %v1610
          %1643 = vst.msk [vmem:[%s319 + $0xb8] sm:$0xff] %vm1391, %v1611
          %1644 = vst.msk [vmem:[%s319 + $0xc0] sm:$0xff] %vm1391, %v1612
          %1645 = vst.msk [vmem:[%s319 + $0xc8] sm:$0xff] %vm1391, %v1613
          %1646 = vst.msk [vmem:[%s319 + $0xd0] sm:$0xff] %vm1391, %v1614
          %1647 = vst.msk [vmem:[%s319 + $0xd8] sm:$0xff] %vm1391, %v1615
          %1648 = vst.msk [vmem:[%s319 + $0xe0] sm:$0xff] %vm1391, %v1616
          %1649 = vst.msk [vmem:[%s319 + $0xe8] sm:$0xff] %vm1391, %v1617
          %1650 = vst.msk [vmem:[%s319 + $0xf0] sm:$0xff] %vm1391, %v1618
          %1651 = vst.msk [vmem:[%s319 + $0xf8] sm:$0xff] %vm1391, %v1619
        $region81: #{rnn_model_forward.10} parent=68 // pred_fallthru
          _
        %s1652 = smul.u32 32, %s18
        %p1653 = scmp.lt.s32.totalorder %s1652, 31
        %s1654 = scalar_select %p1653, %s1652, 31
        %s1655 = smul.addr %s1654, 8
        %s1656 = scalar_lea.vmem %s3, %s1655
        // Predicated region
        $region82: #{rnn_model_forward.10} parent=68 // pred_check
          %p1657 = pneg %p122
        $region83: #{rnn_model_forward.10} parent=68 // pred_check_branch
          %1659 = sbr.rel (%p1657) target = $region85
        $region84: #{rnn_model_forward.10} parent=68 // pred_region
          %s1660 = smul.u32 32, %s18
        $region85: #{rnn_model_forward.10} parent=68 // pred_fallthru
          _
        // Predicated region
        $region86: #{rnn_model_forward.10} parent=68 // pred_check
          %p1661 = pneg %p122
        $region87: #{rnn_model_forward.10} parent=68 // pred_check_branch
          %1663 = sbr.rel (%p1661) target = $region89
        $region88: #{rnn_model_forward.10} parent=68 // pred_region
          %s1664 = smul.u32 32, %s18
          %p1665 = scmp.lt.s32.totalorder %s1664, 31
          %s1666 = scalar_select %p1665, %s1664, 31
          %s1667 = smul.addr %s1666, 8
          %s1668 = scalar_lea.vmem %s3, %s1667
        $region89: #{rnn_model_forward.10} parent=68 // pred_fallthru
          _
      $region69: #{rnn_model_forward.10} parent=5 // pred_fallthru
        _
      %p1669 = scmp.le.s32.totalorder 2, %s9
      // Predicated region
      $region90: #{rnn_model_forward.10} parent=5 // pred_check
        %p1670 = pneg %p1669
      $region91: #{rnn_model_forward.10} parent=5 // pred_check_branch
        %1672 = sbr.rel (%p1670) target = $region93
      $region92: #{rnn_model_forward.10} parent=5 // pred_region
        %s1673 = ssub.s32 %s9, 2
      $region93: #{rnn_model_forward.10} parent=5 // pred_fallthru
        _
    $region6: #{rnn_model_forward.10} parent=1 // loop_footer
      %s13 = sadd.s32 1, %s9
    $region7: #{rnn_model_forward.10} parent=1 // loop_footer_branch
      %8 = sbr.rel target = $region3
    $region8: #{rnn_model_forward.10} parent=1 // loop_exit
      _

// kernel: rnn_model_forward.11
$region0: #{rnn_model_forward.11}
  #allocation0 [shape = 'u32[]', space=smem, size = 0x4, offset = 0x4, fixed_abs, tag = 'smem constant byte address 0x4 - core index']
  #allocation1 [shape = 'u32[144,128]{1,0:T(1,128)}', space=vmem, size = 0x12000, scoped, tag = 'internal scratch']
  %s0 = inlined_call_operand.vmem [shape: bf16[256,128], index: 0, kind: input, shape index: {}]
  %s1 = inlined_call_operand.vmem [shape: bf16[128,384], index: 1, kind: input, shape index: {}]
  %s2 = inlined_call_operand.vmem [shape: f32[1,384], index: 2, kind: input, shape index: {}]
  %s3 = inlined_call_operand.vmem [shape: f32[256,1], index: 3, kind: input, shape index: {}]
  %s4 = inlined_call_operand.hbm [shape: f32[256,384], index: 4, kind: output, shape index: {}]
  %s5 = sld [smem:[#allocation0]]
  $region90: #{rnn_model_forward.11} parent=0
    _
  %s7 = ssub.s32 1, %s5
  %s8 = scalar_select 0, %s7, %s5
  $region1: #{rnn_model_forward.11} parent=0
    #allocation2 [shape = 'u8[65536]{0}', space=vmem, size = 0x10000, scoped, tag = 'input window, operand 1']
    #allocation3 [shape = 'u8[262144]{0}', space=vmem, size = 0x40000, scoped, tag = 'output window, operand 0']
    #allocation4 [shape = 's32[2]{0}', space=sflag, size = 0x8, scoped, tag = 'scoped memory for rnn_model_forward.11']
    %9 = vsyncpa [#allocation4], 0
    %s10 = scalar_lea.sflag [#allocation4], 1
    %11 = vsyncpa %s10, 0
    loop: start=0, step=1, limit=5
    $region2: #{rnn_model_forward.11} parent=1 // loop_pre_header
      _
    $region3: #{rnn_model_forward.11} parent=1 // loop_header
      %s13 = sphi 0, %s17
      %p14 = scmp.ge.s32.totalorder %s13, 5
      %s20 = sphi 0, %s32
      %s21 = sphi 0, %s28
      %s22 = sphi 0, %s20
      %s23 = sphi 0, %s21
      %s24 = sphi 0, %s22
      %s25 = sphi 0, %s23
      %s35 = sphi 0, %s37
      %s38 = sphi 0, %s35
      %s39 = sphi 0, %s38
      %s55 = sphi 0, %s39
      %s61 = sphi 0, %s63
      %s64 = sphi 0, %s61
      %s65 = sphi 0, %s64
      %s81 = sphi 0, %s65
      %s87 = sphi 0, %s89
      %s90 = sphi 0, %s87
      %s91 = sphi 0, %s90
      %s107 = sphi 0, %s91
      %s113 = sphi 0, %s115
      %s116 = sphi 0, %s113
      %s117 = sphi 0, %s116
      %s133 = sphi 0, %s117
      %s141 = sphi 0, %s143
      %s144 = sphi 0, %s141
      %s145 = sphi 0, %s144
      %s161 = sphi 0, %s145
    $region4: #{rnn_model_forward.11} parent=1 // loop_header_branch
      %16 = sbr.rel (%p14) target = $region8
    $region5: #{rnn_model_forward.11} parent=1 // loop_body
      %s18 = ssub.s32 %s13, 1
      %s19 = ssub.s32 %s13, 2
      %s26 = sadd.s32 1, %s21
      %p27 = scmp.ge.s32.totalorder %s26, 3
      %s28 = scalar_select %p27, 0, %s26
      %s29 = sadd.s32 1, %s20
      %s30 = scalar_select %p27, %s29, %s20
      %p31 = scmp.ge.s32.totalorder %s30, 1
      %s32 = scalar_select %p31, 0, %s30
      %s33 = ssub.s32 %s20, %s32
      %p34 = scmp.eq.s32.totalorder %s33, 0
      %s36 = sadd.s32 %s35, 1
      %s37 = scalar_select %p34, %s35, %s36
      %p40 = pneg %p34
      %p41 = scmp.eq.s32.totalorder %s13, 2
      %p42 = por %p40, %p41
      %p43 = scmp.ne.s32.totalorder %s35, %s38
      %p44 = scmp.eq.s32.totalorder %s13, 0
      %p45 = por %p43, %p44
      %p46 = scmp.ne.s32.totalorder %s35, %s38
      %p47 = scmp.eq.s32.totalorder %s18, 2
      %p48 = por %p46, %p47
      %p49 = scmp.ne.s32.totalorder %s38, %s39
      %p50 = scmp.eq.s32.totalorder %s18, 0
      %p51 = por %p49, %p50
      %p52 = scmp.ne.s32.totalorder %s38, %s39
      %p53 = scmp.eq.s32.totalorder %s19, 2
      %p54 = por %p52, %p53
      %p56 = scmp.ne.s32.totalorder %s39, %s55
      %p57 = scmp.eq.s32.totalorder %s19, 0
      %p58 = por %p56, %p57
      %s59 = ssub.s32 %s21, %s28
      %p60 = scmp.eq.s32.totalorder %s59, 0
      %s62 = sadd.s32 %s61, 1
      %s63 = scalar_select %p60, %s61, %s62
      %p66 = pneg %p60
      %p67 = scmp.eq.s32.totalorder %s13, 2
      %p68 = por %p66, %p67
      %p69 = scmp.ne.s32.totalorder %s61, %s64
      %p70 = scmp.eq.s32.totalorder %s13, 0
      %p71 = por %p69, %p70
      %p72 = scmp.ne.s32.totalorder %s61, %s64
      %p73 = scmp.eq.s32.totalorder %s18, 2
      %p74 = por %p72, %p73
      %p75 = scmp.ne.s32.totalorder %s64, %s65
      %p76 = scmp.eq.s32.totalorder %s18, 0
      %p77 = por %p75, %p76
      %p78 = scmp.ne.s32.totalorder %s64, %s65
      %p79 = scmp.eq.s32.totalorder %s19, 2
      %p80 = por %p78, %p79
      %p82 = scmp.ne.s32.totalorder %s65, %s81
      %p83 = scmp.eq.s32.totalorder %s19, 0
      %p84 = por %p82, %p83
      %s85 = ssub.s32 %s21, %s28
      %p86 = scmp.eq.s32.totalorder %s85, 0
      %s88 = sadd.s32 %s87, 1
      %s89 = scalar_select %p86, %s87, %s88
      %p92 = pneg %p86
      %p93 = scmp.eq.s32.totalorder %s13, 2
      %p94 = por %p92, %p93
      %p95 = scmp.ne.s32.totalorder %s87, %s90
      %p96 = scmp.eq.s32.totalorder %s13, 0
      %p97 = por %p95, %p96
      %p98 = scmp.ne.s32.totalorder %s87, %s90
      %p99 = scmp.eq.s32.totalorder %s18, 2
      %p100 = por %p98, %p99
      %p101 = scmp.ne.s32.totalorder %s90, %s91
      %p102 = scmp.eq.s32.totalorder %s18, 0
      %p103 = por %p101, %p102
      %p104 = scmp.ne.s32.totalorder %s90, %s91
      %p105 = scmp.eq.s32.totalorder %s19, 2
      %p106 = por %p104, %p105
      %p108 = scmp.ne.s32.totalorder %s91, %s107
      %p109 = scmp.eq.s32.totalorder %s19, 0
      %p110 = por %p108, %p109
      %s111 = ssub.s32 %s20, %s32
      %p112 = scmp.eq.s32.totalorder %s111, 0
      %s114 = sadd.s32 %s113, 1
      %s115 = scalar_select %p112, %s113, %s114
      %p118 = pneg %p112
      %p119 = scmp.eq.s32.totalorder %s13, 2
      %p120 = por %p118, %p119
      %p121 = scmp.ne.s32.totalorder %s113, %s116
      %p122 = scmp.eq.s32.totalorder %s13, 0
      %p123 = por %p121, %p122
      %p124 = scmp.ne.s32.totalorder %s113, %s116
      %p125 = scmp.eq.s32.totalorder %s18, 2
      %p126 = por %p124, %p125
      %p127 = scmp.ne.s32.totalorder %s116, %s117
      %p128 = scmp.eq.s32.totalorder %s18, 0
      %p129 = por %p127, %p128
      %p130 = scmp.ne.s32.totalorder %s116, %s117
      %p131 = scmp.eq.s32.totalorder %s19, 2
      %p132 = por %p130, %p131
      %p134 = scmp.ne.s32.totalorder %s117, %s133
      %p135 = scmp.eq.s32.totalorder %s19, 0
      %p136 = por %p134, %p135
      %s137 = ssub.s32 %s20, %s32
      %s138 = ssub.s32 %s21, %s28
      %s139 = sor.u32 %s137, %s138
      %p140 = scmp.eq.s32.totalorder %s139, 0
      %s142 = sadd.s32 %s141, 1
      %s143 = scalar_select %p140, %s141, %s142
      %p146 = pneg %p140
      %p147 = scmp.eq.s32.totalorder %s13, 2
      %p148 = por %p146, %p147
      %p149 = scmp.ne.s32.totalorder %s141, %s144
      %p150 = scmp.eq.s32.totalorder %s13, 0
      %p151 = por %p149, %p150
      %p152 = scmp.ne.s32.totalorder %s141, %s144
      %p153 = scmp.eq.s32.totalorder %s18, 2
      %p154 = por %p152, %p153
      %p155 = scmp.ne.s32.totalorder %s144, %s145
      %p156 = scmp.eq.s32.totalorder %s18, 0
      %p157 = por %p155, %p156
      %p158 = scmp.ne.s32.totalorder %s144, %s145
      %p159 = scmp.eq.s32.totalorder %s19, 2
      %p160 = por %p158, %p159
      %p162 = scmp.ne.s32.totalorder %s145, %s161
      %p163 = scmp.eq.s32.totalorder %s19, 0
      %p164 = por %p162, %p163
      %p165 = scmp.le.s32.totalorder 1, %s13
      %p166 = scmp.lt.s32.totalorder %s13, 4
      %p167 = pnand %p165, %p166
      %p168 = pneg %p167
      // Predicated region
      $region9: #{rnn_model_forward.11} parent=5 // pred_check
        _
      $region10: #{rnn_model_forward.11} parent=5 // pred_check_branch
        %170 = sbr.rel (%p167) target = $region12
      $region11: #{rnn_model_forward.11} parent=5 // pred_region
        %s171 = ssub.s32 %s13, 1
        // Predicated region
        $region13: #{rnn_model_forward.11} parent=11 // pred_check
          %p172 = pneg %p51
        $region14: #{rnn_model_forward.11} parent=11 // pred_check_branch
          %174 = sbr.rel (%p172) target = $region16
        $region15: #{rnn_model_forward.11} parent=11 // pred_region
          %s175 = smul.u32 32, %s22
          %p176 = scmp.lt.s32.totalorder %s175, 31
          %s177 = scalar_select %p176, %s175, 31
          %s178 = smul.addr %s177, 4
          %s179 = scalar_lea.vmem %s0, %s178
          %s180 = smul.u32 32, %s22
        $region16: #{rnn_model_forward.11} parent=11 // pred_fallthru
          _
        // Predicated region
        $region17: #{rnn_model_forward.11} parent=11 // pred_check
          %p181 = pneg %p129
        $region18: #{rnn_model_forward.11} parent=11 // pred_check_branch
          %183 = sbr.rel (%p181) target = $region20
        $region19: #{rnn_model_forward.11} parent=11 // pred_region
          %s184 = smul.u32 32, %s22
          %p185 = scmp.lt.s32.totalorder %s184, 31
          %s186 = scalar_select %p185, %s184, 31
          %s187 = smul.addr %s186, 8
          %s188 = scalar_lea.vmem %s3, %s187
          %s189 = smul.u32 32, %s22
        $region20: #{rnn_model_forward.11} parent=11 // pred_fallthru
          _
      $region12: #{rnn_model_forward.11} parent=5 // pred_fallthru
        _
      %p190 = scmp.lt.s32.totalorder %s13, 3
      // Predicated region
      $region21: #{rnn_model_forward.11} parent=5 // pred_check
        %p191 = pneg %p190
      $region22: #{rnn_model_forward.11} parent=5 // pred_check_branch
        %193 = sbr.rel (%p191) target = $region24
      $region23: #{rnn_model_forward.11} parent=5 // pred_region
        // Predicated region
        $region25: #{rnn_model_forward.11} parent=23 // pred_check
          %p194 = pneg %p71
        $region26: #{rnn_model_forward.11} parent=23 // pred_check_branch
          %196 = sbr.rel (%p194) target = $region28
        $region27: #{rnn_model_forward.11} parent=23 // pred_region
          %s197 = sand.u32 %s61, 1
          %s198 = sand.u32 %s61, 1
          %s199 = smul.addr %s198, 64
          %s200 = scalar_lea.vmem [#allocation2], %s199
          %s201 = smul.addr %s21, 4
          %s202 = scalar_lea.vmem %s1, %s201
          // Predicated region
          $region29: #{rnn_model_forward.11} parent=27 // pred_check
            _
          $region30: #{rnn_model_forward.11} parent=27 // pred_check_branch
            %204 = sbr.rel (0) target = $region32
          $region31: #{rnn_model_forward.11} parent=27 // pred_region
            // Predicated region
            $region33: #{rnn_model_forward.11} parent=31 // pred_check
              _
            $region34: #{rnn_model_forward.11} parent=31 // pred_check_branch
              %206 = sbr.rel target = $region36
            $region35: #{rnn_model_forward.11} parent=31 // pred_region
              // Predicated region
              $region48: #{rnn_model_forward.11} parent=35 // pred_check
                _
              $region49: #{rnn_model_forward.11} parent=35 // pred_check_branch
                %251 = sbr.rel (0) target = $region51
              $region50: #{rnn_model_forward.11} parent=35 // pred_region
                loop: start=0, step=1, limit=1
                $region52: #{rnn_model_forward.11} parent=50 // loop_pre_header
                  _
                $region53: #{rnn_model_forward.11} parent=50 // loop_header
                  %s253 = sphi 0, %s257
                  %p254 = scmp.ge.s32.totalorder %s253, 1
                  %s258 = sphi %s202, %s202
                  %s259 = sphi %s200, %s200
                $region54: #{rnn_model_forward.11} parent=50 // loop_header_branch
                  %256 = sbr.rel (%p254) target = $region58
                $region55: #{rnn_model_forward.11} parent=50 // loop_body
                  _
                $region56: #{rnn_model_forward.11} parent=50 // loop_footer
                  %s257 = sadd.s32 1, %s253
                $region57: #{rnn_model_forward.11} parent=50 // loop_footer_branch
                  %252 = sbr.rel target = $region53
                $region58: #{rnn_model_forward.11} parent=50 // loop_exit
                  _
                loop: start=0, step=1, limit=1
                $region59: #{rnn_model_forward.11} parent=50 // loop_pre_header
                  _
                $region60: #{rnn_model_forward.11} parent=50 // loop_header
                  %s262 = sphi 0, %s266
                  %p263 = scmp.ge.s32.totalorder %s262, 1
                  %s267 = sphi %s202, %s202
                  %s268 = sphi %s200, %s200
                $region61: #{rnn_model_forward.11} parent=50 // loop_header_branch
                  %265 = sbr.rel (%p263) target = $region65
                $region62: #{rnn_model_forward.11} parent=50 // loop_body
                  %v269 = vld [vmem:[%s267] sm:$0xf]
                  %270 = vst [vmem:[%s268] sm:$0xf] %v269
                  %v271 = vld [vmem:[%s267 + $0xc] sm:$0xf]
                  %272 = vst [vmem:[%s268 + $0x4] sm:$0xf] %v271
                  %v273 = vld [vmem:[%s267 + $0x18] sm:$0xf]
                  %274 = vst [vmem:[%s268 + $0x8] sm:$0xf] %v273
                  %v275 = vld [vmem:[%s267 + $0x24] sm:$0xf]
                  %276 = vst [vmem:[%s268 + $0xc] sm:$0xf] %v275
                  %v277 = vld [vmem:[%s267 + $0x30] sm:$0xf]
                  %278 = vst [vmem:[%s268 + $0x10] sm:$0xf] %v277
                  %v279 = vld [vmem:[%s267 + $0x3c] sm:$0xf]
                  %280 = vst [vmem:[%s268 + $0x14] sm:$0xf] %v279
                  %v281 = vld [vmem:[%s267 + $0x48] sm:$0xf]
                  %282 = vst [vmem:[%s268 + $0x18] sm:$0xf] %v281
                  %v283 = vld [vmem:[%s267 + $0x54] sm:$0xf]
                  %284 = vst [vmem:[%s268 + $0x1c] sm:$0xf] %v283
                  %v285 = vld [vmem:[%s267 + $0x60] sm:$0xf]
                  %286 = vst [vmem:[%s268 + $0x20] sm:$0xf] %v285
                  %v287 = vld [vmem:[%s267 + $0x6c] sm:$0xf]
                  %288 = vst [vmem:[%s268 + $0x24] sm:$0xf] %v287
                  %v289 = vld [vmem:[%s267 + $0x78] sm:$0xf]
                  %290 = vst [vmem:[%s268 + $0x28] sm:$0xf] %v289
                  %v291 = vld [vmem:[%s267 + $0x84] sm:$0xf]
                  %292 = vst [vmem:[%s268 + $0x2c] sm:$0xf] %v291
                  %v293 = vld [vmem:[%s267 + $0x90] sm:$0xf]
                  %294 = vst [vmem:[%s268 + $0x30] sm:$0xf] %v293
                  %v295 = vld [vmem:[%s267 + $0x9c] sm:$0xf]
                  %296 = vst [vmem:[%s268 + $0x34] sm:$0xf] %v295
                  %v297 = vld [vmem:[%s267 + $0xa8] sm:$0xf]
                  %298 = vst [vmem:[%s268 + $0x38] sm:$0xf] %v297
                  %v299 = vld [vmem:[%s267 + $0xb4] sm:$0xf]
                  %300 = vst [vmem:[%s268 + $0x3c] sm:$0xf] %v299
                $region63: #{rnn_model_forward.11} parent=50 // loop_footer
                  %s266 = sadd.s32 1, %s262
                $region64: #{rnn_model_forward.11} parent=50 // loop_footer_branch
                  %261 = sbr.rel target = $region60
                $region65: #{rnn_model_forward.11} parent=50 // loop_exit
                  _
              $region51: #{rnn_model_forward.11} parent=35 // pred_fallthru
                _
            $region36: #{rnn_model_forward.11} parent=31 // pred_fallthru
              _
            // Predicated region
            $region37: #{rnn_model_forward.11} parent=31 // pred_check
              _
            $region38: #{rnn_model_forward.11} parent=31 // pred_check_branch
              %208 = sbr.rel (0) target = $region40
            $region39: #{rnn_model_forward.11} parent=31 // pred_region
              loop: start=0, step=1, limit=1
              $region41: #{rnn_model_forward.11} parent=39 // loop_pre_header
                _
              $region42: #{rnn_model_forward.11} parent=39 // loop_header
                %s211 = sphi 0, %s215
                %p212 = scmp.ge.s32.totalorder %s211, 1
                %s216 = sphi %s202, %s202
                %s217 = sphi %s200, %s200
              $region43: #{rnn_model_forward.11} parent=39 // loop_header_branch
                %214 = sbr.rel (%p212) target = $region47
              $region44: #{rnn_model_forward.11} parent=39 // loop_body
                %v218 = vld [vmem:[%s216] sm:$0xf]
                %219 = vst [vmem:[%s217] sm:$0xf] %v218
                %v220 = vld [vmem:[%s216 + $0xc] sm:$0xf]
                %221 = vst [vmem:[%s217 + $0x4] sm:$0xf] %v220
                %v222 = vld [vmem:[%s216 + $0x18] sm:$0xf]
                %223 = vst [vmem:[%s217 + $0x8] sm:$0xf] %v222
                %v224 = vld [vmem:[%s216 + $0x24] sm:$0xf]
                %225 = vst [vmem:[%s217 + $0xc] sm:$0xf] %v224
                %v226 = vld [vmem:[%s216 + $0x30] sm:$0xf]
                %227 = vst [vmem:[%s217 + $0x10] sm:$0xf] %v226
                %v228 = vld [vmem:[%s216 + $0x3c] sm:$0xf]
                %229 = vst [vmem:[%s217 + $0x14] sm:$0xf] %v228
                %v230 = vld [vmem:[%s216 + $0x48] sm:$0xf]
                %231 = vst [vmem:[%s217 + $0x18] sm:$0xf] %v230
                %v232 = vld [vmem:[%s216 + $0x54] sm:$0xf]
                %233 = vst [vmem:[%s217 + $0x1c] sm:$0xf] %v232
                %v234 = vld [vmem:[%s216 + $0x60] sm:$0xf]
                %235 = vst [vmem:[%s217 + $0x20] sm:$0xf] %v234
                %v236 = vld [vmem:[%s216 + $0x6c] sm:$0xf]
                %237 = vst [vmem:[%s217 + $0x24] sm:$0xf] %v236
                %v238 = vld [vmem:[%s216 + $0x78] sm:$0xf]
                %239 = vst [vmem:[%s217 + $0x28] sm:$0xf] %v238
                %v240 = vld [vmem:[%s216 + $0x84] sm:$0xf]
                %241 = vst [vmem:[%s217 + $0x2c] sm:$0xf] %v240
                %v242 = vld [vmem:[%s216 + $0x90] sm:$0xf]
                %243 = vst [vmem:[%s217 + $0x30] sm:$0xf] %v242
                %v244 = vld [vmem:[%s216 + $0x9c] sm:$0xf]
                %245 = vst [vmem:[%s217 + $0x34] sm:$0xf] %v244
                %v246 = vld [vmem:[%s216 + $0xa8] sm:$0xf]
                %247 = vst [vmem:[%s217 + $0x38] sm:$0xf] %v246
                %v248 = vld [vmem:[%s216 + $0xb4] sm:$0xf]
                %249 = vst [vmem:[%s217 + $0x3c] sm:$0xf] %v248
              $region45: #{rnn_model_forward.11} parent=39 // loop_footer
                %s215 = sadd.s32 1, %s211
              $region46: #{rnn_model_forward.11} parent=39 // loop_footer_branch
                %210 = sbr.rel target = $region42
              $region47: #{rnn_model_forward.11} parent=39 // loop_exit
                _
            $region40: #{rnn_model_forward.11} parent=31 // pred_fallthru
              _
          $region32: #{rnn_model_forward.11} parent=27 // pred_fallthru
            _
          %301 = vnop
        $region28: #{rnn_model_forward.11} parent=23 // pred_fallthru
          _
        // Predicated region
        $region66: #{rnn_model_forward.11} parent=23 // pred_check
          %p302 = pneg %p97
        $region67: #{rnn_model_forward.11} parent=23 // pred_check_branch
          %304 = sbr.rel (%p302) target = $region69
        $region68: #{rnn_model_forward.11} parent=23 // pred_region
          %p305 = scmp.lt.s32.totalorder %s21, 2
          %s306 = scalar_select %p305, %s21, 2
          %s307 = scalar_lea.vmem %s2, %s306
        $region69: #{rnn_model_forward.11} parent=23 // pred_fallthru
          _
      $region24: #{rnn_model_forward.11} parent=5 // pred_fallthru
        _
      %p308 = scmp.le.s32.totalorder 1, %s13
      %p309 = scmp.lt.s32.totalorder %s13, 4
      %p310 = pnand %p308, %p309
      %p311 = pneg %p310
      // Predicated region
      $region70: #{rnn_model_forward.11} parent=5 // pred_check
        _
      $region71: #{rnn_model_forward.11} parent=5 // pred_check_branch
        %313 = sbr.rel (%p310) target = $region73
      $region72: #{rnn_model_forward.11} parent=5 // pred_region
        %s314 = ssub.s32 %s13, 1
        %s315 = sand.u32 %s64, 1
        %s316 = sand.u32 %s64, 1
        %s317 = smul.addr %s316, 64
        %s318 = scalar_lea.vmem [#allocation2], %s317
        // Predicated region
        $region74: #{rnn_model_forward.11} parent=72 // pred_check
          %p319 = pneg %p77
        $region75: #{rnn_model_forward.11} parent=72 // pred_check_branch
          %321 = sbr.rel (%p319) target = $region77
        $region76: #{rnn_model_forward.11} parent=72 // pred_region
          _
        $region77: #{rnn_model_forward.11} parent=72 // pred_fallthru
          _
        %s322 = smul.u32 32, %s22
        %p323 = scmp.lt.s32.totalorder %s322, 31
        %s324 = scalar_select %p323, %s322, 31
        %s325 = smul.addr %s324, 4
        %s326 = scalar_lea.vmem %s0, %s325
        %p327 = pneg %p51
        %p328 = pneg %p48
        %s329 = sand.u32 %s64, 1
        %s330 = sand.u32 %s64, 1
        %s331 = smul.addr %s330, 64
        %s332 = scalar_lea.vmem [#allocation2], %s331
        %p333 = pneg %p77
        %p334 = pneg %p74
        %p335 = scmp.lt.s32.totalorder %s23, 2
        %s336 = scalar_select %p335, %s23, 2
        %s337 = scalar_lea.vmem %s2, %s336
        %p338 = pneg %p103
        %p339 = pneg %p100
        %s340 = smul.u32 32, %s22
        %p341 = scmp.lt.s32.totalorder %s340, 31
        %s342 = scalar_select %p341, %s340, 31
        %s343 = smul.addr %s342, 8
        %s344 = scalar_lea.vmem %s3, %s343
        %p345 = pneg %p129
        %p346 = pneg %p126
        %p347 = pneg %p157
        %p348 = pneg %p154
        %s349 = sand.u32 %s144, 1
        %s350 = scalar_lea.sflag [#allocation4], %s349
        %s351 = sand.u32 %s144, 1
        %s352 = smul.addr %s351, 256
        %s353 = scalar_lea.vmem [#allocation3], %s352
        %s354 = smul.u32 32, %s22
        %p355 = scmp.lt.s32.totalorder %s354, 31
        %s356 = scalar_select %p355, %s354, 31
        %s357 = smul.addr %s356, 4
        %s358 = scalar_lea.vmem %s0, %s357
        %s359 = smul.u32 32, %s22
        %p360 = scmp.lt.s32.totalorder %s23, 2
        %s361 = scalar_select %p360, %s23, 2
        %s362 = scalar_lea.vmem %s2, %s361
        %s363 = smul.u32 32, %s22
        %p364 = scmp.lt.s32.totalorder %s363, 31
        %s365 = scalar_select %p364, %s363, 31
        %s366 = smul.addr %s365, 8
        %s367 = scalar_lea.vmem %s3, %s366
        %s368 = smul.u32 32, %s22
        %s369 = smul.u32 32, %s22
        %v371 = vld [vmem:[%s358] sm:$0xf]
        %v372 = vld [vmem:[%s358 + $0x4] sm:$0xf]
        %v373 = vld [vmem:[%s358 + $0x8] sm:$0xf]
        %v374 = vld [vmem:[%s358 + $0xc] sm:$0xf]
        %v375 = vld [vmem:[%s358 + $0x10] sm:$0xf]
        %v376 = vld [vmem:[%s358 + $0x14] sm:$0xf]
        %v377 = vld [vmem:[%s358 + $0x18] sm:$0xf]
        %v378 = vld [vmem:[%s358 + $0x1c] sm:$0xf]
        %v379 = vld [vmem:[%s358 + $0x20] sm:$0xf]
        %v380 = vld [vmem:[%s358 + $0x24] sm:$0xf]
        %v381 = vld [vmem:[%s358 + $0x28] sm:$0xf]
        %v382 = vld [vmem:[%s358 + $0x2c] sm:$0xf]
        %v383 = vld [vmem:[%s358 + $0x30] sm:$0xf]
        %v384 = vld [vmem:[%s358 + $0x34] sm:$0xf]
        %v385 = vld [vmem:[%s358 + $0x38] sm:$0xf]
        %v386 = vld [vmem:[%s358 + $0x3c] sm:$0xf]
        %v387 = vld [vmem:[%s358 + $0x40] sm:$0xf]
        %v388 = vld [vmem:[%s358 + $0x44] sm:$0xf]
        %v389 = vld [vmem:[%s358 + $0x48] sm:$0xf]
        %v390 = vld [vmem:[%s358 + $0x4c] sm:$0xf]
        %v391 = vld [vmem:[%s358 + $0x50] sm:$0xf]
        %v392 = vld [vmem:[%s358 + $0x54] sm:$0xf]
        %v393 = vld [vmem:[%s358 + $0x58] sm:$0xf]
        %v394 = vld [vmem:[%s358 + $0x5c] sm:$0xf]
        %v395 = vld [vmem:[%s358 + $0x60] sm:$0xf]
        %v396 = vld [vmem:[%s358 + $0x64] sm:$0xf]
        %v397 = vld [vmem:[%s358 + $0x68] sm:$0xf]
        %v398 = vld [vmem:[%s358 + $0x6c] sm:$0xf]
        %v399 = vld [vmem:[%s358 + $0x70] sm:$0xf]
        %v400 = vld [vmem:[%s358 + $0x74] sm:$0xf]
        %v401 = vld [vmem:[%s358 + $0x78] sm:$0xf]
        %v402 = vld [vmem:[%s358 + $0x7c] sm:$0xf]
        %v403 = vld [vmem:[%s318] sm:$0xf]
        %v404 = vld [vmem:[%s318 + $0x4] sm:$0xf]
        %v405 = vld [vmem:[%s318 + $0x8] sm:$0xf]
        %v406 = vld [vmem:[%s318 + $0xc] sm:$0xf]
        %v407 = vld [vmem:[%s318 + $0x10] sm:$0xf]
        %v408 = vld [vmem:[%s318 + $0x14] sm:$0xf]
        %v409 = vld [vmem:[%s318 + $0x18] sm:$0xf]
        %v410 = vld [vmem:[%s318 + $0x1c] sm:$0xf]
        %v411 = vld [vmem:[%s318 + $0x20] sm:$0xf]
        %v412 = vld [vmem:[%s318 + $0x24] sm:$0xf]
        %v413 = vld [vmem:[%s318 + $0x28] sm:$0xf]
        %v414 = vld [vmem:[%s318 + $0x2c] sm:$0xf]
        %v415 = vld [vmem:[%s318 + $0x30] sm:$0xf]
        %v416 = vld [vmem:[%s318 + $0x34] sm:$0xf]
        %v417 = vld [vmem:[%s318 + $0x38] sm:$0xf]
        %v418 = vld [vmem:[%s318 + $0x3c] sm:$0xf]
        %v419 = vld [vmem:[%s362] sm:$0x1]
        %v421 = vlaneseq
        %v422 = vshrl.u32 %v421, 7
        %v423 = vsub.s32 0, %v422
        %v424 = vrot.slane %v419, %v423
        %v458 = vunpack.c.l.b16 %v371
        %v459 = vunpack.c.l.b16 %v372
        %v460 = vunpack.c.l.b16 %v373
        %v461 = vunpack.c.l.b16 %v374
        %v462 = vunpack.c.l.b16 %v375
        %v463 = vunpack.c.l.b16 %v376
        %v464 = vunpack.c.l.b16 %v377
        %v465 = vunpack.c.l.b16 %v378
        %v466 = vunpack.c.l.b16 %v379
        %v467 = vunpack.c.l.b16 %v380
        %v468 = vunpack.c.l.b16 %v381
        %v469 = vunpack.c.l.b16 %v382
        %v470 = vunpack.c.l.b16 %v383
        %v471 = vunpack.c.l.b16 %v384
        %v472 = vunpack.c.l.b16 %v385
        %v473 = vunpack.c.l.b16 %v386
        %v474 = vunpack.c.l.b16 %v387
        %v475 = vunpack.c.l.b16 %v388
        %v476 = vunpack.c.l.b16 %v389
        %v477 = vunpack.c.l.b16 %v390
        %v478 = vunpack.c.l.b16 %v391
        %v479 = vunpack.c.l.b16 %v392
        %v480 = vunpack.c.l.b16 %v393
        %v481 = vunpack.c.l.b16 %v394
        %v482 = vunpack.c.l.b16 %v395
        %v483 = vunpack.c.l.b16 %v396
        %v484 = vunpack.c.l.b16 %v397
        %v485 = vunpack.c.l.b16 %v398
        %v486 = vunpack.c.l.b16 %v399
        %v487 = vunpack.c.l.b16 %v400
        %v488 = vunpack.c.l.b16 %v401
        %v489 = vunpack.c.l.b16 %v402
        %v490 = vpack.c.b16 %v459, %v458
        %v491 = vpack.c.b16 %v461, %v460
        %v492 = vpack.c.b16 %v463, %v462
        %v493 = vpack.c.b16 %v465, %v464
        %v494 = vpack.c.b16 %v467, %v466
        %v495 = vpack.c.b16 %v469, %v468
        %v496 = vpack.c.b16 %v471, %v470
        %v497 = vpack.c.b16 %v473, %v472
        %v498 = vpack.c.b16 %v475, %v474
        %v499 = vpack.c.b16 %v477, %v476
        %v500 = vpack.c.b16 %v479, %v478
        %v501 = vpack.c.b16 %v481, %v480
        %v502 = vpack.c.b16 %v483, %v482
        %v503 = vpack.c.b16 %v485, %v484
        %v504 = vpack.c.b16 %v487, %v486
        %v505 = vpack.c.b16 %v489, %v488
        %v538 = vunpack.c.l.b16 %v403
        %v539 = vunpack.c.l.b16 %v404
        %v540 = vunpack.c.l.b16 %v405
        %v541 = vunpack.c.l.b16 %v406
        %v542 = vunpack.c.l.b16 %v407
        %v543 = vunpack.c.l.b16 %v408
        %v544 = vunpack.c.l.b16 %v409
        %v545 = vunpack.c.l.b16 %v410
        %v546 = vunpack.c.l.b16 %v411
        %v547 = vunpack.c.l.b16 %v412
        %v548 = vunpack.c.l.b16 %v413
        %v549 = vunpack.c.l.b16 %v414
        %v550 = vunpack.c.l.b16 %v415
        %v551 = vunpack.c.l.b16 %v416
        %v552 = vunpack.c.l.b16 %v417
        %v553 = vunpack.c.l.b16 %v418
        %v554 = vpack.c.b16 %v539, %v538
        %v555 = vpack.c.b16 %v541, %v540
        %v556 = vpack.c.b16 %v543, %v542
        %v557 = vpack.c.b16 %v545, %v544
        %v558 = vpack.c.b16 %v547, %v546
        %v559 = vpack.c.b16 %v549, %v548
        %v560 = vpack.c.b16 %v551, %v550
        %v561 = vpack.c.b16 %v553, %v552
        %570 = vmatprep.subr.bf16.mxu0 0
        %571 = vmatpush1.bf16.msra.mxu0 %v554
        %572 = vmatprep.subr.bf16.mxu0 0
        %573 = vmatpush1.bf16.msra.mxu0 %v555
        %574 = vmatprep.subr.bf16.mxu0 0
        %575 = vmatpush1.bf16.msra.mxu0 %v556
        %576 = vmatprep.subr.bf16.mxu0 0
        %577 = vmatpush1.bf16.msra.mxu0 %v557
        %578 = vmatprep.subr.bf16.mxu0 0
        %579 = vmatpush1.bf16.msra.mxu0 %v558
        %580 = vmatprep.subr.bf16.mxu0 0
        %581 = vmatpush1.bf16.msra.mxu0 %v559
        %582 = vmatprep.subr.bf16.mxu0 0
        %583 = vmatpush1.bf16.msra.mxu0 %v560
        %584 = vmatprep.subr.bf16.mxu0 0
        %585 = vmatpush1.bf16.msra.mxu0 %v561
        %586 = vmatprep.subr.bf16.mxu0 0
        %587 = vmatpush1.bf16.msra.mxu0 0
        %588 = vmatprep.subr.bf16.mxu0 0
        %589 = vmatpush1.bf16.msra.mxu0 0
        %590 = vmatprep.subr.bf16.mxu0 0
        %591 = vmatpush1.bf16.msra.mxu0 0
        %592 = vmatprep.subr.bf16.mxu0 0
        %593 = vmatpush1.bf16.msra.mxu0 0
        %594 = vmatprep.subr.bf16.mxu0 0
        %595 = vmatpush1.bf16.msra.mxu0 0
        %596 = vmatprep.subr.bf16.mxu0 0
        %597 = vmatpush1.bf16.msra.mxu0 0
        %598 = vmatprep.subr.bf16.mxu0 0
        %599 = vmatpush1.bf16.msra.mxu0 0
        %600 = vmatprep.subr.bf16.mxu0 0
        %601 = vmatpush1.bf16.msra.mxu0 0
        %602 = vmatprep.mubr.bf16.mxu0 0
        %603 = vmatmul.mubr.bf16.gmra.mrb[0].mxu0 %v490
        %v604 = vpop.f32.mrb[0].mxu0
        %v605 = vadd.f32 %v424, %v604
        %v606 = vpop.f32.mrb[0].mxu0
        %v607 = vpop.f32.mrb[0].mxu0
        %v608 = vadd.f32 %v424, %v607
        %v609 = vpop.f32.mrb[0].mxu0
        %610 = vmatprep.mubr.bf16.mxu0 0
        %611 = vmatmul.mubr.bf16.gmra.mrb[0].mxu0 %v491
        %v612 = vpop.f32.mrb[0].mxu0
        %v613 = vadd.f32 %v424, %v612
        %v614 = vpop.f32.mrb[0].mxu0
        %v615 = vpop.f32.mrb[0].mxu0
        %v616 = vadd.f32 %v424, %v615
        %v617 = vpop.f32.mrb[0].mxu0
        %618 = vmatprep.mubr.bf16.mxu0 0
        %619 = vmatmul.mubr.bf16.gmra.mrb[0].mxu0 %v492
        %v620 = vpop.f32.mrb[0].mxu0
        %v621 = vadd.f32 %v424, %v620
        %v622 = vpop.f32.mrb[0].mxu0
        %v623 = vpop.f32.mrb[0].mxu0
        %v624 = vadd.f32 %v424, %v623
        %v625 = vpop.f32.mrb[0].mxu0
        %626 = vmatprep.mubr.bf16.mxu0 0
        %627 = vmatmul.mubr.bf16.gmra.mrb[0].mxu0 %v493
        %v628 = vpop.f32.mrb[0].mxu0
        %v629 = vadd.f32 %v424, %v628
        %v630 = vpop.f32.mrb[0].mxu0
        %v631 = vpop.f32.mrb[0].mxu0
        %v632 = vadd.f32 %v424, %v631
        %v633 = vpop.f32.mrb[0].mxu0
        %634 = vmatprep.mubr.bf16.mxu0 0
        %635 = vmatmul.mubr.bf16.gmra.mrb[0].mxu0 %v494
        %v636 = vpop.f32.mrb[0].mxu0
        %v637 = vadd.f32 %v424, %v636
        %v638 = vpop.f32.mrb[0].mxu0
        %v639 = vpop.f32.mrb[0].mxu0
        %v640 = vadd.f32 %v424, %v639
        %v641 = vpop.f32.mrb[0].mxu0
        %642 = vmatprep.mubr.bf16.mxu0 0
        %643 = vmatmul.mubr.bf16.gmra.mrb[0].mxu0 %v495
        %v644 = vpop.f32.mrb[0].mxu0
        %v645 = vadd.f32 %v424, %v644
        %v646 = vpop.f32.mrb[0].mxu0
        %v647 = vpop.f32.mrb[0].mxu0
        %v648 = vadd.f32 %v424, %v647
        %v649 = vpop.f32.mrb[0].mxu0
        %650 = vmatprep.mubr.bf16.mxu0 0
        %651 = vmatmul.mubr.bf16.gmra.mrb[0].mxu0 %v496
        %v652 = vpop.f32.mrb[0].mxu0
        %v653 = vadd.f32 %v424, %v652
        %v654 = vpop.f32.mrb[0].mxu0
        %v655 = vpop.f32.mrb[0].mxu0
        %v656 = vadd.f32 %v424, %v655
        %v657 = vpop.f32.mrb[0].mxu0
        %658 = vmatprep.mubr.bf16.mxu0 0
        %659 = vmatmul.mubr.bf16.gmra.mrb[0].mxu0 %v497
        %v660 = vpop.f32.mrb[0].mxu0
        %v661 = vadd.f32 %v424, %v660
        %v662 = vpop.f32.mrb[0].mxu0
        %v663 = vpop.f32.mrb[0].mxu0
        %v664 = vadd.f32 %v424, %v663
        %v665 = vpop.f32.mrb[0].mxu0
        %666 = vmatprep.mubr.bf16.mxu0 0
        %667 = vmatmul.mubr.bf16.gmra.mrb[0].mxu0 %v498
        %v668 = vpop.f32.mrb[0].mxu0
        %v669 = vadd.f32 %v424, %v668
        %v670 = vpop.f32.mrb[0].mxu0
        %v671 = vpop.f32.mrb[0].mxu0
        %v672 = vadd.f32 %v424, %v671
        %v673 = vpop.f32.mrb[0].mxu0
        %674 = vmatprep.mubr.bf16.mxu0 0
        %675 = vmatmul.mubr.bf16.gmra.mrb[0].mxu0 %v499
        %v676 = vpop.f32.mrb[0].mxu0
        %v677 = vadd.f32 %v424, %v676
        %v678 = vpop.f32.mrb[0].mxu0
        %v679 = vpop.f32.mrb[0].mxu0
        %v680 = vadd.f32 %v424, %v679
        %v681 = vpop.f32.mrb[0].mxu0
        %682 = vmatprep.mubr.bf16.mxu0 0
        %683 = vmatmul.mubr.bf16.gmra.mrb[0].mxu0 %v500
        %v684 = vpop.f32.mrb[0].mxu0
        %v685 = vadd.f32 %v424, %v684
        %v686 = vpop.f32.mrb[0].mxu0
        %v687 = vpop.f32.mrb[0].mxu0
        %v688 = vadd.f32 %v424, %v687
        %v689 = vpop.f32.mrb[0].mxu0
        %690 = vmatprep.mubr.bf16.mxu0 0
        %691 = vmatmul.mubr.bf16.gmra.mrb[0].mxu0 %v501
        %v692 = vpop.f32.mrb[0].mxu0
        %v693 = vadd.f32 %v424, %v692
        %v694 = vpop.f32.mrb[0].mxu0
        %v695 = vpop.f32.mrb[0].mxu0
        %v696 = vadd.f32 %v424, %v695
        %v697 = vpop.f32.mrb[0].mxu0
        %698 = vmatprep.mubr.bf16.mxu0 0
        %699 = vmatmul.mubr.bf16.gmra.mrb[0].mxu0 %v502
        %v700 = vpop.f32.mrb[0].mxu0
        %v701 = vadd.f32 %v424, %v700
        %v702 = vpop.f32.mrb[0].mxu0
        %v703 = vpop.f32.mrb[0].mxu0
        %v704 = vadd.f32 %v424, %v703
        %v705 = vpop.f32.mrb[0].mxu0
        %706 = vmatprep.mubr.bf16.mxu0 0
        %707 = vmatmul.mubr.bf16.gmra.mrb[0].mxu0 %v503
        %v708 = vpop.f32.mrb[0].mxu0
        %v709 = vadd.f32 %v424, %v708
        %v710 = vpop.f32.mrb[0].mxu0
        %v711 = vpop.f32.mrb[0].mxu0
        %v712 = vadd.f32 %v424, %v711
        %v713 = vpop.f32.mrb[0].mxu0
        %714 = vmatprep.mubr.bf16.mxu0 0
        %715 = vmatmul.mubr.bf16.gmra.mrb[0].mxu0 %v504
        %v716 = vpop.f32.mrb[0].mxu0
        %v717 = vadd.f32 %v424, %v716
        %v718 = vpop.f32.mrb[0].mxu0
        %v719 = vpop.f32.mrb[0].mxu0
        %v720 = vadd.f32 %v424, %v719
        %v721 = vpop.f32.mrb[0].mxu0
        %722 = vmatprep.mubr.bf16.mxu0 0
        %723 = vmatmul.mubr.bf16.gmra.mrb[0].mxu0 %v505
        %v724 = vpop.f32.mrb[0].mxu0
        %v725 = vadd.f32 %v424, %v724
        %v726 = vpop.f32.mrb[0].mxu0
        %v727 = vpop.f32.mrb[0].mxu0
        %v728 = vadd.f32 %v424, %v727
        %v729 = vpop.f32.mrb[0].mxu0
        %730 = vdwg.mxu0
        %v731 = vld [vmem:[%s367] sm:$0xff]
        %v732 = vld [vmem:[%s367 + $0x8] sm:$0xff]
        %v733 = vld [vmem:[%s367 + $0x10] sm:$0xff]
        %v734 = vld [vmem:[%s367 + $0x18] sm:$0xff]
        %v735 = vld [vmem:[%s367 + $0x20] sm:$0xff]
        %v736 = vld [vmem:[%s367 + $0x28] sm:$0xff]
        %v737 = vld [vmem:[%s367 + $0x30] sm:$0xff]
        %v738 = vld [vmem:[%s367 + $0x38] sm:$0xff]
        %v739 = vld [vmem:[%s367 + $0x40] sm:$0xff]
        %v740 = vld [vmem:[%s367 + $0x48] sm:$0xff]
        %v741 = vld [vmem:[%s367 + $0x50] sm:$0xff]
        %v742 = vld [vmem:[%s367 + $0x58] sm:$0xff]
        %v743 = vld [vmem:[%s367 + $0x60] sm:$0xff]
        %v744 = vld [vmem:[%s367 + $0x68] sm:$0xff]
        %v745 = vld [vmem:[%s367 + $0x70] sm:$0xff]
        %v746 = vld [vmem:[%s367 + $0x78] sm:$0xff]
        %v747 = vld [vmem:[%s367 + $0x80] sm:$0xff]
        %v748 = vld [vmem:[%s367 + $0x88] sm:$0xff]
        %v749 = vld [vmem:[%s367 + $0x90] sm:$0xff]
        %v750 = vld [vmem:[%s367 + $0x98] sm:$0xff]
        %v751 = vld [vmem:[%s367 + $0xa0] sm:$0xff]
        %v752 = vld [vmem:[%s367 + $0xa8] sm:$0xff]
        %v753 = vld [vmem:[%s367 + $0xb0] sm:$0xff]
        %v754 = vld [vmem:[%s367 + $0xb8] sm:$0xff]
        %v755 = vld [vmem:[%s367 + $0xc0] sm:$0xff]
        %v756 = vld [vmem:[%s367 + $0xc8] sm:$0xff]
        %v757 = vld [vmem:[%s367 + $0xd0] sm:$0xff]
        %v758 = vld [vmem:[%s367 + $0xd8] sm:$0xff]
        %v759 = vld [vmem:[%s367 + $0xe0] sm:$0xff]
        %v760 = vld [vmem:[%s367 + $0xe8] sm:$0xff]
        %v761 = vld [vmem:[%s367 + $0xf0] sm:$0xff]
        %v762 = vld [vmem:[%s367 + $0xf8] sm:$0xff]
        %764 = vset.pattern.permute.xlu0 0
        %765 = vperm.xlu0 %764, %v731
        %v766 = vpop.permute.xlu0 %765
        %769 = vset.pattern.permute.xlu0 0
        %770 = vperm.xlu0 %769, %v732
        %v771 = vpop.permute.xlu0 %770
        %774 = vset.pattern.permute.xlu0 0
        %775 = vperm.xlu0 %774, %v733
        %v776 = vpop.permute.xlu0 %775
        %779 = vset.pattern.permute.xlu0 0
        %780 = vperm.xlu0 %779, %v734
        %v781 = vpop.permute.xlu0 %780
        %784 = vset.pattern.permute.xlu0 0
        %785 = vperm.xlu0 %784, %v735
        %v786 = vpop.permute.xlu0 %785
        %789 = vset.pattern.permute.xlu0 0
        %790 = vperm.xlu0 %789, %v736
        %v791 = vpop.permute.xlu0 %790
        %794 = vset.pattern.permute.xlu0 0
        %795 = vperm.xlu0 %794, %v737
        %v796 = vpop.permute.xlu0 %795
        %799 = vset.pattern.permute.xlu0 0
        %800 = vperm.xlu0 %799, %v738
        %v801 = vpop.permute.xlu0 %800
        %804 = vset.pattern.permute.xlu0 0
        %805 = vperm.xlu0 %804, %v739
        %v806 = vpop.permute.xlu0 %805
        %809 = vset.pattern.permute.xlu0 0
        %810 = vperm.xlu0 %809, %v740
        %v811 = vpop.permute.xlu0 %810
        %814 = vset.pattern.permute.xlu0 0
        %815 = vperm.xlu0 %814, %v741
        %v816 = vpop.permute.xlu0 %815
        %819 = vset.pattern.permute.xlu0 0
        %820 = vperm.xlu0 %819, %v742
        %v821 = vpop.permute.xlu0 %820
        %824 = vset.pattern.permute.xlu0 0
        %825 = vperm.xlu0 %824, %v743
        %v826 = vpop.permute.xlu0 %825
        %829 = vset.pattern.permute.xlu0 0
        %830 = vperm.xlu0 %829, %v744
        %v831 = vpop.permute.xlu0 %830
        %834 = vset.pattern.permute.xlu0 0
        %835 = vperm.xlu0 %834, %v745
        %v836 = vpop.permute.xlu0 %835
        %839 = vset.pattern.permute.xlu0 0
        %840 = vperm.xlu0 %839, %v746
        %v841 = vpop.permute.xlu0 %840
        %844 = vset.pattern.permute.xlu0 0
        %845 = vperm.xlu0 %844, %v747
        %v846 = vpop.permute.xlu0 %845
        %849 = vset.pattern.permute.xlu0 0
        %850 = vperm.xlu0 %849, %v748
        %v851 = vpop.permute.xlu0 %850
        %854 = vset.pattern.permute.xlu0 0
        %855 = vperm.xlu0 %854, %v749
        %v856 = vpop.permute.xlu0 %855
        %859 = vset.pattern.permute.xlu0 0
        %860 = vperm.xlu0 %859, %v750
        %v861 = vpop.permute.xlu0 %860
        %864 = vset.pattern.permute.xlu0 0
        %865 = vperm.xlu0 %864, %v751
        %v866 = vpop.permute.xlu0 %865
        %869 = vset.pattern.permute.xlu0 0
        %870 = vperm.xlu0 %869, %v752
        %v871 = vpop.permute.xlu0 %870
        %874 = vset.pattern.permute.xlu0 0
        %875 = vperm.xlu0 %874, %v753
        %v876 = vpop.permute.xlu0 %875
        %879 = vset.pattern.permute.xlu0 0
        %880 = vperm.xlu0 %879, %v754
        %v881 = vpop.permute.xlu0 %880
        %884 = vset.pattern.permute.xlu0 0
        %885 = vperm.xlu0 %884, %v755
        %v886 = vpop.permute.xlu0 %885
        %889 = vset.pattern.permute.xlu0 0
        %890 = vperm.xlu0 %889, %v756
        %v891 = vpop.permute.xlu0 %890
        %894 = vset.pattern.permute.xlu0 0
        %895 = vperm.xlu0 %894, %v757
        %v896 = vpop.permute.xlu0 %895
        %899 = vset.pattern.permute.xlu0 0
        %900 = vperm.xlu0 %899, %v758
        %v901 = vpop.permute.xlu0 %900
        %904 = vset.pattern.permute.xlu0 0
        %905 = vperm.xlu0 %904, %v759
        %v906 = vpop.permute.xlu0 %905
        %909 = vset.pattern.permute.xlu0 0
        %910 = vperm.xlu0 %909, %v760
        %v911 = vpop.permute.xlu0 %910
        %914 = vset.pattern.permute.xlu0 0
        %915 = vperm.xlu0 %914, %v761
        %v916 = vpop.permute.xlu0 %915
        %919 = vset.pattern.permute.xlu0 0
        %920 = vperm.xlu0 %919, %v762
        %v921 = vpop.permute.xlu0 %920
        %v923 = vsub.f32 %v605, %v766
        %v924 = vsub.f32 %v608, %v771
        %v925 = vsub.f32 %v613, %v776
        %v926 = vsub.f32 %v616, %v781
        %v927 = vsub.f32 %v621, %v786
        %v928 = vsub.f32 %v624, %v791
        %v929 = vsub.f32 %v629, %v796
        %v930 = vsub.f32 %v632, %v801
        %v931 = vsub.f32 %v637, %v806
        %v932 = vsub.f32 %v640, %v811
        %v933 = vsub.f32 %v645, %v816
        %v934 = vsub.f32 %v648, %v821
        %v935 = vsub.f32 %v653, %v826
        %v936 = vsub.f32 %v656, %v831
        %v937 = vsub.f32 %v661, %v836
        %v938 = vsub.f32 %v664, %v841
        %v939 = vsub.f32 %v669, %v846
        %v940 = vsub.f32 %v672, %v851
        %v941 = vsub.f32 %v677, %v856
        %v942 = vsub.f32 %v680, %v861
        %v943 = vsub.f32 %v685, %v866
        %v944 = vsub.f32 %v688, %v871
        %v945 = vsub.f32 %v693, %v876
        %v946 = vsub.f32 %v696, %v881
        %v947 = vsub.f32 %v701, %v886
        %v948 = vsub.f32 %v704, %v891
        %v949 = vsub.f32 %v709, %v896
        %v950 = vsub.f32 %v712, %v901
        %v951 = vsub.f32 %v717, %v906
        %v952 = vsub.f32 %v720, %v911
        %v953 = vsub.f32 %v725, %v916
        %v954 = vsub.f32 %v728, %v921
        %955 = vst [vmem:[%s353] sm:$0xff] %v923
        %956 = vst [vmem:[%s353 + $0x8] sm:$0xff] %v924
        %957 = vst [vmem:[%s353 + $0x10] sm:$0xff] %v925
        %958 = vst [vmem:[%s353 + $0x18] sm:$0xff] %v926
        %959 = vst [vmem:[%s353 + $0x20] sm:$0xff] %v927
        %960 = vst [vmem:[%s353 + $0x28] sm:$0xff] %v928
        %961 = vst [vmem:[%s353 + $0x30] sm:$0xff] %v929
        %962 = vst [vmem:[%s353 + $0x38] sm:$0xff] %v930
        %963 = vst [vmem:[%s353 + $0x40] sm:$0xff] %v931
        %964 = vst [vmem:[%s353 + $0x48] sm:$0xff] %v932
        %965 = vst [vmem:[%s353 + $0x50] sm:$0xff] %v933
        %966 = vst [vmem:[%s353 + $0x58] sm:$0xff] %v934
        %967 = vst [vmem:[%s353 + $0x60] sm:$0xff] %v935
        %968 = vst [vmem:[%s353 + $0x68] sm:$0xff] %v936
        %969 = vst [vmem:[%s353 + $0x70] sm:$0xff] %v937
        %970 = vst [vmem:[%s353 + $0x78] sm:$0xff] %v938
        %971 = vst [vmem:[%s353 + $0x80] sm:$0xff] %v939
        %972 = vst [vmem:[%s353 + $0x88] sm:$0xff] %v940
        %973 = vst [vmem:[%s353 + $0x90] sm:$0xff] %v941
        %974 = vst [vmem:[%s353 + $0x98] sm:$0xff] %v942
        %975 = vst [vmem:[%s353 + $0xa0] sm:$0xff] %v943
        %976 = vst [vmem:[%s353 + $0xa8] sm:$0xff] %v944
        %977 = vst [vmem:[%s353 + $0xb0] sm:$0xff] %v945
        %978 = vst [vmem:[%s353 + $0xb8] sm:$0xff] %v946
        %979 = vst [vmem:[%s353 + $0xc0] sm:$0xff] %v947
        %980 = vst [vmem:[%s353 + $0xc8] sm:$0xff] %v948
        %981 = vst [vmem:[%s353 + $0xd0] sm:$0xff] %v949
        %982 = vst [vmem:[%s353 + $0xd8] sm:$0xff] %v950
        %983 = vst [vmem:[%s353 + $0xe0] sm:$0xff] %v951
        %984 = vst [vmem:[%s353 + $0xe8] sm:$0xff] %v952
        %985 = vst [vmem:[%s353 + $0xf0] sm:$0xff] %v953
        %986 = vst [vmem:[%s353 + $0xf8] sm:$0xff] %v954
        %s987 = sand.u32 %s144, 1
        %s988 = scalar_lea.sflag [#allocation4], %s987
        %s989 = sand.u32 %s144, 1
        %s990 = smul.addr %s989, 256
        %s991 = scalar_lea.vmem [#allocation3], %s990
        // Predicated region
        $region78: #{rnn_model_forward.11} parent=72 // pred_check
          %p992 = pneg %p154
        $region79: #{rnn_model_forward.11} parent=72 // pred_check_branch
          %994 = sbr.rel (%p992) target = $region81
        $region80: #{rnn_model_forward.11} parent=72 // pred_region
          %s995 = smul.u32 32, %s22
          %s997 = ssub.s32 4096, 4096
          %998 = vsyncadd %s988, %s997
          %s999 = smul.addr %s995, 3
          %s1000 = sadd.s32 %s23, %s999
          %s1001 = smul.addr %s1000, 128
          %s1002 = scalar_lea.hbm %s4, %s1001
          %s1003 = sshll.u32 %s991, 4
          %s1004 = int_to_ptr.vmem [resolvable:$true] %s1003
          %1009 = dma.vmem_to_hbm [thread:$0]  %s1004, 4096, %s1002, %s988, 128, 384, 8
        $region81: #{rnn_model_forward.11} parent=72 // pred_fallthru
          _
      $region73: #{rnn_model_forward.11} parent=5 // pred_fallthru
        _
      %p1010 = scmp.le.s32.totalorder 2, %s13
      // Predicated region
      $region82: #{rnn_model_forward.11} parent=5 // pred_check
        %p1011 = pneg %p1010
      $region83: #{rnn_model_forward.11} parent=5 // pred_check_branch
        %1013 = sbr.rel (%p1011) target = $region85
      $region84: #{rnn_model_forward.11} parent=5 // pred_region
        %s1014 = ssub.s32 %s13, 2
        // Predicated region
        $region86: #{rnn_model_forward.11} parent=84 // pred_check
          %p1015 = pneg %p160
        $region87: #{rnn_model_forward.11} parent=84 // pred_check_branch
          %1017 = sbr.rel (%p1015) target = $region89
        $region88: #{rnn_model_forward.11} parent=84 // pred_region
          %s1018 = sand.u32 %s145, 1
          %s1019 = scalar_lea.sflag [#allocation4], %s1018
          %s1020 = sand.u32 %s145, 1
          %s1021 = smul.addr %s1020, 256
          %s1022 = scalar_lea.vmem [#allocation3], %s1021
          %1023 = dma.done %s1019, 4096
        $region89: #{rnn_model_forward.11} parent=84 // pred_fallthru
          _
      $region85: #{rnn_model_forward.11} parent=5 // pred_fallthru
        _
    $region6: #{rnn_model_forward.11} parent=1 // loop_footer
      %s17 = sadd.s32 1, %s13
    $region7: #{rnn_model_forward.11} parent=1 // loop_footer_branch
      %12 = sbr.rel target = $region3
    $region8: #{rnn_model_forward.11} parent=1 // loop_exit
      _
    %1024 = vsyncpa [#allocation4], 1
    %s1025 = scalar_lea.sflag [#allocation4], 1
    %1026 = vsyncpa %s1025, 1

// kernel: rnn_model_forward.7
$region0: #{rnn_model_forward.7}
  #allocation0 [shape = 'u32[]', space=smem, size = 0x4, offset = 0x4, fixed_abs, tag = 'smem constant byte address 0x4 - core index']
  #allocation1 [shape = 'u32[144,128]{1,0:T(1,128)}', space=vmem, size = 0x12000, scoped, tag = 'internal scratch']
  #allocation2 [shape = 'f32[8,128]{1,0:T(8,128)}', space=vmem, size = 0x1000, scoped, tag = 'scratch operand']
  #allocation3 [shape = 'f32[8,128]{1,0:T(8,128)}', space=vmem, size = 0x1000, scoped, tag = 'scratch operand']
  %s0 = inlined_call_operand.vmem [shape: f32[32,8,512], index: 0, kind: input, shape index: {}]
  %s1 = inlined_call_operand.vmem [shape: f32[8,128], index: 1, kind: input, shape index: {}]
  %s2 = inlined_call_operand.vmem [shape: f32[8,128], index: 2, kind: input, shape index: {}]
  %s3 = inlined_call_operand.vmem [shape: bf16[128,512], index: 3, kind: input, shape index: {}]
  %s4 = inlined_call_operand.vmem [shape: bf16[32,8,128], index: 4, kind: output, shape index: {0}]
  %s5 = inlined_call_operand.vmem [shape: f32[8,128], index: 5, kind: output, shape index: {1}]
  %s6 = inlined_call_operand.vmem [shape: f32[8,128], index: 6, kind: output, shape index: {2}]
  %7 = xla_tuple %s4, %s5, %s6
  %s8 = sld [smem:[#allocation0]]
  $region73: #{rnn_model_forward.7} parent=0
    _
  %s10 = ssub.s32 1, %s8
  %s11 = scalar_select 0, %s10, %s8
  loop: start=0, step=1, limit=4
  $region2: #{rnn_model_forward.7} parent=0 // loop_pre_header
    _
  $region3: #{rnn_model_forward.7} parent=0 // loop_header
    %s13 = sphi 0, %s17
    %p14 = scmp.ge.s32.totalorder %s13, 4
    %s23 = sphi 0, %s25
    %s26 = sphi 0, %s23
    %s27 = sphi 0, %s26
    %s43 = sphi 0, %s27
    %s47 = sphi 0, %s47
    %s49 = sphi 0, %s47
    %s50 = sphi 0, %s49
    %s64 = sphi 0, %s50
    %s68 = sphi 0, %s68
    %s70 = sphi 0, %s68
    %s71 = sphi 0, %s70
    %s85 = sphi 0, %s71
    %s89 = sphi 0, %s89
    %s91 = sphi 0, %s89
    %s92 = sphi 0, %s91
    %s106 = sphi 0, %s92
    %s112 = sphi 0, %s114
    %s115 = sphi 0, %s112
    %s116 = sphi 0, %s115
    %s132 = sphi 0, %s116
    %s136 = sphi 0, %s136
    %s138 = sphi 0, %s136
    %s139 = sphi 0, %s138
    %s153 = sphi 0, %s139
    %s157 = sphi 0, %s157
    %s159 = sphi 0, %s157
    %s160 = sphi 0, %s159
    %s174 = sphi 0, %s160
  $region4: #{rnn_model_forward.7} parent=0 // loop_header_branch
    %16 = sbr.rel (%p14) target = $region8
  $region5: #{rnn_model_forward.7} parent=0 // loop_body
    %s18 = ssub.s32 %s13, 1
    %s19 = ssub.s32 %s13, 2
    %s20 = sadd.s32 %s13, 1
    %s21 = ssub.s32 %s13, %s20
    %p22 = scmp.eq.s32.totalorder %s21, 0
    %s24 = sadd.s32 %s23, 1
    %s25 = scalar_select %p22, %s23, %s24
    %p28 = pneg %p22
    %p29 = scmp.eq.s32.totalorder %s13, 1
    %p30 = por %p28, %p29
    %p31 = scmp.ne.s32.totalorder %s23, %s26
    %p32 = scmp.eq.s32.totalorder %s13, 0
    %p33 = por %p31, %p32
    %p34 = scmp.ne.s32.totalorder %s23, %s26
    %p35 = scmp.eq.s32.totalorder %s18, 1
    %p36 = por %p34, %p35
    %p37 = scmp.ne.s32.totalorder %s26, %s27
    %p38 = scmp.eq.s32.totalorder %s18, 0
    %p39 = por %p37, %p38
    %p40 = scmp.ne.s32.totalorder %s26, %s27
    %p41 = scmp.eq.s32.totalorder %s19, 1
    %p42 = por %p40, %p41
    %p44 = scmp.ne.s32.totalorder %s27, %s43
    %p45 = scmp.eq.s32.totalorder %s19, 0
    %p46 = por %p44, %p45
    %s48 = sadd.s32 %s47, 1
    %p51 = scmp.eq.s32.totalorder %s13, 1
    %p52 = scmp.ne.s32.totalorder %s47, %s49
    %p53 = scmp.eq.s32.totalorder %s13, 0
    %p54 = por %p52, %p53
    %p55 = scmp.ne.s32.totalorder %s47, %s49
    %p56 = scmp.eq.s32.totalorder %s18, 1
    %p57 = por %p55, %p56
    %p58 = scmp.ne.s32.totalorder %s49, %s50
    %p59 = scmp.eq.s32.totalorder %s18, 0
    %p60 = por %p58, %p59
    %p61 = scmp.ne.s32.totalorder %s49, %s50
    %p62 = scmp.eq.s32.totalorder %s19, 1
    %p63 = por %p61, %p62
    %p65 = scmp.ne.s32.totalorder %s50, %s64
    %p66 = scmp.eq.s32.totalorder %s19, 0
    %p67 = por %p65, %p66
    %s69 = sadd.s32 %s68, 1
    %p72 = scmp.eq.s32.totalorder %s13, 1
    %p73 = scmp.ne.s32.totalorder %s68, %s70
    %p74 = scmp.eq.s32.totalorder %s13, 0
    %p75 = por %p73, %p74
    %p76 = scmp.ne.s32.totalorder %s68, %s70
    %p77 = scmp.eq.s32.totalorder %s18, 1
    %p78 = por %p76, %p77
    %p79 = scmp.ne.s32.totalorder %s70, %s71
    %p80 = scmp.eq.s32.totalorder %s18, 0
    %p81 = por %p79, %p80
    %p82 = scmp.ne.s32.totalorder %s70, %s71
    %p83 = scmp.eq.s32.totalorder %s19, 1
    %p84 = por %p82, %p83
    %p86 = scmp.ne.s32.totalorder %s71, %s85
    %p87 = scmp.eq.s32.totalorder %s19, 0
    %p88 = por %p86, %p87
    %s90 = sadd.s32 %s89, 1
    %p93 = scmp.eq.s32.totalorder %s13, 1
    %p94 = scmp.ne.s32.totalorder %s89, %s91
    %p95 = scmp.eq.s32.totalorder %s13, 0
    %p96 = por %p94, %p95
    %p97 = scmp.ne.s32.totalorder %s89, %s91
    %p98 = scmp.eq.s32.totalorder %s18, 1
    %p99 = por %p97, %p98
    %p100 = scmp.ne.s32.totalorder %s91, %s92
    %p101 = scmp.eq.s32.totalorder %s18, 0
    %p102 = por %p100, %p101
    %p103 = scmp.ne.s32.totalorder %s91, %s92
    %p104 = scmp.eq.s32.totalorder %s19, 1
    %p105 = por %p103, %p104
    %p107 = scmp.ne.s32.totalorder %s92, %s106
    %p108 = scmp.eq.s32.totalorder %s19, 0
    %p109 = por %p107, %p108
    %s110 = ssub.s32 %s13, %s20
    %p111 = scmp.eq.s32.totalorder %s110, 0
    %s113 = sadd.s32 %s112, 1
    %s114 = scalar_select %p111, %s112, %s113
    %p117 = pneg %p111
    %p118 = scmp.eq.s32.totalorder %s13, 1
    %p119 = por %p117, %p118
    %p120 = scmp.ne.s32.totalorder %s112, %s115
    %p121 = scmp.eq.s32.totalorder %s13, 0
    %p122 = por %p120, %p121
    %p123 = scmp.ne.s32.totalorder %s112, %s115
    %p124 = scmp.eq.s32.totalorder %s18, 1
    %p125 = por %p123, %p124
    %p126 = scmp.ne.s32.totalorder %s115, %s116
    %p127 = scmp.eq.s32.totalorder %s18, 0
    %p128 = por %p126, %p127
    %p129 = scmp.ne.s32.totalorder %s115, %s116
    %p130 = scmp.eq.s32.totalorder %s19, 1
    %p131 = por %p129, %p130
    %p133 = scmp.ne.s32.totalorder %s116, %s132
    %p134 = scmp.eq.s32.totalorder %s19, 0
    %p135 = por %p133, %p134
    %s137 = sadd.s32 %s136, 1
    %p140 = scmp.eq.s32.totalorder %s13, 1
    %p141 = scmp.ne.s32.totalorder %s136, %s138
    %p142 = scmp.eq.s32.totalorder %s13, 0
    %p143 = por %p141, %p142
    %p144 = scmp.ne.s32.totalorder %s136, %s138
    %p145 = scmp.eq.s32.totalorder %s18, 1
    %p146 = por %p144, %p145
    %p147 = scmp.ne.s32.totalorder %s138, %s139
    %p148 = scmp.eq.s32.totalorder %s18, 0
    %p149 = por %p147, %p148
    %p150 = scmp.ne.s32.totalorder %s138, %s139
    %p151 = scmp.eq.s32.totalorder %s19, 1
    %p152 = por %p150, %p151
    %p154 = scmp.ne.s32.totalorder %s139, %s153
    %p155 = scmp.eq.s32.totalorder %s19, 0
    %p156 = por %p154, %p155
    %s158 = sadd.s32 %s157, 1
    %p161 = scmp.eq.s32.totalorder %s13, 1
    %p162 = scmp.ne.s32.totalorder %s157, %s159
    %p163 = scmp.eq.s32.totalorder %s13, 0
    %p164 = por %p162, %p163
    %p165 = scmp.ne.s32.totalorder %s157, %s159
    %p166 = scmp.eq.s32.totalorder %s18, 1
    %p167 = por %p165, %p166
    %p168 = scmp.ne.s32.totalorder %s159, %s160
    %p169 = scmp.eq.s32.totalorder %s18, 0
    %p170 = por %p168, %p169
    %p171 = scmp.ne.s32.totalorder %s159, %s160
    %p172 = scmp.eq.s32.totalorder %s19, 1
    %p173 = por %p171, %p172
    %p175 = scmp.ne.s32.totalorder %s160, %s174
    %p176 = scmp.eq.s32.totalorder %s19, 0
    %p177 = por %p175, %p176
    %p178 = scmp.le.s32.totalorder 1, %s13
    %p179 = scmp.lt.s32.totalorder %s13, 3
    %p180 = pnand %p178, %p179
    %p181 = pneg %p180
    // Predicated region
    $region9: #{rnn_model_forward.7} parent=5 // pred_check
      _
    $region10: #{rnn_model_forward.7} parent=5 // pred_check_branch
      %183 = sbr.rel (%p180) target = $region12
    $region11: #{rnn_model_forward.7} parent=5 // pred_region
      %s184 = ssub.s32 %s13, 1
      // Predicated region
      $region13: #{rnn_model_forward.7} parent=11 // pred_check
        %p185 = pneg %p60
      $region14: #{rnn_model_forward.7} parent=11 // pred_check_branch
        %187 = sbr.rel (%p185) target = $region16
      $region15: #{rnn_model_forward.7} parent=11 // pred_region
        _
      $region16: #{rnn_model_forward.7} parent=11 // pred_fallthru
        _
      // Predicated region
      $region17: #{rnn_model_forward.7} parent=11 // pred_check
        %p188 = pneg %p81
      $region18: #{rnn_model_forward.7} parent=11 // pred_check_branch
        %190 = sbr.rel (%p188) target = $region20
      $region19: #{rnn_model_forward.7} parent=11 // pred_region
        _
      $region20: #{rnn_model_forward.7} parent=11 // pred_fallthru
        _
      // Predicated region
      $region21: #{rnn_model_forward.7} parent=11 // pred_check
        %p191 = pneg %p102
      $region22: #{rnn_model_forward.7} parent=11 // pred_check_branch
        %193 = sbr.rel (%p191) target = $region24
      $region23: #{rnn_model_forward.7} parent=11 // pred_region
        _
      $region24: #{rnn_model_forward.7} parent=11 // pred_fallthru
        _
    $region12: #{rnn_model_forward.7} parent=5 // pred_fallthru
      _
    %p194 = scmp.lt.s32.totalorder %s13, 2
    // Predicated region
    $region25: #{rnn_model_forward.7} parent=5 // pred_check
      %p195 = pneg %p194
    $region26: #{rnn_model_forward.7} parent=5 // pred_check_branch
      %197 = sbr.rel (%p195) target = $region28
    $region27: #{rnn_model_forward.7} parent=5 // pred_region
      // Predicated region
      $region29: #{rnn_model_forward.7} parent=27 // pred_check
        %p198 = pneg %p33
      $region30: #{rnn_model_forward.7} parent=27 // pred_check_branch
        %200 = sbr.rel (%p198) target = $region32
      $region31: #{rnn_model_forward.7} parent=27 // pred_region
        %s201 = smul.u32 16, %s13
        %p202 = scmp.lt.s32.totalorder %s201, 31
        %s203 = scalar_select %p202, %s201, 31
        %s204 = smul.addr %s203, 4
        %s205 = smul.addr %s204, 8
        %s206 = scalar_lea.vmem %s0, %s205
        %s207 = smul.u32 16, %s13
      $region32: #{rnn_model_forward.7} parent=27 // pred_fallthru
        _
    $region28: #{rnn_model_forward.7} parent=5 // pred_fallthru
      _
    %p208 = scmp.le.s32.totalorder 1, %s13
    %p209 = scmp.lt.s32.totalorder %s13, 3
    %p210 = pnand %p208, %p209
    %p211 = pneg %p210
    // Predicated region
    $region33: #{rnn_model_forward.7} parent=5 // pred_check
      _
    $region34: #{rnn_model_forward.7} parent=5 // pred_check_branch
      %213 = sbr.rel (%p210) target = $region36
    $region35: #{rnn_model_forward.7} parent=5 // pred_region
      %s214 = ssub.s32 %s13, 1
      %s215 = smul.u32 16, %s18
      %p216 = scmp.lt.s32.totalorder %s215, 31
      %s217 = scalar_select %p216, %s215, 31
      %s218 = smul.addr %s217, 4
      %s219 = smul.addr %s218, 8
      %s220 = scalar_lea.vmem %s0, %s219
      %p221 = pneg %p39
      %p222 = pneg %p36
      %p223 = pneg %p60
      %p224 = pneg %p57
      %p225 = pneg %p81
      %p226 = pneg %p78
      %p227 = pneg %p102
      %p228 = pneg %p99
      %p229 = pneg %p128
      %p230 = pneg %p125
      %s231 = smul.u32 16, %s18
      %p232 = scmp.lt.s32.totalorder %s231, 31
      %s233 = scalar_select %p232, %s231, 31
      %s234 = smul.addr %s233, 4
      %s235 = scalar_lea.vmem %s4, %s234
      %p236 = pneg %p149
      %p237 = pneg %p146
      %p238 = pneg %p170
      %p239 = pneg %p167
      %s240 = smul.u32 16, %s18
      %p241 = scmp.lt.s32.totalorder %s240, 31
      %s242 = scalar_select %p241, %s240, 31
      %s243 = smul.addr %s242, 4
      %s244 = smul.addr %s243, 8
      %s245 = scalar_lea.vmem %s0, %s244
      %s246 = smul.u32 16, %s18
      %s247 = smul.u32 16, %s18
      %p248 = scmp.lt.s32.totalorder %s247, 31
      %s249 = scalar_select %p248, %s247, 31
      %s250 = smul.addr %s249, 4
      %s251 = scalar_lea.vmem %s4, %s250
      %s252 = smul.u32 16, %s18
      %p254 = scmp.eq.s32.totalorder %s18, 0
      // Predicated region
      $region37: #{rnn_model_forward.7} parent=35 // pred_check
        %p255 = pneg %p254
      $region38: #{rnn_model_forward.7} parent=35 // pred_check_branch
        %257 = sbr.rel (%p255) target = $region40
      $region39: #{rnn_model_forward.7} parent=35 // pred_region
        %v258 = vld [vmem:[%s1] sm:$0xff]
        %259 = vst [vmem:[#allocation2] sm:$0xff] %v258
        %v260 = vld [vmem:[%s2] sm:$0xff]
        %261 = vst [vmem:[#allocation3] sm:$0xff] %v260
      $region40: #{rnn_model_forward.7} parent=35 // pred_fallthru
        _
      %v262 = vld [vmem:[%s3] sm:$0xff]
      %v263 = vld [vmem:[%s3 + $0x8] sm:$0xff]
      %v264 = vld [vmem:[%s3 + $0x10] sm:$0xff]
      %v265 = vld [vmem:[%s3 + $0x18] sm:$0xff]
      %v266 = vld [vmem:[%s3 + $0x20] sm:$0xff]
      %v267 = vld [vmem:[%s3 + $0x28] sm:$0xff]
      %v268 = vld [vmem:[%s3 + $0x30] sm:$0xff]
      %v269 = vld [vmem:[%s3 + $0x38] sm:$0xff]
      %v270 = vld [vmem:[%s3 + $0x40] sm:$0xff]
      %v271 = vld [vmem:[%s3 + $0x48] sm:$0xff]
      %v272 = vld [vmem:[%s3 + $0x50] sm:$0xff]
      %v273 = vld [vmem:[%s3 + $0x58] sm:$0xff]
      %v274 = vld [vmem:[%s3 + $0x60] sm:$0xff]
      %v275 = vld [vmem:[%s3 + $0x68] sm:$0xff]
      %v276 = vld [vmem:[%s3 + $0x70] sm:$0xff]
      %v277 = vld [vmem:[%s3 + $0x78] sm:$0xff]
      %v278 = vld [vmem:[%s3 + $0x80] sm:$0xff]
      %v279 = vld [vmem:[%s3 + $0x88] sm:$0xff]
      %v280 = vld [vmem:[%s3 + $0x90] sm:$0xff]
      %v281 = vld [vmem:[%s3 + $0x98] sm:$0xff]
      %v282 = vld [vmem:[%s3 + $0xa0] sm:$0xff]
      %v283 = vld [vmem:[%s3 + $0xa8] sm:$0xff]
      %v284 = vld [vmem:[%s3 + $0xb0] sm:$0xff]
      %v285 = vld [vmem:[%s3 + $0xb8] sm:$0xff]
      %v286 = vld [vmem:[%s3 + $0xc0] sm:$0xff]
      %v287 = vld [vmem:[%s3 + $0xc8] sm:$0xff]
      %v288 = vld [vmem:[%s3 + $0xd0] sm:$0xff]
      %v289 = vld [vmem:[%s3 + $0xd8] sm:$0xff]
      %v290 = vld [vmem:[%s3 + $0xe0] sm:$0xff]
      %v291 = vld [vmem:[%s3 + $0xe8] sm:$0xff]
      %v292 = vld [vmem:[%s3 + $0xf0] sm:$0xff]
      %v293 = vld [vmem:[%s3 + $0xf8] sm:$0xff]
      %v294 = vld [vmem:[#allocation2] sm:$0xff]
      %v295 = vld [vmem:[#allocation3] sm:$0xff]
      %v296 = vld [vmem:[%s245] sm:$0xff]
      %v297 = vld [vmem:[%s245 + $0x8] sm:$0xff]
      %v298 = vld [vmem:[%s245 + $0x10] sm:$0xff]
      %v299 = vld [vmem:[%s245 + $0x18] sm:$0xff]
      %v300 = vpack.c.bf16 %v294, %v294
      %v333 = vunpack.c.l.b16 %v262
      %v334 = vunpack.c.h.b16 %v262
      %v335 = vunpack.c.l.b16 %v263
      %v336 = vunpack.c.h.b16 %v263
      %v337 = vunpack.c.l.b16 %v264
      %v338 = vunpack.c.h.b16 %v264
      %v339 = vunpack.c.l.b16 %v265
      %v340 = vunpack.c.h.b16 %v265
      %v341 = vunpack.c.l.b16 %v266
      %v342 = vunpack.c.h.b16 %v266
      %v343 = vunpack.c.l.b16 %v267
      %v344 = vunpack.c.h.b16 %v267
      %v345 = vunpack.c.l.b16 %v268
      %v346 = vunpack.c.h.b16 %v268
      %v347 = vunpack.c.l.b16 %v269
      %v348 = vunpack.c.h.b16 %v269
      %v349 = vunpack.c.l.b16 %v270
      %v350 = vunpack.c.h.b16 %v270
      %v351 = vunpack.c.l.b16 %v271
      %v352 = vunpack.c.h.b16 %v271
      %v353 = vunpack.c.l.b16 %v272
      %v354 = vunpack.c.h.b16 %v272
      %v355 = vunpack.c.l.b16 %v273
      %v356 = vunpack.c.h.b16 %v273
      %v357 = vunpack.c.l.b16 %v274
      %v358 = vunpack.c.h.b16 %v274
      %v359 = vunpack.c.l.b16 %v275
      %v360 = vunpack.c.h.b16 %v275
      %v361 = vunpack.c.l.b16 %v276
      %v362 = vunpack.c.h.b16 %v276
      %v363 = vunpack.c.l.b16 %v277
      %v364 = vunpack.c.h.b16 %v277
      %v365 = vunpack.c.l.b16 %v278
      %v366 = vunpack.c.h.b16 %v278
      %v367 = vunpack.c.l.b16 %v279
      %v368 = vunpack.c.h.b16 %v279
      %v369 = vunpack.c.l.b16 %v280
      %v370 = vunpack.c.h.b16 %v280
      %v371 = vunpack.c.l.b16 %v281
      %v372 = vunpack.c.h.b16 %v281
      %v373 = vunpack.c.l.b16 %v282
      %v374 = vunpack.c.h.b16 %v282
      %v375 = vunpack.c.l.b16 %v283
      %v376 = vunpack.c.h.b16 %v283
      %v377 = vunpack.c.l.b16 %v284
      %v378 = vunpack.c.h.b16 %v284
      %v379 = vunpack.c.l.b16 %v285
      %v380 = vunpack.c.h.b16 %v285
      %v381 = vunpack.c.l.b16 %v286
      %v382 = vunpack.c.h.b16 %v286
      %v383 = vunpack.c.l.b16 %v287
      %v384 = vunpack.c.h.b16 %v287
      %v385 = vunpack.c.l.b16 %v288
      %v386 = vunpack.c.h.b16 %v288
      %v387 = vunpack.c.l.b16 %v289
      %v388 = vunpack.c.h.b16 %v289
      %v389 = vunpack.c.l.b16 %v290
      %v390 = vunpack.c.h.b16 %v290
      %v391 = vunpack.c.l.b16 %v291
      %v392 = vunpack.c.h.b16 %v291
      %v393 = vunpack.c.l.b16 %v292
      %v394 = vunpack.c.h.b16 %v292
      %v395 = vunpack.c.l.b16 %v293
      %v396 = vunpack.c.h.b16 %v293
      %v397 = vpack.c.b16 %v337, %v333
      %v398 = vpack.c.b16 %v338, %v334
      %v399 = vpack.c.b16 %v339, %v335
      %v400 = vpack.c.b16 %v340, %v336
      %v401 = vpack.c.b16 %v345, %v341
      %v402 = vpack.c.b16 %v346, %v342
      %v403 = vpack.c.b16 %v347, %v343
      %v404 = vpack.c.b16 %v348, %v344
      %v405 = vpack.c.b16 %v353, %v349
      %v406 = vpack.c.b16 %v354, %v350
      %v407 = vpack.c.b16 %v355, %v351
      %v408 = vpack.c.b16 %v356, %v352
      %v409 = vpack.c.b16 %v361, %v357
      %v410 = vpack.c.b16 %v362, %v358
      %v411 = vpack.c.b16 %v363, %v359
      %v412 = vpack.c.b16 %v364, %v360
      %v413 = vpack.c.b16 %v369, %v365
      %v414 = vpack.c.b16 %v370, %v366
      %v415 = vpack.c.b16 %v371, %v367
      %v416 = vpack.c.b16 %v372, %v368
      %v417 = vpack.c.b16 %v377, %v373
      %v418 = vpack.c.b16 %v378, %v374
      %v419 = vpack.c.b16 %v379, %v375
      %v420 = vpack.c.b16 %v380, %v376
      %v421 = vpack.c.b16 %v385, %v381
      %v422 = vpack.c.b16 %v386, %v382
      %v423 = vpack.c.b16 %v387, %v383
      %v424 = vpack.c.b16 %v388, %v384
      %v425 = vpack.c.b16 %v393, %v389
      %v426 = vpack.c.b16 %v394, %v390
      %v427 = vpack.c.b16 %v395, %v391
      %v428 = vpack.c.b16 %v396, %v392
      %461 = vmatprep.subr.bf16.mxu0 %v398
      %462 = vmatpush1.bf16.msra.mxu0 %v397
      %463 = vmatprep.subr.bf16.mxu0 %v402
      %464 = vmatpush1.bf16.msra.mxu0 %v401
      %465 = vmatprep.subr.bf16.mxu0 %v406
      %466 = vmatpush1.bf16.msra.mxu0 %v405
      %467 = vmatprep.subr.bf16.mxu0 %v410
      %468 = vmatpush1.bf16.msra.mxu0 %v409
      %469 = vmatprep.subr.bf16.mxu0 %v414
      %470 = vmatpush1.bf16.msra.mxu0 %v413
      %471 = vmatprep.subr.bf16.mxu0 %v418
      %472 = vmatpush1.bf16.msra.mxu0 %v417
      %473 = vmatprep.subr.bf16.mxu0 %v422
      %474 = vmatpush1.bf16.msra.mxu0 %v421
      %475 = vmatprep.subr.bf16.mxu0 %v426
      %476 = vmatpush1.bf16.msra.mxu0 %v425
      %477 = vmatprep.subr.bf16.mxu0 0
      %478 = vmatpush1.bf16.msra.mxu0 0
      %479 = vmatprep.subr.bf16.mxu0 0
      %480 = vmatpush1.bf16.msra.mxu0 0
      %481 = vmatprep.subr.bf16.mxu0 0
      %482 = vmatpush1.bf16.msra.mxu0 0
      %483 = vmatprep.subr.bf16.mxu0 0
      %484 = vmatpush1.bf16.msra.mxu0 0
      %485 = vmatprep.subr.bf16.mxu0 0
      %486 = vmatpush1.bf16.msra.mxu0 0
      %487 = vmatprep.subr.bf16.mxu0 0
      %488 = vmatpush1.bf16.msra.mxu0 0
      %489 = vmatprep.subr.bf16.mxu0 0
      %490 = vmatpush1.bf16.msra.mxu0 0
      %491 = vmatprep.subr.bf16.mxu0 0
      %492 = vmatpush1.bf16.msra.mxu0 0
      %493 = vmatprep.mubr.bf16.mxu0 0
      %494 = vmatmul.mubr.bf16.gmra.mrb[0].mxu0 %v300
      %v495 = vpop.f32.mrb[0].mxu0
      %v496 = vadd.f32 0.0, %v495
      %v497 = vpop.f32.mrb[0].mxu0
      %v498 = vadd.f32 0.0, %v497
      %v499 = vpop.f32.mrb[0].mxu0
      %v500 = vpop.f32.mrb[0].mxu0
      %501 = vdwg.mxu0
      %502 = vmatprep.subr.bf16.mxu0 %v400
      %503 = vmatpush1.bf16.msra.mxu0 %v399
      %504 = vmatprep.subr.bf16.mxu0 %v404
      %505 = vmatpush1.bf16.msra.mxu0 %v403
      %506 = vmatprep.subr.bf16.mxu0 %v408
      %507 = vmatpush1.bf16.msra.mxu0 %v407
      %508 = vmatprep.subr.bf16.mxu0 %v412
      %509 = vmatpush1.bf16.msra.mxu0 %v411
      %510 = vmatprep.subr.bf16.mxu0 %v416
      %511 = vmatpush1.bf16.msra.mxu0 %v415
      %512 = vmatprep.subr.bf16.mxu0 %v420
      %513 = vmatpush1.bf16.msra.mxu0 %v419
      %514 = vmatprep.subr.bf16.mxu0 %v424
      %515 = vmatpush1.bf16.msra.mxu0 %v423
      %516 = vmatprep.subr.bf16.mxu0 %v428
      %517 = vmatpush1.bf16.msra.mxu0 %v427
      %518 = vmatprep.subr.bf16.mxu0 0
      %519 = vmatpush1.bf16.msra.mxu0 0
      %520 = vmatprep.subr.bf16.mxu0 0
      %521 = vmatpush1.bf16.msra.mxu0 0
      %522 = vmatprep.subr.bf16.mxu0 0
      %523 = vmatpush1.bf16.msra.mxu0 0
      %524 = vmatprep.subr.bf16.mxu0 0
      %525 = vmatpush1.bf16.msra.mxu0 0
      %526 = vmatprep.subr.bf16.mxu0 0
      %527 = vmatpush1.bf16.msra.mxu0 0
      %528 = vmatprep.subr.bf16.mxu0 0
      %529 = vmatpush1.bf16.msra.mxu0 0
      %530 = vmatprep.subr.bf16.mxu0 0
      %531 = vmatpush1.bf16.msra.mxu0 0
      %532 = vmatprep.subr.bf16.mxu0 0
      %533 = vmatpush1.bf16.msra.mxu0 0
      %534 = vmatprep.mubr.bf16.mxu0 0
      %535 = vmatmul.mubr.bf16.gmra.mrb[0].mxu0 %v300
      %v536 = vpop.f32.mrb[0].mxu0
      %v537 = vadd.f32 0.0, %v536
      %v538 = vpop.f32.mrb[0].mxu0
      %v539 = vadd.f32 0.0, %v538
      %v540 = vpop.f32.mrb[0].mxu0
      %v541 = vpop.f32.mrb[0].mxu0
      %542 = vdwg.mxu0
      %v543 = vadd.f32 %v296, %v496
      %v544 = vadd.f32 %v297, %v498
      %v545 = vadd.f32 %v298, %v537
      %v546 = vadd.f32 %v299, %v539
      %v547 = vxor.u32 %v543, 2147483648
      %v548 = vmul.f32 %v547, 1.442695
      %v549 = vpow.pop %v548
      %v550 = vadd.f32 %v549, 1.0
      %v551 = vrcp.pop %v550
      %v552 = vmul.f32 1.0, %v551
      %v553 = vxor.u32 %v544, 2147483648
      %v554 = vmul.f32 %v553, 1.442695
      %v555 = vpow.pop %v554
      %v556 = vadd.f32 %v555, 1.0
      %v557 = vrcp.pop %v556
      %v558 = vmul.f32 1.0, %v557
      %v559 = vtanh.pop %v545
      %v560 = vxor.u32 %v546, 2147483648
      %v561 = vmul.f32 %v560, 1.442695
      %v562 = vpow.pop %v561
      %v563 = vadd.f32 %v562, 1.0
      %v564 = vrcp.pop %v563
      %v565 = vmul.f32 1.0, %v564
      %v566 = vmul.f32 %v558, %v295
      %v567 = vmul.f32 %v552, %v559
      %v568 = vadd.f32 %v566, %v567
      %v569 = vtanh.pop %v568
      %v570 = vmul.f32 %v565, %v569
      %v571 = vpack.c.bf16 %v570, %v570
      %572 = vst [vmem:[%s251] sm:$0xf] %v571
      %s573 = scalar_lea.vmem %s245, 32
      %v574 = vld [vmem:[%s573] sm:$0xff]
      %v575 = vld [vmem:[%s573 + $0x8] sm:$0xff]
      %v576 = vld [vmem:[%s573 + $0x10] sm:$0xff]
      %v577 = vld [vmem:[%s573 + $0x18] sm:$0xff]
      %578 = vmatprep.subr.bf16.mxu0 %v398
      %579 = vmatpush1.bf16.msra.mxu0 %v397
      %580 = vmatprep.subr.bf16.mxu0 %v402
      %581 = vmatpush1.bf16.msra.mxu0 %v401
      %582 = vmatprep.subr.bf16.mxu0 %v406
      %583 = vmatpush1.bf16.msra.mxu0 %v405
      %584 = vmatprep.subr.bf16.mxu0 %v410
      %585 = vmatpush1.bf16.msra.mxu0 %v409
      %586 = vmatprep.subr.bf16.mxu0 %v414
      %587 = vmatpush1.bf16.msra.mxu0 %v413
      %588 = vmatprep.subr.bf16.mxu0 %v418
      %589 = vmatpush1.bf16.msra.mxu0 %v417
      %590 = vmatprep.subr.bf16.mxu0 %v422
      %591 = vmatpush1.bf16.msra.mxu0 %v421
      %592 = vmatprep.subr.bf16.mxu0 %v426
      %593 = vmatpush1.bf16.msra.mxu0 %v425
      %594 = vmatprep.subr.bf16.mxu0 0
      %595 = vmatpush1.bf16.msra.mxu0 0
      %596 = vmatprep.subr.bf16.mxu0 0
      %597 = vmatpush1.bf16.msra.mxu0 0
      %598 = vmatprep.subr.bf16.mxu0 0
      %599 = vmatpush1.bf16.msra.mxu0 0
      %600 = vmatprep.subr.bf16.mxu0 0
      %601 = vmatpush1.bf16.msra.mxu0 0
      %602 = vmatprep.subr.bf16.mxu0 0
      %603 = vmatpush1.bf16.msra.mxu0 0
      %604 = vmatprep.subr.bf16.mxu0 0
      %605 = vmatpush1.bf16.msra.mxu0 0
      %606 = vmatprep.subr.bf16.mxu0 0
      %607 = vmatpush1.bf16.msra.mxu0 0
      %608 = vmatprep.subr.bf16.mxu0 0
      %609 = vmatpush1.bf16.msra.mxu0 0
      %610 = vmatprep.mubr.bf16.mxu0 0
      %611 = vmatmul.mubr.bf16.gmra.mrb[0].mxu0 %v571
      %v612 = vpop.f32.mrb[0].mxu0
      %v613 = vadd.f32 0.0, %v612
      %v614 = vpop.f32.mrb[0].mxu0
      %v615 = vadd.f32 0.0, %v614
      %v616 = vpop.f32.mrb[0].mxu0
      %v617 = vpop.f32.mrb[0].mxu0
      %618 = vdwg.mxu0
      %619 = vmatprep.subr.bf16.mxu0 %v400
      %620 = vmatpush1.bf16.msra.mxu0 %v399
      %621 = vmatprep.subr.bf16.mxu0 %v404
      %622 = vmatpush1.bf16.msra.mxu0 %v403
      %623 = vmatprep.subr.bf16.mxu0 %v408
      %624 = vmatpush1.bf16.msra.mxu0 %v407
      %625 = vmatprep.subr.bf16.mxu0 %v412
      %626 = vmatpush1.bf16.msra.mxu0 %v411
      %627 = vmatprep.subr.bf16.mxu0 %v416
      %628 = vmatpush1.bf16.msra.mxu0 %v415
      %629 = vmatprep.subr.bf16.mxu0 %v420
      %630 = vmatpush1.bf16.msra.mxu0 %v419
      %631 = vmatprep.subr.bf16.mxu0 %v424
      %632 = vmatpush1.bf16.msra.mxu0 %v423
      %633 = vmatprep.subr.bf16.mxu0 %v428
      %634 = vmatpush1.bf16.msra.mxu0 %v427
      %635 = vmatprep.subr.bf16.mxu0 0
      %636 = vmatpush1.bf16.msra.mxu0 0
      %637 = vmatprep.subr.bf16.mxu0 0
      %638 = vmatpush1.bf16.msra.mxu0 0
      %639 = vmatprep.subr.bf16.mxu0 0
      %640 = vmatpush1.bf16.msra.mxu0 0
      %641 = vmatprep.subr.bf16.mxu0 0
      %642 = vmatpush1.bf16.msra.mxu0 0
      %643 = vmatprep.subr.bf16.mxu0 0
      %644 = vmatpush1.bf16.msra.mxu0 0
      %645 = vmatprep.subr.bf16.mxu0 0
      %646 = vmatpush1.bf16.msra.mxu0 0
      %647 = vmatprep.subr.bf16.mxu0 0
      %648 = vmatpush1.bf16.msra.mxu0 0
      %649 = vmatprep.subr.bf16.mxu0 0
      %650 = vmatpush1.bf16.msra.mxu0 0
      %651 = vmatprep.mubr.bf16.mxu0 0
      %652 = vmatmul.mubr.bf16.gmra.mrb[0].mxu0 %v571
      %v653 = vpop.f32.mrb[0].mxu0
      %v654 = vadd.f32 0.0, %v653
      %v655 = vpop.f32.mrb[0].mxu0
      %v656 = vadd.f32 0.0, %v655
      %v657 = vpop.f32.mrb[0].mxu0
      %v658 = vpop.f32.mrb[0].mxu0
      %659 = vdwg.mxu0
      %v660 = vadd.f32 %v574, %v613
      %v661 = vadd.f32 %v575, %v615
      %v662 = vadd.f32 %v576, %v654
      %v663 = vadd.f32 %v577, %v656
      %v664 = vxor.u32 %v660, 2147483648
      %v665 = vmul.f32 %v664, 1.442695
      %v666 = vpow.pop %v665
      %v667 = vadd.f32 %v666, 1.0
      %v668 = vrcp.pop %v667
      %v669 = vmul.f32 1.0, %v668
      %v670 = vxor.u32 %v661, 2147483648
      %v671 = vmul.f32 %v670, 1.442695
      %v672 = vpow.pop %v671
      %v673 = vadd.f32 %v672, 1.0
      %v674 = vrcp.pop %v673
      %v675 = vmul.f32 1.0, %v674
      %v676 = vtanh.pop %v662
      %v677 = vxor.u32 %v663, 2147483648
      %v678 = vmul.f32 %v677, 1.442695
      %v679 = vpow.pop %v678
      %v680 = vadd.f32 %v679, 1.0
      %v681 = vrcp.pop %v680
      %v682 = vmul.f32 1.0, %v681
      %v683 = vmul.f32 %v675, %v568
      %v684 = vmul.f32 %v669, %v676
      %v685 = vadd.f32 %v683, %v684
      %v686 = vtanh.pop %v685
      %v687 = vmul.f32 %v682, %v686
      %v688 = vpack.c.bf16 %v687, %v687
      %s689 = scalar_lea.vmem %s251, 4
      %690 = vst [vmem:[%s689] sm:$0xf] %v688
      %s691 = scalar_lea.vmem %s245, 64
      %v692 = vld [vmem:[%s691] sm:$0xff]
      %v693 = vld [vmem:[%s691 + $0x8] sm:$0xff]
      %v694 = vld [vmem:[%s691 + $0x10] sm:$0xff]
      %v695 = vld [vmem:[%s691 + $0x18] sm:$0xff]
      %696 = vmatprep.subr.bf16.mxu0 %v398
      %697 = vmatpush1.bf16.msra.mxu0 %v397
      %698 = vmatprep.subr.bf16.mxu0 %v402
      %699 = vmatpush1.bf16.msra.mxu0 %v401
      %700 = vmatprep.subr.bf16.mxu0 %v406
      %701 = vmatpush1.bf16.msra.mxu0 %v405
      %702 = vmatprep.subr.bf16.mxu0 %v410
      %703 = vmatpush1.bf16.msra.mxu0 %v409
      %704 = vmatprep.subr.bf16.mxu0 %v414
      %705 = vmatpush1.bf16.msra.mxu0 %v413
      %706 = vmatprep.subr.bf16.mxu0 %v418
      %707 = vmatpush1.bf16.msra.mxu0 %v417
      %708 = vmatprep.subr.bf16.mxu0 %v422
      %709 = vmatpush1.bf16.msra.mxu0 %v421
      %710 = vmatprep.subr.bf16.mxu0 %v426
      %711 = vmatpush1.bf16.msra.mxu0 %v425
      %712 = vmatprep.subr.bf16.mxu0 0
      %713 = vmatpush1.bf16.msra.mxu0 0
      %714 = vmatprep.subr.bf16.mxu0 0
      %715 = vmatpush1.bf16.msra.mxu0 0
      %716 = vmatprep.subr.bf16.mxu0 0
      %717 = vmatpush1.bf16.msra.mxu0 0
      %718 = vmatprep.subr.bf16.mxu0 0
      %719 = vmatpush1.bf16.msra.mxu0 0
      %720 = vmatprep.subr.bf16.mxu0 0
      %721 = vmatpush1.bf16.msra.mxu0 0
      %722 = vmatprep.subr.bf16.mxu0 0
      %723 = vmatpush1.bf16.msra.mxu0 0
      %724 = vmatprep.subr.bf16.mxu0 0
      %725 = vmatpush1.bf16.msra.mxu0 0
      %726 = vmatprep.subr.bf16.mxu0 0
      %727 = vmatpush1.bf16.msra.mxu0 0
      %728 = vmatprep.mubr.bf16.mxu0 0
      %729 = vmatmul.mubr.bf16.gmra.mrb[0].mxu0 %v688
      %v730 = vpop.f32.mrb[0].mxu0
      %v731 = vadd.f32 0.0, %v730
      %v732 = vpop.f32.mrb[0].mxu0
      %v733 = vadd.f32 0.0, %v732
      %v734 = vpop.f32.mrb[0].mxu0
      %v735 = vpop.f32.mrb[0].mxu0
      %736 = vdwg.mxu0
      %737 = vmatprep.subr.bf16.mxu0 %v400
      %738 = vmatpush1.bf16.msra.mxu0 %v399
      %739 = vmatprep.subr.bf16.mxu0 %v404
      %740 = vmatpush1.bf16.msra.mxu0 %v403
      %741 = vmatprep.subr.bf16.mxu0 %v408
      %742 = vmatpush1.bf16.msra.mxu0 %v407
      %743 = vmatprep.subr.bf16.mxu0 %v412
      %744 = vmatpush1.bf16.msra.mxu0 %v411
      %745 = vmatprep.subr.bf16.mxu0 %v416
      %746 = vmatpush1.bf16.msra.mxu0 %v415
      %747 = vmatprep.subr.bf16.mxu0 %v420
      %748 = vmatpush1.bf16.msra.mxu0 %v419
      %749 = vmatprep.subr.bf16.mxu0 %v424
      %750 = vmatpush1.bf16.msra.mxu0 %v423
      %751 = vmatprep.subr.bf16.mxu0 %v428
      %752 = vmatpush1.bf16.msra.mxu0 %v427
      %753 = vmatprep.subr.bf16.mxu0 0
      %754 = vmatpush1.bf16.msra.mxu0 0
      %755 = vmatprep.subr.bf16.mxu0 0
      %756 = vmatpush1.bf16.msra.mxu0 0
      %757 = vmatprep.subr.bf16.mxu0 0
      %758 = vmatpush1.bf16.msra.mxu0 0
      %759 = vmatprep.subr.bf16.mxu0 0
      %760 = vmatpush1.bf16.msra.mxu0 0
      %761 = vmatprep.subr.bf16.mxu0 0
      %762 = vmatpush1.bf16.msra.mxu0 0
      %763 = vmatprep.subr.bf16.mxu0 0
      %764 = vmatpush1.bf16.msra.mxu0 0
      %765 = vmatprep.subr.bf16.mxu0 0
      %766 = vmatpush1.bf16.msra.mxu0 0
      %767 = vmatprep.subr.bf16.mxu0 0
      %768 = vmatpush1.bf16.msra.mxu0 0
      %769 = vmatprep.mubr.bf16.mxu0 0
      %770 = vmatmul.mubr.bf16.gmra.mrb[0].mxu0 %v688
      %v771 = vpop.f32.mrb[0].mxu0
      %v772 = vadd.f32 0.0, %v771
      %v773 = vpop.f32.mrb[0].mxu0
      %v774 = vadd.f32 0.0, %v773
      %v775 = vpop.f32.mrb[0].mxu0
      %v776 = vpop.f32.mrb[0].mxu0
      %777 = vdwg.mxu0
      %v778 = vadd.f32 %v692, %v731
      %v779 = vadd.f32 %v693, %v733
      %v780 = vadd.f32 %v694, %v772
      %v781 = vadd.f32 %v695, %v774
      %v782 = vxor.u32 %v778, 2147483648
      %v783 = vmul.f32 %v782, 1.442695
      %v784 = vpow.pop %v783
      %v785 = vadd.f32 %v784, 1.0
      %v786 = vrcp.pop %v785
      %v787 = vmul.f32 1.0, %v786
      %v788 = vxor.u32 %v779, 2147483648
      %v789 = vmul.f32 %v788, 1.442695
      %v790 = vpow.pop %v789
      %v791 = vadd.f32 %v790, 1.0
      %v792 = vrcp.pop %v791
      %v793 = vmul.f32 1.0, %v792
      %v794 = vtanh.pop %v780
      %v795 = vxor.u32 %v781, 2147483648
      %v796 = vmul.f32 %v795, 1.442695
      %v797 = vpow.pop %v796
      %v798 = vadd.f32 %v797, 1.0
      %v799 = vrcp.pop %v798
      %v800 = vmul.f32 1.0, %v799
      %v801 = vmul.f32 %v793, %v685
      %v802 = vmul.f32 %v787, %v794
      %v803 = vadd.f32 %v801, %v802
      %v804 = vtanh.pop %v803
      %v805 = vmul.f32 %v800, %v804
      %v806 = vpack.c.bf16 %v805, %v805
      %s807 = scalar_lea.vmem %s251, 8
      %808 = vst [vmem:[%s807] sm:$0xf] %v806
      %s809 = scalar_lea.vmem %s245, 96
      %v810 = vld [vmem:[%s809] sm:$0xff]
      %v811 = vld [vmem:[%s809 + $0x8] sm:$0xff]
      %v812 = vld [vmem:[%s809 + $0x10] sm:$0xff]
      %v813 = vld [vmem:[%s809 + $0x18] sm:$0xff]
      %814 = vmatprep.subr.bf16.mxu0 %v398
      %815 = vmatpush1.bf16.msra.mxu0 %v397
      %816 = vmatprep.subr.bf16.mxu0 %v402
      %817 = vmatpush1.bf16.msra.mxu0 %v401
      %818 = vmatprep.subr.bf16.mxu0 %v406
      %819 = vmatpush1.bf16.msra.mxu0 %v405
      %820 = vmatprep.subr.bf16.mxu0 %v410
      %821 = vmatpush1.bf16.msra.mxu0 %v409
      %822 = vmatprep.subr.bf16.mxu0 %v414
      %823 = vmatpush1.bf16.msra.mxu0 %v413
      %824 = vmatprep.subr.bf16.mxu0 %v418
      %825 = vmatpush1.bf16.msra.mxu0 %v417
      %826 = vmatprep.subr.bf16.mxu0 %v422
      %827 = vmatpush1.bf16.msra.mxu0 %v421
      %828 = vmatprep.subr.bf16.mxu0 %v426
      %829 = vmatpush1.bf16.msra.mxu0 %v425
      %830 = vmatprep.subr.bf16.mxu0 0
      %831 = vmatpush1.bf16.msra.mxu0 0
      %832 = vmatprep.subr.bf16.mxu0 0
      %833 = vmatpush1.bf16.msra.mxu0 0
      %834 = vmatprep.subr.bf16.mxu0 0
      %835 = vmatpush1.bf16.msra.mxu0 0
      %836 = vmatprep.subr.bf16.mxu0 0
      %837 = vmatpush1.bf16.msra.mxu0 0
      %838 = vmatprep.subr.bf16.mxu0 0
      %839 = vmatpush1.bf16.msra.mxu0 0
      %840 = vmatprep.subr.bf16.mxu0 0
      %841 = vmatpush1.bf16.msra.mxu0 0
      %842 = vmatprep.subr.bf16.mxu0 0
      %843 = vmatpush1.bf16.msra.mxu0 0
      %844 = vmatprep.subr.bf16.mxu0 0
      %845 = vmatpush1.bf16.msra.mxu0 0
      %846 = vmatprep.mubr.bf16.mxu0 0
      %847 = vmatmul.mubr.bf16.gmra.mrb[0].mxu0 %v806
      %v848 = vpop.f32.mrb[0].mxu0
      %v849 = vadd.f32 0.0, %v848
      %v850 = vpop.f32.mrb[0].mxu0
      %v851 = vadd.f32 0.0, %v850
      %v852 = vpop.f32.mrb[0].mxu0
      %v853 = vpop.f32.mrb[0].mxu0
      %854 = vdwg.mxu0
      %855 = vmatprep.subr.bf16.mxu0 %v400
      %856 = vmatpush1.bf16.msra.mxu0 %v399
      %857 = vmatprep.subr.bf16.mxu0 %v404
      %858 = vmatpush1.bf16.msra.mxu0 %v403
      %859 = vmatprep.subr.bf16.mxu0 %v408
      %860 = vmatpush1.bf16.msra.mxu0 %v407
      %861 = vmatprep.subr.bf16.mxu0 %v412
      %862 = vmatpush1.bf16.msra.mxu0 %v411
      %863 = vmatprep.subr.bf16.mxu0 %v416
      %864 = vmatpush1.bf16.msra.mxu0 %v415
      %865 = vmatprep.subr.bf16.mxu0 %v420
      %866 = vmatpush1.bf16.msra.mxu0 %v419
      %867 = vmatprep.subr.bf16.mxu0 %v424
      %868 = vmatpush1.bf16.msra.mxu0 %v423
      %869 = vmatprep.subr.bf16.mxu0 %v428
      %870 = vmatpush1.bf16.msra.mxu0 %v427
      %871 = vmatprep.subr.bf16.mxu0 0
      %872 = vmatpush1.bf16.msra.mxu0 0
      %873 = vmatprep.subr.bf16.mxu0 0
      %874 = vmatpush1.bf16.msra.mxu0 0
      %875 = vmatprep.subr.bf16.mxu0 0
      %876 = vmatpush1.bf16.msra.mxu0 0
      %877 = vmatprep.subr.bf16.mxu0 0
      %878 = vmatpush1.bf16.msra.mxu0 0
      %879 = vmatprep.subr.bf16.mxu0 0
      %880 = vmatpush1.bf16.msra.mxu0 0
      %881 = vmatprep.subr.bf16.mxu0 0
      %882 = vmatpush1.bf16.msra.mxu0 0
      %883 = vmatprep.subr.bf16.mxu0 0
      %884 = vmatpush1.bf16.msra.mxu0 0
      %885 = vmatprep.subr.bf16.mxu0 0
      %886 = vmatpush1.bf16.msra.mxu0 0
      %887 = vmatprep.mubr.bf16.mxu0 0
      %888 = vmatmul.mubr.bf16.gmra.mrb[0].mxu0 %v806
      %v889 = vpop.f32.mrb[0].mxu0
      %v890 = vadd.f32 0.0, %v889
      %v891 = vpop.f32.mrb[0].mxu0
      %v892 = vadd.f32 0.0, %v891
      %v893 = vpop.f32.mrb[0].mxu0
      %v894 = vpop.f32.mrb[0].mxu0
      %895 = vdwg.mxu0
      %v896 = vadd.f32 %v810, %v849
      %v897 = vadd.f32 %v811, %v851
      %v898 = vadd.f32 %v812, %v890
      %v899 = vadd.f32 %v813, %v892
      %v900 = vxor.u32 %v896, 2147483648
      %v901 = vmul.f32 %v900, 1.442695
      %v902 = vpow.pop %v901
      %v903 = vadd.f32 %v902, 1.0
      %v904 = vrcp.pop %v903
      %v905 = vmul.f32 1.0, %v904
      %v906 = vxor.u32 %v897, 2147483648
      %v907 = vmul.f32 %v906, 1.442695
      %v908 = vpow.pop %v907
      %v909 = vadd.f32 %v908, 1.0
      %v910 = vrcp.pop %v909
      %v911 = vmul.f32 1.0, %v910
      %v912 = vtanh.pop %v898
      %v913 = vxor.u32 %v899, 2147483648
      %v914 = vmul.f32 %v913, 1.442695
      %v915 = vpow.pop %v914
      %v916 = vadd.f32 %v915, 1.0
      %v917 = vrcp.pop %v916
      %v918 = vmul.f32 1.0, %v917
      %v919 = vmul.f32 %v911, %v803
      %v920 = vmul.f32 %v905, %v912
      %v921 = vadd.f32 %v919, %v920
      %v922 = vtanh.pop %v921
      %v923 = vmul.f32 %v918, %v922
      %v924 = vpack.c.bf16 %v923, %v923
      %s925 = scalar_lea.vmem %s251, 12
      %926 = vst [vmem:[%s925] sm:$0xf] %v924
      %s927 = scalar_lea.vmem %s245, 128
      %v928 = vld [vmem:[%s927] sm:$0xff]
      %v929 = vld [vmem:[%s927 + $0x8] sm:$0xff]
      %v930 = vld [vmem:[%s927 + $0x10] sm:$0xff]
      %v931 = vld [vmem:[%s927 + $0x18] sm:$0xff]
      %932 = vmatprep.subr.bf16.mxu0 %v398
      %933 = vmatpush1.bf16.msra.mxu0 %v397
      %934 = vmatprep.subr.bf16.mxu0 %v402
      %935 = vmatpush1.bf16.msra.mxu0 %v401
      %936 = vmatprep.subr.bf16.mxu0 %v406
      %937 = vmatpush1.bf16.msra.mxu0 %v405
      %938 = vmatprep.subr.bf16.mxu0 %v410
      %939 = vmatpush1.bf16.msra.mxu0 %v409
      %940 = vmatprep.subr.bf16.mxu0 %v414
      %941 = vmatpush1.bf16.msra.mxu0 %v413
      %942 = vmatprep.subr.bf16.mxu0 %v418
      %943 = vmatpush1.bf16.msra.mxu0 %v417
      %944 = vmatprep.subr.bf16.mxu0 %v422
      %945 = vmatpush1.bf16.msra.mxu0 %v421
      %946 = vmatprep.subr.bf16.mxu0 %v426
      %947 = vmatpush1.bf16.msra.mxu0 %v425
      %948 = vmatprep.subr.bf16.mxu0 0
      %949 = vmatpush1.bf16.msra.mxu0 0
      %950 = vmatprep.subr.bf16.mxu0 0
      %951 = vmatpush1.bf16.msra.mxu0 0
      %952 = vmatprep.subr.bf16.mxu0 0
      %953 = vmatpush1.bf16.msra.mxu0 0
      %954 = vmatprep.subr.bf16.mxu0 0
      %955 = vmatpush1.bf16.msra.mxu0 0
      %956 = vmatprep.subr.bf16.mxu0 0
      %957 = vmatpush1.bf16.msra.mxu0 0
      %958 = vmatprep.subr.bf16.mxu0 0
      %959 = vmatpush1.bf16.msra.mxu0 0
      %960 = vmatprep.subr.bf16.mxu0 0
      %961 = vmatpush1.bf16.msra.mxu0 0
      %962 = vmatprep.subr.bf16.mxu0 0
      %963 = vmatpush1.bf16.msra.mxu0 0
      %964 = vmatprep.mubr.bf16.mxu0 0
      %965 = vmatmul.mubr.bf16.gmra.mrb[0].mxu0 %v924
      %v966 = vpop.f32.mrb[0].mxu0
      %v967 = vadd.f32 0.0, %v966
      %v968 = vpop.f32.mrb[0].mxu0
      %v969 = vadd.f32 0.0, %v968
      %v970 = vpop.f32.mrb[0].mxu0
      %v971 = vpop.f32.mrb[0].mxu0
      %972 = vdwg.mxu0
      %973 = vmatprep.subr.bf16.mxu0 %v400
      %974 = vmatpush1.bf16.msra.mxu0 %v399
      %975 = vmatprep.subr.bf16.mxu0 %v404
      %976 = vmatpush1.bf16.msra.mxu0 %v403
      %977 = vmatprep.subr.bf16.mxu0 %v408
      %978 = vmatpush1.bf16.msra.mxu0 %v407
      %979 = vmatprep.subr.bf16.mxu0 %v412
      %980 = vmatpush1.bf16.msra.mxu0 %v411
      %981 = vmatprep.subr.bf16.mxu0 %v416
      %982 = vmatpush1.bf16.msra.mxu0 %v415
      %983 = vmatprep.subr.bf16.mxu0 %v420
      %984 = vmatpush1.bf16.msra.mxu0 %v419
      %985 = vmatprep.subr.bf16.mxu0 %v424
      %986 = vmatpush1.bf16.msra.mxu0 %v423
      %987 = vmatprep.subr.bf16.mxu0 %v428
      %988 = vmatpush1.bf16.msra.mxu0 %v427
      %989 = vmatprep.subr.bf16.mxu0 0
      %990 = vmatpush1.bf16.msra.mxu0 0
      %991 = vmatprep.subr.bf16.mxu0 0
      %992 = vmatpush1.bf16.msra.mxu0 0
      %993 = vmatprep.subr.bf16.mxu0 0
      %994 = vmatpush1.bf16.msra.mxu0 0
      %995 = vmatprep.subr.bf16.mxu0 0
      %996 = vmatpush1.bf16.msra.mxu0 0
      %997 = vmatprep.subr.bf16.mxu0 0
      %998 = vmatpush1.bf16.msra.mxu0 0
      %999 = vmatprep.subr.bf16.mxu0 0
      %1000 = vmatpush1.bf16.msra.mxu0 0
      %1001 = vmatprep.subr.bf16.mxu0 0
      %1002 = vmatpush1.bf16.msra.mxu0 0
      %1003 = vmatprep.subr.bf16.mxu0 0
      %1004 = vmatpush1.bf16.msra.mxu0 0
      %1005 = vmatprep.mubr.bf16.mxu0 0
      %1006 = vmatmul.mubr.bf16.gmra.mrb[0].mxu0 %v924
      %v1007 = vpop.f32.mrb[0].mxu0
      %v1008 = vadd.f32 0.0, %v1007
      %v1009 = vpop.f32.mrb[0].mxu0
      %v1010 = vadd.f32 0.0, %v1009
      %v1011 = vpop.f32.mrb[0].mxu0
      %v1012 = vpop.f32.mrb[0].mxu0
      %1013 = vdwg.mxu0
      %v1014 = vadd.f32 %v928, %v967
      %v1015 = vadd.f32 %v929, %v969
      %v1016 = vadd.f32 %v930, %v1008
      %v1017 = vadd.f32 %v931, %v1010
      %v1018 = vxor.u32 %v1014, 2147483648
      %v1019 = vmul.f32 %v1018, 1.442695
      %v1020 = vpow.pop %v1019
      %v1021 = vadd.f32 %v1020, 1.0
      %v1022 = vrcp.pop %v1021
      %v1023 = vmul.f32 1.0, %v1022
      %v1024 = vxor.u32 %v1015, 2147483648
      %v1025 = vmul.f32 %v1024, 1.442695
      %v1026 = vpow.pop %v1025
      %v1027 = vadd.f32 %v1026, 1.0
      %v1028 = vrcp.pop %v1027
      %v1029 = vmul.f32 1.0, %v1028
      %v1030 = vtanh.pop %v1016
      %v1031 = vxor.u32 %v1017, 2147483648
      %v1032 = vmul.f32 %v1031, 1.442695
      %v1033 = vpow.pop %v1032
      %v1034 = vadd.f32 %v1033, 1.0
      %v1035 = vrcp.pop %v1034
      %v1036 = vmul.f32 1.0, %v1035
      %v1037 = vmul.f32 %v1029, %v921
      %v1038 = vmul.f32 %v1023, %v1030
      %v1039 = vadd.f32 %v1037, %v1038
      %v1040 = vtanh.pop %v1039
      %v1041 = vmul.f32 %v1036, %v1040
      %v1042 = vpack.c.bf16 %v1041, %v1041
      %s1043 = scalar_lea.vmem %s251, 16
      %1044 = vst [vmem:[%s1043] sm:$0xf] %v1042
      %s1045 = scalar_lea.vmem %s245, 160
      %v1046 = vld [vmem:[%s1045] sm:$0xff]
      %v1047 = vld [vmem:[%s1045 + $0x8] sm:$0xff]
      %v1048 = vld [vmem:[%s1045 + $0x10] sm:$0xff]
      %v1049 = vld [vmem:[%s1045 + $0x18] sm:$0xff]
      %1050 = vmatprep.subr.bf16.mxu0 %v398
      %1051 = vmatpush1.bf16.msra.mxu0 %v397
      %1052 = vmatprep.subr.bf16.mxu0 %v402
      %1053 = vmatpush1.bf16.msra.mxu0 %v401
      %1054 = vmatprep.subr.bf16.mxu0 %v406
      %1055 = vmatpush1.bf16.msra.mxu0 %v405
      %1056 = vmatprep.subr.bf16.mxu0 %v410
      %1057 = vmatpush1.bf16.msra.mxu0 %v409
      %1058 = vmatprep.subr.bf16.mxu0 %v414
      %1059 = vmatpush1.bf16.msra.mxu0 %v413
      %1060 = vmatprep.subr.bf16.mxu0 %v418
      %1061 = vmatpush1.bf16.msra.mxu0 %v417
      %1062 = vmatprep.subr.bf16.mxu0 %v422
      %1063 = vmatpush1.bf16.msra.mxu0 %v421
      %1064 = vmatprep.subr.bf16.mxu0 %v426
      %1065 = vmatpush1.bf16.msra.mxu0 %v425
      %1066 = vmatprep.subr.bf16.mxu0 0
      %1067 = vmatpush1.bf16.msra.mxu0 0
      %1068 = vmatprep.subr.bf16.mxu0 0
      %1069 = vmatpush1.bf16.msra.mxu0 0
      %1070 = vmatprep.subr.bf16.mxu0 0
      %1071 = vmatpush1.bf16.msra.mxu0 0
      %1072 = vmatprep.subr.bf16.mxu0 0
      %1073 = vmatpush1.bf16.msra.mxu0 0
      %1074 = vmatprep.subr.bf16.mxu0 0
      %1075 = vmatpush1.bf16.msra.mxu0 0
      %1076 = vmatprep.subr.bf16.mxu0 0
      %1077 = vmatpush1.bf16.msra.mxu0 0
      %1078 = vmatprep.subr.bf16.mxu0 0
      %1079 = vmatpush1.bf16.msra.mxu0 0
      %1080 = vmatprep.subr.bf16.mxu0 0
      %1081 = vmatpush1.bf16.msra.mxu0 0
      %1082 = vmatprep.mubr.bf16.mxu0 0
      %1083 = vmatmul.mubr.bf16.gmra.mrb[0].mxu0 %v1042
      %v1084 = vpop.f32.mrb[0].mxu0
      %v1085 = vadd.f32 0.0, %v1084
      %v1086 = vpop.f32.mrb[0].mxu0
      %v1087 = vadd.f32 0.0, %v1086
      %v1088 = vpop.f32.mrb[0].mxu0
      %v1089 = vpop.f32.mrb[0].mxu0
      %1090 = vdwg.mxu0
      %1091 = vmatprep.subr.bf16.mxu0 %v400
      %1092 = vmatpush1.bf16.msra.mxu0 %v399
      %1093 = vmatprep.subr.bf16.mxu0 %v404
      %1094 = vmatpush1.bf16.msra.mxu0 %v403
      %1095 = vmatprep.subr.bf16.mxu0 %v408
      %1096 = vmatpush1.bf16.msra.mxu0 %v407
      %1097 = vmatprep.subr.bf16.mxu0 %v412
      %1098 = vmatpush1.bf16.msra.mxu0 %v411
      %1099 = vmatprep.subr.bf16.mxu0 %v416
      %1100 = vmatpush1.bf16.msra.mxu0 %v415
      %1101 = vmatprep.subr.bf16.mxu0 %v420
      %1102 = vmatpush1.bf16.msra.mxu0 %v419
      %1103 = vmatprep.subr.bf16.mxu0 %v424
      %1104 = vmatpush1.bf16.msra.mxu0 %v423
      %1105 = vmatprep.subr.bf16.mxu0 %v428
      %1106 = vmatpush1.bf16.msra.mxu0 %v427
      %1107 = vmatprep.subr.bf16.mxu0 0
      %1108 = vmatpush1.bf16.msra.mxu0 0
      %1109 = vmatprep.subr.bf16.mxu0 0
      %1110 = vmatpush1.bf16.msra.mxu0 0
      %1111 = vmatprep.subr.bf16.mxu0 0
      %1112 = vmatpush1.bf16.msra.mxu0 0
      %1113 = vmatprep.subr.bf16.mxu0 0
      %1114 = vmatpush1.bf16.msra.mxu0 0
      %1115 = vmatprep.subr.bf16.mxu0 0
      %1116 = vmatpush1.bf16.msra.mxu0 0
      %1117 = vmatprep.subr.bf16.mxu0 0
      %1118 = vmatpush1.bf16.msra.mxu0 0
      %1119 = vmatprep.subr.bf16.mxu0 0
      %1120 = vmatpush1.bf16.msra.mxu0 0
      %1121 = vmatprep.subr.bf16.mxu0 0
      %1122 = vmatpush1.bf16.msra.mxu0 0
      %1123 = vmatprep.mubr.bf16.mxu0 0
      %1124 = vmatmul.mubr.bf16.gmra.mrb[0].mxu0 %v1042
      %v1125 = vpop.f32.mrb[0].mxu0
      %v1126 = vadd.f32 0.0, %v1125
      %v1127 = vpop.f32.mrb[0].mxu0
      %v1128 = vadd.f32 0.0, %v1127
      %v1129 = vpop.f32.mrb[0].mxu0
      %v1130 = vpop.f32.mrb[0].mxu0
      %1131 = vdwg.mxu0
      %v1132 = vadd.f32 %v1046, %v1085
      %v1133 = vadd.f32 %v1047, %v1087
      %v1134 = vadd.f32 %v1048, %v1126
      %v1135 = vadd.f32 %v1049, %v1128
      %v1136 = vxor.u32 %v1132, 2147483648
      %v1137 = vmul.f32 %v1136, 1.442695
      %v1138 = vpow.pop %v1137
      %v1139 = vadd.f32 %v1138, 1.0
      %v1140 = vrcp.pop %v1139
      %v1141 = vmul.f32 1.0, %v1140
      %v1142 = vxor.u32 %v1133, 2147483648
      %v1143 = vmul.f32 %v1142, 1.442695
      %v1144 = vpow.pop %v1143
      %v1145 = vadd.f32 %v1144, 1.0
      %v1146 = vrcp.pop %v1145
      %v1147 = vmul.f32 1.0, %v1146
      %v1148 = vtanh.pop %v1134
      %v1149 = vxor.u32 %v1135, 2147483648
      %v1150 = vmul.f32 %v1149, 1.442695
      %v1151 = vpow.pop %v1150
      %v1152 = vadd.f32 %v1151, 1.0
      %v1153 = vrcp.pop %v1152
      %v1154 = vmul.f32 1.0, %v1153
      %v1155 = vmul.f32 %v1147, %v1039
      %v1156 = vmul.f32 %v1141, %v1148
      %v1157 = vadd.f32 %v1155, %v1156
      %v1158 = vtanh.pop %v1157
      %v1159 = vmul.f32 %v1154, %v1158
      %v1160 = vpack.c.bf16 %v1159, %v1159
      %s1161 = scalar_lea.vmem %s251, 20
      %1162 = vst [vmem:[%s1161] sm:$0xf] %v1160
      %s1163 = scalar_lea.vmem %s245, 192
      %v1164 = vld [vmem:[%s1163] sm:$0xff]
      %v1165 = vld [vmem:[%s1163 + $0x8] sm:$0xff]
      %v1166 = vld [vmem:[%s1163 + $0x10] sm:$0xff]
      %v1167 = vld [vmem:[%s1163 + $0x18] sm:$0xff]
      %1168 = vmatprep.subr.bf16.mxu0 %v398
      %1169 = vmatpush1.bf16.msra.mxu0 %v397
      %1170 = vmatprep.subr.bf16.mxu0 %v402
      %1171 = vmatpush1.bf16.msra.mxu0 %v401
      %1172 = vmatprep.subr.bf16.mxu0 %v406
      %1173 = vmatpush1.bf16.msra.mxu0 %v405
      %1174 = vmatprep.subr.bf16.mxu0 %v410
      %1175 = vmatpush1.bf16.msra.mxu0 %v409
      %1176 = vmatprep.subr.bf16.mxu0 %v414
      %1177 = vmatpush1.bf16.msra.mxu0 %v413
      %1178 = vmatprep.subr.bf16.mxu0 %v418
      %1179 = vmatpush1.bf16.msra.mxu0 %v417
      %1180 = vmatprep.subr.bf16.mxu0 %v422
      %1181 = vmatpush1.bf16.msra.mxu0 %v421
      %1182 = vmatprep.subr.bf16.mxu0 %v426
      %1183 = vmatpush1.bf16.msra.mxu0 %v425
      %1184 = vmatprep.subr.bf16.mxu0 0
      %1185 = vmatpush1.bf16.msra.mxu0 0
      %1186 = vmatprep.subr.bf16.mxu0 0
      %1187 = vmatpush1.bf16.msra.mxu0 0
      %1188 = vmatprep.subr.bf16.mxu0 0
      %1189 = vmatpush1.bf16.msra.mxu0 0
      %1190 = vmatprep.subr.bf16.mxu0 0
      %1191 = vmatpush1.bf16.msra.mxu0 0
      %1192 = vmatprep.subr.bf16.mxu0 0
      %1193 = vmatpush1.bf16.msra.mxu0 0
      %1194 = vmatprep.subr.bf16.mxu0 0
      %1195 = vmatpush1.bf16.msra.mxu0 0
      %1196 = vmatprep.subr.bf16.mxu0 0
      %1197 = vmatpush1.bf16.msra.mxu0 0
      %1198 = vmatprep.subr.bf16.mxu0 0
      %1199 = vmatpush1.bf16.msra.mxu0 0
      %1200 = vmatprep.mubr.bf16.mxu0 0
      %1201 = vmatmul.mubr.bf16.gmra.mrb[0].mxu0 %v1160
      %v1202 = vpop.f32.mrb[0].mxu0
      %v1203 = vadd.f32 0.0, %v1202
      %v1204 = vpop.f32.mrb[0].mxu0
      %v1205 = vadd.f32 0.0, %v1204
      %v1206 = vpop.f32.mrb[0].mxu0
      %v1207 = vpop.f32.mrb[0].mxu0
      %1208 = vdwg.mxu0
      %1209 = vmatprep.subr.bf16.mxu0 %v400
      %1210 = vmatpush1.bf16.msra.mxu0 %v399
      %1211 = vmatprep.subr.bf16.mxu0 %v404
      %1212 = vmatpush1.bf16.msra.mxu0 %v403
      %1213 = vmatprep.subr.bf16.mxu0 %v408
      %1214 = vmatpush1.bf16.msra.mxu0 %v407
      %1215 = vmatprep.subr.bf16.mxu0 %v412
      %1216 = vmatpush1.bf16.msra.mxu0 %v411
      %1217 = vmatprep.subr.bf16.mxu0 %v416
      %1218 = vmatpush1.bf16.msra.mxu0 %v415
      %1219 = vmatprep.subr.bf16.mxu0 %v420
      %1220 = vmatpush1.bf16.msra.mxu0 %v419
      %1221 = vmatprep.subr.bf16.mxu0 %v424
      %1222 = vmatpush1.bf16.msra.mxu0 %v423
      %1223 = vmatprep.subr.bf16.mxu0 %v428
      %1224 = vmatpush1.bf16.msra.mxu0 %v427
      %1225 = vmatprep.subr.bf16.mxu0 0
      %1226 = vmatpush1.bf16.msra.mxu0 0
      %1227 = vmatprep.subr.bf16.mxu0 0
      %1228 = vmatpush1.bf16.msra.mxu0 0
      %1229 = vmatprep.subr.bf16.mxu0 0
      %1230 = vmatpush1.bf16.msra.mxu0 0
      %1231 = vmatprep.subr.bf16.mxu0 0
      %1232 = vmatpush1.bf16.msra.mxu0 0
      %1233 = vmatprep.subr.bf16.mxu0 0
      %1234 = vmatpush1.bf16.msra.mxu0 0
      %1235 = vmatprep.subr.bf16.mxu0 0
      %1236 = vmatpush1.bf16.msra.mxu0 0
      %1237 = vmatprep.subr.bf16.mxu0 0
      %1238 = vmatpush1.bf16.msra.mxu0 0
      %1239 = vmatprep.subr.bf16.mxu0 0
      %1240 = vmatpush1.bf16.msra.mxu0 0
      %1241 = vmatprep.mubr.bf16.mxu0 0
      %1242 = vmatmul.mubr.bf16.gmra.mrb[0].mxu0 %v1160
      %v1243 = vpop.f32.mrb[0].mxu0
      %v1244 = vadd.f32 0.0, %v1243
      %v1245 = vpop.f32.mrb[0].mxu0
      %v1246 = vadd.f32 0.0, %v1245
      %v1247 = vpop.f32.mrb[0].mxu0
      %v1248 = vpop.f32.mrb[0].mxu0
      %1249 = vdwg.mxu0
      %v1250 = vadd.f32 %v1164, %v1203
      %v1251 = vadd.f32 %v1165, %v1205
      %v1252 = vadd.f32 %v1166, %v1244
      %v1253 = vadd.f32 %v1167, %v1246
      %v1254 = vxor.u32 %v1250, 2147483648
      %v1255 = vmul.f32 %v1254, 1.442695
      %v1256 = vpow.pop %v1255
      %v1257 = vadd.f32 %v1256, 1.0
      %v1258 = vrcp.pop %v1257
      %v1259 = vmul.f32 1.0, %v1258
      %v1260 = vxor.u32 %v1251, 2147483648
      %v1261 = vmul.f32 %v1260, 1.442695
      %v1262 = vpow.pop %v1261
      %v1263 = vadd.f32 %v1262, 1.0
      %v1264 = vrcp.pop %v1263
      %v1265 = vmul.f32 1.0, %v1264
      %v1266 = vtanh.pop %v1252
      %v1267 = vxor.u32 %v1253, 2147483648
      %v1268 = vmul.f32 %v1267, 1.442695
      %v1269 = vpow.pop %v1268
      %v1270 = vadd.f32 %v1269, 1.0
      %v1271 = vrcp.pop %v1270
      %v1272 = vmul.f32 1.0, %v1271
      %v1273 = vmul.f32 %v1265, %v1157
      %v1274 = vmul.f32 %v1259, %v1266
      %v1275 = vadd.f32 %v1273, %v1274
      %v1276 = vtanh.pop %v1275
      %v1277 = vmul.f32 %v1272, %v1276
      %v1278 = vpack.c.bf16 %v1277, %v1277
      %s1279 = scalar_lea.vmem %s251, 24
      %1280 = vst [vmem:[%s1279] sm:$0xf] %v1278
      %s1281 = scalar_lea.vmem %s245, 224
      %v1282 = vld [vmem:[%s1281] sm:$0xff]
      %v1283 = vld [vmem:[%s1281 + $0x8] sm:$0xff]
      %v1284 = vld [vmem:[%s1281 + $0x10] sm:$0xff]
      %v1285 = vld [vmem:[%s1281 + $0x18] sm:$0xff]
      %1286 = vmatprep.subr.bf16.mxu0 %v398
      %1287 = vmatpush1.bf16.msra.mxu0 %v397
      %1288 = vmatprep.subr.bf16.mxu0 %v402
      %1289 = vmatpush1.bf16.msra.mxu0 %v401
      %1290 = vmatprep.subr.bf16.mxu0 %v406
      %1291 = vmatpush1.bf16.msra.mxu0 %v405
      %1292 = vmatprep.subr.bf16.mxu0 %v410
      %1293 = vmatpush1.bf16.msra.mxu0 %v409
      %1294 = vmatprep.subr.bf16.mxu0 %v414
      %1295 = vmatpush1.bf16.msra.mxu0 %v413
      %1296 = vmatprep.subr.bf16.mxu0 %v418
      %1297 = vmatpush1.bf16.msra.mxu0 %v417
      %1298 = vmatprep.subr.bf16.mxu0 %v422
      %1299 = vmatpush1.bf16.msra.mxu0 %v421
      %1300 = vmatprep.subr.bf16.mxu0 %v426
      %1301 = vmatpush1.bf16.msra.mxu0 %v425
      %1302 = vmatprep.subr.bf16.mxu0 0
      %1303 = vmatpush1.bf16.msra.mxu0 0
      %1304 = vmatprep.subr.bf16.mxu0 0
      %1305 = vmatpush1.bf16.msra.mxu0 0
      %1306 = vmatprep.subr.bf16.mxu0 0
      %1307 = vmatpush1.bf16.msra.mxu0 0
      %1308 = vmatprep.subr.bf16.mxu0 0
      %1309 = vmatpush1.bf16.msra.mxu0 0
      %1310 = vmatprep.subr.bf16.mxu0 0
      %1311 = vmatpush1.bf16.msra.mxu0 0
      %1312 = vmatprep.subr.bf16.mxu0 0
      %1313 = vmatpush1.bf16.msra.mxu0 0
      %1314 = vmatprep.subr.bf16.mxu0 0
      %1315 = vmatpush1.bf16.msra.mxu0 0
      %1316 = vmatprep.subr.bf16.mxu0 0
      %1317 = vmatpush1.bf16.msra.mxu0 0
      %1318 = vmatprep.mubr.bf16.mxu0 0
      %1319 = vmatmul.mubr.bf16.gmra.mrb[0].mxu0 %v1278
      %v1320 = vpop.f32.mrb[0].mxu0
      %v1321 = vadd.f32 0.0, %v1320
      %v1322 = vpop.f32.mrb[0].mxu0
      %v1323 = vadd.f32 0.0, %v1322
      %v1324 = vpop.f32.mrb[0].mxu0
      %v1325 = vpop.f32.mrb[0].mxu0
      %1326 = vdwg.mxu0
      %1327 = vmatprep.subr.bf16.mxu0 %v400
      %1328 = vmatpush1.bf16.msra.mxu0 %v399
      %1329 = vmatprep.subr.bf16.mxu0 %v404
      %1330 = vmatpush1.bf16.msra.mxu0 %v403
      %1331 = vmatprep.subr.bf16.mxu0 %v408
      %1332 = vmatpush1.bf16.msra.mxu0 %v407
      %1333 = vmatprep.subr.bf16.mxu0 %v412
      %1334 = vmatpush1.bf16.msra.mxu0 %v411
      %1335 = vmatprep.subr.bf16.mxu0 %v416
      %1336 = vmatpush1.bf16.msra.mxu0 %v415
      %1337 = vmatprep.subr.bf16.mxu0 %v420
      %1338 = vmatpush1.bf16.msra.mxu0 %v419
      %1339 = vmatprep.subr.bf16.mxu0 %v424
      %1340 = vmatpush1.bf16.msra.mxu0 %v423
      %1341 = vmatprep.subr.bf16.mxu0 %v428
      %1342 = vmatpush1.bf16.msra.mxu0 %v427
      %1343 = vmatprep.subr.bf16.mxu0 0
      %1344 = vmatpush1.bf16.msra.mxu0 0
      %1345 = vmatprep.subr.bf16.mxu0 0
      %1346 = vmatpush1.bf16.msra.mxu0 0
      %1347 = vmatprep.subr.bf16.mxu0 0
      %1348 = vmatpush1.bf16.msra.mxu0 0
      %1349 = vmatprep.subr.bf16.mxu0 0
      %1350 = vmatpush1.bf16.msra.mxu0 0
      %1351 = vmatprep.subr.bf16.mxu0 0
      %1352 = vmatpush1.bf16.msra.mxu0 0
      %1353 = vmatprep.subr.bf16.mxu0 0
      %1354 = vmatpush1.bf16.msra.mxu0 0
      %1355 = vmatprep.subr.bf16.mxu0 0
      %1356 = vmatpush1.bf16.msra.mxu0 0
      %1357 = vmatprep.subr.bf16.mxu0 0
      %1358 = vmatpush1.bf16.msra.mxu0 0
      %1359 = vmatprep.mubr.bf16.mxu0 0
      %1360 = vmatmul.mubr.bf16.gmra.mrb[0].mxu0 %v1278
      %v1361 = vpop.f32.mrb[0].mxu0
      %v1362 = vadd.f32 0.0, %v1361
      %v1363 = vpop.f32.mrb[0].mxu0
      %v1364 = vadd.f32 0.0, %v1363
      %v1365 = vpop.f32.mrb[0].mxu0
      %v1366 = vpop.f32.mrb[0].mxu0
      %1367 = vdwg.mxu0
      %v1368 = vadd.f32 %v1282, %v1321
      %v1369 = vadd.f32 %v1283, %v1323
      %v1370 = vadd.f32 %v1284, %v1362
      %v1371 = vadd.f32 %v1285, %v1364
      %v1372 = vxor.u32 %v1368, 2147483648
      %v1373 = vmul.f32 %v1372, 1.442695
      %v1374 = vpow.pop %v1373
      %v1375 = vadd.f32 %v1374, 1.0
      %v1376 = vrcp.pop %v1375
      %v1377 = vmul.f32 1.0, %v1376
      %v1378 = vxor.u32 %v1369, 2147483648
      %v1379 = vmul.f32 %v1378, 1.442695
      %v1380 = vpow.pop %v1379
      %v1381 = vadd.f32 %v1380, 1.0
      %v1382 = vrcp.pop %v1381
      %v1383 = vmul.f32 1.0, %v1382
      %v1384 = vtanh.pop %v1370
      %v1385 = vxor.u32 %v1371, 2147483648
      %v1386 = vmul.f32 %v1385, 1.442695
      %v1387 = vpow.pop %v1386
      %v1388 = vadd.f32 %v1387, 1.0
      %v1389 = vrcp.pop %v1388
      %v1390 = vmul.f32 1.0, %v1389
      %v1391 = vmul.f32 %v1383, %v1275
      %v1392 = vmul.f32 %v1377, %v1384
      %v1393 = vadd.f32 %v1391, %v1392
      %v1394 = vtanh.pop %v1393
      %v1395 = vmul.f32 %v1390, %v1394
      %v1396 = vpack.c.bf16 %v1395, %v1395
      %s1397 = scalar_lea.vmem %s251, 28
      %1398 = vst [vmem:[%s1397] sm:$0xf] %v1396
      %s1399 = scalar_lea.vmem %s245, 256
      %v1400 = vld [vmem:[%s1399] sm:$0xff]
      %v1401 = vld [vmem:[%s1399 + $0x8] sm:$0xff]
      %v1402 = vld [vmem:[%s1399 + $0x10] sm:$0xff]
      %v1403 = vld [vmem:[%s1399 + $0x18] sm:$0xff]
      %1404 = vmatprep.subr.bf16.mxu0 %v398
      %1405 = vmatpush1.bf16.msra.mxu0 %v397
      %1406 = vmatprep.subr.bf16.mxu0 %v402
      %1407 = vmatpush1.bf16.msra.mxu0 %v401
      %1408 = vmatprep.subr.bf16.mxu0 %v406
      %1409 = vmatpush1.bf16.msra.mxu0 %v405
      %1410 = vmatprep.subr.bf16.mxu0 %v410
      %1411 = vmatpush1.bf16.msra.mxu0 %v409
      %1412 = vmatprep.subr.bf16.mxu0 %v414
      %1413 = vmatpush1.bf16.msra.mxu0 %v413
      %1414 = vmatprep.subr.bf16.mxu0 %v418
      %1415 = vmatpush1.bf16.msra.mxu0 %v417
      %1416 = vmatprep.subr.bf16.mxu0 %v422
      %1417 = vmatpush1.bf16.msra.mxu0 %v421
      %1418 = vmatprep.subr.bf16.mxu0 %v426
      %1419 = vmatpush1.bf16.msra.mxu0 %v425
      %1420 = vmatprep.subr.bf16.mxu0 0
      %1421 = vmatpush1.bf16.msra.mxu0 0
      %1422 = vmatprep.subr.bf16.mxu0 0
      %1423 = vmatpush1.bf16.msra.mxu0 0
      %1424 = vmatprep.subr.bf16.mxu0 0
      %1425 = vmatpush1.bf16.msra.mxu0 0
      %1426 = vmatprep.subr.bf16.mxu0 0
      %1427 = vmatpush1.bf16.msra.mxu0 0
      %1428 = vmatprep.subr.bf16.mxu0 0
      %1429 = vmatpush1.bf16.msra.mxu0 0
      %1430 = vmatprep.subr.bf16.mxu0 0
      %1431 = vmatpush1.bf16.msra.mxu0 0
      %1432 = vmatprep.subr.bf16.mxu0 0
      %1433 = vmatpush1.bf16.msra.mxu0 0
      %1434 = vmatprep.subr.bf16.mxu0 0
      %1435 = vmatpush1.bf16.msra.mxu0 0
      %1436 = vmatprep.mubr.bf16.mxu0 0
      %1437 = vmatmul.mubr.bf16.gmra.mrb[0].mxu0 %v1396
      %v1438 = vpop.f32.mrb[0].mxu0
      %v1439 = vadd.f32 0.0, %v1438
      %v1440 = vpop.f32.mrb[0].mxu0
      %v1441 = vadd.f32 0.0, %v1440
      %v1442 = vpop.f32.mrb[0].mxu0
      %v1443 = vpop.f32.mrb[0].mxu0
      %1444 = vdwg.mxu0
      %1445 = vmatprep.subr.bf16.mxu0 %v400
      %1446 = vmatpush1.bf16.msra.mxu0 %v399
      %1447 = vmatprep.subr.bf16.mxu0 %v404
      %1448 = vmatpush1.bf16.msra.mxu0 %v403
      %1449 = vmatprep.subr.bf16.mxu0 %v408
      %1450 = vmatpush1.bf16.msra.mxu0 %v407
      %1451 = vmatprep.subr.bf16.mxu0 %v412
      %1452 = vmatpush1.bf16.msra.mxu0 %v411
      %1453 = vmatprep.subr.bf16.mxu0 %v416
      %1454 = vmatpush1.bf16.msra.mxu0 %v415
      %1455 = vmatprep.subr.bf16.mxu0 %v420
      %1456 = vmatpush1.bf16.msra.mxu0 %v419
      %1457 = vmatprep.subr.bf16.mxu0 %v424
      %1458 = vmatpush1.bf16.msra.mxu0 %v423
      %1459 = vmatprep.subr.bf16.mxu0 %v428
      %1460 = vmatpush1.bf16.msra.mxu0 %v427
      %1461 = vmatprep.subr.bf16.mxu0 0
      %1462 = vmatpush1.bf16.msra.mxu0 0
      %1463 = vmatprep.subr.bf16.mxu0 0
      %1464 = vmatpush1.bf16.msra.mxu0 0
      %1465 = vmatprep.subr.bf16.mxu0 0
      %1466 = vmatpush1.bf16.msra.mxu0 0
      %1467 = vmatprep.subr.bf16.mxu0 0
      %1468 = vmatpush1.bf16.msra.mxu0 0
      %1469 = vmatprep.subr.bf16.mxu0 0
      %1470 = vmatpush1.bf16.msra.mxu0 0
      %1471 = vmatprep.subr.bf16.mxu0 0
      %1472 = vmatpush1.bf16.msra.mxu0 0
      %1473 = vmatprep.subr.bf16.mxu0 0
      %1474 = vmatpush1.bf16.msra.mxu0 0
      %1475 = vmatprep.subr.bf16.mxu0 0
      %1476 = vmatpush1.bf16.msra.mxu0 0
      %1477 = vmatprep.mubr.bf16.mxu0 0
      %1478 = vmatmul.mubr.bf16.gmra.mrb[0].mxu0 %v1396
      %v1479 = vpop.f32.mrb[0].mxu0
      %v1480 = vadd.f32 0.0, %v1479
      %v1481 = vpop.f32.mrb[0].mxu0
      %v1482 = vadd.f32 0.0, %v1481
      %v1483 = vpop.f32.mrb[0].mxu0
      %v1484 = vpop.f32.mrb[0].mxu0
      %1485 = vdwg.mxu0
      %v1486 = vadd.f32 %v1400, %v1439
      %v1487 = vadd.f32 %v1401, %v1441
      %v1488 = vadd.f32 %v1402, %v1480
      %v1489 = vadd.f32 %v1403, %v1482
      %v1490 = vxor.u32 %v1486, 2147483648
      %v1491 = vmul.f32 %v1490, 1.442695
      %v1492 = vpow.pop %v1491
      %v1493 = vadd.f32 %v1492, 1.0
      %v1494 = vrcp.pop %v1493
      %v1495 = vmul.f32 1.0, %v1494
      %v1496 = vxor.u32 %v1487, 2147483648
      %v1497 = vmul.f32 %v1496, 1.442695
      %v1498 = vpow.pop %v1497
      %v1499 = vadd.f32 %v1498, 1.0
      %v1500 = vrcp.pop %v1499
      %v1501 = vmul.f32 1.0, %v1500
      %v1502 = vtanh.pop %v1488
      %v1503 = vxor.u32 %v1489, 2147483648
      %v1504 = vmul.f32 %v1503, 1.442695
      %v1505 = vpow.pop %v1504
      %v1506 = vadd.f32 %v1505, 1.0
      %v1507 = vrcp.pop %v1506
      %v1508 = vmul.f32 1.0, %v1507
      %v1509 = vmul.f32 %v1501, %v1393
      %v1510 = vmul.f32 %v1495, %v1502
      %v1511 = vadd.f32 %v1509, %v1510
      %v1512 = vtanh.pop %v1511
      %v1513 = vmul.f32 %v1508, %v1512
      %v1514 = vpack.c.bf16 %v1513, %v1513
      %s1515 = scalar_lea.vmem %s251, 32
      %1516 = vst [vmem:[%s1515] sm:$0xf] %v1514
      %s1517 = scalar_lea.vmem %s245, 288
      %v1518 = vld [vmem:[%s1517] sm:$0xff]
      %v1519 = vld [vmem:[%s1517 + $0x8] sm:$0xff]
      %v1520 = vld [vmem:[%s1517 + $0x10] sm:$0xff]
      %v1521 = vld [vmem:[%s1517 + $0x18] sm:$0xff]
      %1522 = vmatprep.subr.bf16.mxu0 %v398
      %1523 = vmatpush1.bf16.msra.mxu0 %v397
      %1524 = vmatprep.subr.bf16.mxu0 %v402
      %1525 = vmatpush1.bf16.msra.mxu0 %v401
      %1526 = vmatprep.subr.bf16.mxu0 %v406
      %1527 = vmatpush1.bf16.msra.mxu0 %v405
      %1528 = vmatprep.subr.bf16.mxu0 %v410
      %1529 = vmatpush1.bf16.msra.mxu0 %v409
      %1530 = vmatprep.subr.bf16.mxu0 %v414
      %1531 = vmatpush1.bf16.msra.mxu0 %v413
      %1532 = vmatprep.subr.bf16.mxu0 %v418
      %1533 = vmatpush1.bf16.msra.mxu0 %v417
      %1534 = vmatprep.subr.bf16.mxu0 %v422
      %1535 = vmatpush1.bf16.msra.mxu0 %v421
      %1536 = vmatprep.subr.bf16.mxu0 %v426
      %1537 = vmatpush1.bf16.msra.mxu0 %v425
      %1538 = vmatprep.subr.bf16.mxu0 0
      %1539 = vmatpush1.bf16.msra.mxu0 0
      %1540 = vmatprep.subr.bf16.mxu0 0
      %1541 = vmatpush1.bf16.msra.mxu0 0
      %1542 = vmatprep.subr.bf16.mxu0 0
      %1543 = vmatpush1.bf16.msra.mxu0 0
      %1544 = vmatprep.subr.bf16.mxu0 0
      %1545 = vmatpush1.bf16.msra.mxu0 0
      %1546 = vmatprep.subr.bf16.mxu0 0
      %1547 = vmatpush1.bf16.msra.mxu0 0
      %1548 = vmatprep.subr.bf16.mxu0 0
      %1549 = vmatpush1.bf16.msra.mxu0 0
      %1550 = vmatprep.subr.bf16.mxu0 0
      %1551 = vmatpush1.bf16.msra.mxu0 0
      %1552 = vmatprep.subr.bf16.mxu0 0
      %1553 = vmatpush1.bf16.msra.mxu0 0
      %1554 = vmatprep.mubr.bf16.mxu0 0
      %1555 = vmatmul.mubr.bf16.gmra.mrb[0].mxu0 %v1514
      %v1556 = vpop.f32.mrb[0].mxu0
      %v1557 = vadd.f32 0.0, %v1556
      %v1558 = vpop.f32.mrb[0].mxu0
      %v1559 = vadd.f32 0.0, %v1558
      %v1560 = vpop.f32.mrb[0].mxu0
      %v1561 = vpop.f32.mrb[0].mxu0
      %1562 = vdwg.mxu0
      %1563 = vmatprep.subr.bf16.mxu0 %v400
      %1564 = vmatpush1.bf16.msra.mxu0 %v399
      %1565 = vmatprep.subr.bf16.mxu0 %v404
      %1566 = vmatpush1.bf16.msra.mxu0 %v403
      %1567 = vmatprep.subr.bf16.mxu0 %v408
      %1568 = vmatpush1.bf16.msra.mxu0 %v407
      %1569 = vmatprep.subr.bf16.mxu0 %v412
      %1570 = vmatpush1.bf16.msra.mxu0 %v411
      %1571 = vmatprep.subr.bf16.mxu0 %v416
      %1572 = vmatpush1.bf16.msra.mxu0 %v415
      %1573 = vmatprep.subr.bf16.mxu0 %v420
      %1574 = vmatpush1.bf16.msra.mxu0 %v419
      %1575 = vmatprep.subr.bf16.mxu0 %v424
      %1576 = vmatpush1.bf16.msra.mxu0 %v423
      %1577 = vmatprep.subr.bf16.mxu0 %v428
      %1578 = vmatpush1.bf16.msra.mxu0 %v427
      %1579 = vmatprep.subr.bf16.mxu0 0
      %1580 = vmatpush1.bf16.msra.mxu0 0
      %1581 = vmatprep.subr.bf16.mxu0 0
      %1582 = vmatpush1.bf16.msra.mxu0 0
      %1583 = vmatprep.subr.bf16.mxu0 0
      %1584 = vmatpush1.bf16.msra.mxu0 0
      %1585 = vmatprep.subr.bf16.mxu0 0
      %1586 = vmatpush1.bf16.msra.mxu0 0
      %1587 = vmatprep.subr.bf16.mxu0 0
      %1588 = vmatpush1.bf16.msra.mxu0 0
      %1589 = vmatprep.subr.bf16.mxu0 0
      %1590 = vmatpush1.bf16.msra.mxu0 0
      %1591 = vmatprep.subr.bf16.mxu0 0
      %1592 = vmatpush1.bf16.msra.mxu0 0
      %1593 = vmatprep.subr.bf16.mxu0 0
      %1594 = vmatpush1.bf16.msra.mxu0 0
      %1595 = vmatprep.mubr.bf16.mxu0 0
      %1596 = vmatmul.mubr.bf16.gmra.mrb[0].mxu0 %v1514
      %v1597 = vpop.f32.mrb[0].mxu0
      %v1598 = vadd.f32 0.0, %v1597
      %v1599 = vpop.f32.mrb[0].mxu0
      %v1600 = vadd.f32 0.0, %v1599
      %v1601 = vpop.f32.mrb[0].mxu0
      %v1602 = vpop.f32.mrb[0].mxu0
      %1603 = vdwg.mxu0
      %v1604 = vadd.f32 %v1518, %v1557
      %v1605 = vadd.f32 %v1519, %v1559
      %v1606 = vadd.f32 %v1520, %v1598
      %v1607 = vadd.f32 %v1521, %v1600
      %v1608 = vxor.u32 %v1604, 2147483648
      %v1609 = vmul.f32 %v1608, 1.442695
      %v1610 = vpow.pop %v1609
      %v1611 = vadd.f32 %v1610, 1.0
      %v1612 = vrcp.pop %v1611
      %v1613 = vmul.f32 1.0, %v1612
      %v1614 = vxor.u32 %v1605, 2147483648
      %v1615 = vmul.f32 %v1614, 1.442695
      %v1616 = vpow.pop %v1615
      %v1617 = vadd.f32 %v1616, 1.0
      %v1618 = vrcp.pop %v1617
      %v1619 = vmul.f32 1.0, %v1618
      %v1620 = vtanh.pop %v1606
      %v1621 = vxor.u32 %v1607, 2147483648
      %v1622 = vmul.f32 %v1621, 1.442695
      %v1623 = vpow.pop %v1622
      %v1624 = vadd.f32 %v1623, 1.0
      %v1625 = vrcp.pop %v1624
      %v1626 = vmul.f32 1.0, %v1625
      %v1627 = vmul.f32 %v1619, %v1511
      %v1628 = vmul.f32 %v1613, %v1620
      %v1629 = vadd.f32 %v1627, %v1628
      %v1630 = vtanh.pop %v1629
      %v1631 = vmul.f32 %v1626, %v1630
      %v1632 = vpack.c.bf16 %v1631, %v1631
      %s1633 = scalar_lea.vmem %s251, 36
      %1634 = vst [vmem:[%s1633] sm:$0xf] %v1632
      %s1635 = scalar_lea.vmem %s245, 320
      %v1636 = vld [vmem:[%s1635] sm:$0xff]
      %v1637 = vld [vmem:[%s1635 + $0x8] sm:$0xff]
      %v1638 = vld [vmem:[%s1635 + $0x10] sm:$0xff]
      %v1639 = vld [vmem:[%s1635 + $0x18] sm:$0xff]
      %1640 = vmatprep.subr.bf16.mxu0 %v398
      %1641 = vmatpush1.bf16.msra.mxu0 %v397
      %1642 = vmatprep.subr.bf16.mxu0 %v402
      %1643 = vmatpush1.bf16.msra.mxu0 %v401
      %1644 = vmatprep.subr.bf16.mxu0 %v406
      %1645 = vmatpush1.bf16.msra.mxu0 %v405
      %1646 = vmatprep.subr.bf16.mxu0 %v410
      %1647 = vmatpush1.bf16.msra.mxu0 %v409
      %1648 = vmatprep.subr.bf16.mxu0 %v414
      %1649 = vmatpush1.bf16.msra.mxu0 %v413
      %1650 = vmatprep.subr.bf16.mxu0 %v418
      %1651 = vmatpush1.bf16.msra.mxu0 %v417
      %1652 = vmatprep.subr.bf16.mxu0 %v422
      %1653 = vmatpush1.bf16.msra.mxu0 %v421
      %1654 = vmatprep.subr.bf16.mxu0 %v426
      %1655 = vmatpush1.bf16.msra.mxu0 %v425
      %1656 = vmatprep.subr.bf16.mxu0 0
      %1657 = vmatpush1.bf16.msra.mxu0 0
      %1658 = vmatprep.subr.bf16.mxu0 0
      %1659 = vmatpush1.bf16.msra.mxu0 0
      %1660 = vmatprep.subr.bf16.mxu0 0
      %1661 = vmatpush1.bf16.msra.mxu0 0
      %1662 = vmatprep.subr.bf16.mxu0 0
      %1663 = vmatpush1.bf16.msra.mxu0 0
      %1664 = vmatprep.subr.bf16.mxu0 0
      %1665 = vmatpush1.bf16.msra.mxu0 0
      %1666 = vmatprep.subr.bf16.mxu0 0
      %1667 = vmatpush1.bf16.msra.mxu0 0
      %1668 = vmatprep.subr.bf16.mxu0 0
      %1669 = vmatpush1.bf16.msra.mxu0 0
      %1670 = vmatprep.subr.bf16.mxu0 0
      %1671 = vmatpush1.bf16.msra.mxu0 0
      %1672 = vmatprep.mubr.bf16.mxu0 0
      %1673 = vmatmul.mubr.bf16.gmra.mrb[0].mxu0 %v1632
      %v1674 = vpop.f32.mrb[0].mxu0
      %v1675 = vadd.f32 0.0, %v1674
      %v1676 = vpop.f32.mrb[0].mxu0
      %v1677 = vadd.f32 0.0, %v1676
      %v1678 = vpop.f32.mrb[0].mxu0
      %v1679 = vpop.f32.mrb[0].mxu0
      %1680 = vdwg.mxu0
      %1681 = vmatprep.subr.bf16.mxu0 %v400
      %1682 = vmatpush1.bf16.msra.mxu0 %v399
      %1683 = vmatprep.subr.bf16.mxu0 %v404
      %1684 = vmatpush1.bf16.msra.mxu0 %v403
      %1685 = vmatprep.subr.bf16.mxu0 %v408
      %1686 = vmatpush1.bf16.msra.mxu0 %v407
      %1687 = vmatprep.subr.bf16.mxu0 %v412
      %1688 = vmatpush1.bf16.msra.mxu0 %v411
      %1689 = vmatprep.subr.bf16.mxu0 %v416
      %1690 = vmatpush1.bf16.msra.mxu0 %v415
      %1691 = vmatprep.subr.bf16.mxu0 %v420
      %1692 = vmatpush1.bf16.msra.mxu0 %v419
      %1693 = vmatprep.subr.bf16.mxu0 %v424
      %1694 = vmatpush1.bf16.msra.mxu0 %v423
      %1695 = vmatprep.subr.bf16.mxu0 %v428
      %1696 = vmatpush1.bf16.msra.mxu0 %v427
      %1697 = vmatprep.subr.bf16.mxu0 0
      %1698 = vmatpush1.bf16.msra.mxu0 0
      %1699 = vmatprep.subr.bf16.mxu0 0
      %1700 = vmatpush1.bf16.msra.mxu0 0
      %1701 = vmatprep.subr.bf16.mxu0 0
      %1702 = vmatpush1.bf16.msra.mxu0 0
      %1703 = vmatprep.subr.bf16.mxu0 0
      %1704 = vmatpush1.bf16.msra.mxu0 0
      %1705 = vmatprep.subr.bf16.mxu0 0
      %1706 = vmatpush1.bf16.msra.mxu0 0
      %1707 = vmatprep.subr.bf16.mxu0 0
      %1708 = vmatpush1.bf16.msra.mxu0 0
      %1709 = vmatprep.subr.bf16.mxu0 0
      %1710 = vmatpush1.bf16.msra.mxu0 0
      %1711 = vmatprep.subr.bf16.mxu0 0
      %1712 = vmatpush1.bf16.msra.mxu0 0
      %1713 = vmatprep.mubr.bf16.mxu0 0
      %1714 = vmatmul.mubr.bf16.gmra.mrb[0].mxu0 %v1632
      %v1715 = vpop.f32.mrb[0].mxu0
      %v1716 = vadd.f32 0.0, %v1715
      %v1717 = vpop.f32.mrb[0].mxu0
      %v1718 = vadd.f32 0.0, %v1717
      %v1719 = vpop.f32.mrb[0].mxu0
      %v1720 = vpop.f32.mrb[0].mxu0
      %1721 = vdwg.mxu0
      %v1722 = vadd.f32 %v1636, %v1675
      %v1723 = vadd.f32 %v1637, %v1677
      %v1724 = vadd.f32 %v1638, %v1716
      %v1725 = vadd.f32 %v1639, %v1718
      %v1726 = vxor.u32 %v1722, 2147483648
      %v1727 = vmul.f32 %v1726, 1.442695
      %v1728 = vpow.pop %v1727
      %v1729 = vadd.f32 %v1728, 1.0
      %v1730 = vrcp.pop %v1729
      %v1731 = vmul.f32 1.0, %v1730
      %v1732 = vxor.u32 %v1723, 2147483648
      %v1733 = vmul.f32 %v1732, 1.442695
      %v1734 = vpow.pop %v1733
      %v1735 = vadd.f32 %v1734, 1.0
      %v1736 = vrcp.pop %v1735
      %v1737 = vmul.f32 1.0, %v1736
      %v1738 = vtanh.pop %v1724
      %v1739 = vxor.u32 %v1725, 2147483648
      %v1740 = vmul.f32 %v1739, 1.442695
      %v1741 = vpow.pop %v1740
      %v1742 = vadd.f32 %v1741, 1.0
      %v1743 = vrcp.pop %v1742
      %v1744 = vmul.f32 1.0, %v1743
      %v1745 = vmul.f32 %v1737, %v1629
      %v1746 = vmul.f32 %v1731, %v1738
      %v1747 = vadd.f32 %v1745, %v1746
      %v1748 = vtanh.pop %v1747
      %v1749 = vmul.f32 %v1744, %v1748
      %v1750 = vpack.c.bf16 %v1749, %v1749
      %s1751 = scalar_lea.vmem %s251, 40
      %1752 = vst [vmem:[%s1751] sm:$0xf] %v1750
      %s1753 = scalar_lea.vmem %s245, 352
      %v1754 = vld [vmem:[%s1753] sm:$0xff]
      %v1755 = vld [vmem:[%s1753 + $0x8] sm:$0xff]
      %v1756 = vld [vmem:[%s1753 + $0x10] sm:$0xff]
      %v1757 = vld [vmem:[%s1753 + $0x18] sm:$0xff]
      %1758 = vmatprep.subr.bf16.mxu0 %v398
      %1759 = vmatpush1.bf16.msra.mxu0 %v397
      %1760 = vmatprep.subr.bf16.mxu0 %v402
      %1761 = vmatpush1.bf16.msra.mxu0 %v401
      %1762 = vmatprep.subr.bf16.mxu0 %v406
      %1763 = vmatpush1.bf16.msra.mxu0 %v405
      %1764 = vmatprep.subr.bf16.mxu0 %v410
      %1765 = vmatpush1.bf16.msra.mxu0 %v409
      %1766 = vmatprep.subr.bf16.mxu0 %v414
      %1767 = vmatpush1.bf16.msra.mxu0 %v413
      %1768 = vmatprep.subr.bf16.mxu0 %v418
      %1769 = vmatpush1.bf16.msra.mxu0 %v417
      %1770 = vmatprep.subr.bf16.mxu0 %v422
      %1771 = vmatpush1.bf16.msra.mxu0 %v421
      %1772 = vmatprep.subr.bf16.mxu0 %v426
      %1773 = vmatpush1.bf16.msra.mxu0 %v425
      %1774 = vmatprep.subr.bf16.mxu0 0
      %1775 = vmatpush1.bf16.msra.mxu0 0
      %1776 = vmatprep.subr.bf16.mxu0 0
      %1777 = vmatpush1.bf16.msra.mxu0 0
      %1778 = vmatprep.subr.bf16.mxu0 0
      %1779 = vmatpush1.bf16.msra.mxu0 0
      %1780 = vmatprep.subr.bf16.mxu0 0
      %1781 = vmatpush1.bf16.msra.mxu0 0
      %1782 = vmatprep.subr.bf16.mxu0 0
      %1783 = vmatpush1.bf16.msra.mxu0 0
      %1784 = vmatprep.subr.bf16.mxu0 0
      %1785 = vmatpush1.bf16.msra.mxu0 0
      %1786 = vmatprep.subr.bf16.mxu0 0
      %1787 = vmatpush1.bf16.msra.mxu0 0
      %1788 = vmatprep.subr.bf16.mxu0 0
      %1789 = vmatpush1.bf16.msra.mxu0 0
      %1790 = vmatprep.mubr.bf16.mxu0 0
      %1791 = vmatmul.mubr.bf16.gmra.mrb[0].mxu0 %v1750
      %v1792 = vpop.f32.mrb[0].mxu0
      %v1793 = vadd.f32 0.0, %v1792
      %v1794 = vpop.f32.mrb[0].mxu0
      %v1795 = vadd.f32 0.0, %v1794
      %v1796 = vpop.f32.mrb[0].mxu0
      %v1797 = vpop.f32.mrb[0].mxu0
      %1798 = vdwg.mxu0
      %1799 = vmatprep.subr.bf16.mxu0 %v400
      %1800 = vmatpush1.bf16.msra.mxu0 %v399
      %1801 = vmatprep.subr.bf16.mxu0 %v404
      %1802 = vmatpush1.bf16.msra.mxu0 %v403
      %1803 = vmatprep.subr.bf16.mxu0 %v408
      %1804 = vmatpush1.bf16.msra.mxu0 %v407
      %1805 = vmatprep.subr.bf16.mxu0 %v412
      %1806 = vmatpush1.bf16.msra.mxu0 %v411
      %1807 = vmatprep.subr.bf16.mxu0 %v416
      %1808 = vmatpush1.bf16.msra.mxu0 %v415
      %1809 = vmatprep.subr.bf16.mxu0 %v420
      %1810 = vmatpush1.bf16.msra.mxu0 %v419
      %1811 = vmatprep.subr.bf16.mxu0 %v424
      %1812 = vmatpush1.bf16.msra.mxu0 %v423
      %1813 = vmatprep.subr.bf16.mxu0 %v428
      %1814 = vmatpush1.bf16.msra.mxu0 %v427
      %1815 = vmatprep.subr.bf16.mxu0 0
      %1816 = vmatpush1.bf16.msra.mxu0 0
      %1817 = vmatprep.subr.bf16.mxu0 0
      %1818 = vmatpush1.bf16.msra.mxu0 0
      %1819 = vmatprep.subr.bf16.mxu0 0
      %1820 = vmatpush1.bf16.msra.mxu0 0
      %1821 = vmatprep.subr.bf16.mxu0 0
      %1822 = vmatpush1.bf16.msra.mxu0 0
      %1823 = vmatprep.subr.bf16.mxu0 0
      %1824 = vmatpush1.bf16.msra.mxu0 0
      %1825 = vmatprep.subr.bf16.mxu0 0
      %1826 = vmatpush1.bf16.msra.mxu0 0
      %1827 = vmatprep.subr.bf16.mxu0 0
      %1828 = vmatpush1.bf16.msra.mxu0 0
      %1829 = vmatprep.subr.bf16.mxu0 0
      %1830 = vmatpush1.bf16.msra.mxu0 0
      %1831 = vmatprep.mubr.bf16.mxu0 0
      %1832 = vmatmul.mubr.bf16.gmra.mrb[0].mxu0 %v1750
      %v1833 = vpop.f32.mrb[0].mxu0
      %v1834 = vadd.f32 0.0, %v1833
      %v1835 = vpop.f32.mrb[0].mxu0
      %v1836 = vadd.f32 0.0, %v1835
      %v1837 = vpop.f32.mrb[0].mxu0
      %v1838 = vpop.f32.mrb[0].mxu0
      %1839 = vdwg.mxu0
      %v1840 = vadd.f32 %v1754, %v1793
      %v1841 = vadd.f32 %v1755, %v1795
      %v1842 = vadd.f32 %v1756, %v1834
      %v1843 = vadd.f32 %v1757, %v1836
      %v1844 = vxor.u32 %v1840, 2147483648
      %v1845 = vmul.f32 %v1844, 1.442695
      %v1846 = vpow.pop %v1845
      %v1847 = vadd.f32 %v1846, 1.0
      %v1848 = vrcp.pop %v1847
      %v1849 = vmul.f32 1.0, %v1848
      %v1850 = vxor.u32 %v1841, 2147483648
      %v1851 = vmul.f32 %v1850, 1.442695
      %v1852 = vpow.pop %v1851
      %v1853 = vadd.f32 %v1852, 1.0
      %v1854 = vrcp.pop %v1853
      %v1855 = vmul.f32 1.0, %v1854
      %v1856 = vtanh.pop %v1842
      %v1857 = vxor.u32 %v1843, 2147483648
      %v1858 = vmul.f32 %v1857, 1.442695
      %v1859 = vpow.pop %v1858
      %v1860 = vadd.f32 %v1859, 1.0
      %v1861 = vrcp.pop %v1860
      %v1862 = vmul.f32 1.0, %v1861
      %v1863 = vmul.f32 %v1855, %v1747
      %v1864 = vmul.f32 %v1849, %v1856
      %v1865 = vadd.f32 %v1863, %v1864
      %v1866 = vtanh.pop %v1865
      %v1867 = vmul.f32 %v1862, %v1866
      %v1868 = vpack.c.bf16 %v1867, %v1867
      %s1869 = scalar_lea.vmem %s251, 44
      %1870 = vst [vmem:[%s1869] sm:$0xf] %v1868
      %s1871 = scalar_lea.vmem %s245, 384
      %v1872 = vld [vmem:[%s1871] sm:$0xff]
      %v1873 = vld [vmem:[%s1871 + $0x8] sm:$0xff]
      %v1874 = vld [vmem:[%s1871 + $0x10] sm:$0xff]
      %v1875 = vld [vmem:[%s1871 + $0x18] sm:$0xff]
      %1876 = vmatprep.subr.bf16.mxu0 %v398
      %1877 = vmatpush1.bf16.msra.mxu0 %v397
      %1878 = vmatprep.subr.bf16.mxu0 %v402
      %1879 = vmatpush1.bf16.msra.mxu0 %v401
      %1880 = vmatprep.subr.bf16.mxu0 %v406
      %1881 = vmatpush1.bf16.msra.mxu0 %v405
      %1882 = vmatprep.subr.bf16.mxu0 %v410
      %1883 = vmatpush1.bf16.msra.mxu0 %v409
      %1884 = vmatprep.subr.bf16.mxu0 %v414
      %1885 = vmatpush1.bf16.msra.mxu0 %v413
      %1886 = vmatprep.subr.bf16.mxu0 %v418
      %1887 = vmatpush1.bf16.msra.mxu0 %v417
      %1888 = vmatprep.subr.bf16.mxu0 %v422
      %1889 = vmatpush1.bf16.msra.mxu0 %v421
      %1890 = vmatprep.subr.bf16.mxu0 %v426
      %1891 = vmatpush1.bf16.msra.mxu0 %v425
      %1892 = vmatprep.subr.bf16.mxu0 0
      %1893 = vmatpush1.bf16.msra.mxu0 0
      %1894 = vmatprep.subr.bf16.mxu0 0
      %1895 = vmatpush1.bf16.msra.mxu0 0
      %1896 = vmatprep.subr.bf16.mxu0 0
      %1897 = vmatpush1.bf16.msra.mxu0 0
      %1898 = vmatprep.subr.bf16.mxu0 0
      %1899 = vmatpush1.bf16.msra.mxu0 0
      %1900 = vmatprep.subr.bf16.mxu0 0
      %1901 = vmatpush1.bf16.msra.mxu0 0
      %1902 = vmatprep.subr.bf16.mxu0 0
      %1903 = vmatpush1.bf16.msra.mxu0 0
      %1904 = vmatprep.subr.bf16.mxu0 0
      %1905 = vmatpush1.bf16.msra.mxu0 0
      %1906 = vmatprep.subr.bf16.mxu0 0
      %1907 = vmatpush1.bf16.msra.mxu0 0
      %1908 = vmatprep.mubr.bf16.mxu0 0
      %1909 = vmatmul.mubr.bf16.gmra.mrb[0].mxu0 %v1868
      %v1910 = vpop.f32.mrb[0].mxu0
      %v1911 = vadd.f32 0.0, %v1910
      %v1912 = vpop.f32.mrb[0].mxu0
      %v1913 = vadd.f32 0.0, %v1912
      %v1914 = vpop.f32.mrb[0].mxu0
      %v1915 = vpop.f32.mrb[0].mxu0
      %1916 = vdwg.mxu0
      %1917 = vmatprep.subr.bf16.mxu0 %v400
      %1918 = vmatpush1.bf16.msra.mxu0 %v399
      %1919 = vmatprep.subr.bf16.mxu0 %v404
      %1920 = vmatpush1.bf16.msra.mxu0 %v403
      %1921 = vmatprep.subr.bf16.mxu0 %v408
      %1922 = vmatpush1.bf16.msra.mxu0 %v407
      %1923 = vmatprep.subr.bf16.mxu0 %v412
      %1924 = vmatpush1.bf16.msra.mxu0 %v411
      %1925 = vmatprep.subr.bf16.mxu0 %v416
      %1926 = vmatpush1.bf16.msra.mxu0 %v415
      %1927 = vmatprep.subr.bf16.mxu0 %v420
      %1928 = vmatpush1.bf16.msra.mxu0 %v419
      %1929 = vmatprep.subr.bf16.mxu0 %v424
      %1930 = vmatpush1.bf16.msra.mxu0 %v423
      %1931 = vmatprep.subr.bf16.mxu0 %v428
      %1932 = vmatpush1.bf16.msra.mxu0 %v427
      %1933 = vmatprep.subr.bf16.mxu0 0
      %1934 = vmatpush1.bf16.msra.mxu0 0
      %1935 = vmatprep.subr.bf16.mxu0 0
      %1936 = vmatpush1.bf16.msra.mxu0 0
      %1937 = vmatprep.subr.bf16.mxu0 0
      %1938 = vmatpush1.bf16.msra.mxu0 0
      %1939 = vmatprep.subr.bf16.mxu0 0
      %1940 = vmatpush1.bf16.msra.mxu0 0
      %1941 = vmatprep.subr.bf16.mxu0 0
      %1942 = vmatpush1.bf16.msra.mxu0 0
      %1943 = vmatprep.subr.bf16.mxu0 0
      %1944 = vmatpush1.bf16.msra.mxu0 0
      %1945 = vmatprep.subr.bf16.mxu0 0
      %1946 = vmatpush1.bf16.msra.mxu0 0
      %1947 = vmatprep.subr.bf16.mxu0 0
      %1948 = vmatpush1.bf16.msra.mxu0 0
      %1949 = vmatprep.mubr.bf16.mxu0 0
      %1950 = vmatmul.mubr.bf16.gmra.mrb[0].mxu0 %v1868
      %v1951 = vpop.f32.mrb[0].mxu0
      %v1952 = vadd.f32 0.0, %v1951
      %v1953 = vpop.f32.mrb[0].mxu0
      %v1954 = vadd.f32 0.0, %v1953
      %v1955 = vpop.f32.mrb[0].mxu0
      %v1956 = vpop.f32.mrb[0].mxu0
      %1957 = vdwg.mxu0
      %v1958 = vadd.f32 %v1872, %v1911
      %v1959 = vadd.f32 %v1873, %v1913
      %v1960 = vadd.f32 %v1874, %v1952
      %v1961 = vadd.f32 %v1875, %v1954
      %v1962 = vxor.u32 %v1958, 2147483648
      %v1963 = vmul.f32 %v1962, 1.442695
      %v1964 = vpow.pop %v1963
      %v1965 = vadd.f32 %v1964, 1.0
      %v1966 = vrcp.pop %v1965
      %v1967 = vmul.f32 1.0, %v1966
      %v1968 = vxor.u32 %v1959, 2147483648
      %v1969 = vmul.f32 %v1968, 1.442695
      %v1970 = vpow.pop %v1969
      %v1971 = vadd.f32 %v1970, 1.0
      %v1972 = vrcp.pop %v1971
      %v1973 = vmul.f32 1.0, %v1972
      %v1974 = vtanh.pop %v1960
      %v1975 = vxor.u32 %v1961, 2147483648
      %v1976 = vmul.f32 %v1975, 1.442695
      %v1977 = vpow.pop %v1976
      %v1978 = vadd.f32 %v1977, 1.0
      %v1979 = vrcp.pop %v1978
      %v1980 = vmul.f32 1.0, %v1979
      %v1981 = vmul.f32 %v1973, %v1865
      %v1982 = vmul.f32 %v1967, %v1974
      %v1983 = vadd.f32 %v1981, %v1982
      %v1984 = vtanh.pop %v1983
      %v1985 = vmul.f32 %v1980, %v1984
      %v1986 = vpack.c.bf16 %v1985, %v1985
      %s1987 = scalar_lea.vmem %s251, 48
      %1988 = vst [vmem:[%s1987] sm:$0xf] %v1986
      %s1989 = scalar_lea.vmem %s245, 416
      %v1990 = vld [vmem:[%s1989] sm:$0xff]
      %v1991 = vld [vmem:[%s1989 + $0x8] sm:$0xff]
      %v1992 = vld [vmem:[%s1989 + $0x10] sm:$0xff]
      %v1993 = vld [vmem:[%s1989 + $0x18] sm:$0xff]
      %1994 = vmatprep.subr.bf16.mxu0 %v398
      %1995 = vmatpush1.bf16.msra.mxu0 %v397
      %1996 = vmatprep.subr.bf16.mxu0 %v402
      %1997 = vmatpush1.bf16.msra.mxu0 %v401
      %1998 = vmatprep.subr.bf16.mxu0 %v406
      %1999 = vmatpush1.bf16.msra.mxu0 %v405
      %2000 = vmatprep.subr.bf16.mxu0 %v410
      %2001 = vmatpush1.bf16.msra.mxu0 %v409
      %2002 = vmatprep.subr.bf16.mxu0 %v414
      %2003 = vmatpush1.bf16.msra.mxu0 %v413
      %2004 = vmatprep.subr.bf16.mxu0 %v418
      %2005 = vmatpush1.bf16.msra.mxu0 %v417
      %2006 = vmatprep.subr.bf16.mxu0 %v422
      %2007 = vmatpush1.bf16.msra.mxu0 %v421
      %2008 = vmatprep.subr.bf16.mxu0 %v426
      %2009 = vmatpush1.bf16.msra.mxu0 %v425
      %2010 = vmatprep.subr.bf16.mxu0 0
      %2011 = vmatpush1.bf16.msra.mxu0 0
      %2012 = vmatprep.subr.bf16.mxu0 0
      %2013 = vmatpush1.bf16.msra.mxu0 0
      %2014 = vmatprep.subr.bf16.mxu0 0
      %2015 = vmatpush1.bf16.msra.mxu0 0
      %2016 = vmatprep.subr.bf16.mxu0 0
      %2017 = vmatpush1.bf16.msra.mxu0 0
      %2018 = vmatprep.subr.bf16.mxu0 0
      %2019 = vmatpush1.bf16.msra.mxu0 0
      %2020 = vmatprep.subr.bf16.mxu0 0
      %2021 = vmatpush1.bf16.msra.mxu0 0
      %2022 = vmatprep.subr.bf16.mxu0 0
      %2023 = vmatpush1.bf16.msra.mxu0 0
      %2024 = vmatprep.subr.bf16.mxu0 0
      %2025 = vmatpush1.bf16.msra.mxu0 0
      %2026 = vmatprep.mubr.bf16.mxu0 0
      %2027 = vmatmul.mubr.bf16.gmra.mrb[0].mxu0 %v1986
      %v2028 = vpop.f32.mrb[0].mxu0
      %v2029 = vadd.f32 0.0, %v2028
      %v2030 = vpop.f32.mrb[0].mxu0
      %v2031 = vadd.f32 0.0, %v2030
      %v2032 = vpop.f32.mrb[0].mxu0
      %v2033 = vpop.f32.mrb[0].mxu0
      %2034 = vdwg.mxu0
      %2035 = vmatprep.subr.bf16.mxu0 %v400
      %2036 = vmatpush1.bf16.msra.mxu0 %v399
      %2037 = vmatprep.subr.bf16.mxu0 %v404
      %2038 = vmatpush1.bf16.msra.mxu0 %v403
      %2039 = vmatprep.subr.bf16.mxu0 %v408
      %2040 = vmatpush1.bf16.msra.mxu0 %v407
      %2041 = vmatprep.subr.bf16.mxu0 %v412
      %2042 = vmatpush1.bf16.msra.mxu0 %v411
      %2043 = vmatprep.subr.bf16.mxu0 %v416
      %2044 = vmatpush1.bf16.msra.mxu0 %v415
      %2045 = vmatprep.subr.bf16.mxu0 %v420
      %2046 = vmatpush1.bf16.msra.mxu0 %v419
      %2047 = vmatprep.subr.bf16.mxu0 %v424
      %2048 = vmatpush1.bf16.msra.mxu0 %v423
      %2049 = vmatprep.subr.bf16.mxu0 %v428
      %2050 = vmatpush1.bf16.msra.mxu0 %v427
      %2051 = vmatprep.subr.bf16.mxu0 0
      %2052 = vmatpush1.bf16.msra.mxu0 0
      %2053 = vmatprep.subr.bf16.mxu0 0
      %2054 = vmatpush1.bf16.msra.mxu0 0
      %2055 = vmatprep.subr.bf16.mxu0 0
      %2056 = vmatpush1.bf16.msra.mxu0 0
      %2057 = vmatprep.subr.bf16.mxu0 0
      %2058 = vmatpush1.bf16.msra.mxu0 0
      %2059 = vmatprep.subr.bf16.mxu0 0
      %2060 = vmatpush1.bf16.msra.mxu0 0
      %2061 = vmatprep.subr.bf16.mxu0 0
      %2062 = vmatpush1.bf16.msra.mxu0 0
      %2063 = vmatprep.subr.bf16.mxu0 0
      %2064 = vmatpush1.bf16.msra.mxu0 0
      %2065 = vmatprep.subr.bf16.mxu0 0
      %2066 = vmatpush1.bf16.msra.mxu0 0
      %2067 = vmatprep.mubr.bf16.mxu0 0
      %2068 = vmatmul.mubr.bf16.gmra.mrb[0].mxu0 %v1986
      %v2069 = vpop.f32.mrb[0].mxu0
      %v2070 = vadd.f32 0.0, %v2069
      %v2071 = vpop.f32.mrb[0].mxu0
      %v2072 = vadd.f32 0.0, %v2071
      %v2073 = vpop.f32.mrb[0].mxu0
      %v2074 = vpop.f32.mrb[0].mxu0
      %2075 = vdwg.mxu0
      %v2076 = vadd.f32 %v1990, %v2029
      %v2077 = vadd.f32 %v1991, %v2031
      %v2078 = vadd.f32 %v1992, %v2070
      %v2079 = vadd.f32 %v1993, %v2072
      %v2080 = vxor.u32 %v2076, 2147483648
      %v2081 = vmul.f32 %v2080, 1.442695
      %v2082 = vpow.pop %v2081
      %v2083 = vadd.f32 %v2082, 1.0
      %v2084 = vrcp.pop %v2083
      %v2085 = vmul.f32 1.0, %v2084
      %v2086 = vxor.u32 %v2077, 2147483648
      %v2087 = vmul.f32 %v2086, 1.442695
      %v2088 = vpow.pop %v2087
      %v2089 = vadd.f32 %v2088, 1.0
      %v2090 = vrcp.pop %v2089
      %v2091 = vmul.f32 1.0, %v2090
      %v2092 = vtanh.pop %v2078
      %v2093 = vxor.u32 %v2079, 2147483648
      %v2094 = vmul.f32 %v2093, 1.442695
      %v2095 = vpow.pop %v2094
      %v2096 = vadd.f32 %v2095, 1.0
      %v2097 = vrcp.pop %v2096
      %v2098 = vmul.f32 1.0, %v2097
      %v2099 = vmul.f32 %v2091, %v1983
      %v2100 = vmul.f32 %v2085, %v2092
      %v2101 = vadd.f32 %v2099, %v2100
      %v2102 = vtanh.pop %v2101
      %v2103 = vmul.f32 %v2098, %v2102
      %v2104 = vpack.c.bf16 %v2103, %v2103
      %s2105 = scalar_lea.vmem %s251, 52
      %2106 = vst [vmem:[%s2105] sm:$0xf] %v2104
      %s2107 = scalar_lea.vmem %s245, 448
      %v2108 = vld [vmem:[%s2107] sm:$0xff]
      %v2109 = vld [vmem:[%s2107 + $0x8] sm:$0xff]
      %v2110 = vld [vmem:[%s2107 + $0x10] sm:$0xff]
      %v2111 = vld [vmem:[%s2107 + $0x18] sm:$0xff]
      %2112 = vmatprep.subr.bf16.mxu0 %v398
      %2113 = vmatpush1.bf16.msra.mxu0 %v397
      %2114 = vmatprep.subr.bf16.mxu0 %v402
      %2115 = vmatpush1.bf16.msra.mxu0 %v401
      %2116 = vmatprep.subr.bf16.mxu0 %v406
      %2117 = vmatpush1.bf16.msra.mxu0 %v405
      %2118 = vmatprep.subr.bf16.mxu0 %v410
      %2119 = vmatpush1.bf16.msra.mxu0 %v409
      %2120 = vmatprep.subr.bf16.mxu0 %v414
      %2121 = vmatpush1.bf16.msra.mxu0 %v413
      %2122 = vmatprep.subr.bf16.mxu0 %v418
      %2123 = vmatpush1.bf16.msra.mxu0 %v417
      %2124 = vmatprep.subr.bf16.mxu0 %v422
      %2125 = vmatpush1.bf16.msra.mxu0 %v421
      %2126 = vmatprep.subr.bf16.mxu0 %v426
      %2127 = vmatpush1.bf16.msra.mxu0 %v425
      %2128 = vmatprep.subr.bf16.mxu0 0
      %2129 = vmatpush1.bf16.msra.mxu0 0
      %2130 = vmatprep.subr.bf16.mxu0 0
      %2131 = vmatpush1.bf16.msra.mxu0 0
      %2132 = vmatprep.subr.bf16.mxu0 0
      %2133 = vmatpush1.bf16.msra.mxu0 0
      %2134 = vmatprep.subr.bf16.mxu0 0
      %2135 = vmatpush1.bf16.msra.mxu0 0
      %2136 = vmatprep.subr.bf16.mxu0 0
      %2137 = vmatpush1.bf16.msra.mxu0 0
      %2138 = vmatprep.subr.bf16.mxu0 0
      %2139 = vmatpush1.bf16.msra.mxu0 0
      %2140 = vmatprep.subr.bf16.mxu0 0
      %2141 = vmatpush1.bf16.msra.mxu0 0
      %2142 = vmatprep.subr.bf16.mxu0 0
      %2143 = vmatpush1.bf16.msra.mxu0 0
      %2144 = vmatprep.mubr.bf16.mxu0 0
      %2145 = vmatmul.mubr.bf16.gmra.mrb[0].mxu0 %v2104
      %v2146 = vpop.f32.mrb[0].mxu0
      %v2147 = vadd.f32 0.0, %v2146
      %v2148 = vpop.f32.mrb[0].mxu0
      %v2149 = vadd.f32 0.0, %v2148
      %v2150 = vpop.f32.mrb[0].mxu0
      %v2151 = vpop.f32.mrb[0].mxu0
      %2152 = vdwg.mxu0
      %2153 = vmatprep.subr.bf16.mxu0 %v400
      %2154 = vmatpush1.bf16.msra.mxu0 %v399
      %2155 = vmatprep.subr.bf16.mxu0 %v404
      %2156 = vmatpush1.bf16.msra.mxu0 %v403
      %2157 = vmatprep.subr.bf16.mxu0 %v408
      %2158 = vmatpush1.bf16.msra.mxu0 %v407
      %2159 = vmatprep.subr.bf16.mxu0 %v412
      %2160 = vmatpush1.bf16.msra.mxu0 %v411
      %2161 = vmatprep.subr.bf16.mxu0 %v416
      %2162 = vmatpush1.bf16.msra.mxu0 %v415
      %2163 = vmatprep.subr.bf16.mxu0 %v420
      %2164 = vmatpush1.bf16.msra.mxu0 %v419
      %2165 = vmatprep.subr.bf16.mxu0 %v424
      %2166 = vmatpush1.bf16.msra.mxu0 %v423
      %2167 = vmatprep.subr.bf16.mxu0 %v428
      %2168 = vmatpush1.bf16.msra.mxu0 %v427
      %2169 = vmatprep.subr.bf16.mxu0 0
      %2170 = vmatpush1.bf16.msra.mxu0 0
      %2171 = vmatprep.subr.bf16.mxu0 0
      %2172 = vmatpush1.bf16.msra.mxu0 0
      %2173 = vmatprep.subr.bf16.mxu0 0
      %2174 = vmatpush1.bf16.msra.mxu0 0
      %2175 = vmatprep.subr.bf16.mxu0 0
      %2176 = vmatpush1.bf16.msra.mxu0 0
      %2177 = vmatprep.subr.bf16.mxu0 0
      %2178 = vmatpush1.bf16.msra.mxu0 0
      %2179 = vmatprep.subr.bf16.mxu0 0
      %2180 = vmatpush1.bf16.msra.mxu0 0
      %2181 = vmatprep.subr.bf16.mxu0 0
      %2182 = vmatpush1.bf16.msra.mxu0 0
      %2183 = vmatprep.subr.bf16.mxu0 0
      %2184 = vmatpush1.bf16.msra.mxu0 0
      %2185 = vmatprep.mubr.bf16.mxu0 0
      %2186 = vmatmul.mubr.bf16.gmra.mrb[0].mxu0 %v2104
      %v2187 = vpop.f32.mrb[0].mxu0
      %v2188 = vadd.f32 0.0, %v2187
      %v2189 = vpop.f32.mrb[0].mxu0
      %v2190 = vadd.f32 0.0, %v2189
      %v2191 = vpop.f32.mrb[0].mxu0
      %v2192 = vpop.f32.mrb[0].mxu0
      %2193 = vdwg.mxu0
      %v2194 = vadd.f32 %v2108, %v2147
      %v2195 = vadd.f32 %v2109, %v2149
      %v2196 = vadd.f32 %v2110, %v2188
      %v2197 = vadd.f32 %v2111, %v2190
      %v2198 = vxor.u32 %v2194, 2147483648
      %v2199 = vmul.f32 %v2198, 1.442695
      %v2200 = vpow.pop %v2199
      %v2201 = vadd.f32 %v2200, 1.0
      %v2202 = vrcp.pop %v2201
      %v2203 = vmul.f32 1.0, %v2202
      %v2204 = vxor.u32 %v2195, 2147483648
      %v2205 = vmul.f32 %v2204, 1.442695
      %v2206 = vpow.pop %v2205
      %v2207 = vadd.f32 %v2206, 1.0
      %v2208 = vrcp.pop %v2207
      %v2209 = vmul.f32 1.0, %v2208
      %v2210 = vtanh.pop %v2196
      %v2211 = vxor.u32 %v2197, 2147483648
      %v2212 = vmul.f32 %v2211, 1.442695
      %v2213 = vpow.pop %v2212
      %v2214 = vadd.f32 %v2213, 1.0
      %v2215 = vrcp.pop %v2214
      %v2216 = vmul.f32 1.0, %v2215
      %v2217 = vmul.f32 %v2209, %v2101
      %v2218 = vmul.f32 %v2203, %v2210
      %v2219 = vadd.f32 %v2217, %v2218
      %v2220 = vtanh.pop %v2219
      %v2221 = vmul.f32 %v2216, %v2220
      %v2222 = vpack.c.bf16 %v2221, %v2221
      %s2223 = scalar_lea.vmem %s251, 56
      %2224 = vst [vmem:[%s2223] sm:$0xf] %v2222
      %s2225 = scalar_lea.vmem %s245, 480
      %v2226 = vld [vmem:[%s2225] sm:$0xff]
      %v2227 = vld [vmem:[%s2225 + $0x8] sm:$0xff]
      %v2228 = vld [vmem:[%s2225 + $0x10] sm:$0xff]
      %v2229 = vld [vmem:[%s2225 + $0x18] sm:$0xff]
      %2230 = vmatprep.subr.bf16.mxu0 %v398
      %2231 = vmatpush1.bf16.msra.mxu0 %v397
      %2232 = vmatprep.subr.bf16.mxu0 %v402
      %2233 = vmatpush1.bf16.msra.mxu0 %v401
      %2234 = vmatprep.subr.bf16.mxu0 %v406
      %2235 = vmatpush1.bf16.msra.mxu0 %v405
      %2236 = vmatprep.subr.bf16.mxu0 %v410
      %2237 = vmatpush1.bf16.msra.mxu0 %v409
      %2238 = vmatprep.subr.bf16.mxu0 %v414
      %2239 = vmatpush1.bf16.msra.mxu0 %v413
      %2240 = vmatprep.subr.bf16.mxu0 %v418
      %2241 = vmatpush1.bf16.msra.mxu0 %v417
      %2242 = vmatprep.subr.bf16.mxu0 %v422
      %2243 = vmatpush1.bf16.msra.mxu0 %v421
      %2244 = vmatprep.subr.bf16.mxu0 %v426
      %2245 = vmatpush1.bf16.msra.mxu0 %v425
      %2246 = vmatprep.subr.bf16.mxu0 0
      %2247 = vmatpush1.bf16.msra.mxu0 0
      %2248 = vmatprep.subr.bf16.mxu0 0
      %2249 = vmatpush1.bf16.msra.mxu0 0
      %2250 = vmatprep.subr.bf16.mxu0 0
      %2251 = vmatpush1.bf16.msra.mxu0 0
      %2252 = vmatprep.subr.bf16.mxu0 0
      %2253 = vmatpush1.bf16.msra.mxu0 0
      %2254 = vmatprep.subr.bf16.mxu0 0
      %2255 = vmatpush1.bf16.msra.mxu0 0
      %2256 = vmatprep.subr.bf16.mxu0 0
      %2257 = vmatpush1.bf16.msra.mxu0 0
      %2258 = vmatprep.subr.bf16.mxu0 0
      %2259 = vmatpush1.bf16.msra.mxu0 0
      %2260 = vmatprep.subr.bf16.mxu0 0
      %2261 = vmatpush1.bf16.msra.mxu0 0
      %2262 = vmatprep.mubr.bf16.mxu0 0
      %2263 = vmatmul.mubr.bf16.gmra.mrb[0].mxu0 %v2222
      %v2264 = vpop.f32.mrb[0].mxu0
      %v2265 = vadd.f32 0.0, %v2264
      %v2266 = vpop.f32.mrb[0].mxu0
      %v2267 = vadd.f32 0.0, %v2266
      %v2268 = vpop.f32.mrb[0].mxu0
      %v2269 = vpop.f32.mrb[0].mxu0
      %2270 = vdwg.mxu0
      %2271 = vmatprep.subr.bf16.mxu0 %v400
      %2272 = vmatpush1.bf16.msra.mxu0 %v399
      %2273 = vmatprep.subr.bf16.mxu0 %v404
      %2274 = vmatpush1.bf16.msra.mxu0 %v403
      %2275 = vmatprep.subr.bf16.mxu0 %v408
      %2276 = vmatpush1.bf16.msra.mxu0 %v407
      %2277 = vmatprep.subr.bf16.mxu0 %v412
      %2278 = vmatpush1.bf16.msra.mxu0 %v411
      %2279 = vmatprep.subr.bf16.mxu0 %v416
      %2280 = vmatpush1.bf16.msra.mxu0 %v415
      %2281 = vmatprep.subr.bf16.mxu0 %v420
      %2282 = vmatpush1.bf16.msra.mxu0 %v419
      %2283 = vmatprep.subr.bf16.mxu0 %v424
      %2284 = vmatpush1.bf16.msra.mxu0 %v423
      %2285 = vmatprep.subr.bf16.mxu0 %v428
      %2286 = vmatpush1.bf16.msra.mxu0 %v427
      %2287 = vmatprep.subr.bf16.mxu0 0
      %2288 = vmatpush1.bf16.msra.mxu0 0
      %2289 = vmatprep.subr.bf16.mxu0 0
      %2290 = vmatpush1.bf16.msra.mxu0 0
      %2291 = vmatprep.subr.bf16.mxu0 0
      %2292 = vmatpush1.bf16.msra.mxu0 0
      %2293 = vmatprep.subr.bf16.mxu0 0
      %2294 = vmatpush1.bf16.msra.mxu0 0
      %2295 = vmatprep.subr.bf16.mxu0 0
      %2296 = vmatpush1.bf16.msra.mxu0 0
      %2297 = vmatprep.subr.bf16.mxu0 0
      %2298 = vmatpush1.bf16.msra.mxu0 0
      %2299 = vmatprep.subr.bf16.mxu0 0
      %2300 = vmatpush1.bf16.msra.mxu0 0
      %2301 = vmatprep.subr.bf16.mxu0 0
      %2302 = vmatpush1.bf16.msra.mxu0 0
      %2303 = vmatprep.mubr.bf16.mxu0 0
      %2304 = vmatmul.mubr.bf16.gmra.mrb[0].mxu0 %v2222
      %v2305 = vpop.f32.mrb[0].mxu0
      %v2306 = vadd.f32 0.0, %v2305
      %v2307 = vpop.f32.mrb[0].mxu0
      %v2308 = vadd.f32 0.0, %v2307
      %v2309 = vpop.f32.mrb[0].mxu0
      %v2310 = vpop.f32.mrb[0].mxu0
      %2311 = vdwg.mxu0
      %v2312 = vadd.f32 %v2226, %v2265
      %v2313 = vadd.f32 %v2227, %v2267
      %v2314 = vadd.f32 %v2228, %v2306
      %v2315 = vadd.f32 %v2229, %v2308
      %v2316 = vxor.u32 %v2312, 2147483648
      %v2317 = vmul.f32 %v2316, 1.442695
      %v2318 = vpow.pop %v2317
      %v2319 = vadd.f32 %v2318, 1.0
      %v2320 = vrcp.pop %v2319
      %v2321 = vmul.f32 1.0, %v2320
      %v2322 = vxor.u32 %v2313, 2147483648
      %v2323 = vmul.f32 %v2322, 1.442695
      %v2324 = vpow.pop %v2323
      %v2325 = vadd.f32 %v2324, 1.0
      %v2326 = vrcp.pop %v2325
      %v2327 = vmul.f32 1.0, %v2326
      %v2328 = vtanh.pop %v2314
      %v2329 = vxor.u32 %v2315, 2147483648
      %v2330 = vmul.f32 %v2329, 1.442695
      %v2331 = vpow.pop %v2330
      %v2332 = vadd.f32 %v2331, 1.0
      %v2333 = vrcp.pop %v2332
      %v2334 = vmul.f32 1.0, %v2333
      %v2335 = vmul.f32 %v2327, %v2219
      %v2336 = vmul.f32 %v2321, %v2328
      %v2337 = vadd.f32 %v2335, %v2336
      %v2338 = vtanh.pop %v2337
      %v2339 = vmul.f32 %v2334, %v2338
      %v2340 = vpack.c.bf16 %v2339, %v2339
      %s2341 = scalar_lea.vmem %s251, 60
      %2342 = vst [vmem:[%s2341] sm:$0xf] %v2340
      %2343 = vst [vmem:[#allocation2] sm:$0xff] %v2339
      %2344 = vst [vmem:[#allocation3] sm:$0xff] %v2337
      %p2345 = scmp.eq.s32.totalorder %s18, 1
      // Predicated region
      $region41: #{rnn_model_forward.7} parent=35 // pred_check
        %p2346 = pneg %p2345
      $region42: #{rnn_model_forward.7} parent=35 // pred_check_branch
        %2348 = sbr.rel (%p2346) target = $region44
      $region43: #{rnn_model_forward.7} parent=35 // pred_region
        %2349 = vst [vmem:[%s5] sm:$0xff] %v2339
        %2350 = vst [vmem:[%s6] sm:$0xff] %v2337
      $region44: #{rnn_model_forward.7} parent=35 // pred_fallthru
        _
      %s2351 = smul.u32 16, %s18
      %p2352 = scmp.lt.s32.totalorder %s2351, 31
      %s2353 = scalar_select %p2352, %s2351, 31
      %s2354 = smul.addr %s2353, 4
      %s2355 = scalar_lea.vmem %s4, %s2354
      // Predicated region
      $region45: #{rnn_model_forward.7} parent=35 // pred_check
        %p2356 = pneg %p125
      $region46: #{rnn_model_forward.7} parent=35 // pred_check_branch
        %2358 = sbr.rel (%p2356) target = $region48
      $region47: #{rnn_model_forward.7} parent=35 // pred_region
        %s2359 = smul.u32 16, %s18
      $region48: #{rnn_model_forward.7} parent=35 // pred_fallthru
        _
      // Predicated region
      $region49: #{rnn_model_forward.7} parent=35 // pred_check
        %p2360 = pneg %p146
      $region50: #{rnn_model_forward.7} parent=35 // pred_check_branch
        %2362 = sbr.rel (%p2360) target = $region52
      $region51: #{rnn_model_forward.7} parent=35 // pred_region
        _
      $region52: #{rnn_model_forward.7} parent=35 // pred_fallthru
        _
      // Predicated region
      $region53: #{rnn_model_forward.7} parent=35 // pred_check
        %p2363 = pneg %p167
      $region54: #{rnn_model_forward.7} parent=35 // pred_check_branch
        %2365 = sbr.rel (%p2363) target = $region56
      $region55: #{rnn_model_forward.7} parent=35 // pred_region
        _
      $region56: #{rnn_model_forward.7} parent=35 // pred_fallthru
        _
      // Predicated region
      $region57: #{rnn_model_forward.7} parent=35 // pred_check
        %p2366 = pneg %p146
      $region58: #{rnn_model_forward.7} parent=35 // pred_check_branch
        %2368 = sbr.rel (%p2366) target = $region60
      $region59: #{rnn_model_forward.7} parent=35 // pred_region
        _
      $region60: #{rnn_model_forward.7} parent=35 // pred_fallthru
        _
      // Predicated region
      $region61: #{rnn_model_forward.7} parent=35 // pred_check
        %p2369 = pneg %p167
      $region62: #{rnn_model_forward.7} parent=35 // pred_check_branch
        %2371 = sbr.rel (%p2369) target = $region64
      $region63: #{rnn_model_forward.7} parent=35 // pred_region
        _
      $region64: #{rnn_model_forward.7} parent=35 // pred_fallthru
        _
    $region36: #{rnn_model_forward.7} parent=5 // pred_fallthru
      _
    %p2372 = scmp.le.s32.totalorder 2, %s13
    // Predicated region
    $region65: #{rnn_model_forward.7} parent=5 // pred_check
      %p2373 = pneg %p2372
    $region66: #{rnn_model_forward.7} parent=5 // pred_check_branch
      %2375 = sbr.rel (%p2373) target = $region68
    $region67: #{rnn_model_forward.7} parent=5 // pred_region
      %s2376 = ssub.s32 %s13, 2
      // Predicated region
      $region69: #{rnn_model_forward.7} parent=67 // pred_check
        %p2377 = pneg %p131
      $region70: #{rnn_model_forward.7} parent=67 // pred_check_branch
        %2379 = sbr.rel (%p2377) target = $region72
      $region71: #{rnn_model_forward.7} parent=67 // pred_region
        %s2380 = smul.u32 16, %s19
        %p2381 = scmp.lt.s32.totalorder %s2380, 31
        %s2382 = scalar_select %p2381, %s2380, 31
        %s2383 = smul.addr %s2382, 4
        %s2384 = scalar_lea.vmem %s4, %s2383
      $region72: #{rnn_model_forward.7} parent=67 // pred_fallthru
        _
    $region68: #{rnn_model_forward.7} parent=5 // pred_fallthru
      _
  $region6: #{rnn_model_forward.7} parent=0 // loop_footer
    %s17 = sadd.s32 1, %s13
  $region7: #{rnn_model_forward.7} parent=0 // loop_footer_branch
    %12 = sbr.rel target = $region3
  $region8: #{rnn_model_forward.7} parent=0 // loop_exit
    _

</llo_original>
